<compile_context>
chip_gen: v7x
topology: tpu7x:2x2x1
jax: 0.10.0
libtpu: 0.0.40
codegen_flags: <defaults>
</compile_context>

<pallas_src>
import functools

import jax
import jax.numpy as jnp
from jax.experimental import pallas as pl
from jax.experimental.pallas import tpu as pltpu


# ----------------------------------------------------------------------------
# Fused bidirectional LSTM layer kernel (optionally with the MLP head fused).
# Runs once (no grid); the whole sequence lives in VMEM for these small shapes.
# ----------------------------------------------------------------------------
def _bilstm_layer_kernel(*refs, T, B, H, with_head):
    if with_head:
        (x_ref, w_in_ref, b_in_ref, whh_f_ref, whh_r_ref,
         fc1_w_ref, fc1_b_ref, fc2_w_ref, fc2_b_ref,
         hseq_ref, out_ref, gx_sc) = refs
    else:
        (x_ref, w_in_ref, b_in_ref, whh_f_ref, whh_r_ref,
         hseq_ref, gx_sc) = refs

    Din = x_ref.shape[-1]

    # (1) Hoisted input projection for ALL timesteps and BOTH directions, bias
    # folded in once:  gx[:, 0:4H] = fwd gates precursor, gx[:, 4H:8H] = rev.
    x_flat = x_ref[...].reshape(T * B, Din)
    gx_sc[...] = (
        jnp.dot(x_flat, w_in_ref[...], preferred_element_type=jnp.float32)
        + b_in_ref[...])

    whh_f = whh_f_ref[...]      # (H, 4H)
    whh_r = whh_r_ref[...]      # (H, 4H)

    def cell(gates, c_prev):
        # PyTorch gate order: i, f, g, o.  Apply sigmoid/tanh to the full
        # (B, 4H) tile (EUP slot), then take the per-gate lane slices.
        sig = jax.nn.sigmoid(gates)
        tnh = jnp.tanh(gates)
        i = sig[:, 0 * H:1 * H]
        f = sig[:, 1 * H:2 * H]
        g = tnh[:, 2 * H:3 * H]
        o = sig[:, 3 * H:4 * H]
        c_new = f * c_prev + i * g
        h_new = o * jnp.tanh(c_new)
        return h_new, c_new

    def _row(t_idx):
        r = t_idx * B
        if B % 8 == 0:
            r = pl.multiple_of(r, 8)
        return r

    def step(t, carry):
        h_f, c_f, h_r, c_r = carry

        # forward direction processes timestep t
        g_f = (gx_sc[pl.ds(_row(t), B), 0:4 * H]
               + jnp.dot(h_f, whh_f, preferred_element_type=jnp.float32))
        h_f, c_f = cell(g_f, c_f)
        hseq_ref[t, :, 0:H] = h_f

        # reverse direction processes timestep T-1-t in the same iteration
        tr = T - 1 - t
        g_r = (gx_sc[pl.ds(_row(tr), B), 4 * H:8 * H]
               + jnp.dot(h_r, whh_r, preferred_element_type=jnp.float32))
        h_r, c_r = cell(g_r, c_r)
        hseq_ref[tr, :, H:2 * H] = h_r

        return (h_f, c_f, h_r, c_r)

    zeros = jnp.zeros((B, H), jnp.float32)
    jax.lax.fori_loop(0, T, step, (zeros, zeros, zeros, zeros), unroll=True)

    if with_head:
        # Fused MLP head on seq[:, -1, :]:
        #   fwd half = final forward carry, rev half was written at loop t==0.
        feats = hseq_ref[T - 1]                       # (B, 2H)
        h1 = (jnp.dot(feats, fc1_w_ref[...],
                      preferred_element_type=jnp.float32) + fc1_b_ref[...])
        h1 = jnp.maximum(h1, 0.0)
        # Dropout(p=0.5) is the identity in eval mode.
        out_ref[...] = (jnp.dot(h1, fc2_w_ref[...],
                                preferred_element_type=jnp.float32)
                        + fc2_b_ref[...])


def bidirectional_lstm_layer(x_tmajor, p, head=None):
    """x_tmajor: (T, B, Din) f32.  Returns (T, B, 2H), or (B, out) if `head`."""
    T, B, Din = x_tmajor.shape
    H = p["w_hh"].shape[1]                      # w_hh: (4H, H)

    # Concatenate the two directions' input weights / biases once (glue).
    w_in = jnp.concatenate([p["w_ih"].T, p["w_ih_r"].T], axis=1)     # (Din, 8H)
    b_in = jnp.concatenate([p["b_ih"] + p["b_hh"],
                            p["b_ih_r"] + p["b_hh_r"]]).reshape(1, 8 * H)
    whh_f = p["w_hh"].T                                              # (H, 4H)
    whh_r = p["w_hh_r"].T                                            # (H, 4H)

    kernel = functools.partial(_bilstm_layer_kernel, T=T, B=B, H=H,
                               with_head=head is not None)
    scratch = [pltpu.VMEM((T * B, 8 * H), jnp.float32)]   # projected gates

    if head is None:
        return pl.pallas_call(
            kernel,
            out_shape=jax.ShapeDtypeStruct((T, B, 2 * H), jnp.float32),
            scratch_shapes=scratch,
        )(x_tmajor, w_in, b_in, whh_f, whh_r)

    fc1_w, fc1_b, fc2_w, fc2_b = head
    out_size = fc2_w.shape[0]
    _, out = pl.pallas_call(
        kernel,
        out_shape=(jax.ShapeDtypeStruct((T, B, 2 * H), jnp.float32),
                   jax.ShapeDtypeStruct((B, out_size), jnp.float32)),
        scratch_shapes=scratch,
    )(x_tmajor, w_in, b_in, whh_f, whh_r,
      fc1_w.T, fc1_b.reshape(1, -1), fc2_w.T, fc2_b.reshape(1, -1))
    return out


# ----------------------------------------------------------------------------
# Parameter init (deterministic, PyTorch-style uniform ranges).
# ----------------------------------------------------------------------------
def _uniform(key, shape, k):
    return jax.random.uniform(key, shape, jnp.float32, minval=-k, maxval=k)


def init_lstm_layer(key, input_size, hidden):
    k = 1.0 / jnp.sqrt(hidden)
    keys = jax.random.split(key, 8)
    return {
        "w_ih":   _uniform(keys[0], (4 * hidden, input_size), k),
        "w_hh":   _uniform(keys[1], (4 * hidden, hidden), k),
        "b_ih":   _uniform(keys[2], (4 * hidden,), k),
        "b_hh":   _uniform(keys[3], (4 * hidden,), k),
        "w_ih_r": _uniform(keys[4], (4 * hidden, input_size), k),
        "w_hh_r": _uniform(keys[5], (4 * hidden, hidden), k),
        "b_ih_r": _uniform(keys[6], (4 * hidden,), k),
        "b_hh_r": _uniform(keys[7], (4 * hidden,), k),
    }


def init_params(key, vocab_size, emb_dim, lstm_dim, output_size):
    keys = jax.random.split(key, 8)
    emb = jax.random.normal(keys[0], (vocab_size, emb_dim), jnp.float32)
    emb = emb.at[0].set(0.0)  # padding_idx=0
    # pos_embdding exists in __init__ but is unused in forward(); omitted.
    return {
        "emb": emb,
        "lstm1": init_lstm_layer(keys[1], emb_dim, lstm_dim),
        "lstm2": init_lstm_layer(keys[2], 2 * lstm_dim, lstm_dim),
        "lstm3": init_lstm_layer(keys[3], 2 * lstm_dim, lstm_dim),
        "fc1_w": _uniform(keys[4], (128, 2 * lstm_dim),
                          1.0 / jnp.sqrt(2 * lstm_dim)),
        "fc1_b": _uniform(keys[5], (128,), 1.0 / jnp.sqrt(2 * lstm_dim)),
        "fc2_w": _uniform(keys[6], (output_size, 128), 1.0 / jnp.sqrt(128)),
        "fc2_b": _uniform(keys[7], (output_size,), 1.0 / jnp.sqrt(128)),
    }


# ----------------------------------------------------------------------------
# Full forward pass (eval mode).
# ----------------------------------------------------------------------------
def _round_up(n, m):
    return ((n + m - 1) // m) * m


def lstm_model_forward(params, src):
    # src: (B, T) int32 tokens.
    B, T = src.shape
    B_pad = _round_up(B, 8)                      # fill sublanes; pad with token 0
    if B_pad != B:
        src = jnp.pad(src, ((0, B_pad - B), (0, 0)))
    emb = jnp.take(params["emb"], src, axis=0)   # (B_pad, T, E)   [glue gather]
    x = jnp.transpose(emb, (1, 0, 2))            # (T, B_pad, E)   time-major
    x = bidirectional_lstm_layer(x, params["lstm1"])     # (T, B_pad, 2H)
    x = bidirectional_lstm_layer(x, params["lstm2"])     # (T, B_pad, 2H)
    out = bidirectional_lstm_layer(                      # fused last layer + head
        x, params["lstm3"],
        head=(params["fc1_w"], params["fc1_b"],
              params["fc2_w"], params["fc2_b"]))         # (B_pad, output_size)
    return out[:B]


if __name__ == "__main__":
    B, T = 2, 8
    vocab_size, emb_dim, lstm_dim, output_size = 50, 32, 32, 5

    key = jax.random.PRNGKey(0)
    pkey, dkey = jax.random.split(key)
    params = init_params(pkey, vocab_size, emb_dim, lstm_dim, output_size)
    src = jax.random.randint(dkey, (B, T), 0, vocab_size, dtype=jnp.int32)

    out = jax.jit(lstm_model_forward)(params, src)
    jax.block_until_ready(out)
    assert out.shape == (B, output_size)
    print("KERNEL_OK")
</pallas_src>

<mosaic_0001>
module attributes {stable_mosaic.version = 11 : i64} {
  func.func @_bilstm_layer_kernel(%arg0: memref<8x8x32xf32, #tpu.memory_space<vmem>>, %arg1: memref<32x256xf32, #tpu.memory_space<vmem>>, %arg2: memref<1x256xf32, #tpu.memory_space<vmem>>, %arg3: memref<32x128xf32, #tpu.memory_space<vmem>>, %arg4: memref<32x128xf32, #tpu.memory_space<vmem>>, %arg5: memref<8x8x64xf32, #tpu.memory_space<vmem>>, %arg6: memref<64x256xf32, #tpu.memory_space<vmem>>) attributes {dimension_semantics = [], scalar_prefetch = 0 : i64, scratch_operands = 1 : i64, tpu.core_type = #tpu.core_type<tc>} {
    %c0 = arith.constant 0 : index
    %c0_0 = arith.constant 0 : index
    %c0_1 = arith.constant 0 : index
    %0 = vector.load %arg0[%c0, %c0_0, %c0_1] : memref<8x8x32xf32, #tpu.memory_space<vmem>>, vector<8x8x32xf32>
    %1 = vector.shape_cast %0 : vector<8x8x32xf32> to vector<64x32xf32>
    %c0_2 = arith.constant 0 : index
    %c0_3 = arith.constant 0 : index
    %2 = vector.load %arg1[%c0_2, %c0_3] : memref<32x256xf32, #tpu.memory_space<vmem>>, vector<32x256xf32>
    %cst = arith.constant dense<0.000000e+00> : vector<64x256xf32>
    %3 = tpu.matmul %1, %2, %cst {dimension_numbers = #tpu.dot_dimension_numbers<[1], [0], [0], [1], [0, 0, 1, 1], [], []>} : vector<64x32xf32>, vector<32x256xf32>, vector<64x256xf32> -> vector<64x256xf32>
    %c0_4 = arith.constant 0 : index
    %c0_5 = arith.constant 0 : index
    %4 = vector.load %arg2[%c0_4, %c0_5] : memref<1x256xf32, #tpu.memory_space<vmem>>, vector<1x256xf32>
    %5 = vector.broadcast %4 : vector<1x256xf32> to vector<64x256xf32>
    %6 = arith.addf %3, %5 : vector<64x256xf32>
    %c0_6 = arith.constant 0 : index
    %c0_7 = arith.constant 0 : index
    %7 = vector.load %arg6[%c0_6, %c0_7] : memref<64x256xf32, #tpu.memory_space<vmem>>, vector<64x256xf32>
    tpu.vector_store %arg6[%c0_6, %c0_7], %6 {strides = array<i32>} : memref<64x256xf32, #tpu.memory_space<vmem>>, vector<64x256xf32>,
    %c0_8 = arith.constant 0 : index
    %c0_9 = arith.constant 0 : index
    %8 = vector.load %arg3[%c0_8, %c0_9] : memref<32x128xf32, #tpu.memory_space<vmem>>, vector<32x128xf32>
    %c0_10 = arith.constant 0 : index
    %c0_11 = arith.constant 0 : index
    %9 = vector.load %arg4[%c0_10, %c0_11] : memref<32x128xf32, #tpu.memory_space<vmem>>, vector<32x128xf32>
    %cst_12 = arith.constant 0.000000e+00 : f32
    %10 = vector.broadcast %cst_12 : f32 to vector<8x32xf32>
    %c0_i32 = arith.constant 0 : i32
    %c8_i32 = arith.constant 8 : i32
    %11 = arith.muli %c0_i32, %c8_i32 : i32
    %12 = tpu.assume_multiple %11, 8 : i32
    %13 = arith.index_cast %12 : i32 to index
    %c0_13 = arith.constant 0 : index
    %14 = vector.load %arg6[%13, %c0_13] : memref<64x256xf32, #tpu.memory_space<vmem>>, vector<8x128xf32>
    %cst_14 = arith.constant dense<0.000000e+00> : vector<8x128xf32>
    %15 = tpu.matmul %10, %8, %cst_14 {dimension_numbers = #tpu.dot_dimension_numbers<[1], [0], [0], [1], [0, 0, 1, 1], [], []>} : vector<8x32xf32>, vector<32x128xf32>, vector<8x128xf32> -> vector<8x128xf32>
    %16 = arith.addf %14, %15 : vector<8x128xf32>
    %17 = arith.negf %16 : vector<8x128xf32>
    %18 = math.exp %17 : vector<8x128xf32>
    %cst_15 = arith.constant 1.000000e+00 : f32
    %19 = vector.broadcast %cst_15 : f32 to vector<8x128xf32>
    %20 = arith.addf %19, %18 : vector<8x128xf32>
    %21 = arith.divf %19, %20 : vector<8x128xf32>
    %22 = math.tanh %16 : vector<8x128xf32>
    %23 = vector.extract_strided_slice %21 {offsets = [0, 0], sizes = [8, 32], strides = [1, 1]} : vector<8x128xf32> to vector<8x32xf32>
    %24 = vector.extract_strided_slice %21 {offsets = [0, 32], sizes = [8, 32], strides = [1, 1]} : vector<8x128xf32> to vector<8x32xf32>
    %25 = vector.extract_strided_slice %22 {offsets = [0, 64], sizes = [8, 32], strides = [1, 1]} : vector<8x128xf32> to vector<8x32xf32>
    %26 = vector.extract_strided_slice %21 {offsets = [0, 96], sizes = [8, 32], strides = [1, 1]} : vector<8x128xf32> to vector<8x32xf32>
    %27 = arith.mulf %24, %10 : vector<8x32xf32>
    %28 = arith.mulf %23, %25 : vector<8x32xf32>
    %29 = arith.addf %27, %28 : vector<8x32xf32>
    %30 = math.tanh %29 : vector<8x32xf32>
    %31 = arith.mulf %26, %30 : vector<8x32xf32>
    %32 = arith.index_cast %c0_i32 : i32 to index
    %c0_16 = arith.constant 0 : index
    %c0_17 = arith.constant 0 : index
    %33 = vector.load %arg5[%32, %c0_16, %c0_17] : memref<8x8x64xf32, #tpu.memory_space<vmem>>, vector<1x8x32xf32>
    %34 = vector.shape_cast %33 : vector<1x8x32xf32> to vector<8x32xf32>
    %35 = vector.shape_cast %31 : vector<8x32xf32> to vector<1x8x32xf32>
    tpu.vector_store %arg5[%32, %c0_16, %c0_17], %35 {strides = array<i32>} : memref<8x8x64xf32, #tpu.memory_space<vmem>>, vector<1x8x32xf32>,
    %c7_i32 = arith.constant 7 : i32
    %36 = arith.subi %c7_i32, %c0_i32 : i32
    %c8_i32_18 = arith.constant 8 : i32
    %37 = arith.muli %36, %c8_i32_18 : i32
    %38 = tpu.assume_multiple %37, 8 : i32
    %39 = arith.index_cast %38 : i32 to index
    %c128 = arith.constant 128 : index
    %40 = vector.load %arg6[%39, %c128] : memref<64x256xf32, #tpu.memory_space<vmem>>, vector<8x128xf32>
    %cst_19 = arith.constant dense<0.000000e+00> : vector<8x128xf32>
    %41 = tpu.matmul %10, %9, %cst_19 {dimension_numbers = #tpu.dot_dimension_numbers<[1], [0], [0], [1], [0, 0, 1, 1], [], []>} : vector<8x32xf32>, vector<32x128xf32>, vector<8x128xf32> -> vector<8x128xf32>
    %42 = arith.addf %40, %41 : vector<8x128xf32>
    %43 = arith.negf %42 : vector<8x128xf32>
    %44 = math.exp %43 : vector<8x128xf32>
    %cst_20 = arith.constant 1.000000e+00 : f32
    %45 = vector.broadcast %cst_20 : f32 to vector<8x128xf32>
    %46 = arith.addf %45, %44 : vector<8x128xf32>
    %47 = arith.divf %45, %46 : vector<8x128xf32>
    %48 = math.tanh %42 : vector<8x128xf32>
    %49 = vector.extract_strided_slice %47 {offsets = [0, 0], sizes = [8, 32], strides = [1, 1]} : vector<8x128xf32> to vector<8x32xf32>
    %50 = vector.extract_strided_slice %47 {offsets = [0, 32], sizes = [8, 32], strides = [1, 1]} : vector<8x128xf32> to vector<8x32xf32>
    %51 = vector.extract_strided_slice %48 {offsets = [0, 64], sizes = [8, 32], strides = [1, 1]} : vector<8x128xf32> to vector<8x32xf32>
    %52 = vector.extract_strided_slice %47 {offsets = [0, 96], sizes = [8, 32], strides = [1, 1]} : vector<8x128xf32> to vector<8x32xf32>
    %53 = arith.mulf %50, %10 : vector<8x32xf32>
    %54 = arith.mulf %49, %51 : vector<8x32xf32>
    %55 = arith.addf %53, %54 : vector<8x32xf32>
    %56 = math.tanh %55 : vector<8x32xf32>
    %57 = arith.mulf %52, %56 : vector<8x32xf32>
    %58 = arith.index_cast %36 : i32 to index
    %c0_21 = arith.constant 0 : index
    %c32 = arith.constant 32 : index
    %59 = vector.load %arg5[%58, %c0_21, %c32] : memref<8x8x64xf32, #tpu.memory_space<vmem>>, vector<1x8x32xf32>
    %60 = vector.shape_cast %59 : vector<1x8x32xf32> to vector<8x32xf32>
    %61 = vector.shape_cast %57 : vector<8x32xf32> to vector<1x8x32xf32>
    tpu.vector_store %arg5[%58, %c0_21, %c32], %61 {strides = array<i32>} : memref<8x8x64xf32, #tpu.memory_space<vmem>>, vector<1x8x32xf32>,
    %c1_i32 = arith.constant 1 : i32
    %c8_i32_22 = arith.constant 8 : i32
    %62 = arith.muli %c1_i32, %c8_i32_22 : i32
    %63 = tpu.assume_multiple %62, 8 : i32
    %64 = arith.index_cast %63 : i32 to index
    %c0_23 = arith.constant 0 : index
    %65 = vector.load %arg6[%64, %c0_23] : memref<64x256xf32, #tpu.memory_space<vmem>>, vector<8x128xf32>
    %cst_24 = arith.constant dense<0.000000e+00> : vector<8x128xf32>
    %66 = tpu.matmul %31, %8, %cst_24 {dimension_numbers = #tpu.dot_dimension_numbers<[1], [0], [0], [1], [0, 0, 1, 1], [], []>} : vector<8x32xf32>, vector<32x128xf32>, vector<8x128xf32> -> vector<8x128xf32>
    %67 = arith.addf %65, %66 : vector<8x128xf32>
    %68 = arith.negf %67 : vector<8x128xf32>
    %69 = math.exp %68 : vector<8x128xf32>
    %cst_25 = arith.constant 1.000000e+00 : f32
    %70 = vector.broadcast %cst_25 : f32 to vector<8x128xf32>
    %71 = arith.addf %70, %69 : vector<8x128xf32>
    %72 = arith.divf %70, %71 : vector<8x128xf32>
    %73 = math.tanh %67 : vector<8x128xf32>
    %74 = vector.extract_strided_slice %72 {offsets = [0, 0], sizes = [8, 32], strides = [1, 1]} : vector<8x128xf32> to vector<8x32xf32>
    %75 = vector.extract_strided_slice %72 {offsets = [0, 32], sizes = [8, 32], strides = [1, 1]} : vector<8x128xf32> to vector<8x32xf32>
    %76 = vector.extract_strided_slice %73 {offsets = [0, 64], sizes = [8, 32], strides = [1, 1]} : vector<8x128xf32> to vector<8x32xf32>
    %77 = vector.extract_strided_slice %72 {offsets = [0, 96], sizes = [8, 32], strides = [1, 1]} : vector<8x128xf32> to vector<8x32xf32>
    %78 = arith.mulf %75, %29 : vector<8x32xf32>
    %79 = arith.mulf %74, %76 : vector<8x32xf32>
    %80 = arith.addf %78, %79 : vector<8x32xf32>
    %81 = math.tanh %80 : vector<8x32xf32>
    %82 = arith.mulf %77, %81 : vector<8x32xf32>
    %83 = arith.index_cast %c1_i32 : i32 to index
    %c0_26 = arith.constant 0 : index
    %c0_27 = arith.constant 0 : index
    %84 = vector.load %arg5[%83, %c0_26, %c0_27] : memref<8x8x64xf32, #tpu.memory_space<vmem>>, vector<1x8x32xf32>
    %85 = vector.shape_cast %84 : vector<1x8x32xf32> to vector<8x32xf32>
    %86 = vector.shape_cast %82 : vector<8x32xf32> to vector<1x8x32xf32>
    tpu.vector_store %arg5[%83, %c0_26, %c0_27], %86 {strides = array<i32>} : memref<8x8x64xf32, #tpu.memory_space<vmem>>, vector<1x8x32xf32>,
    %c7_i32_28 = arith.constant 7 : i32
    %87 = arith.subi %c7_i32_28, %c1_i32 : i32
    %c8_i32_29 = arith.constant 8 : i32
    %88 = arith.muli %87, %c8_i32_29 : i32
    %89 = tpu.assume_multiple %88, 8 : i32
    %90 = arith.index_cast %89 : i32 to index
    %c128_30 = arith.constant 128 : index
    %91 = vector.load %arg6[%90, %c128_30] : memref<64x256xf32, #tpu.memory_space<vmem>>, vector<8x128xf32>
    %cst_31 = arith.constant dense<0.000000e+00> : vector<8x128xf32>
    %92 = tpu.matmul %57, %9, %cst_31 {dimension_numbers = #tpu.dot_dimension_numbers<[1], [0], [0], [1], [0, 0, 1, 1], [], []>} : vector<8x32xf32>, vector<32x128xf32>, vector<8x128xf32> -> vector<8x128xf32>
    %93 = arith.addf %91, %92 : vector<8x128xf32>
    %94 = arith.negf %93 : vector<8x128xf32>
    %95 = math.exp %94 : vector<8x128xf32>
    %cst_32 = arith.constant 1.000000e+00 : f32
    %96 = vector.broadcast %cst_32 : f32 to vector<8x128xf32>
    %97 = arith.addf %96, %95 : vector<8x128xf32>
    %98 = arith.divf %96, %97 : vector<8x128xf32>
    %99 = math.tanh %93 : vector<8x128xf32>
    %100 = vector.extract_strided_slice %98 {offsets = [0, 0], sizes = [8, 32], strides = [1, 1]} : vector<8x128xf32> to vector<8x32xf32>
    %101 = vector.extract_strided_slice %98 {offsets = [0, 32], sizes = [8, 32], strides = [1, 1]} : vector<8x128xf32> to vector<8x32xf32>
    %102 = vector.extract_strided_slice %99 {offsets = [0, 64], sizes = [8, 32], strides = [1, 1]} : vector<8x128xf32> to vector<8x32xf32>
    %103 = vector.extract_strided_slice %98 {offsets = [0, 96], sizes = [8, 32], strides = [1, 1]} : vector<8x128xf32> to vector<8x32xf32>
    %104 = arith.mulf %101, %55 : vector<8x32xf32>
    %105 = arith.mulf %100, %102 : vector<8x32xf32>
    %106 = arith.addf %104, %105 : vector<8x32xf32>
    %107 = math.tanh %106 : vector<8x32xf32>
    %108 = arith.mulf %103, %107 : vector<8x32xf32>
    %109 = arith.index_cast %87 : i32 to index
    %c0_33 = arith.constant 0 : index
    %c32_34 = arith.constant 32 : index
    %110 = vector.load %arg5[%109, %c0_33, %c32_34] : memref<8x8x64xf32, #tpu.memory_space<vmem>>, vector<1x8x32xf32>
    %111 = vector.shape_cast %110 : vector<1x8x32xf32> to vector<8x32xf32>
    %112 = vector.shape_cast %108 : vector<8x32xf32> to vector<1x8x32xf32>
    tpu.vector_store %arg5[%109, %c0_33, %c32_34], %112 {strides = array<i32>} : memref<8x8x64xf32, #tpu.memory_space<vmem>>, vector<1x8x32xf32>,
    %c2_i32 = arith.constant 2 : i32
    %c8_i32_35 = arith.constant 8 : i32
    %113 = arith.muli %c2_i32, %c8_i32_35 : i32
    %114 = tpu.assume_multiple %113, 8 : i32
    %115 = arith.index_cast %114 : i32 to index
    %c0_36 = arith.constant 0 : index
    %116 = vector.load %arg6[%115, %c0_36] : memref<64x256xf32, #tpu.memory_space<vmem>>, vector<8x128xf32>
    %cst_37 = arith.constant dense<0.000000e+00> : vector<8x128xf32>
    %117 = tpu.matmul %82, %8, %cst_37 {dimension_numbers = #tpu.dot_dimension_numbers<[1], [0], [0], [1], [0, 0, 1, 1], [], []>} : vector<8x32xf32>, vector<32x128xf32>, vector<8x128xf32> -> vector<8x128xf32>
    %118 = arith.addf %116, %117 : vector<8x128xf32>
    %119 = arith.negf %118 : vector<8x128xf32>
    %120 = math.exp %119 : vector<8x128xf32>
    %cst_38 = arith.constant 1.000000e+00 : f32
    %121 = vector.broadcast %cst_38 : f32 to vector<8x128xf32>
    %122 = arith.addf %121, %120 : vector<8x128xf32>
    %123 = arith.divf %121, %122 : vector<8x128xf32>
    %124 = math.tanh %118 : vector<8x128xf32>
    %125 = vector.extract_strided_slice %123 {offsets = [0, 0], sizes = [8, 32], strides = [1, 1]} : vector<8x128xf32> to vector<8x32xf32>
    %126 = vector.extract_strided_slice %123 {offsets = [0, 32], sizes = [8, 32], strides = [1, 1]} : vector<8x128xf32> to vector<8x32xf32>
    %127 = vector.extract_strided_slice %124 {offsets = [0, 64], sizes = [8, 32], strides = [1, 1]} : vector<8x128xf32> to vector<8x32xf32>
    %128 = vector.extract_strided_slice %123 {offsets = [0, 96], sizes = [8, 32], strides = [1, 1]} : vector<8x128xf32> to vector<8x32xf32>
    %129 = arith.mulf %126, %80 : vector<8x32xf32>
    %130 = arith.mulf %125, %127 : vector<8x32xf32>
    %131 = arith.addf %129, %130 : vector<8x32xf32>
    %132 = math.tanh %131 : vector<8x32xf32>
    %133 = arith.mulf %128, %132 : vector<8x32xf32>
    %134 = arith.index_cast %c2_i32 : i32 to index
    %c0_39 = arith.constant 0 : index
    %c0_40 = arith.constant 0 : index
    %135 = vector.load %arg5[%134, %c0_39, %c0_40] : memref<8x8x64xf32, #tpu.memory_space<vmem>>, vector<1x8x32xf32>
    %136 = vector.shape_cast %135 : vector<1x8x32xf32> to vector<8x32xf32>
    %137 = vector.shape_cast %133 : vector<8x32xf32> to vector<1x8x32xf32>
    tpu.vector_store %arg5[%134, %c0_39, %c0_40], %137 {strides = array<i32>} : memref<8x8x64xf32, #tpu.memory_space<vmem>>, vector<1x8x32xf32>,
    %c7_i32_41 = arith.constant 7 : i32
    %138 = arith.subi %c7_i32_41, %c2_i32 : i32
    %c8_i32_42 = arith.constant 8 : i32
    %139 = arith.muli %138, %c8_i32_42 : i32
    %140 = tpu.assume_multiple %139, 8 : i32
    %141 = arith.index_cast %140 : i32 to index
    %c128_43 = arith.constant 128 : index
    %142 = vector.load %arg6[%141, %c128_43] : memref<64x256xf32, #tpu.memory_space<vmem>>, vector<8x128xf32>
    %cst_44 = arith.constant dense<0.000000e+00> : vector<8x128xf32>
    %143 = tpu.matmul %108, %9, %cst_44 {dimension_numbers = #tpu.dot_dimension_numbers<[1], [0], [0], [1], [0, 0, 1, 1], [], []>} : vector<8x32xf32>, vector<32x128xf32>, vector<8x128xf32> -> vector<8x128xf32>
    %144 = arith.addf %142, %143 : vector<8x128xf32>
    %145 = arith.negf %144 : vector<8x128xf32>
    %146 = math.exp %145 : vector<8x128xf32>
    %cst_45 = arith.constant 1.000000e+00 : f32
    %147 = vector.broadcast %cst_45 : f32 to vector<8x128xf32>
    %148 = arith.addf %147, %146 : vector<8x128xf32>
    %149 = arith.divf %147, %148 : vector<8x128xf32>
    %150 = math.tanh %144 : vector<8x128xf32>
    %151 = vector.extract_strided_slice %149 {offsets = [0, 0], sizes = [8, 32], strides = [1, 1]} : vector<8x128xf32> to vector<8x32xf32>
    %152 = vector.extract_strided_slice %149 {offsets = [0, 32], sizes = [8, 32], strides = [1, 1]} : vector<8x128xf32> to vector<8x32xf32>
    %153 = vector.extract_strided_slice %150 {offsets = [0, 64], sizes = [8, 32], strides = [1, 1]} : vector<8x128xf32> to vector<8x32xf32>
    %154 = vector.extract_strided_slice %149 {offsets = [0, 96], sizes = [8, 32], strides = [1, 1]} : vector<8x128xf32> to vector<8x32xf32>
    %155 = arith.mulf %152, %106 : vector<8x32xf32>
    %156 = arith.mulf %151, %153 : vector<8x32xf32>
    %157 = arith.addf %155, %156 : vector<8x32xf32>
    %158 = math.tanh %157 : vector<8x32xf32>
    %159 = arith.mulf %154, %158 : vector<8x32xf32>
    %160 = arith.index_cast %138 : i32 to index
    %c0_46 = arith.constant 0 : index
    %c32_47 = arith.constant 32 : index
    %161 = vector.load %arg5[%160, %c0_46, %c32_47] : memref<8x8x64xf32, #tpu.memory_space<vmem>>, vector<1x8x32xf32>
    %162 = vector.shape_cast %161 : vector<1x8x32xf32> to vector<8x32xf32>
    %163 = vector.shape_cast %159 : vector<8x32xf32> to vector<1x8x32xf32>
    tpu.vector_store %arg5[%160, %c0_46, %c32_47], %163 {strides = array<i32>} : memref<8x8x64xf32, #tpu.memory_space<vmem>>, vector<1x8x32xf32>,
    %c3_i32 = arith.constant 3 : i32
    %c8_i32_48 = arith.constant 8 : i32
    %164 = arith.muli %c3_i32, %c8_i32_48 : i32
    %165 = tpu.assume_multiple %164, 8 : i32
    %166 = arith.index_cast %165 : i32 to index
    %c0_49 = arith.constant 0 : index
    %167 = vector.load %arg6[%166, %c0_49] : memref<64x256xf32, #tpu.memory_space<vmem>>, vector<8x128xf32>
    %cst_50 = arith.constant dense<0.000000e+00> : vector<8x128xf32>
    %168 = tpu.matmul %133, %8, %cst_50 {dimension_numbers = #tpu.dot_dimension_numbers<[1], [0], [0], [1], [0, 0, 1, 1], [], []>} : vector<8x32xf32>, vector<32x128xf32>, vector<8x128xf32> -> vector<8x128xf32>
    %169 = arith.addf %167, %168 : vector<8x128xf32>
    %170 = arith.negf %169 : vector<8x128xf32>
    %171 = math.exp %170 : vector<8x128xf32>
    %cst_51 = arith.constant 1.000000e+00 : f32
    %172 = vector.broadcast %cst_51 : f32 to vector<8x128xf32>
    %173 = arith.addf %172, %171 : vector<8x128xf32>
    %174 = arith.divf %172, %173 : vector<8x128xf32>
    %175 = math.tanh %169 : vector<8x128xf32>
    %176 = vector.extract_strided_slice %174 {offsets = [0, 0], sizes = [8, 32], strides = [1, 1]} : vector<8x128xf32> to vector<8x32xf32>
    %177 = vector.extract_strided_slice %174 {offsets = [0, 32], sizes = [8, 32], strides = [1, 1]} : vector<8x128xf32> to vector<8x32xf32>
    %178 = vector.extract_strided_slice %175 {offsets = [0, 64], sizes = [8, 32], strides = [1, 1]} : vector<8x128xf32> to vector<8x32xf32>
    %179 = vector.extract_strided_slice %174 {offsets = [0, 96], sizes = [8, 32], strides = [1, 1]} : vector<8x128xf32> to vector<8x32xf32>
    %180 = arith.mulf %177, %131 : vector<8x32xf32>
    %181 = arith.mulf %176, %178 : vector<8x32xf32>
    %182 = arith.addf %180, %181 : vector<8x32xf32>
    %183 = math.tanh %182 : vector<8x32xf32>
    %184 = arith.mulf %179, %183 : vector<8x32xf32>
    %185 = arith.index_cast %c3_i32 : i32 to index
    %c0_52 = arith.constant 0 : index
    %c0_53 = arith.constant 0 : index
    %186 = vector.load %arg5[%185, %c0_52, %c0_53] : memref<8x8x64xf32, #tpu.memory_space<vmem>>, vector<1x8x32xf32>
    %187 = vector.shape_cast %186 : vector<1x8x32xf32> to vector<8x32xf32>
    %188 = vector.shape_cast %184 : vector<8x32xf32> to vector<1x8x32xf32>
    tpu.vector_store %arg5[%185, %c0_52, %c0_53], %188 {strides = array<i32>} : memref<8x8x64xf32, #tpu.memory_space<vmem>>, vector<1x8x32xf32>,
    %c7_i32_54 = arith.constant 7 : i32
    %189 = arith.subi %c7_i32_54, %c3_i32 : i32
    %c8_i32_55 = arith.constant 8 : i32
    %190 = arith.muli %189, %c8_i32_55 : i32
    %191 = tpu.assume_multiple %190, 8 : i32
    %192 = arith.index_cast %191 : i32 to index
    %c128_56 = arith.constant 128 : index
    %193 = vector.load %arg6[%192, %c128_56] : memref<64x256xf32, #tpu.memory_space<vmem>>, vector<8x128xf32>
    %cst_57 = arith.constant dense<0.000000e+00> : vector<8x128xf32>
    %194 = tpu.matmul %159, %9, %cst_57 {dimension_numbers = #tpu.dot_dimension_numbers<[1], [0], [0], [1], [0, 0, 1, 1], [], []>} : vector<8x32xf32>, vector<32x128xf32>, vector<8x128xf32> -> vector<8x128xf32>
    %195 = arith.addf %193, %194 : vector<8x128xf32>
    %196 = arith.negf %195 : vector<8x128xf32>
    %197 = math.exp %196 : vector<8x128xf32>
    %cst_58 = arith.constant 1.000000e+00 : f32
    %198 = vector.broadcast %cst_58 : f32 to vector<8x128xf32>
    %199 = arith.addf %198, %197 : vector<8x128xf32>
    %200 = arith.divf %198, %199 : vector<8x128xf32>
    %201 = math.tanh %195 : vector<8x128xf32>
    %202 = vector.extract_strided_slice %200 {offsets = [0, 0], sizes = [8, 32], strides = [1, 1]} : vector<8x128xf32> to vector<8x32xf32>
    %203 = vector.extract_strided_slice %200 {offsets = [0, 32], sizes = [8, 32], strides = [1, 1]} : vector<8x128xf32> to vector<8x32xf32>
    %204 = vector.extract_strided_slice %201 {offsets = [0, 64], sizes = [8, 32], strides = [1, 1]} : vector<8x128xf32> to vector<8x32xf32>
    %205 = vector.extract_strided_slice %200 {offsets = [0, 96], sizes = [8, 32], strides = [1, 1]} : vector<8x128xf32> to vector<8x32xf32>
    %206 = arith.mulf %203, %157 : vector<8x32xf32>
    %207 = arith.mulf %202, %204 : vector<8x32xf32>
    %208 = arith.addf %206, %207 : vector<8x32xf32>
    %209 = math.tanh %208 : vector<8x32xf32>
    %210 = arith.mulf %205, %209 : vector<8x32xf32>
    %211 = arith.index_cast %189 : i32 to index
    %c0_59 = arith.constant 0 : index
    %c32_60 = arith.constant 32 : index
    %212 = vector.load %arg5[%211, %c0_59, %c32_60] : memref<8x8x64xf32, #tpu.memory_space<vmem>>, vector<1x8x32xf32>
    %213 = vector.shape_cast %212 : vector<1x8x32xf32> to vector<8x32xf32>
    %214 = vector.shape_cast %210 : vector<8x32xf32> to vector<1x8x32xf32>
    tpu.vector_store %arg5[%211, %c0_59, %c32_60], %214 {strides = array<i32>} : memref<8x8x64xf32, #tpu.memory_space<vmem>>, vector<1x8x32xf32>,
    %c4_i32 = arith.constant 4 : i32
    %c8_i32_61 = arith.constant 8 : i32
    %215 = arith.muli %c4_i32, %c8_i32_61 : i32
    %216 = tpu.assume_multiple %215, 8 : i32
    %217 = arith.index_cast %216 : i32 to index
    %c0_62 = arith.constant 0 : index
    %218 = vector.load %arg6[%217, %c0_62] : memref<64x256xf32, #tpu.memory_space<vmem>>, vector<8x128xf32>
    %cst_63 = arith.constant dense<0.000000e+00> : vector<8x128xf32>
    %219 = tpu.matmul %184, %8, %cst_63 {dimension_numbers = #tpu.dot_dimension_numbers<[1], [0], [0], [1], [0, 0, 1, 1], [], []>} : vector<8x32xf32>, vector<32x128xf32>, vector<8x128xf32> -> vector<8x128xf32>
    %220 = arith.addf %218, %219 : vector<8x128xf32>
    %221 = arith.negf %220 : vector<8x128xf32>
    %222 = math.exp %221 : vector<8x128xf32>
    %cst_64 = arith.constant 1.000000e+00 : f32
    %223 = vector.broadcast %cst_64 : f32 to vector<8x128xf32>
    %224 = arith.addf %223, %222 : vector<8x128xf32>
    %225 = arith.divf %223, %224 : vector<8x128xf32>
    %226 = math.tanh %220 : vector<8x128xf32>
    %227 = vector.extract_strided_slice %225 {offsets = [0, 0], sizes = [8, 32], strides = [1, 1]} : vector<8x128xf32> to vector<8x32xf32>
    %228 = vector.extract_strided_slice %225 {offsets = [0, 32], sizes = [8, 32], strides = [1, 1]} : vector<8x128xf32> to vector<8x32xf32>
    %229 = vector.extract_strided_slice %226 {offsets = [0, 64], sizes = [8, 32], strides = [1, 1]} : vector<8x128xf32> to vector<8x32xf32>
    %230 = vector.extract_strided_slice %225 {offsets = [0, 96], sizes = [8, 32], strides = [1, 1]} : vector<8x128xf32> to vector<8x32xf32>
    %231 = arith.mulf %228, %182 : vector<8x32xf32>
    %232 = arith.mulf %227, %229 : vector<8x32xf32>
    %233 = arith.addf %231, %232 : vector<8x32xf32>
    %234 = math.tanh %233 : vector<8x32xf32>
    %235 = arith.mulf %230, %234 : vector<8x32xf32>
    %236 = arith.index_cast %c4_i32 : i32 to index
    %c0_65 = arith.constant 0 : index
    %c0_66 = arith.constant 0 : index
    %237 = vector.load %arg5[%236, %c0_65, %c0_66] : memref<8x8x64xf32, #tpu.memory_space<vmem>>, vector<1x8x32xf32>
    %238 = vector.shape_cast %237 : vector<1x8x32xf32> to vector<8x32xf32>
    %239 = vector.shape_cast %235 : vector<8x32xf32> to vector<1x8x32xf32>
    tpu.vector_store %arg5[%236, %c0_65, %c0_66], %239 {strides = array<i32>} : memref<8x8x64xf32, #tpu.memory_space<vmem>>, vector<1x8x32xf32>,
    %c7_i32_67 = arith.constant 7 : i32
    %240 = arith.subi %c7_i32_67, %c4_i32 : i32
    %c8_i32_68 = arith.constant 8 : i32
    %241 = arith.muli %240, %c8_i32_68 : i32
    %242 = tpu.assume_multiple %241, 8 : i32
    %243 = arith.index_cast %242 : i32 to index
    %c128_69 = arith.constant 128 : index
    %244 = vector.load %arg6[%243, %c128_69] : memref<64x256xf32, #tpu.memory_space<vmem>>, vector<8x128xf32>
    %cst_70 = arith.constant dense<0.000000e+00> : vector<8x128xf32>
    %245 = tpu.matmul %210, %9, %cst_70 {dimension_numbers = #tpu.dot_dimension_numbers<[1], [0], [0], [1], [0, 0, 1, 1], [], []>} : vector<8x32xf32>, vector<32x128xf32>, vector<8x128xf32> -> vector<8x128xf32>
    %246 = arith.addf %244, %245 : vector<8x128xf32>
    %247 = arith.negf %246 : vector<8x128xf32>
    %248 = math.exp %247 : vector<8x128xf32>
    %cst_71 = arith.constant 1.000000e+00 : f32
    %249 = vector.broadcast %cst_71 : f32 to vector<8x128xf32>
    %250 = arith.addf %249, %248 : vector<8x128xf32>
    %251 = arith.divf %249, %250 : vector<8x128xf32>
    %252 = math.tanh %246 : vector<8x128xf32>
    %253 = vector.extract_strided_slice %251 {offsets = [0, 0], sizes = [8, 32], strides = [1, 1]} : vector<8x128xf32> to vector<8x32xf32>
    %254 = vector.extract_strided_slice %251 {offsets = [0, 32], sizes = [8, 32], strides = [1, 1]} : vector<8x128xf32> to vector<8x32xf32>
    %255 = vector.extract_strided_slice %252 {offsets = [0, 64], sizes = [8, 32], strides = [1, 1]} : vector<8x128xf32> to vector<8x32xf32>
    %256 = vector.extract_strided_slice %251 {offsets = [0, 96], sizes = [8, 32], strides = [1, 1]} : vector<8x128xf32> to vector<8x32xf32>
    %257 = arith.mulf %254, %208 : vector<8x32xf32>
    %258 = arith.mulf %253, %255 : vector<8x32xf32>
    %259 = arith.addf %257, %258 : vector<8x32xf32>
    %260 = math.tanh %259 : vector<8x32xf32>
    %261 = arith.mulf %256, %260 : vector<8x32xf32>
    %262 = arith.index_cast %240 : i32 to index
    %c0_72 = arith.constant 0 : index
    %c32_73 = arith.constant 32 : index
    %263 = vector.load %arg5[%262, %c0_72, %c32_73] : memref<8x8x64xf32, #tpu.memory_space<vmem>>, vector<1x8x32xf32>
    %264 = vector.shape_cast %263 : vector<1x8x32xf32> to vector<8x32xf32>
    %265 = vector.shape_cast %261 : vector<8x32xf32> to vector<1x8x32xf32>
    tpu.vector_store %arg5[%262, %c0_72, %c32_73], %265 {strides = array<i32>} : memref<8x8x64xf32, #tpu.memory_space<vmem>>, vector<1x8x32xf32>,
    %c5_i32 = arith.constant 5 : i32
    %c8_i32_74 = arith.constant 8 : i32
    %266 = arith.muli %c5_i32, %c8_i32_74 : i32
    %267 = tpu.assume_multiple %266, 8 : i32
    %268 = arith.index_cast %267 : i32 to index
    %c0_75 = arith.constant 0 : index
    %269 = vector.load %arg6[%268, %c0_75] : memref<64x256xf32, #tpu.memory_space<vmem>>, vector<8x128xf32>
    %cst_76 = arith.constant dense<0.000000e+00> : vector<8x128xf32>
    %270 = tpu.matmul %235, %8, %cst_76 {dimension_numbers = #tpu.dot_dimension_numbers<[1], [0], [0], [1], [0, 0, 1, 1], [], []>} : vector<8x32xf32>, vector<32x128xf32>, vector<8x128xf32> -> vector<8x128xf32>
    %271 = arith.addf %269, %270 : vector<8x128xf32>
    %272 = arith.negf %271 : vector<8x128xf32>
    %273 = math.exp %272 : vector<8x128xf32>
    %cst_77 = arith.constant 1.000000e+00 : f32
    %274 = vector.broadcast %cst_77 : f32 to vector<8x128xf32>
    %275 = arith.addf %274, %273 : vector<8x128xf32>
    %276 = arith.divf %274, %275 : vector<8x128xf32>
    %277 = math.tanh %271 : vector<8x128xf32>
    %278 = vector.extract_strided_slice %276 {offsets = [0, 0], sizes = [8, 32], strides = [1, 1]} : vector<8x128xf32> to vector<8x32xf32>
    %279 = vector.extract_strided_slice %276 {offsets = [0, 32], sizes = [8, 32], strides = [1, 1]} : vector<8x128xf32> to vector<8x32xf32>
    %280 = vector.extract_strided_slice %277 {offsets = [0, 64], sizes = [8, 32], strides = [1, 1]} : vector<8x128xf32> to vector<8x32xf32>
    %281 = vector.extract_strided_slice %276 {offsets = [0, 96], sizes = [8, 32], strides = [1, 1]} : vector<8x128xf32> to vector<8x32xf32>
    %282 = arith.mulf %279, %233 : vector<8x32xf32>
    %283 = arith.mulf %278, %280 : vector<8x32xf32>
    %284 = arith.addf %282, %283 : vector<8x32xf32>
    %285 = math.tanh %284 : vector<8x32xf32>
    %286 = arith.mulf %281, %285 : vector<8x32xf32>
    %287 = arith.index_cast %c5_i32 : i32 to index
    %c0_78 = arith.constant 0 : index
    %c0_79 = arith.constant 0 : index
    %288 = vector.load %arg5[%287, %c0_78, %c0_79] : memref<8x8x64xf32, #tpu.memory_space<vmem>>, vector<1x8x32xf32>
    %289 = vector.shape_cast %288 : vector<1x8x32xf32> to vector<8x32xf32>
    %290 = vector.shape_cast %286 : vector<8x32xf32> to vector<1x8x32xf32>
    tpu.vector_store %arg5[%287, %c0_78, %c0_79], %290 {strides = array<i32>} : memref<8x8x64xf32, #tpu.memory_space<vmem>>, vector<1x8x32xf32>,
    %c7_i32_80 = arith.constant 7 : i32
    %291 = arith.subi %c7_i32_80, %c5_i32 : i32
    %c8_i32_81 = arith.constant 8 : i32
    %292 = arith.muli %291, %c8_i32_81 : i32
    %293 = tpu.assume_multiple %292, 8 : i32
    %294 = arith.index_cast %293 : i32 to index
    %c128_82 = arith.constant 128 : index
    %295 = vector.load %arg6[%294, %c128_82] : memref<64x256xf32, #tpu.memory_space<vmem>>, vector<8x128xf32>
    %cst_83 = arith.constant dense<0.000000e+00> : vector<8x128xf32>
    %296 = tpu.matmul %261, %9, %cst_83 {dimension_numbers = #tpu.dot_dimension_numbers<[1], [0], [0], [1], [0, 0, 1, 1], [], []>} : vector<8x32xf32>, vector<32x128xf32>, vector<8x128xf32> -> vector<8x128xf32>
    %297 = arith.addf %295, %296 : vector<8x128xf32>
    %298 = arith.negf %297 : vector<8x128xf32>
    %299 = math.exp %298 : vector<8x128xf32>
    %cst_84 = arith.constant 1.000000e+00 : f32
    %300 = vector.broadcast %cst_84 : f32 to vector<8x128xf32>
    %301 = arith.addf %300, %299 : vector<8x128xf32>
    %302 = arith.divf %300, %301 : vector<8x128xf32>
    %303 = math.tanh %297 : vector<8x128xf32>
    %304 = vector.extract_strided_slice %302 {offsets = [0, 0], sizes = [8, 32], strides = [1, 1]} : vector<8x128xf32> to vector<8x32xf32>
    %305 = vector.extract_strided_slice %302 {offsets = [0, 32], sizes = [8, 32], strides = [1, 1]} : vector<8x128xf32> to vector<8x32xf32>
    %306 = vector.extract_strided_slice %303 {offsets = [0, 64], sizes = [8, 32], strides = [1, 1]} : vector<8x128xf32> to vector<8x32xf32>
    %307 = vector.extract_strided_slice %302 {offsets = [0, 96], sizes = [8, 32], strides = [1, 1]} : vector<8x128xf32> to vector<8x32xf32>
    %308 = arith.mulf %305, %259 : vector<8x32xf32>
    %309 = arith.mulf %304, %306 : vector<8x32xf32>
    %310 = arith.addf %308, %309 : vector<8x32xf32>
    %311 = math.tanh %310 : vector<8x32xf32>
    %312 = arith.mulf %307, %311 : vector<8x32xf32>
    %313 = arith.index_cast %291 : i32 to index
    %c0_85 = arith.constant 0 : index
    %c32_86 = arith.constant 32 : index
    %314 = vector.load %arg5[%313, %c0_85, %c32_86] : memref<8x8x64xf32, #tpu.memory_space<vmem>>, vector<1x8x32xf32>
    %315 = vector.shape_cast %314 : vector<1x8x32xf32> to vector<8x32xf32>
    %316 = vector.shape_cast %312 : vector<8x32xf32> to vector<1x8x32xf32>
    tpu.vector_store %arg5[%313, %c0_85, %c32_86], %316 {strides = array<i32>} : memref<8x8x64xf32, #tpu.memory_space<vmem>>, vector<1x8x32xf32>,
    %c6_i32 = arith.constant 6 : i32
    %c8_i32_87 = arith.constant 8 : i32
    %317 = arith.muli %c6_i32, %c8_i32_87 : i32
    %318 = tpu.assume_multiple %317, 8 : i32
    %319 = arith.index_cast %318 : i32 to index
    %c0_88 = arith.constant 0 : index
    %320 = vector.load %arg6[%319, %c0_88] : memref<64x256xf32, #tpu.memory_space<vmem>>, vector<8x128xf32>
    %cst_89 = arith.constant dense<0.000000e+00> : vector<8x128xf32>
    %321 = tpu.matmul %286, %8, %cst_89 {dimension_numbers = #tpu.dot_dimension_numbers<[1], [0], [0], [1], [0, 0, 1, 1], [], []>} : vector<8x32xf32>, vector<32x128xf32>, vector<8x128xf32> -> vector<8x128xf32>
    %322 = arith.addf %320, %321 : vector<8x128xf32>
    %323 = arith.negf %322 : vector<8x128xf32>
    %324 = math.exp %323 : vector<8x128xf32>
    %cst_90 = arith.constant 1.000000e+00 : f32
    %325 = vector.broadcast %cst_90 : f32 to vector<8x128xf32>
    %326 = arith.addf %325, %324 : vector<8x128xf32>
    %327 = arith.divf %325, %326 : vector<8x128xf32>
    %328 = math.tanh %322 : vector<8x128xf32>
    %329 = vector.extract_strided_slice %327 {offsets = [0, 0], sizes = [8, 32], strides = [1, 1]} : vector<8x128xf32> to vector<8x32xf32>
    %330 = vector.extract_strided_slice %327 {offsets = [0, 32], sizes = [8, 32], strides = [1, 1]} : vector<8x128xf32> to vector<8x32xf32>
    %331 = vector.extract_strided_slice %328 {offsets = [0, 64], sizes = [8, 32], strides = [1, 1]} : vector<8x128xf32> to vector<8x32xf32>
    %332 = vector.extract_strided_slice %327 {offsets = [0, 96], sizes = [8, 32], strides = [1, 1]} : vector<8x128xf32> to vector<8x32xf32>
    %333 = arith.mulf %330, %284 : vector<8x32xf32>
    %334 = arith.mulf %329, %331 : vector<8x32xf32>
    %335 = arith.addf %333, %334 : vector<8x32xf32>
    %336 = math.tanh %335 : vector<8x32xf32>
    %337 = arith.mulf %332, %336 : vector<8x32xf32>
    %338 = arith.index_cast %c6_i32 : i32 to index
    %c0_91 = arith.constant 0 : index
    %c0_92 = arith.constant 0 : index
    %339 = vector.load %arg5[%338, %c0_91, %c0_92] : memref<8x8x64xf32, #tpu.memory_space<vmem>>, vector<1x8x32xf32>
    %340 = vector.shape_cast %339 : vector<1x8x32xf32> to vector<8x32xf32>
    %341 = vector.shape_cast %337 : vector<8x32xf32> to vector<1x8x32xf32>
    tpu.vector_store %arg5[%338, %c0_91, %c0_92], %341 {strides = array<i32>} : memref<8x8x64xf32, #tpu.memory_space<vmem>>, vector<1x8x32xf32>,
    %c7_i32_93 = arith.constant 7 : i32
    %342 = arith.subi %c7_i32_93, %c6_i32 : i32
    %c8_i32_94 = arith.constant 8 : i32
    %343 = arith.muli %342, %c8_i32_94 : i32
    %344 = tpu.assume_multiple %343, 8 : i32
    %345 = arith.index_cast %344 : i32 to index
    %c128_95 = arith.constant 128 : index
    %346 = vector.load %arg6[%345, %c128_95] : memref<64x256xf32, #tpu.memory_space<vmem>>, vector<8x128xf32>
    %cst_96 = arith.constant dense<0.000000e+00> : vector<8x128xf32>
    %347 = tpu.matmul %312, %9, %cst_96 {dimension_numbers = #tpu.dot_dimension_numbers<[1], [0], [0], [1], [0, 0, 1, 1], [], []>} : vector<8x32xf32>, vector<32x128xf32>, vector<8x128xf32> -> vector<8x128xf32>
    %348 = arith.addf %346, %347 : vector<8x128xf32>
    %349 = arith.negf %348 : vector<8x128xf32>
    %350 = math.exp %349 : vector<8x128xf32>
    %cst_97 = arith.constant 1.000000e+00 : f32
    %351 = vector.broadcast %cst_97 : f32 to vector<8x128xf32>
    %352 = arith.addf %351, %350 : vector<8x128xf32>
    %353 = arith.divf %351, %352 : vector<8x128xf32>
    %354 = math.tanh %348 : vector<8x128xf32>
    %355 = vector.extract_strided_slice %353 {offsets = [0, 0], sizes = [8, 32], strides = [1, 1]} : vector<8x128xf32> to vector<8x32xf32>
    %356 = vector.extract_strided_slice %353 {offsets = [0, 32], sizes = [8, 32], strides = [1, 1]} : vector<8x128xf32> to vector<8x32xf32>
    %357 = vector.extract_strided_slice %354 {offsets = [0, 64], sizes = [8, 32], strides = [1, 1]} : vector<8x128xf32> to vector<8x32xf32>
    %358 = vector.extract_strided_slice %353 {offsets = [0, 96], sizes = [8, 32], strides = [1, 1]} : vector<8x128xf32> to vector<8x32xf32>
    %359 = arith.mulf %356, %310 : vector<8x32xf32>
    %360 = arith.mulf %355, %357 : vector<8x32xf32>
    %361 = arith.addf %359, %360 : vector<8x32xf32>
    %362 = math.tanh %361 : vector<8x32xf32>
    %363 = arith.mulf %358, %362 : vector<8x32xf32>
    %364 = arith.index_cast %342 : i32 to index
    %c0_98 = arith.constant 0 : index
    %c32_99 = arith.constant 32 : index
    %365 = vector.load %arg5[%364, %c0_98, %c32_99] : memref<8x8x64xf32, #tpu.memory_space<vmem>>, vector<1x8x32xf32>
    %366 = vector.shape_cast %365 : vector<1x8x32xf32> to vector<8x32xf32>
    %367 = vector.shape_cast %363 : vector<8x32xf32> to vector<1x8x32xf32>
    tpu.vector_store %arg5[%364, %c0_98, %c32_99], %367 {strides = array<i32>} : memref<8x8x64xf32, #tpu.memory_space<vmem>>, vector<1x8x32xf32>,
    %c7_i32_100 = arith.constant 7 : i32
    %c8_i32_101 = arith.constant 8 : i32
    %368 = arith.muli %c7_i32_100, %c8_i32_101 : i32
    %369 = tpu.assume_multiple %368, 8 : i32
    %370 = arith.index_cast %369 : i32 to index
    %c0_102 = arith.constant 0 : index
    %371 = vector.load %arg6[%370, %c0_102] : memref<64x256xf32, #tpu.memory_space<vmem>>, vector<8x128xf32>
    %cst_103 = arith.constant dense<0.000000e+00> : vector<8x128xf32>
    %372 = tpu.matmul %337, %8, %cst_103 {dimension_numbers = #tpu.dot_dimension_numbers<[1], [0], [0], [1], [0, 0, 1, 1], [], []>} : vector<8x32xf32>, vector<32x128xf32>, vector<8x128xf32> -> vector<8x128xf32>
    %373 = arith.addf %371, %372 : vector<8x128xf32>
    %374 = arith.negf %373 : vector<8x128xf32>
    %375 = math.exp %374 : vector<8x128xf32>
    %cst_104 = arith.constant 1.000000e+00 : f32
    %376 = vector.broadcast %cst_104 : f32 to vector<8x128xf32>
    %377 = arith.addf %376, %375 : vector<8x128xf32>
    %378 = arith.divf %376, %377 : vector<8x128xf32>
    %379 = math.tanh %373 : vector<8x128xf32>
    %380 = vector.extract_strided_slice %378 {offsets = [0, 0], sizes = [8, 32], strides = [1, 1]} : vector<8x128xf32> to vector<8x32xf32>
    %381 = vector.extract_strided_slice %378 {offsets = [0, 32], sizes = [8, 32], strides = [1, 1]} : vector<8x128xf32> to vector<8x32xf32>
    %382 = vector.extract_strided_slice %379 {offsets = [0, 64], sizes = [8, 32], strides = [1, 1]} : vector<8x128xf32> to vector<8x32xf32>
    %383 = vector.extract_strided_slice %378 {offsets = [0, 96], sizes = [8, 32], strides = [1, 1]} : vector<8x128xf32> to vector<8x32xf32>
    %384 = arith.mulf %381, %335 : vector<8x32xf32>
    %385 = arith.mulf %380, %382 : vector<8x32xf32>
    %386 = arith.addf %384, %385 : vector<8x32xf32>
    %387 = math.tanh %386 : vector<8x32xf32>
    %388 = arith.mulf %383, %387 : vector<8x32xf32>
    %389 = arith.index_cast %c7_i32_100 : i32 to index
    %c0_105 = arith.constant 0 : index
    %c0_106 = arith.constant 0 : index
    %390 = vector.load %arg5[%389, %c0_105, %c0_106] : memref<8x8x64xf32, #tpu.memory_space<vmem>>, vector<1x8x32xf32>
    %391 = vector.shape_cast %390 : vector<1x8x32xf32> to vector<8x32xf32>
    %392 = vector.shape_cast %388 : vector<8x32xf32> to vector<1x8x32xf32>
    tpu.vector_store %arg5[%389, %c0_105, %c0_106], %392 {strides = array<i32>} : memref<8x8x64xf32, #tpu.memory_space<vmem>>, vector<1x8x32xf32>,
    %c7_i32_107 = arith.constant 7 : i32
    %393 = arith.subi %c7_i32_107, %c7_i32_100 : i32
    %c8_i32_108 = arith.constant 8 : i32
    %394 = arith.muli %393, %c8_i32_108 : i32
    %395 = tpu.assume_multiple %394, 8 : i32
    %396 = arith.index_cast %395 : i32 to index
    %c128_109 = arith.constant 128 : index
    %397 = vector.load %arg6[%396, %c128_109] : memref<64x256xf32, #tpu.memory_space<vmem>>, vector<8x128xf32>
    %cst_110 = arith.constant dense<0.000000e+00> : vector<8x128xf32>
    %398 = tpu.matmul %363, %9, %cst_110 {dimension_numbers = #tpu.dot_dimension_numbers<[1], [0], [0], [1], [0, 0, 1, 1], [], []>} : vector<8x32xf32>, vector<32x128xf32>, vector<8x128xf32> -> vector<8x128xf32>
    %399 = arith.addf %397, %398 : vector<8x128xf32>
    %400 = arith.negf %399 : vector<8x128xf32>
    %401 = math.exp %400 : vector<8x128xf32>
    %cst_111 = arith.constant 1.000000e+00 : f32
    %402 = vector.broadcast %cst_111 : f32 to vector<8x128xf32>
    %403 = arith.addf %402, %401 : vector<8x128xf32>
    %404 = arith.divf %402, %403 : vector<8x128xf32>
    %405 = math.tanh %399 : vector<8x128xf32>
    %406 = vector.extract_strided_slice %404 {offsets = [0, 0], sizes = [8, 32], strides = [1, 1]} : vector<8x128xf32> to vector<8x32xf32>
    %407 = vector.extract_strided_slice %404 {offsets = [0, 32], sizes = [8, 32], strides = [1, 1]} : vector<8x128xf32> to vector<8x32xf32>
    %408 = vector.extract_strided_slice %405 {offsets = [0, 64], sizes = [8, 32], strides = [1, 1]} : vector<8x128xf32> to vector<8x32xf32>
    %409 = vector.extract_strided_slice %404 {offsets = [0, 96], sizes = [8, 32], strides = [1, 1]} : vector<8x128xf32> to vector<8x32xf32>
    %410 = arith.mulf %407, %361 : vector<8x32xf32>
    %411 = arith.mulf %406, %408 : vector<8x32xf32>
    %412 = arith.addf %410, %411 : vector<8x32xf32>
    %413 = math.tanh %412 : vector<8x32xf32>
    %414 = arith.mulf %409, %413 : vector<8x32xf32>
    %415 = arith.index_cast %393 : i32 to index
    %c0_112 = arith.constant 0 : index
    %c32_113 = arith.constant 32 : index
    %416 = vector.load %arg5[%415, %c0_112, %c32_113] : memref<8x8x64xf32, #tpu.memory_space<vmem>>, vector<1x8x32xf32>
    %417 = vector.shape_cast %416 : vector<1x8x32xf32> to vector<8x32xf32>
    %418 = vector.shape_cast %414 : vector<8x32xf32> to vector<1x8x32xf32>
    tpu.vector_store %arg5[%415, %c0_112, %c32_113], %418 {strides = array<i32>} : memref<8x8x64xf32, #tpu.memory_space<vmem>>, vector<1x8x32xf32>,
    %c8_i32_114 = arith.constant 8 : i32
    return
  }
}

module attributes {stable_mosaic.version = 11 : i64} {
  func.func @_bilstm_layer_kernel(%arg0: memref<8x8x64xf32, #tpu.memory_space<vmem>>, %arg1: memref<64x256xf32, #tpu.memory_space<vmem>>, %arg2: memref<1x256xf32, #tpu.memory_space<vmem>>, %arg3: memref<32x128xf32, #tpu.memory_space<vmem>>, %arg4: memref<32x128xf32, #tpu.memory_space<vmem>>, %arg5: memref<8x8x64xf32, #tpu.memory_space<vmem>>, %arg6: memref<64x256xf32, #tpu.memory_space<vmem>>) attributes {dimension_semantics = [], scalar_prefetch = 0 : i64, scratch_operands = 1 : i64, tpu.core_type = #tpu.core_type<tc>} {
    %c0 = arith.constant 0 : index
    %c0_0 = arith.constant 0 : index
    %c0_1 = arith.constant 0 : index
    %0 = vector.load %arg0[%c0, %c0_0, %c0_1] : memref<8x8x64xf32, #tpu.memory_space<vmem>>, vector<8x8x64xf32>
    %1 = vector.shape_cast %0 : vector<8x8x64xf32> to vector<64x64xf32>
    %c0_2 = arith.constant 0 : index
    %c0_3 = arith.constant 0 : index
    %2 = vector.load %arg1[%c0_2, %c0_3] : memref<64x256xf32, #tpu.memory_space<vmem>>, vector<64x256xf32>
    %cst = arith.constant dense<0.000000e+00> : vector<64x256xf32>
    %3 = tpu.matmul %1, %2, %cst {dimension_numbers = #tpu.dot_dimension_numbers<[1], [0], [0], [1], [0, 0, 1, 1], [], []>} : vector<64x64xf32>, vector<64x256xf32>, vector<64x256xf32> -> vector<64x256xf32>
    %c0_4 = arith.constant 0 : index
    %c0_5 = arith.constant 0 : index
    %4 = vector.load %arg2[%c0_4, %c0_5] : memref<1x256xf32, #tpu.memory_space<vmem>>, vector<1x256xf32>
    %5 = vector.broadcast %4 : vector<1x256xf32> to vector<64x256xf32>
    %6 = arith.addf %3, %5 : vector<64x256xf32>
    %c0_6 = arith.constant 0 : index
    %c0_7 = arith.constant 0 : index
    %7 = vector.load %arg6[%c0_6, %c0_7] : memref<64x256xf32, #tpu.memory_space<vmem>>, vector<64x256xf32>
    tpu.vector_store %arg6[%c0_6, %c0_7], %6 {strides = array<i32>} : memref<64x256xf32, #tpu.memory_space<vmem>>, vector<64x256xf32>,
    %c0_8 = arith.constant 0 : index
    %c0_9 = arith.constant 0 : index
    %8 = vector.load %arg3[%c0_8, %c0_9] : memref<32x128xf32, #tpu.memory_space<vmem>>, vector<32x128xf32>
    %c0_10 = arith.constant 0 : index
    %c0_11 = arith.constant 0 : index
    %9 = vector.load %arg4[%c0_10, %c0_11] : memref<32x128xf32, #tpu.memory_space<vmem>>, vector<32x128xf32>
    %cst_12 = arith.constant 0.000000e+00 : f32
    %10 = vector.broadcast %cst_12 : f32 to vector<8x32xf32>
    %c0_i32 = arith.constant 0 : i32
    %c8_i32 = arith.constant 8 : i32
    %11 = arith.muli %c0_i32, %c8_i32 : i32
    %12 = tpu.assume_multiple %11, 8 : i32
    %13 = arith.index_cast %12 : i32 to index
    %c0_13 = arith.constant 0 : index
    %14 = vector.load %arg6[%13, %c0_13] : memref<64x256xf32, #tpu.memory_space<vmem>>, vector<8x128xf32>
    %cst_14 = arith.constant dense<0.000000e+00> : vector<8x128xf32>
    %15 = tpu.matmul %10, %8, %cst_14 {dimension_numbers = #tpu.dot_dimension_numbers<[1], [0], [0], [1], [0, 0, 1, 1], [], []>} : vector<8x32xf32>, vector<32x128xf32>, vector<8x128xf32> -> vector<8x128xf32>
    %16 = arith.addf %14, %15 : vector<8x128xf32>
    %17 = arith.negf %16 : vector<8x128xf32>
    %18 = math.exp %17 : vector<8x128xf32>
    %cst_15 = arith.constant 1.000000e+00 : f32
    %19 = vector.broadcast %cst_15 : f32 to vector<8x128xf32>
    %20 = arith.addf %19, %18 : vector<8x128xf32>
    %21 = arith.divf %19, %20 : vector<8x128xf32>
    %22 = math.tanh %16 : vector<8x128xf32>
    %23 = vector.extract_strided_slice %21 {offsets = [0, 0], sizes = [8, 32], strides = [1, 1]} : vector<8x128xf32> to vector<8x32xf32>
    %24 = vector.extract_strided_slice %21 {offsets = [0, 32], sizes = [8, 32], strides = [1, 1]} : vector<8x128xf32> to vector<8x32xf32>
    %25 = vector.extract_strided_slice %22 {offsets = [0, 64], sizes = [8, 32], strides = [1, 1]} : vector<8x128xf32> to vector<8x32xf32>
    %26 = vector.extract_strided_slice %21 {offsets = [0, 96], sizes = [8, 32], strides = [1, 1]} : vector<8x128xf32> to vector<8x32xf32>
    %27 = arith.mulf %24, %10 : vector<8x32xf32>
    %28 = arith.mulf %23, %25 : vector<8x32xf32>
    %29 = arith.addf %27, %28 : vector<8x32xf32>
    %30 = math.tanh %29 : vector<8x32xf32>
    %31 = arith.mulf %26, %30 : vector<8x32xf32>
    %32 = arith.index_cast %c0_i32 : i32 to index
    %c0_16 = arith.constant 0 : index
    %c0_17 = arith.constant 0 : index
    %33 = vector.load %arg5[%32, %c0_16, %c0_17] : memref<8x8x64xf32, #tpu.memory_space<vmem>>, vector<1x8x32xf32>
    %34 = vector.shape_cast %33 : vector<1x8x32xf32> to vector<8x32xf32>
    %35 = vector.shape_cast %31 : vector<8x32xf32> to vector<1x8x32xf32>
    tpu.vector_store %arg5[%32, %c0_16, %c0_17], %35 {strides = array<i32>} : memref<8x8x64xf32, #tpu.memory_space<vmem>>, vector<1x8x32xf32>,
    %c7_i32 = arith.constant 7 : i32
    %36 = arith.subi %c7_i32, %c0_i32 : i32
    %c8_i32_18 = arith.constant 8 : i32
    %37 = arith.muli %36, %c8_i32_18 : i32
    %38 = tpu.assume_multiple %37, 8 : i32
    %39 = arith.index_cast %38 : i32 to index
    %c128 = arith.constant 128 : index
    %40 = vector.load %arg6[%39, %c128] : memref<64x256xf32, #tpu.memory_space<vmem>>, vector<8x128xf32>
    %cst_19 = arith.constant dense<0.000000e+00> : vector<8x128xf32>
    %41 = tpu.matmul %10, %9, %cst_19 {dimension_numbers = #tpu.dot_dimension_numbers<[1], [0], [0], [1], [0, 0, 1, 1], [], []>} : vector<8x32xf32>, vector<32x128xf32>, vector<8x128xf32> -> vector<8x128xf32>
    %42 = arith.addf %40, %41 : vector<8x128xf32>
    %43 = arith.negf %42 : vector<8x128xf32>
    %44 = math.exp %43 : vector<8x128xf32>
    %cst_20 = arith.constant 1.000000e+00 : f32
    %45 = vector.broadcast %cst_20 : f32 to vector<8x128xf32>
    %46 = arith.addf %45, %44 : vector<8x128xf32>
    %47 = arith.divf %45, %46 : vector<8x128xf32>
    %48 = math.tanh %42 : vector<8x128xf32>
    %49 = vector.extract_strided_slice %47 {offsets = [0, 0], sizes = [8, 32], strides = [1, 1]} : vector<8x128xf32> to vector<8x32xf32>
    %50 = vector.extract_strided_slice %47 {offsets = [0, 32], sizes = [8, 32], strides = [1, 1]} : vector<8x128xf32> to vector<8x32xf32>
    %51 = vector.extract_strided_slice %48 {offsets = [0, 64], sizes = [8, 32], strides = [1, 1]} : vector<8x128xf32> to vector<8x32xf32>
    %52 = vector.extract_strided_slice %47 {offsets = [0, 96], sizes = [8, 32], strides = [1, 1]} : vector<8x128xf32> to vector<8x32xf32>
    %53 = arith.mulf %50, %10 : vector<8x32xf32>
    %54 = arith.mulf %49, %51 : vector<8x32xf32>
    %55 = arith.addf %53, %54 : vector<8x32xf32>
    %56 = math.tanh %55 : vector<8x32xf32>
    %57 = arith.mulf %52, %56 : vector<8x32xf32>
    %58 = arith.index_cast %36 : i32 to index
    %c0_21 = arith.constant 0 : index
    %c32 = arith.constant 32 : index
    %59 = vector.load %arg5[%58, %c0_21, %c32] : memref<8x8x64xf32, #tpu.memory_space<vmem>>, vector<1x8x32xf32>
    %60 = vector.shape_cast %59 : vector<1x8x32xf32> to vector<8x32xf32>
    %61 = vector.shape_cast %57 : vector<8x32xf32> to vector<1x8x32xf32>
    tpu.vector_store %arg5[%58, %c0_21, %c32], %61 {strides = array<i32>} : memref<8x8x64xf32, #tpu.memory_space<vmem>>, vector<1x8x32xf32>,
    %c1_i32 = arith.constant 1 : i32
    %c8_i32_22 = arith.constant 8 : i32
    %62 = arith.muli %c1_i32, %c8_i32_22 : i32
    %63 = tpu.assume_multiple %62, 8 : i32
    %64 = arith.index_cast %63 : i32 to index
    %c0_23 = arith.constant 0 : index
    %65 = vector.load %arg6[%64, %c0_23] : memref<64x256xf32, #tpu.memory_space<vmem>>, vector<8x128xf32>
    %cst_24 = arith.constant dense<0.000000e+00> : vector<8x128xf32>
    %66 = tpu.matmul %31, %8, %cst_24 {dimension_numbers = #tpu.dot_dimension_numbers<[1], [0], [0], [1], [0, 0, 1, 1], [], []>} : vector<8x32xf32>, vector<32x128xf32>, vector<8x128xf32> -> vector<8x128xf32>
    %67 = arith.addf %65, %66 : vector<8x128xf32>
    %68 = arith.negf %67 : vector<8x128xf32>
    %69 = math.exp %68 : vector<8x128xf32>
    %cst_25 = arith.constant 1.000000e+00 : f32
    %70 = vector.broadcast %cst_25 : f32 to vector<8x128xf32>
    %71 = arith.addf %70, %69 : vector<8x128xf32>
    %72 = arith.divf %70, %71 : vector<8x128xf32>
    %73 = math.tanh %67 : vector<8x128xf32>
    %74 = vector.extract_strided_slice %72 {offsets = [0, 0], sizes = [8, 32], strides = [1, 1]} : vector<8x128xf32> to vector<8x32xf32>
    %75 = vector.extract_strided_slice %72 {offsets = [0, 32], sizes = [8, 32], strides = [1, 1]} : vector<8x128xf32> to vector<8x32xf32>
    %76 = vector.extract_strided_slice %73 {offsets = [0, 64], sizes = [8, 32], strides = [1, 1]} : vector<8x128xf32> to vector<8x32xf32>
    %77 = vector.extract_strided_slice %72 {offsets = [0, 96], sizes = [8, 32], strides = [1, 1]} : vector<8x128xf32> to vector<8x32xf32>
    %78 = arith.mulf %75, %29 : vector<8x32xf32>
    %79 = arith.mulf %74, %76 : vector<8x32xf32>
    %80 = arith.addf %78, %79 : vector<8x32xf32>
    %81 = math.tanh %80 : vector<8x32xf32>
    %82 = arith.mulf %77, %81 : vector<8x32xf32>
    %83 = arith.index_cast %c1_i32 : i32 to index
    %c0_26 = arith.constant 0 : index
    %c0_27 = arith.constant 0 : index
    %84 = vector.load %arg5[%83, %c0_26, %c0_27] : memref<8x8x64xf32, #tpu.memory_space<vmem>>, vector<1x8x32xf32>
    %85 = vector.shape_cast %84 : vector<1x8x32xf32> to vector<8x32xf32>
    %86 = vector.shape_cast %82 : vector<8x32xf32> to vector<1x8x32xf32>
    tpu.vector_store %arg5[%83, %c0_26, %c0_27], %86 {strides = array<i32>} : memref<8x8x64xf32, #tpu.memory_space<vmem>>, vector<1x8x32xf32>,
    %c7_i32_28 = arith.constant 7 : i32
    %87 = arith.subi %c7_i32_28, %c1_i32 : i32
    %c8_i32_29 = arith.constant 8 : i32
    %88 = arith.muli %87, %c8_i32_29 : i32
    %89 = tpu.assume_multiple %88, 8 : i32
    %90 = arith.index_cast %89 : i32 to index
    %c128_30 = arith.constant 128 : index
    %91 = vector.load %arg6[%90, %c128_30] : memref<64x256xf32, #tpu.memory_space<vmem>>, vector<8x128xf32>
    %cst_31 = arith.constant dense<0.000000e+00> : vector<8x128xf32>
    %92 = tpu.matmul %57, %9, %cst_31 {dimension_numbers = #tpu.dot_dimension_numbers<[1], [0], [0], [1], [0, 0, 1, 1], [], []>} : vector<8x32xf32>, vector<32x128xf32>, vector<8x128xf32> -> vector<8x128xf32>
    %93 = arith.addf %91, %92 : vector<8x128xf32>
    %94 = arith.negf %93 : vector<8x128xf32>
    %95 = math.exp %94 : vector<8x128xf32>
    %cst_32 = arith.constant 1.000000e+00 : f32
    %96 = vector.broadcast %cst_32 : f32 to vector<8x128xf32>
    %97 = arith.addf %96, %95 : vector<8x128xf32>
    %98 = arith.divf %96, %97 : vector<8x128xf32>
    %99 = math.tanh %93 : vector<8x128xf32>
    %100 = vector.extract_strided_slice %98 {offsets = [0, 0], sizes = [8, 32], strides = [1, 1]} : vector<8x128xf32> to vector<8x32xf32>
    %101 = vector.extract_strided_slice %98 {offsets = [0, 32], sizes = [8, 32], strides = [1, 1]} : vector<8x128xf32> to vector<8x32xf32>
    %102 = vector.extract_strided_slice %99 {offsets = [0, 64], sizes = [8, 32], strides = [1, 1]} : vector<8x128xf32> to vector<8x32xf32>
    %103 = vector.extract_strided_slice %98 {offsets = [0, 96], sizes = [8, 32], strides = [1, 1]} : vector<8x128xf32> to vector<8x32xf32>
    %104 = arith.mulf %101, %55 : vector<8x32xf32>
    %105 = arith.mulf %100, %102 : vector<8x32xf32>
    %106 = arith.addf %104, %105 : vector<8x32xf32>
    %107 = math.tanh %106 : vector<8x32xf32>
    %108 = arith.mulf %103, %107 : vector<8x32xf32>
    %109 = arith.index_cast %87 : i32 to index
    %c0_33 = arith.constant 0 : index
    %c32_34 = arith.constant 32 : index
    %110 = vector.load %arg5[%109, %c0_33, %c32_34] : memref<8x8x64xf32, #tpu.memory_space<vmem>>, vector<1x8x32xf32>
    %111 = vector.shape_cast %110 : vector<1x8x32xf32> to vector<8x32xf32>
    %112 = vector.shape_cast %108 : vector<8x32xf32> to vector<1x8x32xf32>
    tpu.vector_store %arg5[%109, %c0_33, %c32_34], %112 {strides = array<i32>} : memref<8x8x64xf32, #tpu.memory_space<vmem>>, vector<1x8x32xf32>,
    %c2_i32 = arith.constant 2 : i32
    %c8_i32_35 = arith.constant 8 : i32
    %113 = arith.muli %c2_i32, %c8_i32_35 : i32
    %114 = tpu.assume_multiple %113, 8 : i32
    %115 = arith.index_cast %114 : i32 to index
    %c0_36 = arith.constant 0 : index
    %116 = vector.load %arg6[%115, %c0_36] : memref<64x256xf32, #tpu.memory_space<vmem>>, vector<8x128xf32>
    %cst_37 = arith.constant dense<0.000000e+00> : vector<8x128xf32>
    %117 = tpu.matmul %82, %8, %cst_37 {dimension_numbers = #tpu.dot_dimension_numbers<[1], [0], [0], [1], [0, 0, 1, 1], [], []>} : vector<8x32xf32>, vector<32x128xf32>, vector<8x128xf32> -> vector<8x128xf32>
    %118 = arith.addf %116, %117 : vector<8x128xf32>
    %119 = arith.negf %118 : vector<8x128xf32>
    %120 = math.exp %119 : vector<8x128xf32>
    %cst_38 = arith.constant 1.000000e+00 : f32
    %121 = vector.broadcast %cst_38 : f32 to vector<8x128xf32>
    %122 = arith.addf %121, %120 : vector<8x128xf32>
    %123 = arith.divf %121, %122 : vector<8x128xf32>
    %124 = math.tanh %118 : vector<8x128xf32>
    %125 = vector.extract_strided_slice %123 {offsets = [0, 0], sizes = [8, 32], strides = [1, 1]} : vector<8x128xf32> to vector<8x32xf32>
    %126 = vector.extract_strided_slice %123 {offsets = [0, 32], sizes = [8, 32], strides = [1, 1]} : vector<8x128xf32> to vector<8x32xf32>
    %127 = vector.extract_strided_slice %124 {offsets = [0, 64], sizes = [8, 32], strides = [1, 1]} : vector<8x128xf32> to vector<8x32xf32>
    %128 = vector.extract_strided_slice %123 {offsets = [0, 96], sizes = [8, 32], strides = [1, 1]} : vector<8x128xf32> to vector<8x32xf32>
    %129 = arith.mulf %126, %80 : vector<8x32xf32>
    %130 = arith.mulf %125, %127 : vector<8x32xf32>
    %131 = arith.addf %129, %130 : vector<8x32xf32>
    %132 = math.tanh %131 : vector<8x32xf32>
    %133 = arith.mulf %128, %132 : vector<8x32xf32>
    %134 = arith.index_cast %c2_i32 : i32 to index
    %c0_39 = arith.constant 0 : index
    %c0_40 = arith.constant 0 : index
    %135 = vector.load %arg5[%134, %c0_39, %c0_40] : memref<8x8x64xf32, #tpu.memory_space<vmem>>, vector<1x8x32xf32>
    %136 = vector.shape_cast %135 : vector<1x8x32xf32> to vector<8x32xf32>
    %137 = vector.shape_cast %133 : vector<8x32xf32> to vector<1x8x32xf32>
    tpu.vector_store %arg5[%134, %c0_39, %c0_40], %137 {strides = array<i32>} : memref<8x8x64xf32, #tpu.memory_space<vmem>>, vector<1x8x32xf32>,
    %c7_i32_41 = arith.constant 7 : i32
    %138 = arith.subi %c7_i32_41, %c2_i32 : i32
    %c8_i32_42 = arith.constant 8 : i32
    %139 = arith.muli %138, %c8_i32_42 : i32
    %140 = tpu.assume_multiple %139, 8 : i32
    %141 = arith.index_cast %140 : i32 to index
    %c128_43 = arith.constant 128 : index
    %142 = vector.load %arg6[%141, %c128_43] : memref<64x256xf32, #tpu.memory_space<vmem>>, vector<8x128xf32>
    %cst_44 = arith.constant dense<0.000000e+00> : vector<8x128xf32>
    %143 = tpu.matmul %108, %9, %cst_44 {dimension_numbers = #tpu.dot_dimension_numbers<[1], [0], [0], [1], [0, 0, 1, 1], [], []>} : vector<8x32xf32>, vector<32x128xf32>, vector<8x128xf32> -> vector<8x128xf32>
    %144 = arith.addf %142, %143 : vector<8x128xf32>
    %145 = arith.negf %144 : vector<8x128xf32>
    %146 = math.exp %145 : vector<8x128xf32>
    %cst_45 = arith.constant 1.000000e+00 : f32
    %147 = vector.broadcast %cst_45 : f32 to vector<8x128xf32>
    %148 = arith.addf %147, %146 : vector<8x128xf32>
    %149 = arith.divf %147, %148 : vector<8x128xf32>
    %150 = math.tanh %144 : vector<8x128xf32>
    %151 = vector.extract_strided_slice %149 {offsets = [0, 0], sizes = [8, 32], strides = [1, 1]} : vector<8x128xf32> to vector<8x32xf32>
    %152 = vector.extract_strided_slice %149 {offsets = [0, 32], sizes = [8, 32], strides = [1, 1]} : vector<8x128xf32> to vector<8x32xf32>
    %153 = vector.extract_strided_slice %150 {offsets = [0, 64], sizes = [8, 32], strides = [1, 1]} : vector<8x128xf32> to vector<8x32xf32>
    %154 = vector.extract_strided_slice %149 {offsets = [0, 96], sizes = [8, 32], strides = [1, 1]} : vector<8x128xf32> to vector<8x32xf32>
    %155 = arith.mulf %152, %106 : vector<8x32xf32>
    %156 = arith.mulf %151, %153 : vector<8x32xf32>
    %157 = arith.addf %155, %156 : vector<8x32xf32>
    %158 = math.tanh %157 : vector<8x32xf32>
    %159 = arith.mulf %154, %158 : vector<8x32xf32>
    %160 = arith.index_cast %138 : i32 to index
    %c0_46 = arith.constant 0 : index
    %c32_47 = arith.constant 32 : index
    %161 = vector.load %arg5[%160, %c0_46, %c32_47] : memref<8x8x64xf32, #tpu.memory_space<vmem>>, vector<1x8x32xf32>
    %162 = vector.shape_cast %161 : vector<1x8x32xf32> to vector<8x32xf32>
    %163 = vector.shape_cast %159 : vector<8x32xf32> to vector<1x8x32xf32>
    tpu.vector_store %arg5[%160, %c0_46, %c32_47], %163 {strides = array<i32>} : memref<8x8x64xf32, #tpu.memory_space<vmem>>, vector<1x8x32xf32>,
    %c3_i32 = arith.constant 3 : i32
    %c8_i32_48 = arith.constant 8 : i32
    %164 = arith.muli %c3_i32, %c8_i32_48 : i32
    %165 = tpu.assume_multiple %164, 8 : i32
    %166 = arith.index_cast %165 : i32 to index
    %c0_49 = arith.constant 0 : index
    %167 = vector.load %arg6[%166, %c0_49] : memref<64x256xf32, #tpu.memory_space<vmem>>, vector<8x128xf32>
    %cst_50 = arith.constant dense<0.000000e+00> : vector<8x128xf32>
    %168 = tpu.matmul %133, %8, %cst_50 {dimension_numbers = #tpu.dot_dimension_numbers<[1], [0], [0], [1], [0, 0, 1, 1], [], []>} : vector<8x32xf32>, vector<32x128xf32>, vector<8x128xf32> -> vector<8x128xf32>
    %169 = arith.addf %167, %168 : vector<8x128xf32>
    %170 = arith.negf %169 : vector<8x128xf32>
    %171 = math.exp %170 : vector<8x128xf32>
    %cst_51 = arith.constant 1.000000e+00 : f32
    %172 = vector.broadcast %cst_51 : f32 to vector<8x128xf32>
    %173 = arith.addf %172, %171 : vector<8x128xf32>
    %174 = arith.divf %172, %173 : vector<8x128xf32>
    %175 = math.tanh %169 : vector<8x128xf32>
    %176 = vector.extract_strided_slice %174 {offsets = [0, 0], sizes = [8, 32], strides = [1, 1]} : vector<8x128xf32> to vector<8x32xf32>
    %177 = vector.extract_strided_slice %174 {offsets = [0, 32], sizes = [8, 32], strides = [1, 1]} : vector<8x128xf32> to vector<8x32xf32>
    %178 = vector.extract_strided_slice %175 {offsets = [0, 64], sizes = [8, 32], strides = [1, 1]} : vector<8x128xf32> to vector<8x32xf32>
    %179 = vector.extract_strided_slice %174 {offsets = [0, 96], sizes = [8, 32], strides = [1, 1]} : vector<8x128xf32> to vector<8x32xf32>
    %180 = arith.mulf %177, %131 : vector<8x32xf32>
    %181 = arith.mulf %176, %178 : vector<8x32xf32>
    %182 = arith.addf %180, %181 : vector<8x32xf32>
    %183 = math.tanh %182 : vector<8x32xf32>
    %184 = arith.mulf %179, %183 : vector<8x32xf32>
    %185 = arith.index_cast %c3_i32 : i32 to index
    %c0_52 = arith.constant 0 : index
    %c0_53 = arith.constant 0 : index
    %186 = vector.load %arg5[%185, %c0_52, %c0_53] : memref<8x8x64xf32, #tpu.memory_space<vmem>>, vector<1x8x32xf32>
    %187 = vector.shape_cast %186 : vector<1x8x32xf32> to vector<8x32xf32>
    %188 = vector.shape_cast %184 : vector<8x32xf32> to vector<1x8x32xf32>
    tpu.vector_store %arg5[%185, %c0_52, %c0_53], %188 {strides = array<i32>} : memref<8x8x64xf32, #tpu.memory_space<vmem>>, vector<1x8x32xf32>,
    %c7_i32_54 = arith.constant 7 : i32
    %189 = arith.subi %c7_i32_54, %c3_i32 : i32
    %c8_i32_55 = arith.constant 8 : i32
    %190 = arith.muli %189, %c8_i32_55 : i32
    %191 = tpu.assume_multiple %190, 8 : i32
    %192 = arith.index_cast %191 : i32 to index
    %c128_56 = arith.constant 128 : index
    %193 = vector.load %arg6[%192, %c128_56] : memref<64x256xf32, #tpu.memory_space<vmem>>, vector<8x128xf32>
    %cst_57 = arith.constant dense<0.000000e+00> : vector<8x128xf32>
    %194 = tpu.matmul %159, %9, %cst_57 {dimension_numbers = #tpu.dot_dimension_numbers<[1], [0], [0], [1], [0, 0, 1, 1], [], []>} : vector<8x32xf32>, vector<32x128xf32>, vector<8x128xf32> -> vector<8x128xf32>
    %195 = arith.addf %193, %194 : vector<8x128xf32>
    %196 = arith.negf %195 : vector<8x128xf32>
    %197 = math.exp %196 : vector<8x128xf32>
    %cst_58 = arith.constant 1.000000e+00 : f32
    %198 = vector.broadcast %cst_58 : f32 to vector<8x128xf32>
    %199 = arith.addf %198, %197 : vector<8x128xf32>
    %200 = arith.divf %198, %199 : vector<8x128xf32>
    %201 = math.tanh %195 : vector<8x128xf32>
    %202 = vector.extract_strided_slice %200 {offsets = [0, 0], sizes = [8, 32], strides = [1, 1]} : vector<8x128xf32> to vector<8x32xf32>
    %203 = vector.extract_strided_slice %200 {offsets = [0, 32], sizes = [8, 32], strides = [1, 1]} : vector<8x128xf32> to vector<8x32xf32>
    %204 = vector.extract_strided_slice %201 {offsets = [0, 64], sizes = [8, 32], strides = [1, 1]} : vector<8x128xf32> to vector<8x32xf32>
    %205 = vector.extract_strided_slice %200 {offsets = [0, 96], sizes = [8, 32], strides = [1, 1]} : vector<8x128xf32> to vector<8x32xf32>
    %206 = arith.mulf %203, %157 : vector<8x32xf32>
    %207 = arith.mulf %202, %204 : vector<8x32xf32>
    %208 = arith.addf %206, %207 : vector<8x32xf32>
    %209 = math.tanh %208 : vector<8x32xf32>
    %210 = arith.mulf %205, %209 : vector<8x32xf32>
    %211 = arith.index_cast %189 : i32 to index
    %c0_59 = arith.constant 0 : index
    %c32_60 = arith.constant 32 : index
    %212 = vector.load %arg5[%211, %c0_59, %c32_60] : memref<8x8x64xf32, #tpu.memory_space<vmem>>, vector<1x8x32xf32>
    %213 = vector.shape_cast %212 : vector<1x8x32xf32> to vector<8x32xf32>
    %214 = vector.shape_cast %210 : vector<8x32xf32> to vector<1x8x32xf32>
    tpu.vector_store %arg5[%211, %c0_59, %c32_60], %214 {strides = array<i32>} : memref<8x8x64xf32, #tpu.memory_space<vmem>>, vector<1x8x32xf32>,
    %c4_i32 = arith.constant 4 : i32
    %c8_i32_61 = arith.constant 8 : i32
    %215 = arith.muli %c4_i32, %c8_i32_61 : i32
    %216 = tpu.assume_multiple %215, 8 : i32
    %217 = arith.index_cast %216 : i32 to index
    %c0_62 = arith.constant 0 : index
    %218 = vector.load %arg6[%217, %c0_62] : memref<64x256xf32, #tpu.memory_space<vmem>>, vector<8x128xf32>
    %cst_63 = arith.constant dense<0.000000e+00> : vector<8x128xf32>
    %219 = tpu.matmul %184, %8, %cst_63 {dimension_numbers = #tpu.dot_dimension_numbers<[1], [0], [0], [1], [0, 0, 1, 1], [], []>} : vector<8x32xf32>, vector<32x128xf32>, vector<8x128xf32> -> vector<8x128xf32>
    %220 = arith.addf %218, %219 : vector<8x128xf32>
    %221 = arith.negf %220 : vector<8x128xf32>
    %222 = math.exp %221 : vector<8x128xf32>
    %cst_64 = arith.constant 1.000000e+00 : f32
    %223 = vector.broadcast %cst_64 : f32 to vector<8x128xf32>
    %224 = arith.addf %223, %222 : vector<8x128xf32>
    %225 = arith.divf %223, %224 : vector<8x128xf32>
    %226 = math.tanh %220 : vector<8x128xf32>
    %227 = vector.extract_strided_slice %225 {offsets = [0, 0], sizes = [8, 32], strides = [1, 1]} : vector<8x128xf32> to vector<8x32xf32>
    %228 = vector.extract_strided_slice %225 {offsets = [0, 32], sizes = [8, 32], strides = [1, 1]} : vector<8x128xf32> to vector<8x32xf32>
    %229 = vector.extract_strided_slice %226 {offsets = [0, 64], sizes = [8, 32], strides = [1, 1]} : vector<8x128xf32> to vector<8x32xf32>
    %230 = vector.extract_strided_slice %225 {offsets = [0, 96], sizes = [8, 32], strides = [1, 1]} : vector<8x128xf32> to vector<8x32xf32>
    %231 = arith.mulf %228, %182 : vector<8x32xf32>
    %232 = arith.mulf %227, %229 : vector<8x32xf32>
    %233 = arith.addf %231, %232 : vector<8x32xf32>
    %234 = math.tanh %233 : vector<8x32xf32>
    %235 = arith.mulf %230, %234 : vector<8x32xf32>
    %236 = arith.index_cast %c4_i32 : i32 to index
    %c0_65 = arith.constant 0 : index
    %c0_66 = arith.constant 0 : index
    %237 = vector.load %arg5[%236, %c0_65, %c0_66] : memref<8x8x64xf32, #tpu.memory_space<vmem>>, vector<1x8x32xf32>
    %238 = vector.shape_cast %237 : vector<1x8x32xf32> to vector<8x32xf32>
    %239 = vector.shape_cast %235 : vector<8x32xf32> to vector<1x8x32xf32>
    tpu.vector_store %arg5[%236, %c0_65, %c0_66], %239 {strides = array<i32>} : memref<8x8x64xf32, #tpu.memory_space<vmem>>, vector<1x8x32xf32>,
    %c7_i32_67 = arith.constant 7 : i32
    %240 = arith.subi %c7_i32_67, %c4_i32 : i32
    %c8_i32_68 = arith.constant 8 : i32
    %241 = arith.muli %240, %c8_i32_68 : i32
    %242 = tpu.assume_multiple %241, 8 : i32
    %243 = arith.index_cast %242 : i32 to index
    %c128_69 = arith.constant 128 : index
    %244 = vector.load %arg6[%243, %c128_69] : memref<64x256xf32, #tpu.memory_space<vmem>>, vector<8x128xf32>
    %cst_70 = arith.constant dense<0.000000e+00> : vector<8x128xf32>
    %245 = tpu.matmul %210, %9, %cst_70 {dimension_numbers = #tpu.dot_dimension_numbers<[1], [0], [0], [1], [0, 0, 1, 1], [], []>} : vector<8x32xf32>, vector<32x128xf32>, vector<8x128xf32> -> vector<8x128xf32>
    %246 = arith.addf %244, %245 : vector<8x128xf32>
    %247 = arith.negf %246 : vector<8x128xf32>
    %248 = math.exp %247 : vector<8x128xf32>
    %cst_71 = arith.constant 1.000000e+00 : f32
    %249 = vector.broadcast %cst_71 : f32 to vector<8x128xf32>
    %250 = arith.addf %249, %248 : vector<8x128xf32>
    %251 = arith.divf %249, %250 : vector<8x128xf32>
    %252 = math.tanh %246 : vector<8x128xf32>
    %253 = vector.extract_strided_slice %251 {offsets = [0, 0], sizes = [8, 32], strides = [1, 1]} : vector<8x128xf32> to vector<8x32xf32>
    %254 = vector.extract_strided_slice %251 {offsets = [0, 32], sizes = [8, 32], strides = [1, 1]} : vector<8x128xf32> to vector<8x32xf32>
    %255 = vector.extract_strided_slice %252 {offsets = [0, 64], sizes = [8, 32], strides = [1, 1]} : vector<8x128xf32> to vector<8x32xf32>
    %256 = vector.extract_strided_slice %251 {offsets = [0, 96], sizes = [8, 32], strides = [1, 1]} : vector<8x128xf32> to vector<8x32xf32>
    %257 = arith.mulf %254, %208 : vector<8x32xf32>
    %258 = arith.mulf %253, %255 : vector<8x32xf32>
    %259 = arith.addf %257, %258 : vector<8x32xf32>
    %260 = math.tanh %259 : vector<8x32xf32>
    %261 = arith.mulf %256, %260 : vector<8x32xf32>
    %262 = arith.index_cast %240 : i32 to index
    %c0_72 = arith.constant 0 : index
    %c32_73 = arith.constant 32 : index
    %263 = vector.load %arg5[%262, %c0_72, %c32_73] : memref<8x8x64xf32, #tpu.memory_space<vmem>>, vector<1x8x32xf32>
    %264 = vector.shape_cast %263 : vector<1x8x32xf32> to vector<8x32xf32>
    %265 = vector.shape_cast %261 : vector<8x32xf32> to vector<1x8x32xf32>
    tpu.vector_store %arg5[%262, %c0_72, %c32_73], %265 {strides = array<i32>} : memref<8x8x64xf32, #tpu.memory_space<vmem>>, vector<1x8x32xf32>,
    %c5_i32 = arith.constant 5 : i32
    %c8_i32_74 = arith.constant 8 : i32
    %266 = arith.muli %c5_i32, %c8_i32_74 : i32
    %267 = tpu.assume_multiple %266, 8 : i32
    %268 = arith.index_cast %267 : i32 to index
    %c0_75 = arith.constant 0 : index
    %269 = vector.load %arg6[%268, %c0_75] : memref<64x256xf32, #tpu.memory_space<vmem>>, vector<8x128xf32>
    %cst_76 = arith.constant dense<0.000000e+00> : vector<8x128xf32>
    %270 = tpu.matmul %235, %8, %cst_76 {dimension_numbers = #tpu.dot_dimension_numbers<[1], [0], [0], [1], [0, 0, 1, 1], [], []>} : vector<8x32xf32>, vector<32x128xf32>, vector<8x128xf32> -> vector<8x128xf32>
    %271 = arith.addf %269, %270 : vector<8x128xf32>
    %272 = arith.negf %271 : vector<8x128xf32>
    %273 = math.exp %272 : vector<8x128xf32>
    %cst_77 = arith.constant 1.000000e+00 : f32
    %274 = vector.broadcast %cst_77 : f32 to vector<8x128xf32>
    %275 = arith.addf %274, %273 : vector<8x128xf32>
    %276 = arith.divf %274, %275 : vector<8x128xf32>
    %277 = math.tanh %271 : vector<8x128xf32>
    %278 = vector.extract_strided_slice %276 {offsets = [0, 0], sizes = [8, 32], strides = [1, 1]} : vector<8x128xf32> to vector<8x32xf32>
    %279 = vector.extract_strided_slice %276 {offsets = [0, 32], sizes = [8, 32], strides = [1, 1]} : vector<8x128xf32> to vector<8x32xf32>
    %280 = vector.extract_strided_slice %277 {offsets = [0, 64], sizes = [8, 32], strides = [1, 1]} : vector<8x128xf32> to vector<8x32xf32>
    %281 = vector.extract_strided_slice %276 {offsets = [0, 96], sizes = [8, 32], strides = [1, 1]} : vector<8x128xf32> to vector<8x32xf32>
    %282 = arith.mulf %279, %233 : vector<8x32xf32>
    %283 = arith.mulf %278, %280 : vector<8x32xf32>
    %284 = arith.addf %282, %283 : vector<8x32xf32>
    %285 = math.tanh %284 : vector<8x32xf32>
    %286 = arith.mulf %281, %285 : vector<8x32xf32>
    %287 = arith.index_cast %c5_i32 : i32 to index
    %c0_78 = arith.constant 0 : index
    %c0_79 = arith.constant 0 : index
    %288 = vector.load %arg5[%287, %c0_78, %c0_79] : memref<8x8x64xf32, #tpu.memory_space<vmem>>, vector<1x8x32xf32>
    %289 = vector.shape_cast %288 : vector<1x8x32xf32> to vector<8x32xf32>
    %290 = vector.shape_cast %286 : vector<8x32xf32> to vector<1x8x32xf32>
    tpu.vector_store %arg5[%287, %c0_78, %c0_79], %290 {strides = array<i32>} : memref<8x8x64xf32, #tpu.memory_space<vmem>>, vector<1x8x32xf32>,
    %c7_i32_80 = arith.constant 7 : i32
    %291 = arith.subi %c7_i32_80, %c5_i32 : i32
    %c8_i32_81 = arith.constant 8 : i32
    %292 = arith.muli %291, %c8_i32_81 : i32
    %293 = tpu.assume_multiple %292, 8 : i32
    %294 = arith.index_cast %293 : i32 to index
    %c128_82 = arith.constant 128 : index
    %295 = vector.load %arg6[%294, %c128_82] : memref<64x256xf32, #tpu.memory_space<vmem>>, vector<8x128xf32>
    %cst_83 = arith.constant dense<0.000000e+00> : vector<8x128xf32>
    %296 = tpu.matmul %261, %9, %cst_83 {dimension_numbers = #tpu.dot_dimension_numbers<[1], [0], [0], [1], [0, 0, 1, 1], [], []>} : vector<8x32xf32>, vector<32x128xf32>, vector<8x128xf32> -> vector<8x128xf32>
    %297 = arith.addf %295, %296 : vector<8x128xf32>
    %298 = arith.negf %297 : vector<8x128xf32>
    %299 = math.exp %298 : vector<8x128xf32>
    %cst_84 = arith.constant 1.000000e+00 : f32
    %300 = vector.broadcast %cst_84 : f32 to vector<8x128xf32>
    %301 = arith.addf %300, %299 : vector<8x128xf32>
    %302 = arith.divf %300, %301 : vector<8x128xf32>
    %303 = math.tanh %297 : vector<8x128xf32>
    %304 = vector.extract_strided_slice %302 {offsets = [0, 0], sizes = [8, 32], strides = [1, 1]} : vector<8x128xf32> to vector<8x32xf32>
    %305 = vector.extract_strided_slice %302 {offsets = [0, 32], sizes = [8, 32], strides = [1, 1]} : vector<8x128xf32> to vector<8x32xf32>
    %306 = vector.extract_strided_slice %303 {offsets = [0, 64], sizes = [8, 32], strides = [1, 1]} : vector<8x128xf32> to vector<8x32xf32>
    %307 = vector.extract_strided_slice %302 {offsets = [0, 96], sizes = [8, 32], strides = [1, 1]} : vector<8x128xf32> to vector<8x32xf32>
    %308 = arith.mulf %305, %259 : vector<8x32xf32>
    %309 = arith.mulf %304, %306 : vector<8x32xf32>
    %310 = arith.addf %308, %309 : vector<8x32xf32>
    %311 = math.tanh %310 : vector<8x32xf32>
    %312 = arith.mulf %307, %311 : vector<8x32xf32>
    %313 = arith.index_cast %291 : i32 to index
    %c0_85 = arith.constant 0 : index
    %c32_86 = arith.constant 32 : index
    %314 = vector.load %arg5[%313, %c0_85, %c32_86] : memref<8x8x64xf32, #tpu.memory_space<vmem>>, vector<1x8x32xf32>
    %315 = vector.shape_cast %314 : vector<1x8x32xf32> to vector<8x32xf32>
    %316 = vector.shape_cast %312 : vector<8x32xf32> to vector<1x8x32xf32>
    tpu.vector_store %arg5[%313, %c0_85, %c32_86], %316 {strides = array<i32>} : memref<8x8x64xf32, #tpu.memory_space<vmem>>, vector<1x8x32xf32>,
    %c6_i32 = arith.constant 6 : i32
    %c8_i32_87 = arith.constant 8 : i32
    %317 = arith.muli %c6_i32, %c8_i32_87 : i32
    %318 = tpu.assume_multiple %317, 8 : i32
    %319 = arith.index_cast %318 : i32 to index
    %c0_88 = arith.constant 0 : index
    %320 = vector.load %arg6[%319, %c0_88] : memref<64x256xf32, #tpu.memory_space<vmem>>, vector<8x128xf32>
    %cst_89 = arith.constant dense<0.000000e+00> : vector<8x128xf32>
    %321 = tpu.matmul %286, %8, %cst_89 {dimension_numbers = #tpu.dot_dimension_numbers<[1], [0], [0], [1], [0, 0, 1, 1], [], []>} : vector<8x32xf32>, vector<32x128xf32>, vector<8x128xf32> -> vector<8x128xf32>
    %322 = arith.addf %320, %321 : vector<8x128xf32>
    %323 = arith.negf %322 : vector<8x128xf32>
    %324 = math.exp %323 : vector<8x128xf32>
    %cst_90 = arith.constant 1.000000e+00 : f32
    %325 = vector.broadcast %cst_90 : f32 to vector<8x128xf32>
    %326 = arith.addf %325, %324 : vector<8x128xf32>
    %327 = arith.divf %325, %326 : vector<8x128xf32>
    %328 = math.tanh %322 : vector<8x128xf32>
    %329 = vector.extract_strided_slice %327 {offsets = [0, 0], sizes = [8, 32], strides = [1, 1]} : vector<8x128xf32> to vector<8x32xf32>
    %330 = vector.extract_strided_slice %327 {offsets = [0, 32], sizes = [8, 32], strides = [1, 1]} : vector<8x128xf32> to vector<8x32xf32>
    %331 = vector.extract_strided_slice %328 {offsets = [0, 64], sizes = [8, 32], strides = [1, 1]} : vector<8x128xf32> to vector<8x32xf32>
    %332 = vector.extract_strided_slice %327 {offsets = [0, 96], sizes = [8, 32], strides = [1, 1]} : vector<8x128xf32> to vector<8x32xf32>
    %333 = arith.mulf %330, %284 : vector<8x32xf32>
    %334 = arith.mulf %329, %331 : vector<8x32xf32>
    %335 = arith.addf %333, %334 : vector<8x32xf32>
    %336 = math.tanh %335 : vector<8x32xf32>
    %337 = arith.mulf %332, %336 : vector<8x32xf32>
    %338 = arith.index_cast %c6_i32 : i32 to index
    %c0_91 = arith.constant 0 : index
    %c0_92 = arith.constant 0 : index
    %339 = vector.load %arg5[%338, %c0_91, %c0_92] : memref<8x8x64xf32, #tpu.memory_space<vmem>>, vector<1x8x32xf32>
    %340 = vector.shape_cast %339 : vector<1x8x32xf32> to vector<8x32xf32>
    %341 = vector.shape_cast %337 : vector<8x32xf32> to vector<1x8x32xf32>
    tpu.vector_store %arg5[%338, %c0_91, %c0_92], %341 {strides = array<i32>} : memref<8x8x64xf32, #tpu.memory_space<vmem>>, vector<1x8x32xf32>,
    %c7_i32_93 = arith.constant 7 : i32
    %342 = arith.subi %c7_i32_93, %c6_i32 : i32
    %c8_i32_94 = arith.constant 8 : i32
    %343 = arith.muli %342, %c8_i32_94 : i32
    %344 = tpu.assume_multiple %343, 8 : i32
    %345 = arith.index_cast %344 : i32 to index
    %c128_95 = arith.constant 128 : index
    %346 = vector.load %arg6[%345, %c128_95] : memref<64x256xf32, #tpu.memory_space<vmem>>, vector<8x128xf32>
    %cst_96 = arith.constant dense<0.000000e+00> : vector<8x128xf32>
    %347 = tpu.matmul %312, %9, %cst_96 {dimension_numbers = #tpu.dot_dimension_numbers<[1], [0], [0], [1], [0, 0, 1, 1], [], []>} : vector<8x32xf32>, vector<32x128xf32>, vector<8x128xf32> -> vector<8x128xf32>
    %348 = arith.addf %346, %347 : vector<8x128xf32>
    %349 = arith.negf %348 : vector<8x128xf32>
    %350 = math.exp %349 : vector<8x128xf32>
    %cst_97 = arith.constant 1.000000e+00 : f32
    %351 = vector.broadcast %cst_97 : f32 to vector<8x128xf32>
    %352 = arith.addf %351, %350 : vector<8x128xf32>
    %353 = arith.divf %351, %352 : vector<8x128xf32>
    %354 = math.tanh %348 : vector<8x128xf32>
    %355 = vector.extract_strided_slice %353 {offsets = [0, 0], sizes = [8, 32], strides = [1, 1]} : vector<8x128xf32> to vector<8x32xf32>
    %356 = vector.extract_strided_slice %353 {offsets = [0, 32], sizes = [8, 32], strides = [1, 1]} : vector<8x128xf32> to vector<8x32xf32>
    %357 = vector.extract_strided_slice %354 {offsets = [0, 64], sizes = [8, 32], strides = [1, 1]} : vector<8x128xf32> to vector<8x32xf32>
    %358 = vector.extract_strided_slice %353 {offsets = [0, 96], sizes = [8, 32], strides = [1, 1]} : vector<8x128xf32> to vector<8x32xf32>
    %359 = arith.mulf %356, %310 : vector<8x32xf32>
    %360 = arith.mulf %355, %357 : vector<8x32xf32>
    %361 = arith.addf %359, %360 : vector<8x32xf32>
    %362 = math.tanh %361 : vector<8x32xf32>
    %363 = arith.mulf %358, %362 : vector<8x32xf32>
    %364 = arith.index_cast %342 : i32 to index
    %c0_98 = arith.constant 0 : index
    %c32_99 = arith.constant 32 : index
    %365 = vector.load %arg5[%364, %c0_98, %c32_99] : memref<8x8x64xf32, #tpu.memory_space<vmem>>, vector<1x8x32xf32>
    %366 = vector.shape_cast %365 : vector<1x8x32xf32> to vector<8x32xf32>
    %367 = vector.shape_cast %363 : vector<8x32xf32> to vector<1x8x32xf32>
    tpu.vector_store %arg5[%364, %c0_98, %c32_99], %367 {strides = array<i32>} : memref<8x8x64xf32, #tpu.memory_space<vmem>>, vector<1x8x32xf32>,
    %c7_i32_100 = arith.constant 7 : i32
    %c8_i32_101 = arith.constant 8 : i32
    %368 = arith.muli %c7_i32_100, %c8_i32_101 : i32
    %369 = tpu.assume_multiple %368, 8 : i32
    %370 = arith.index_cast %369 : i32 to index
    %c0_102 = arith.constant 0 : index
    %371 = vector.load %arg6[%370, %c0_102] : memref<64x256xf32, #tpu.memory_space<vmem>>, vector<8x128xf32>
    %cst_103 = arith.constant dense<0.000000e+00> : vector<8x128xf32>
    %372 = tpu.matmul %337, %8, %cst_103 {dimension_numbers = #tpu.dot_dimension_numbers<[1], [0], [0], [1], [0, 0, 1, 1], [], []>} : vector<8x32xf32>, vector<32x128xf32>, vector<8x128xf32> -> vector<8x128xf32>
    %373 = arith.addf %371, %372 : vector<8x128xf32>
    %374 = arith.negf %373 : vector<8x128xf32>
    %375 = math.exp %374 : vector<8x128xf32>
    %cst_104 = arith.constant 1.000000e+00 : f32
    %376 = vector.broadcast %cst_104 : f32 to vector<8x128xf32>
    %377 = arith.addf %376, %375 : vector<8x128xf32>
    %378 = arith.divf %376, %377 : vector<8x128xf32>
    %379 = math.tanh %373 : vector<8x128xf32>
    %380 = vector.extract_strided_slice %378 {offsets = [0, 0], sizes = [8, 32], strides = [1, 1]} : vector<8x128xf32> to vector<8x32xf32>
    %381 = vector.extract_strided_slice %378 {offsets = [0, 32], sizes = [8, 32], strides = [1, 1]} : vector<8x128xf32> to vector<8x32xf32>
    %382 = vector.extract_strided_slice %379 {offsets = [0, 64], sizes = [8, 32], strides = [1, 1]} : vector<8x128xf32> to vector<8x32xf32>
    %383 = vector.extract_strided_slice %378 {offsets = [0, 96], sizes = [8, 32], strides = [1, 1]} : vector<8x128xf32> to vector<8x32xf32>
    %384 = arith.mulf %381, %335 : vector<8x32xf32>
    %385 = arith.mulf %380, %382 : vector<8x32xf32>
    %386 = arith.addf %384, %385 : vector<8x32xf32>
    %387 = math.tanh %386 : vector<8x32xf32>
    %388 = arith.mulf %383, %387 : vector<8x32xf32>
    %389 = arith.index_cast %c7_i32_100 : i32 to index
    %c0_105 = arith.constant 0 : index
    %c0_106 = arith.constant 0 : index
    %390 = vector.load %arg5[%389, %c0_105, %c0_106] : memref<8x8x64xf32, #tpu.memory_space<vmem>>, vector<1x8x32xf32>
    %391 = vector.shape_cast %390 : vector<1x8x32xf32> to vector<8x32xf32>
    %392 = vector.shape_cast %388 : vector<8x32xf32> to vector<1x8x32xf32>
    tpu.vector_store %arg5[%389, %c0_105, %c0_106], %392 {strides = array<i32>} : memref<8x8x64xf32, #tpu.memory_space<vmem>>, vector<1x8x32xf32>,
    %c7_i32_107 = arith.constant 7 : i32
    %393 = arith.subi %c7_i32_107, %c7_i32_100 : i32
    %c8_i32_108 = arith.constant 8 : i32
    %394 = arith.muli %393, %c8_i32_108 : i32
    %395 = tpu.assume_multiple %394, 8 : i32
    %396 = arith.index_cast %395 : i32 to index
    %c128_109 = arith.constant 128 : index
    %397 = vector.load %arg6[%396, %c128_109] : memref<64x256xf32, #tpu.memory_space<vmem>>, vector<8x128xf32>
    %cst_110 = arith.constant dense<0.000000e+00> : vector<8x128xf32>
    %398 = tpu.matmul %363, %9, %cst_110 {dimension_numbers = #tpu.dot_dimension_numbers<[1], [0], [0], [1], [0, 0, 1, 1], [], []>} : vector<8x32xf32>, vector<32x128xf32>, vector<8x128xf32> -> vector<8x128xf32>
    %399 = arith.addf %397, %398 : vector<8x128xf32>
    %400 = arith.negf %399 : vector<8x128xf32>
    %401 = math.exp %400 : vector<8x128xf32>
    %cst_111 = arith.constant 1.000000e+00 : f32
    %402 = vector.broadcast %cst_111 : f32 to vector<8x128xf32>
    %403 = arith.addf %402, %401 : vector<8x128xf32>
    %404 = arith.divf %402, %403 : vector<8x128xf32>
    %405 = math.tanh %399 : vector<8x128xf32>
    %406 = vector.extract_strided_slice %404 {offsets = [0, 0], sizes = [8, 32], strides = [1, 1]} : vector<8x128xf32> to vector<8x32xf32>
    %407 = vector.extract_strided_slice %404 {offsets = [0, 32], sizes = [8, 32], strides = [1, 1]} : vector<8x128xf32> to vector<8x32xf32>
    %408 = vector.extract_strided_slice %405 {offsets = [0, 64], sizes = [8, 32], strides = [1, 1]} : vector<8x128xf32> to vector<8x32xf32>
    %409 = vector.extract_strided_slice %404 {offsets = [0, 96], sizes = [8, 32], strides = [1, 1]} : vector<8x128xf32> to vector<8x32xf32>
    %410 = arith.mulf %407, %361 : vector<8x32xf32>
    %411 = arith.mulf %406, %408 : vector<8x32xf32>
    %412 = arith.addf %410, %411 : vector<8x32xf32>
    %413 = math.tanh %412 : vector<8x32xf32>
    %414 = arith.mulf %409, %413 : vector<8x32xf32>
    %415 = arith.index_cast %393 : i32 to index
    %c0_112 = arith.constant 0 : index
    %c32_113 = arith.constant 32 : index
    %416 = vector.load %arg5[%415, %c0_112, %c32_113] : memref<8x8x64xf32, #tpu.memory_space<vmem>>, vector<1x8x32xf32>
    %417 = vector.shape_cast %416 : vector<1x8x32xf32> to vector<8x32xf32>
    %418 = vector.shape_cast %414 : vector<8x32xf32> to vector<1x8x32xf32>
    tpu.vector_store %arg5[%415, %c0_112, %c32_113], %418 {strides = array<i32>} : memref<8x8x64xf32, #tpu.memory_space<vmem>>, vector<1x8x32xf32>,
    %c8_i32_114 = arith.constant 8 : i32
    return
  }
}

module attributes {stable_mosaic.version = 11 : i64} {
  func.func @_bilstm_layer_kernel(%arg0: memref<8x8x64xf32, #tpu.memory_space<vmem>>, %arg1: memref<64x256xf32, #tpu.memory_space<vmem>>, %arg2: memref<1x256xf32, #tpu.memory_space<vmem>>, %arg3: memref<32x128xf32, #tpu.memory_space<vmem>>, %arg4: memref<32x128xf32, #tpu.memory_space<vmem>>, %arg5: memref<64x128xf32, #tpu.memory_space<vmem>>, %arg6: memref<1x128xf32, #tpu.memory_space<vmem>>, %arg7: memref<128x5xf32, #tpu.memory_space<vmem>>, %arg8: memref<1x5xf32, #tpu.memory_space<vmem>>, %arg9: memref<8x8x64xf32, #tpu.memory_space<vmem>>, %arg10: memref<8x5xf32, #tpu.memory_space<vmem>>, %arg11: memref<64x256xf32, #tpu.memory_space<vmem>>) attributes {dimension_semantics = [], scalar_prefetch = 0 : i64, scratch_operands = 1 : i64, tpu.core_type = #tpu.core_type<tc>} {
    %c0 = arith.constant 0 : index
    %c0_0 = arith.constant 0 : index
    %c0_1 = arith.constant 0 : index
    %0 = vector.load %arg0[%c0, %c0_0, %c0_1] : memref<8x8x64xf32, #tpu.memory_space<vmem>>, vector<8x8x64xf32>
    %1 = vector.shape_cast %0 : vector<8x8x64xf32> to vector<64x64xf32>
    %c0_2 = arith.constant 0 : index
    %c0_3 = arith.constant 0 : index
    %2 = vector.load %arg1[%c0_2, %c0_3] : memref<64x256xf32, #tpu.memory_space<vmem>>, vector<64x256xf32>
    %cst = arith.constant dense<0.000000e+00> : vector<64x256xf32>
    %3 = tpu.matmul %1, %2, %cst {dimension_numbers = #tpu.dot_dimension_numbers<[1], [0], [0], [1], [0, 0, 1, 1], [], []>} : vector<64x64xf32>, vector<64x256xf32>, vector<64x256xf32> -> vector<64x256xf32>
    %c0_4 = arith.constant 0 : index
    %c0_5 = arith.constant 0 : index
    %4 = vector.load %arg2[%c0_4, %c0_5] : memref<1x256xf32, #tpu.memory_space<vmem>>, vector<1x256xf32>
    %5 = vector.broadcast %4 : vector<1x256xf32> to vector<64x256xf32>
    %6 = arith.addf %3, %5 : vector<64x256xf32>
    %c0_6 = arith.constant 0 : index
    %c0_7 = arith.constant 0 : index
    %7 = vector.load %arg11[%c0_6, %c0_7] : memref<64x256xf32, #tpu.memory_space<vmem>>, vector<64x256xf32>
    tpu.vector_store %arg11[%c0_6, %c0_7], %6 {strides = array<i32>} : memref<64x256xf32, #tpu.memory_space<vmem>>, vector<64x256xf32>,
    %c0_8 = arith.constant 0 : index
    %c0_9 = arith.constant 0 : index
    %8 = vector.load %arg3[%c0_8, %c0_9] : memref<32x128xf32, #tpu.memory_space<vmem>>, vector<32x128xf32>
    %c0_10 = arith.constant 0 : index
    %c0_11 = arith.constant 0 : index
    %9 = vector.load %arg4[%c0_10, %c0_11] : memref<32x128xf32, #tpu.memory_space<vmem>>, vector<32x128xf32>
    %cst_12 = arith.constant 0.000000e+00 : f32
    %10 = vector.broadcast %cst_12 : f32 to vector<8x32xf32>
    %c0_i32 = arith.constant 0 : i32
    %c8_i32 = arith.constant 8 : i32
    %11 = arith.muli %c0_i32, %c8_i32 : i32
    %12 = tpu.assume_multiple %11, 8 : i32
    %13 = arith.index_cast %12 : i32 to index
    %c0_13 = arith.constant 0 : index
    %14 = vector.load %arg11[%13, %c0_13] : memref<64x256xf32, #tpu.memory_space<vmem>>, vector<8x128xf32>
    %cst_14 = arith.constant dense<0.000000e+00> : vector<8x128xf32>
    %15 = tpu.matmul %10, %8, %cst_14 {dimension_numbers = #tpu.dot_dimension_numbers<[1], [0], [0], [1], [0, 0, 1, 1], [], []>} : vector<8x32xf32>, vector<32x128xf32>, vector<8x128xf32> -> vector<8x128xf32>
    %16 = arith.addf %14, %15 : vector<8x128xf32>
    %17 = arith.negf %16 : vector<8x128xf32>
    %18 = math.exp %17 : vector<8x128xf32>
    %cst_15 = arith.constant 1.000000e+00 : f32
    %19 = vector.broadcast %cst_15 : f32 to vector<8x128xf32>
    %20 = arith.addf %19, %18 : vector<8x128xf32>
    %21 = arith.divf %19, %20 : vector<8x128xf32>
    %22 = math.tanh %16 : vector<8x128xf32>
    %23 = vector.extract_strided_slice %21 {offsets = [0, 0], sizes = [8, 32], strides = [1, 1]} : vector<8x128xf32> to vector<8x32xf32>
    %24 = vector.extract_strided_slice %21 {offsets = [0, 32], sizes = [8, 32], strides = [1, 1]} : vector<8x128xf32> to vector<8x32xf32>
    %25 = vector.extract_strided_slice %22 {offsets = [0, 64], sizes = [8, 32], strides = [1, 1]} : vector<8x128xf32> to vector<8x32xf32>
    %26 = vector.extract_strided_slice %21 {offsets = [0, 96], sizes = [8, 32], strides = [1, 1]} : vector<8x128xf32> to vector<8x32xf32>
    %27 = arith.mulf %24, %10 : vector<8x32xf32>
    %28 = arith.mulf %23, %25 : vector<8x32xf32>
    %29 = arith.addf %27, %28 : vector<8x32xf32>
    %30 = math.tanh %29 : vector<8x32xf32>
    %31 = arith.mulf %26, %30 : vector<8x32xf32>
    %32 = arith.index_cast %c0_i32 : i32 to index
    %c0_16 = arith.constant 0 : index
    %c0_17 = arith.constant 0 : index
    %33 = vector.load %arg9[%32, %c0_16, %c0_17] : memref<8x8x64xf32, #tpu.memory_space<vmem>>, vector<1x8x32xf32>
    %34 = vector.shape_cast %33 : vector<1x8x32xf32> to vector<8x32xf32>
    %35 = vector.shape_cast %31 : vector<8x32xf32> to vector<1x8x32xf32>
    tpu.vector_store %arg9[%32, %c0_16, %c0_17], %35 {strides = array<i32>} : memref<8x8x64xf32, #tpu.memory_space<vmem>>, vector<1x8x32xf32>,
    %c7_i32 = arith.constant 7 : i32
    %36 = arith.subi %c7_i32, %c0_i32 : i32
    %c8_i32_18 = arith.constant 8 : i32
    %37 = arith.muli %36, %c8_i32_18 : i32
    %38 = tpu.assume_multiple %37, 8 : i32
    %39 = arith.index_cast %38 : i32 to index
    %c128 = arith.constant 128 : index
    %40 = vector.load %arg11[%39, %c128] : memref<64x256xf32, #tpu.memory_space<vmem>>, vector<8x128xf32>
    %cst_19 = arith.constant dense<0.000000e+00> : vector<8x128xf32>
    %41 = tpu.matmul %10, %9, %cst_19 {dimension_numbers = #tpu.dot_dimension_numbers<[1], [0], [0], [1], [0, 0, 1, 1], [], []>} : vector<8x32xf32>, vector<32x128xf32>, vector<8x128xf32> -> vector<8x128xf32>
    %42 = arith.addf %40, %41 : vector<8x128xf32>
    %43 = arith.negf %42 : vector<8x128xf32>
    %44 = math.exp %43 : vector<8x128xf32>
    %cst_20 = arith.constant 1.000000e+00 : f32
    %45 = vector.broadcast %cst_20 : f32 to vector<8x128xf32>
    %46 = arith.addf %45, %44 : vector<8x128xf32>
    %47 = arith.divf %45, %46 : vector<8x128xf32>
    %48 = math.tanh %42 : vector<8x128xf32>
    %49 = vector.extract_strided_slice %47 {offsets = [0, 0], sizes = [8, 32], strides = [1, 1]} : vector<8x128xf32> to vector<8x32xf32>
    %50 = vector.extract_strided_slice %47 {offsets = [0, 32], sizes = [8, 32], strides = [1, 1]} : vector<8x128xf32> to vector<8x32xf32>
    %51 = vector.extract_strided_slice %48 {offsets = [0, 64], sizes = [8, 32], strides = [1, 1]} : vector<8x128xf32> to vector<8x32xf32>
    %52 = vector.extract_strided_slice %47 {offsets = [0, 96], sizes = [8, 32], strides = [1, 1]} : vector<8x128xf32> to vector<8x32xf32>
    %53 = arith.mulf %50, %10 : vector<8x32xf32>
    %54 = arith.mulf %49, %51 : vector<8x32xf32>
    %55 = arith.addf %53, %54 : vector<8x32xf32>
    %56 = math.tanh %55 : vector<8x32xf32>
    %57 = arith.mulf %52, %56 : vector<8x32xf32>
    %58 = arith.index_cast %36 : i32 to index
    %c0_21 = arith.constant 0 : index
    %c32 = arith.constant 32 : index
    %59 = vector.load %arg9[%58, %c0_21, %c32] : memref<8x8x64xf32, #tpu.memory_space<vmem>>, vector<1x8x32xf32>
    %60 = vector.shape_cast %59 : vector<1x8x32xf32> to vector<8x32xf32>
    %61 = vector.shape_cast %57 : vector<8x32xf32> to vector<1x8x32xf32>
    tpu.vector_store %arg9[%58, %c0_21, %c32], %61 {strides = array<i32>} : memref<8x8x64xf32, #tpu.memory_space<vmem>>, vector<1x8x32xf32>,
    %c1_i32 = arith.constant 1 : i32
    %c8_i32_22 = arith.constant 8 : i32
    %62 = arith.muli %c1_i32, %c8_i32_22 : i32
    %63 = tpu.assume_multiple %62, 8 : i32
    %64 = arith.index_cast %63 : i32 to index
    %c0_23 = arith.constant 0 : index
    %65 = vector.load %arg11[%64, %c0_23] : memref<64x256xf32, #tpu.memory_space<vmem>>, vector<8x128xf32>
    %cst_24 = arith.constant dense<0.000000e+00> : vector<8x128xf32>
    %66 = tpu.matmul %31, %8, %cst_24 {dimension_numbers = #tpu.dot_dimension_numbers<[1], [0], [0], [1], [0, 0, 1, 1], [], []>} : vector<8x32xf32>, vector<32x128xf32>, vector<8x128xf32> -> vector<8x128xf32>
    %67 = arith.addf %65, %66 : vector<8x128xf32>
    %68 = arith.negf %67 : vector<8x128xf32>
    %69 = math.exp %68 : vector<8x128xf32>
    %cst_25 = arith.constant 1.000000e+00 : f32
    %70 = vector.broadcast %cst_25 : f32 to vector<8x128xf32>
    %71 = arith.addf %70, %69 : vector<8x128xf32>
    %72 = arith.divf %70, %71 : vector<8x128xf32>
    %73 = math.tanh %67 : vector<8x128xf32>
    %74 = vector.extract_strided_slice %72 {offsets = [0, 0], sizes = [8, 32], strides = [1, 1]} : vector<8x128xf32> to vector<8x32xf32>
    %75 = vector.extract_strided_slice %72 {offsets = [0, 32], sizes = [8, 32], strides = [1, 1]} : vector<8x128xf32> to vector<8x32xf32>
    %76 = vector.extract_strided_slice %73 {offsets = [0, 64], sizes = [8, 32], strides = [1, 1]} : vector<8x128xf32> to vector<8x32xf32>
    %77 = vector.extract_strided_slice %72 {offsets = [0, 96], sizes = [8, 32], strides = [1, 1]} : vector<8x128xf32> to vector<8x32xf32>
    %78 = arith.mulf %75, %29 : vector<8x32xf32>
    %79 = arith.mulf %74, %76 : vector<8x32xf32>
    %80 = arith.addf %78, %79 : vector<8x32xf32>
    %81 = math.tanh %80 : vector<8x32xf32>
    %82 = arith.mulf %77, %81 : vector<8x32xf32>
    %83 = arith.index_cast %c1_i32 : i32 to index
    %c0_26 = arith.constant 0 : index
    %c0_27 = arith.constant 0 : index
    %84 = vector.load %arg9[%83, %c0_26, %c0_27] : memref<8x8x64xf32, #tpu.memory_space<vmem>>, vector<1x8x32xf32>
    %85 = vector.shape_cast %84 : vector<1x8x32xf32> to vector<8x32xf32>
    %86 = vector.shape_cast %82 : vector<8x32xf32> to vector<1x8x32xf32>
    tpu.vector_store %arg9[%83, %c0_26, %c0_27], %86 {strides = array<i32>} : memref<8x8x64xf32, #tpu.memory_space<vmem>>, vector<1x8x32xf32>,
    %c7_i32_28 = arith.constant 7 : i32
    %87 = arith.subi %c7_i32_28, %c1_i32 : i32
    %c8_i32_29 = arith.constant 8 : i32
    %88 = arith.muli %87, %c8_i32_29 : i32
    %89 = tpu.assume_multiple %88, 8 : i32
    %90 = arith.index_cast %89 : i32 to index
    %c128_30 = arith.constant 128 : index
    %91 = vector.load %arg11[%90, %c128_30] : memref<64x256xf32, #tpu.memory_space<vmem>>, vector<8x128xf32>
    %cst_31 = arith.constant dense<0.000000e+00> : vector<8x128xf32>
    %92 = tpu.matmul %57, %9, %cst_31 {dimension_numbers = #tpu.dot_dimension_numbers<[1], [0], [0], [1], [0, 0, 1, 1], [], []>} : vector<8x32xf32>, vector<32x128xf32>, vector<8x128xf32> -> vector<8x128xf32>
    %93 = arith.addf %91, %92 : vector<8x128xf32>
    %94 = arith.negf %93 : vector<8x128xf32>
    %95 = math.exp %94 : vector<8x128xf32>
    %cst_32 = arith.constant 1.000000e+00 : f32
    %96 = vector.broadcast %cst_32 : f32 to vector<8x128xf32>
    %97 = arith.addf %96, %95 : vector<8x128xf32>
    %98 = arith.divf %96, %97 : vector<8x128xf32>
    %99 = math.tanh %93 : vector<8x128xf32>
    %100 = vector.extract_strided_slice %98 {offsets = [0, 0], sizes = [8, 32], strides = [1, 1]} : vector<8x128xf32> to vector<8x32xf32>
    %101 = vector.extract_strided_slice %98 {offsets = [0, 32], sizes = [8, 32], strides = [1, 1]} : vector<8x128xf32> to vector<8x32xf32>
    %102 = vector.extract_strided_slice %99 {offsets = [0, 64], sizes = [8, 32], strides = [1, 1]} : vector<8x128xf32> to vector<8x32xf32>
    %103 = vector.extract_strided_slice %98 {offsets = [0, 96], sizes = [8, 32], strides = [1, 1]} : vector<8x128xf32> to vector<8x32xf32>
    %104 = arith.mulf %101, %55 : vector<8x32xf32>
    %105 = arith.mulf %100, %102 : vector<8x32xf32>
    %106 = arith.addf %104, %105 : vector<8x32xf32>
    %107 = math.tanh %106 : vector<8x32xf32>
    %108 = arith.mulf %103, %107 : vector<8x32xf32>
    %109 = arith.index_cast %87 : i32 to index
    %c0_33 = arith.constant 0 : index
    %c32_34 = arith.constant 32 : index
    %110 = vector.load %arg9[%109, %c0_33, %c32_34] : memref<8x8x64xf32, #tpu.memory_space<vmem>>, vector<1x8x32xf32>
    %111 = vector.shape_cast %110 : vector<1x8x32xf32> to vector<8x32xf32>
    %112 = vector.shape_cast %108 : vector<8x32xf32> to vector<1x8x32xf32>
    tpu.vector_store %arg9[%109, %c0_33, %c32_34], %112 {strides = array<i32>} : memref<8x8x64xf32, #tpu.memory_space<vmem>>, vector<1x8x32xf32>,
    %c2_i32 = arith.constant 2 : i32
    %c8_i32_35 = arith.constant 8 : i32
    %113 = arith.muli %c2_i32, %c8_i32_35 : i32
    %114 = tpu.assume_multiple %113, 8 : i32
    %115 = arith.index_cast %114 : i32 to index
    %c0_36 = arith.constant 0 : index
    %116 = vector.load %arg11[%115, %c0_36] : memref<64x256xf32, #tpu.memory_space<vmem>>, vector<8x128xf32>
    %cst_37 = arith.constant dense<0.000000e+00> : vector<8x128xf32>
    %117 = tpu.matmul %82, %8, %cst_37 {dimension_numbers = #tpu.dot_dimension_numbers<[1], [0], [0], [1], [0, 0, 1, 1], [], []>} : vector<8x32xf32>, vector<32x128xf32>, vector<8x128xf32> -> vector<8x128xf32>
    %118 = arith.addf %116, %117 : vector<8x128xf32>
    %119 = arith.negf %118 : vector<8x128xf32>
    %120 = math.exp %119 : vector<8x128xf32>
    %cst_38 = arith.constant 1.000000e+00 : f32
    %121 = vector.broadcast %cst_38 : f32 to vector<8x128xf32>
    %122 = arith.addf %121, %120 : vector<8x128xf32>
    %123 = arith.divf %121, %122 : vector<8x128xf32>
    %124 = math.tanh %118 : vector<8x128xf32>
    %125 = vector.extract_strided_slice %123 {offsets = [0, 0], sizes = [8, 32], strides = [1, 1]} : vector<8x128xf32> to vector<8x32xf32>
    %126 = vector.extract_strided_slice %123 {offsets = [0, 32], sizes = [8, 32], strides = [1, 1]} : vector<8x128xf32> to vector<8x32xf32>
    %127 = vector.extract_strided_slice %124 {offsets = [0, 64], sizes = [8, 32], strides = [1, 1]} : vector<8x128xf32> to vector<8x32xf32>
    %128 = vector.extract_strided_slice %123 {offsets = [0, 96], sizes = [8, 32], strides = [1, 1]} : vector<8x128xf32> to vector<8x32xf32>
    %129 = arith.mulf %126, %80 : vector<8x32xf32>
    %130 = arith.mulf %125, %127 : vector<8x32xf32>
    %131 = arith.addf %129, %130 : vector<8x32xf32>
    %132 = math.tanh %131 : vector<8x32xf32>
    %133 = arith.mulf %128, %132 : vector<8x32xf32>
    %134 = arith.index_cast %c2_i32 : i32 to index
    %c0_39 = arith.constant 0 : index
    %c0_40 = arith.constant 0 : index
    %135 = vector.load %arg9[%134, %c0_39, %c0_40] : memref<8x8x64xf32, #tpu.memory_space<vmem>>, vector<1x8x32xf32>
    %136 = vector.shape_cast %135 : vector<1x8x32xf32> to vector<8x32xf32>
    %137 = vector.shape_cast %133 : vector<8x32xf32> to vector<1x8x32xf32>
    tpu.vector_store %arg9[%134, %c0_39, %c0_40], %137 {strides = array<i32>} : memref<8x8x64xf32, #tpu.memory_space<vmem>>, vector<1x8x32xf32>,
    %c7_i32_41 = arith.constant 7 : i32
    %138 = arith.subi %c7_i32_41, %c2_i32 : i32
    %c8_i32_42 = arith.constant 8 : i32
    %139 = arith.muli %138, %c8_i32_42 : i32
    %140 = tpu.assume_multiple %139, 8 : i32
    %141 = arith.index_cast %140 : i32 to index
    %c128_43 = arith.constant 128 : index
    %142 = vector.load %arg11[%141, %c128_43] : memref<64x256xf32, #tpu.memory_space<vmem>>, vector<8x128xf32>
    %cst_44 = arith.constant dense<0.000000e+00> : vector<8x128xf32>
    %143 = tpu.matmul %108, %9, %cst_44 {dimension_numbers = #tpu.dot_dimension_numbers<[1], [0], [0], [1], [0, 0, 1, 1], [], []>} : vector<8x32xf32>, vector<32x128xf32>, vector<8x128xf32> -> vector<8x128xf32>
    %144 = arith.addf %142, %143 : vector<8x128xf32>
    %145 = arith.negf %144 : vector<8x128xf32>
    %146 = math.exp %145 : vector<8x128xf32>
    %cst_45 = arith.constant 1.000000e+00 : f32
    %147 = vector.broadcast %cst_45 : f32 to vector<8x128xf32>
    %148 = arith.addf %147, %146 : vector<8x128xf32>
    %149 = arith.divf %147, %148 : vector<8x128xf32>
    %150 = math.tanh %144 : vector<8x128xf32>
    %151 = vector.extract_strided_slice %149 {offsets = [0, 0], sizes = [8, 32], strides = [1, 1]} : vector<8x128xf32> to vector<8x32xf32>
    %152 = vector.extract_strided_slice %149 {offsets = [0, 32], sizes = [8, 32], strides = [1, 1]} : vector<8x128xf32> to vector<8x32xf32>
    %153 = vector.extract_strided_slice %150 {offsets = [0, 64], sizes = [8, 32], strides = [1, 1]} : vector<8x128xf32> to vector<8x32xf32>
    %154 = vector.extract_strided_slice %149 {offsets = [0, 96], sizes = [8, 32], strides = [1, 1]} : vector<8x128xf32> to vector<8x32xf32>
    %155 = arith.mulf %152, %106 : vector<8x32xf32>
    %156 = arith.mulf %151, %153 : vector<8x32xf32>
    %157 = arith.addf %155, %156 : vector<8x32xf32>
    %158 = math.tanh %157 : vector<8x32xf32>
    %159 = arith.mulf %154, %158 : vector<8x32xf32>
    %160 = arith.index_cast %138 : i32 to index
    %c0_46 = arith.constant 0 : index
    %c32_47 = arith.constant 32 : index
    %161 = vector.load %arg9[%160, %c0_46, %c32_47] : memref<8x8x64xf32, #tpu.memory_space<vmem>>, vector<1x8x32xf32>
    %162 = vector.shape_cast %161 : vector<1x8x32xf32> to vector<8x32xf32>
    %163 = vector.shape_cast %159 : vector<8x32xf32> to vector<1x8x32xf32>
    tpu.vector_store %arg9[%160, %c0_46, %c32_47], %163 {strides = array<i32>} : memref<8x8x64xf32, #tpu.memory_space<vmem>>, vector<1x8x32xf32>,
    %c3_i32 = arith.constant 3 : i32
    %c8_i32_48 = arith.constant 8 : i32
    %164 = arith.muli %c3_i32, %c8_i32_48 : i32
    %165 = tpu.assume_multiple %164, 8 : i32
    %166 = arith.index_cast %165 : i32 to index
    %c0_49 = arith.constant 0 : index
    %167 = vector.load %arg11[%166, %c0_49] : memref<64x256xf32, #tpu.memory_space<vmem>>, vector<8x128xf32>
    %cst_50 = arith.constant dense<0.000000e+00> : vector<8x128xf32>
    %168 = tpu.matmul %133, %8, %cst_50 {dimension_numbers = #tpu.dot_dimension_numbers<[1], [0], [0], [1], [0, 0, 1, 1], [], []>} : vector<8x32xf32>, vector<32x128xf32>, vector<8x128xf32> -> vector<8x128xf32>
    %169 = arith.addf %167, %168 : vector<8x128xf32>
    %170 = arith.negf %169 : vector<8x128xf32>
    %171 = math.exp %170 : vector<8x128xf32>
    %cst_51 = arith.constant 1.000000e+00 : f32
    %172 = vector.broadcast %cst_51 : f32 to vector<8x128xf32>
    %173 = arith.addf %172, %171 : vector<8x128xf32>
    %174 = arith.divf %172, %173 : vector<8x128xf32>
    %175 = math.tanh %169 : vector<8x128xf32>
    %176 = vector.extract_strided_slice %174 {offsets = [0, 0], sizes = [8, 32], strides = [1, 1]} : vector<8x128xf32> to vector<8x32xf32>
    %177 = vector.extract_strided_slice %174 {offsets = [0, 32], sizes = [8, 32], strides = [1, 1]} : vector<8x128xf32> to vector<8x32xf32>
    %178 = vector.extract_strided_slice %175 {offsets = [0, 64], sizes = [8, 32], strides = [1, 1]} : vector<8x128xf32> to vector<8x32xf32>
    %179 = vector.extract_strided_slice %174 {offsets = [0, 96], sizes = [8, 32], strides = [1, 1]} : vector<8x128xf32> to vector<8x32xf32>
    %180 = arith.mulf %177, %131 : vector<8x32xf32>
    %181 = arith.mulf %176, %178 : vector<8x32xf32>
    %182 = arith.addf %180, %181 : vector<8x32xf32>
    %183 = math.tanh %182 : vector<8x32xf32>
    %184 = arith.mulf %179, %183 : vector<8x32xf32>
    %185 = arith.index_cast %c3_i32 : i32 to index
    %c0_52 = arith.constant 0 : index
    %c0_53 = arith.constant 0 : index
    %186 = vector.load %arg9[%185, %c0_52, %c0_53] : memref<8x8x64xf32, #tpu.memory_space<vmem>>, vector<1x8x32xf32>
    %187 = vector.shape_cast %186 : vector<1x8x32xf32> to vector<8x32xf32>
    %188 = vector.shape_cast %184 : vector<8x32xf32> to vector<1x8x32xf32>
    tpu.vector_store %arg9[%185, %c0_52, %c0_53], %188 {strides = array<i32>} : memref<8x8x64xf32, #tpu.memory_space<vmem>>, vector<1x8x32xf32>,
    %c7_i32_54 = arith.constant 7 : i32
    %189 = arith.subi %c7_i32_54, %c3_i32 : i32
    %c8_i32_55 = arith.constant 8 : i32
    %190 = arith.muli %189, %c8_i32_55 : i32
    %191 = tpu.assume_multiple %190, 8 : i32
    %192 = arith.index_cast %191 : i32 to index
    %c128_56 = arith.constant 128 : index
    %193 = vector.load %arg11[%192, %c128_56] : memref<64x256xf32, #tpu.memory_space<vmem>>, vector<8x128xf32>
    %cst_57 = arith.constant dense<0.000000e+00> : vector<8x128xf32>
    %194 = tpu.matmul %159, %9, %cst_57 {dimension_numbers = #tpu.dot_dimension_numbers<[1], [0], [0], [1], [0, 0, 1, 1], [], []>} : vector<8x32xf32>, vector<32x128xf32>, vector<8x128xf32> -> vector<8x128xf32>
    %195 = arith.addf %193, %194 : vector<8x128xf32>
    %196 = arith.negf %195 : vector<8x128xf32>
    %197 = math.exp %196 : vector<8x128xf32>
    %cst_58 = arith.constant 1.000000e+00 : f32
    %198 = vector.broadcast %cst_58 : f32 to vector<8x128xf32>
    %199 = arith.addf %198, %197 : vector<8x128xf32>
    %200 = arith.divf %198, %199 : vector<8x128xf32>
    %201 = math.tanh %195 : vector<8x128xf32>
    %202 = vector.extract_strided_slice %200 {offsets = [0, 0], sizes = [8, 32], strides = [1, 1]} : vector<8x128xf32> to vector<8x32xf32>
    %203 = vector.extract_strided_slice %200 {offsets = [0, 32], sizes = [8, 32], strides = [1, 1]} : vector<8x128xf32> to vector<8x32xf32>
    %204 = vector.extract_strided_slice %201 {offsets = [0, 64], sizes = [8, 32], strides = [1, 1]} : vector<8x128xf32> to vector<8x32xf32>
    %205 = vector.extract_strided_slice %200 {offsets = [0, 96], sizes = [8, 32], strides = [1, 1]} : vector<8x128xf32> to vector<8x32xf32>
    %206 = arith.mulf %203, %157 : vector<8x32xf32>
    %207 = arith.mulf %202, %204 : vector<8x32xf32>
    %208 = arith.addf %206, %207 : vector<8x32xf32>
    %209 = math.tanh %208 : vector<8x32xf32>
    %210 = arith.mulf %205, %209 : vector<8x32xf32>
    %211 = arith.index_cast %189 : i32 to index
    %c0_59 = arith.constant 0 : index
    %c32_60 = arith.constant 32 : index
    %212 = vector.load %arg9[%211, %c0_59, %c32_60] : memref<8x8x64xf32, #tpu.memory_space<vmem>>, vector<1x8x32xf32>
    %213 = vector.shape_cast %212 : vector<1x8x32xf32> to vector<8x32xf32>
    %214 = vector.shape_cast %210 : vector<8x32xf32> to vector<1x8x32xf32>
    tpu.vector_store %arg9[%211, %c0_59, %c32_60], %214 {strides = array<i32>} : memref<8x8x64xf32, #tpu.memory_space<vmem>>, vector<1x8x32xf32>,
    %c4_i32 = arith.constant 4 : i32
    %c8_i32_61 = arith.constant 8 : i32
    %215 = arith.muli %c4_i32, %c8_i32_61 : i32
    %216 = tpu.assume_multiple %215, 8 : i32
    %217 = arith.index_cast %216 : i32 to index
    %c0_62 = arith.constant 0 : index
    %218 = vector.load %arg11[%217, %c0_62] : memref<64x256xf32, #tpu.memory_space<vmem>>, vector<8x128xf32>
    %cst_63 = arith.constant dense<0.000000e+00> : vector<8x128xf32>
    %219 = tpu.matmul %184, %8, %cst_63 {dimension_numbers = #tpu.dot_dimension_numbers<[1], [0], [0], [1], [0, 0, 1, 1], [], []>} : vector<8x32xf32>, vector<32x128xf32>, vector<8x128xf32> -> vector<8x128xf32>
    %220 = arith.addf %218, %219 : vector<8x128xf32>
    %221 = arith.negf %220 : vector<8x128xf32>
    %222 = math.exp %221 : vector<8x128xf32>
    %cst_64 = arith.constant 1.000000e+00 : f32
    %223 = vector.broadcast %cst_64 : f32 to vector<8x128xf32>
    %224 = arith.addf %223, %222 : vector<8x128xf32>
    %225 = arith.divf %223, %224 : vector<8x128xf32>
    %226 = math.tanh %220 : vector<8x128xf32>
    %227 = vector.extract_strided_slice %225 {offsets = [0, 0], sizes = [8, 32], strides = [1, 1]} : vector<8x128xf32> to vector<8x32xf32>
    %228 = vector.extract_strided_slice %225 {offsets = [0, 32], sizes = [8, 32], strides = [1, 1]} : vector<8x128xf32> to vector<8x32xf32>
    %229 = vector.extract_strided_slice %226 {offsets = [0, 64], sizes = [8, 32], strides = [1, 1]} : vector<8x128xf32> to vector<8x32xf32>
    %230 = vector.extract_strided_slice %225 {offsets = [0, 96], sizes = [8, 32], strides = [1, 1]} : vector<8x128xf32> to vector<8x32xf32>
    %231 = arith.mulf %228, %182 : vector<8x32xf32>
    %232 = arith.mulf %227, %229 : vector<8x32xf32>
    %233 = arith.addf %231, %232 : vector<8x32xf32>
    %234 = math.tanh %233 : vector<8x32xf32>
    %235 = arith.mulf %230, %234 : vector<8x32xf32>
    %236 = arith.index_cast %c4_i32 : i32 to index
    %c0_65 = arith.constant 0 : index
    %c0_66 = arith.constant 0 : index
    %237 = vector.load %arg9[%236, %c0_65, %c0_66] : memref<8x8x64xf32, #tpu.memory_space<vmem>>, vector<1x8x32xf32>
    %238 = vector.shape_cast %237 : vector<1x8x32xf32> to vector<8x32xf32>
    %239 = vector.shape_cast %235 : vector<8x32xf32> to vector<1x8x32xf32>
    tpu.vector_store %arg9[%236, %c0_65, %c0_66], %239 {strides = array<i32>} : memref<8x8x64xf32, #tpu.memory_space<vmem>>, vector<1x8x32xf32>,
    %c7_i32_67 = arith.constant 7 : i32
    %240 = arith.subi %c7_i32_67, %c4_i32 : i32
    %c8_i32_68 = arith.constant 8 : i32
    %241 = arith.muli %240, %c8_i32_68 : i32
    %242 = tpu.assume_multiple %241, 8 : i32
    %243 = arith.index_cast %242 : i32 to index
    %c128_69 = arith.constant 128 : index
    %244 = vector.load %arg11[%243, %c128_69] : memref<64x256xf32, #tpu.memory_space<vmem>>, vector<8x128xf32>
    %cst_70 = arith.constant dense<0.000000e+00> : vector<8x128xf32>
    %245 = tpu.matmul %210, %9, %cst_70 {dimension_numbers = #tpu.dot_dimension_numbers<[1], [0], [0], [1], [0, 0, 1, 1], [], []>} : vector<8x32xf32>, vector<32x128xf32>, vector<8x128xf32> -> vector<8x128xf32>
    %246 = arith.addf %244, %245 : vector<8x128xf32>
    %247 = arith.negf %246 : vector<8x128xf32>
    %248 = math.exp %247 : vector<8x128xf32>
    %cst_71 = arith.constant 1.000000e+00 : f32
    %249 = vector.broadcast %cst_71 : f32 to vector<8x128xf32>
    %250 = arith.addf %249, %248 : vector<8x128xf32>
    %251 = arith.divf %249, %250 : vector<8x128xf32>
    %252 = math.tanh %246 : vector<8x128xf32>
    %253 = vector.extract_strided_slice %251 {offsets = [0, 0], sizes = [8, 32], strides = [1, 1]} : vector<8x128xf32> to vector<8x32xf32>
    %254 = vector.extract_strided_slice %251 {offsets = [0, 32], sizes = [8, 32], strides = [1, 1]} : vector<8x128xf32> to vector<8x32xf32>
    %255 = vector.extract_strided_slice %252 {offsets = [0, 64], sizes = [8, 32], strides = [1, 1]} : vector<8x128xf32> to vector<8x32xf32>
    %256 = vector.extract_strided_slice %251 {offsets = [0, 96], sizes = [8, 32], strides = [1, 1]} : vector<8x128xf32> to vector<8x32xf32>
    %257 = arith.mulf %254, %208 : vector<8x32xf32>
    %258 = arith.mulf %253, %255 : vector<8x32xf32>
    %259 = arith.addf %257, %258 : vector<8x32xf32>
    %260 = math.tanh %259 : vector<8x32xf32>
    %261 = arith.mulf %256, %260 : vector<8x32xf32>
    %262 = arith.index_cast %240 : i32 to index
    %c0_72 = arith.constant 0 : index
    %c32_73 = arith.constant 32 : index
    %263 = vector.load %arg9[%262, %c0_72, %c32_73] : memref<8x8x64xf32, #tpu.memory_space<vmem>>, vector<1x8x32xf32>
    %264 = vector.shape_cast %263 : vector<1x8x32xf32> to vector<8x32xf32>
    %265 = vector.shape_cast %261 : vector<8x32xf32> to vector<1x8x32xf32>
    tpu.vector_store %arg9[%262, %c0_72, %c32_73], %265 {strides = array<i32>} : memref<8x8x64xf32, #tpu.memory_space<vmem>>, vector<1x8x32xf32>,
    %c5_i32 = arith.constant 5 : i32
    %c8_i32_74 = arith.constant 8 : i32
    %266 = arith.muli %c5_i32, %c8_i32_74 : i32
    %267 = tpu.assume_multiple %266, 8 : i32
    %268 = arith.index_cast %267 : i32 to index
    %c0_75 = arith.constant 0 : index
    %269 = vector.load %arg11[%268, %c0_75] : memref<64x256xf32, #tpu.memory_space<vmem>>, vector<8x128xf32>
    %cst_76 = arith.constant dense<0.000000e+00> : vector<8x128xf32>
    %270 = tpu.matmul %235, %8, %cst_76 {dimension_numbers = #tpu.dot_dimension_numbers<[1], [0], [0], [1], [0, 0, 1, 1], [], []>} : vector<8x32xf32>, vector<32x128xf32>, vector<8x128xf32> -> vector<8x128xf32>
    %271 = arith.addf %269, %270 : vector<8x128xf32>
    %272 = arith.negf %271 : vector<8x128xf32>
    %273 = math.exp %272 : vector<8x128xf32>
    %cst_77 = arith.constant 1.000000e+00 : f32
    %274 = vector.broadcast %cst_77 : f32 to vector<8x128xf32>
    %275 = arith.addf %274, %273 : vector<8x128xf32>
    %276 = arith.divf %274, %275 : vector<8x128xf32>
    %277 = math.tanh %271 : vector<8x128xf32>
    %278 = vector.extract_strided_slice %276 {offsets = [0, 0], sizes = [8, 32], strides = [1, 1]} : vector<8x128xf32> to vector<8x32xf32>
    %279 = vector.extract_strided_slice %276 {offsets = [0, 32], sizes = [8, 32], strides = [1, 1]} : vector<8x128xf32> to vector<8x32xf32>
    %280 = vector.extract_strided_slice %277 {offsets = [0, 64], sizes = [8, 32], strides = [1, 1]} : vector<8x128xf32> to vector<8x32xf32>
    %281 = vector.extract_strided_slice %276 {offsets = [0, 96], sizes = [8, 32], strides = [1, 1]} : vector<8x128xf32> to vector<8x32xf32>
    %282 = arith.mulf %279, %233 : vector<8x32xf32>
    %283 = arith.mulf %278, %280 : vector<8x32xf32>
    %284 = arith.addf %282, %283 : vector<8x32xf32>
    %285 = math.tanh %284 : vector<8x32xf32>
    %286 = arith.mulf %281, %285 : vector<8x32xf32>
    %287 = arith.index_cast %c5_i32 : i32 to index
    %c0_78 = arith.constant 0 : index
    %c0_79 = arith.constant 0 : index
    %288 = vector.load %arg9[%287, %c0_78, %c0_79] : memref<8x8x64xf32, #tpu.memory_space<vmem>>, vector<1x8x32xf32>
    %289 = vector.shape_cast %288 : vector<1x8x32xf32> to vector<8x32xf32>
    %290 = vector.shape_cast %286 : vector<8x32xf32> to vector<1x8x32xf32>
    tpu.vector_store %arg9[%287, %c0_78, %c0_79], %290 {strides = array<i32>} : memref<8x8x64xf32, #tpu.memory_space<vmem>>, vector<1x8x32xf32>,
    %c7_i32_80 = arith.constant 7 : i32
    %291 = arith.subi %c7_i32_80, %c5_i32 : i32
    %c8_i32_81 = arith.constant 8 : i32
    %292 = arith.muli %291, %c8_i32_81 : i32
    %293 = tpu.assume_multiple %292, 8 : i32
    %294 = arith.index_cast %293 : i32 to index
    %c128_82 = arith.constant 128 : index
    %295 = vector.load %arg11[%294, %c128_82] : memref<64x256xf32, #tpu.memory_space<vmem>>, vector<8x128xf32>
    %cst_83 = arith.constant dense<0.000000e+00> : vector<8x128xf32>
    %296 = tpu.matmul %261, %9, %cst_83 {dimension_numbers = #tpu.dot_dimension_numbers<[1], [0], [0], [1], [0, 0, 1, 1], [], []>} : vector<8x32xf32>, vector<32x128xf32>, vector<8x128xf32> -> vector<8x128xf32>
    %297 = arith.addf %295, %296 : vector<8x128xf32>
    %298 = arith.negf %297 : vector<8x128xf32>
    %299 = math.exp %298 : vector<8x128xf32>
    %cst_84 = arith.constant 1.000000e+00 : f32
    %300 = vector.broadcast %cst_84 : f32 to vector<8x128xf32>
    %301 = arith.addf %300, %299 : vector<8x128xf32>
    %302 = arith.divf %300, %301 : vector<8x128xf32>
    %303 = math.tanh %297 : vector<8x128xf32>
    %304 = vector.extract_strided_slice %302 {offsets = [0, 0], sizes = [8, 32], strides = [1, 1]} : vector<8x128xf32> to vector<8x32xf32>
    %305 = vector.extract_strided_slice %302 {offsets = [0, 32], sizes = [8, 32], strides = [1, 1]} : vector<8x128xf32> to vector<8x32xf32>
    %306 = vector.extract_strided_slice %303 {offsets = [0, 64], sizes = [8, 32], strides = [1, 1]} : vector<8x128xf32> to vector<8x32xf32>
    %307 = vector.extract_strided_slice %302 {offsets = [0, 96], sizes = [8, 32], strides = [1, 1]} : vector<8x128xf32> to vector<8x32xf32>
    %308 = arith.mulf %305, %259 : vector<8x32xf32>
    %309 = arith.mulf %304, %306 : vector<8x32xf32>
    %310 = arith.addf %308, %309 : vector<8x32xf32>
    %311 = math.tanh %310 : vector<8x32xf32>
    %312 = arith.mulf %307, %311 : vector<8x32xf32>
    %313 = arith.index_cast %291 : i32 to index
    %c0_85 = arith.constant 0 : index
    %c32_86 = arith.constant 32 : index
    %314 = vector.load %arg9[%313, %c0_85, %c32_86] : memref<8x8x64xf32, #tpu.memory_space<vmem>>, vector<1x8x32xf32>
    %315 = vector.shape_cast %314 : vector<1x8x32xf32> to vector<8x32xf32>
    %316 = vector.shape_cast %312 : vector<8x32xf32> to vector<1x8x32xf32>
    tpu.vector_store %arg9[%313, %c0_85, %c32_86], %316 {strides = array<i32>} : memref<8x8x64xf32, #tpu.memory_space<vmem>>, vector<1x8x32xf32>,
    %c6_i32 = arith.constant 6 : i32
    %c8_i32_87 = arith.constant 8 : i32
    %317 = arith.muli %c6_i32, %c8_i32_87 : i32
    %318 = tpu.assume_multiple %317, 8 : i32
    %319 = arith.index_cast %318 : i32 to index
    %c0_88 = arith.constant 0 : index
    %320 = vector.load %arg11[%319, %c0_88] : memref<64x256xf32, #tpu.memory_space<vmem>>, vector<8x128xf32>
    %cst_89 = arith.constant dense<0.000000e+00> : vector<8x128xf32>
    %321 = tpu.matmul %286, %8, %cst_89 {dimension_numbers = #tpu.dot_dimension_numbers<[1], [0], [0], [1], [0, 0, 1, 1], [], []>} : vector<8x32xf32>, vector<32x128xf32>, vector<8x128xf32> -> vector<8x128xf32>
    %322 = arith.addf %320, %321 : vector<8x128xf32>
    %323 = arith.negf %322 : vector<8x128xf32>
    %324 = math.exp %323 : vector<8x128xf32>
    %cst_90 = arith.constant 1.000000e+00 : f32
    %325 = vector.broadcast %cst_90 : f32 to vector<8x128xf32>
    %326 = arith.addf %325, %324 : vector<8x128xf32>
    %327 = arith.divf %325, %326 : vector<8x128xf32>
    %328 = math.tanh %322 : vector<8x128xf32>
    %329 = vector.extract_strided_slice %327 {offsets = [0, 0], sizes = [8, 32], strides = [1, 1]} : vector<8x128xf32> to vector<8x32xf32>
    %330 = vector.extract_strided_slice %327 {offsets = [0, 32], sizes = [8, 32], strides = [1, 1]} : vector<8x128xf32> to vector<8x32xf32>
    %331 = vector.extract_strided_slice %328 {offsets = [0, 64], sizes = [8, 32], strides = [1, 1]} : vector<8x128xf32> to vector<8x32xf32>
    %332 = vector.extract_strided_slice %327 {offsets = [0, 96], sizes = [8, 32], strides = [1, 1]} : vector<8x128xf32> to vector<8x32xf32>
    %333 = arith.mulf %330, %284 : vector<8x32xf32>
    %334 = arith.mulf %329, %331 : vector<8x32xf32>
    %335 = arith.addf %333, %334 : vector<8x32xf32>
    %336 = math.tanh %335 : vector<8x32xf32>
    %337 = arith.mulf %332, %336 : vector<8x32xf32>
    %338 = arith.index_cast %c6_i32 : i32 to index
    %c0_91 = arith.constant 0 : index
    %c0_92 = arith.constant 0 : index
    %339 = vector.load %arg9[%338, %c0_91, %c0_92] : memref<8x8x64xf32, #tpu.memory_space<vmem>>, vector<1x8x32xf32>
    %340 = vector.shape_cast %339 : vector<1x8x32xf32> to vector<8x32xf32>
    %341 = vector.shape_cast %337 : vector<8x32xf32> to vector<1x8x32xf32>
    tpu.vector_store %arg9[%338, %c0_91, %c0_92], %341 {strides = array<i32>} : memref<8x8x64xf32, #tpu.memory_space<vmem>>, vector<1x8x32xf32>,
    %c7_i32_93 = arith.constant 7 : i32
    %342 = arith.subi %c7_i32_93, %c6_i32 : i32
    %c8_i32_94 = arith.constant 8 : i32
    %343 = arith.muli %342, %c8_i32_94 : i32
    %344 = tpu.assume_multiple %343, 8 : i32
    %345 = arith.index_cast %344 : i32 to index
    %c128_95 = arith.constant 128 : index
    %346 = vector.load %arg11[%345, %c128_95] : memref<64x256xf32, #tpu.memory_space<vmem>>, vector<8x128xf32>
    %cst_96 = arith.constant dense<0.000000e+00> : vector<8x128xf32>
    %347 = tpu.matmul %312, %9, %cst_96 {dimension_numbers = #tpu.dot_dimension_numbers<[1], [0], [0], [1], [0, 0, 1, 1], [], []>} : vector<8x32xf32>, vector<32x128xf32>, vector<8x128xf32> -> vector<8x128xf32>
    %348 = arith.addf %346, %347 : vector<8x128xf32>
    %349 = arith.negf %348 : vector<8x128xf32>
    %350 = math.exp %349 : vector<8x128xf32>
    %cst_97 = arith.constant 1.000000e+00 : f32
    %351 = vector.broadcast %cst_97 : f32 to vector<8x128xf32>
    %352 = arith.addf %351, %350 : vector<8x128xf32>
    %353 = arith.divf %351, %352 : vector<8x128xf32>
    %354 = math.tanh %348 : vector<8x128xf32>
    %355 = vector.extract_strided_slice %353 {offsets = [0, 0], sizes = [8, 32], strides = [1, 1]} : vector<8x128xf32> to vector<8x32xf32>
    %356 = vector.extract_strided_slice %353 {offsets = [0, 32], sizes = [8, 32], strides = [1, 1]} : vector<8x128xf32> to vector<8x32xf32>
    %357 = vector.extract_strided_slice %354 {offsets = [0, 64], sizes = [8, 32], strides = [1, 1]} : vector<8x128xf32> to vector<8x32xf32>
    %358 = vector.extract_strided_slice %353 {offsets = [0, 96], sizes = [8, 32], strides = [1, 1]} : vector<8x128xf32> to vector<8x32xf32>
    %359 = arith.mulf %356, %310 : vector<8x32xf32>
    %360 = arith.mulf %355, %357 : vector<8x32xf32>
    %361 = arith.addf %359, %360 : vector<8x32xf32>
    %362 = math.tanh %361 : vector<8x32xf32>
    %363 = arith.mulf %358, %362 : vector<8x32xf32>
    %364 = arith.index_cast %342 : i32 to index
    %c0_98 = arith.constant 0 : index
    %c32_99 = arith.constant 32 : index
    %365 = vector.load %arg9[%364, %c0_98, %c32_99] : memref<8x8x64xf32, #tpu.memory_space<vmem>>, vector<1x8x32xf32>
    %366 = vector.shape_cast %365 : vector<1x8x32xf32> to vector<8x32xf32>
    %367 = vector.shape_cast %363 : vector<8x32xf32> to vector<1x8x32xf32>
    tpu.vector_store %arg9[%364, %c0_98, %c32_99], %367 {strides = array<i32>} : memref<8x8x64xf32, #tpu.memory_space<vmem>>, vector<1x8x32xf32>,
    %c7_i32_100 = arith.constant 7 : i32
    %c8_i32_101 = arith.constant 8 : i32
    %368 = arith.muli %c7_i32_100, %c8_i32_101 : i32
    %369 = tpu.assume_multiple %368, 8 : i32
    %370 = arith.index_cast %369 : i32 to index
    %c0_102 = arith.constant 0 : index
    %371 = vector.load %arg11[%370, %c0_102] : memref<64x256xf32, #tpu.memory_space<vmem>>, vector<8x128xf32>
    %cst_103 = arith.constant dense<0.000000e+00> : vector<8x128xf32>
    %372 = tpu.matmul %337, %8, %cst_103 {dimension_numbers = #tpu.dot_dimension_numbers<[1], [0], [0], [1], [0, 0, 1, 1], [], []>} : vector<8x32xf32>, vector<32x128xf32>, vector<8x128xf32> -> vector<8x128xf32>
    %373 = arith.addf %371, %372 : vector<8x128xf32>
    %374 = arith.negf %373 : vector<8x128xf32>
    %375 = math.exp %374 : vector<8x128xf32>
    %cst_104 = arith.constant 1.000000e+00 : f32
    %376 = vector.broadcast %cst_104 : f32 to vector<8x128xf32>
    %377 = arith.addf %376, %375 : vector<8x128xf32>
    %378 = arith.divf %376, %377 : vector<8x128xf32>
    %379 = math.tanh %373 : vector<8x128xf32>
    %380 = vector.extract_strided_slice %378 {offsets = [0, 0], sizes = [8, 32], strides = [1, 1]} : vector<8x128xf32> to vector<8x32xf32>
    %381 = vector.extract_strided_slice %378 {offsets = [0, 32], sizes = [8, 32], strides = [1, 1]} : vector<8x128xf32> to vector<8x32xf32>
    %382 = vector.extract_strided_slice %379 {offsets = [0, 64], sizes = [8, 32], strides = [1, 1]} : vector<8x128xf32> to vector<8x32xf32>
    %383 = vector.extract_strided_slice %378 {offsets = [0, 96], sizes = [8, 32], strides = [1, 1]} : vector<8x128xf32> to vector<8x32xf32>
    %384 = arith.mulf %381, %335 : vector<8x32xf32>
    %385 = arith.mulf %380, %382 : vector<8x32xf32>
    %386 = arith.addf %384, %385 : vector<8x32xf32>
    %387 = math.tanh %386 : vector<8x32xf32>
    %388 = arith.mulf %383, %387 : vector<8x32xf32>
    %389 = arith.index_cast %c7_i32_100 : i32 to index
    %c0_105 = arith.constant 0 : index
    %c0_106 = arith.constant 0 : index
    %390 = vector.load %arg9[%389, %c0_105, %c0_106] : memref<8x8x64xf32, #tpu.memory_space<vmem>>, vector<1x8x32xf32>
    %391 = vector.shape_cast %390 : vector<1x8x32xf32> to vector<8x32xf32>
    %392 = vector.shape_cast %388 : vector<8x32xf32> to vector<1x8x32xf32>
    tpu.vector_store %arg9[%389, %c0_105, %c0_106], %392 {strides = array<i32>} : memref<8x8x64xf32, #tpu.memory_space<vmem>>, vector<1x8x32xf32>,
    %c7_i32_107 = arith.constant 7 : i32
    %393 = arith.subi %c7_i32_107, %c7_i32_100 : i32
    %c8_i32_108 = arith.constant 8 : i32
    %394 = arith.muli %393, %c8_i32_108 : i32
    %395 = tpu.assume_multiple %394, 8 : i32
    %396 = arith.index_cast %395 : i32 to index
    %c128_109 = arith.constant 128 : index
    %397 = vector.load %arg11[%396, %c128_109] : memref<64x256xf32, #tpu.memory_space<vmem>>, vector<8x128xf32>
    %cst_110 = arith.constant dense<0.000000e+00> : vector<8x128xf32>
    %398 = tpu.matmul %363, %9, %cst_110 {dimension_numbers = #tpu.dot_dimension_numbers<[1], [0], [0], [1], [0, 0, 1, 1], [], []>} : vector<8x32xf32>, vector<32x128xf32>, vector<8x128xf32> -> vector<8x128xf32>
    %399 = arith.addf %397, %398 : vector<8x128xf32>
    %400 = arith.negf %399 : vector<8x128xf32>
    %401 = math.exp %400 : vector<8x128xf32>
    %cst_111 = arith.constant 1.000000e+00 : f32
    %402 = vector.broadcast %cst_111 : f32 to vector<8x128xf32>
    %403 = arith.addf %402, %401 : vector<8x128xf32>
    %404 = arith.divf %402, %403 : vector<8x128xf32>
    %405 = math.tanh %399 : vector<8x128xf32>
    %406 = vector.extract_strided_slice %404 {offsets = [0, 0], sizes = [8, 32], strides = [1, 1]} : vector<8x128xf32> to vector<8x32xf32>
    %407 = vector.extract_strided_slice %404 {offsets = [0, 32], sizes = [8, 32], strides = [1, 1]} : vector<8x128xf32> to vector<8x32xf32>
    %408 = vector.extract_strided_slice %405 {offsets = [0, 64], sizes = [8, 32], strides = [1, 1]} : vector<8x128xf32> to vector<8x32xf32>
    %409 = vector.extract_strided_slice %404 {offsets = [0, 96], sizes = [8, 32], strides = [1, 1]} : vector<8x128xf32> to vector<8x32xf32>
    %410 = arith.mulf %407, %361 : vector<8x32xf32>
    %411 = arith.mulf %406, %408 : vector<8x32xf32>
    %412 = arith.addf %410, %411 : vector<8x32xf32>
    %413 = math.tanh %412 : vector<8x32xf32>
    %414 = arith.mulf %409, %413 : vector<8x32xf32>
    %415 = arith.index_cast %393 : i32 to index
    %c0_112 = arith.constant 0 : index
    %c32_113 = arith.constant 32 : index
    %416 = vector.load %arg9[%415, %c0_112, %c32_113] : memref<8x8x64xf32, #tpu.memory_space<vmem>>, vector<1x8x32xf32>
    %417 = vector.shape_cast %416 : vector<1x8x32xf32> to vector<8x32xf32>
    %418 = vector.shape_cast %414 : vector<8x32xf32> to vector<1x8x32xf32>
    tpu.vector_store %arg9[%415, %c0_112, %c32_113], %418 {strides = array<i32>} : memref<8x8x64xf32, #tpu.memory_space<vmem>>, vector<1x8x32xf32>,
    %c8_i32_114 = arith.constant 8 : i32
    %c7 = arith.constant 7 : index
    %c0_115 = arith.constant 0 : index
    %c0_116 = arith.constant 0 : index
    %419 = vector.load %arg9[%c7, %c0_115, %c0_116] : memref<8x8x64xf32, #tpu.memory_space<vmem>>, vector<1x8x64xf32>
    %420 = vector.shape_cast %419 : vector<1x8x64xf32> to vector<8x64xf32>
    %c0_117 = arith.constant 0 : index
    %c0_118 = arith.constant 0 : index
    %421 = vector.load %arg5[%c0_117, %c0_118] : memref<64x128xf32, #tpu.memory_space<vmem>>, vector<64x128xf32>
    %cst_119 = arith.constant dense<0.000000e+00> : vector<8x128xf32>
    %422 = tpu.matmul %420, %421, %cst_119 {dimension_numbers = #tpu.dot_dimension_numbers<[1], [0], [0], [1], [0, 0, 1, 1], [], []>} : vector<8x64xf32>, vector<64x128xf32>, vector<8x128xf32> -> vector<8x128xf32>
    %c0_120 = arith.constant 0 : index
    %c0_121 = arith.constant 0 : index
    %423 = vector.load %arg6[%c0_120, %c0_121] : memref<1x128xf32, #tpu.memory_space<vmem>>, vector<1x128xf32>
    %424 = vector.broadcast %423 : vector<1x128xf32> to vector<8x128xf32>
    %425 = arith.addf %422, %424 : vector<8x128xf32>
    %cst_122 = arith.constant 0.000000e+00 : f32
    %426 = vector.broadcast %cst_122 : f32 to vector<8x128xf32>
    %427 = arith.maximumf %425, %426 : vector<8x128xf32>
    %c0_123 = arith.constant 0 : index
    %c0_124 = arith.constant 0 : index
    %428 = vector.load %arg7[%c0_123, %c0_124] : memref<128x5xf32, #tpu.memory_space<vmem>>, vector<128x5xf32>
    %cst_125 = arith.constant dense<0.000000e+00> : vector<8x5xf32>
    %429 = tpu.matmul %427, %428, %cst_125 {dimension_numbers = #tpu.dot_dimension_numbers<[1], [0], [0], [1], [0, 0, 1, 1], [], []>} : vector<8x128xf32>, vector<128x5xf32>, vector<8x5xf32> -> vector<8x5xf32>
    %c0_126 = arith.constant 0 : index
    %c0_127 = arith.constant 0 : index
    %430 = vector.load %arg8[%c0_126, %c0_127] : memref<1x5xf32, #tpu.memory_space<vmem>>, vector<1x5xf32>
    %431 = vector.broadcast %430 : vector<1x5xf32> to vector<8x5xf32>
    %432 = arith.addf %429, %431 : vector<8x5xf32>
    %c0_128 = arith.constant 0 : index
    %c0_129 = arith.constant 0 : index
    %433 = vector.load %arg10[%c0_128, %c0_129] : memref<8x5xf32, #tpu.memory_space<vmem>>, vector<8x5xf32>
    tpu.vector_store %arg10[%c0_128, %c0_129], %432 {strides = array<i32>} : memref<8x5xf32, #tpu.memory_space<vmem>>, vector<8x5xf32>,
    return
  }
}

</mosaic_0001>

<llo_original>
// kernel: lstm_model_forward.3
$region0: #{lstm_model_forward.3}
  #allocation0 [shape = 'u32[]', space=smem, size = 0x4, offset = 0x4, fixed_abs, tag = 'smem constant byte address 0x4 - core index']
  #allocation1 [shape = 'u32[144,128]{1,0:T(1,128)}', space=vmem, size = 0x12000, scoped, tag = 'internal scratch']
  #allocation2 [shape = 'f32[64,256]{1,0:T(8,128)}', space=vmem, size = 0x10000, scoped, tag = 'scratch operand']
  %s0 = inlined_call_operand.vmem [shape: f32[8,8,32], index: 0, kind: input, shape index: {}]
  %s1 = inlined_call_operand.vmem [shape: f32[32,256], index: 1, kind: input, shape index: {}]
  %s2 = inlined_call_operand.vmem [shape: f32[1,256], index: 2, kind: input, shape index: {}]
  %s3 = inlined_call_operand.vmem [shape: f32[32,128], index: 3, kind: input, shape index: {}]
  %s4 = inlined_call_operand.vmem [shape: f32[32,128], index: 4, kind: input, shape index: {}]
  %s5 = inlined_call_operand.vmem [shape: f32[8,8,64], index: 5, kind: output, shape index: {}]
  %s6 = sld [smem:[#allocation0]]
  $region30: #{lstm_model_forward.3} parent=0
    _
  %s8 = ssub.s32 1, %s6
  %s9 = scalar_select 0, %s8, %s6
  // Predicated region
  $region2: #{lstm_model_forward.3} parent=0 // pred_check
    _
  $region3: #{lstm_model_forward.3} parent=0 // pred_check_branch
    %11 = sbr.rel (0) target = $region5
  $region4: #{lstm_model_forward.3} parent=0 // pred_region
    _
  $region5: #{lstm_model_forward.3} parent=0 // pred_fallthru
    _
  // Predicated region
  $region6: #{lstm_model_forward.3} parent=0 // pred_check
    _
  $region7: #{lstm_model_forward.3} parent=0 // pred_check_branch
    %13 = sbr.rel (0) target = $region9
  $region8: #{lstm_model_forward.3} parent=0 // pred_region
    _
  $region9: #{lstm_model_forward.3} parent=0 // pred_fallthru
    _
  // Predicated region
  $region10: #{lstm_model_forward.3} parent=0 // pred_check
    _
  $region11: #{lstm_model_forward.3} parent=0 // pred_check_branch
    %15 = sbr.rel (0) target = $region13
  $region12: #{lstm_model_forward.3} parent=0 // pred_region
    _
  $region13: #{lstm_model_forward.3} parent=0 // pred_fallthru
    _
  // Predicated region
  $region14: #{lstm_model_forward.3} parent=0 // pred_check
    _
  $region15: #{lstm_model_forward.3} parent=0 // pred_check_branch
    %17 = sbr.rel (0) target = $region17
  $region16: #{lstm_model_forward.3} parent=0 // pred_region
    _
  $region17: #{lstm_model_forward.3} parent=0 // pred_fallthru
    _
  // Predicated region
  $region18: #{lstm_model_forward.3} parent=0 // pred_check
    _
  $region19: #{lstm_model_forward.3} parent=0 // pred_check_branch
    %19 = sbr.rel (0) target = $region21
  $region20: #{lstm_model_forward.3} parent=0 // pred_region
    _
  $region21: #{lstm_model_forward.3} parent=0 // pred_fallthru
    _
  %v20 = vld [vmem:[%s0] sm:$0xff]
  %v21 = vld [vmem:[%s0 + $0x8] sm:$0xff]
  %v22 = vld [vmem:[%s0 + $0x10] sm:$0xff]
  %v23 = vld [vmem:[%s0 + $0x18] sm:$0xff]
  %v24 = vld [vmem:[%s0 + $0x20] sm:$0xff]
  %v25 = vld [vmem:[%s0 + $0x28] sm:$0xff]
  %v26 = vld [vmem:[%s0 + $0x30] sm:$0xff]
  %v27 = vld [vmem:[%s0 + $0x38] sm:$0xff]
  %v28 = vld [vmem:[%s1] sm:$0xff]
  %v29 = vld [vmem:[%s1 + $0x8] sm:$0xff]
  %v30 = vld [vmem:[%s1 + $0x10] sm:$0xff]
  %v31 = vld [vmem:[%s1 + $0x18] sm:$0xff]
  %v32 = vld [vmem:[%s1 + $0x20] sm:$0xff]
  %v33 = vld [vmem:[%s1 + $0x28] sm:$0xff]
  %v34 = vld [vmem:[%s1 + $0x30] sm:$0xff]
  %v35 = vld [vmem:[%s1 + $0x38] sm:$0xff]
  %v36 = vld [vmem:[%s2] sm:$0x3]
  %v38 = vlaneseq
  %v39 = vshrl.u32 %v38, 7
  %v40 = vsub.s32 0, %v39
  %v41 = vrot.slane %v36, %v40
  %v42 = vlaneseq
  %v43 = vshrl.u32 %v42, 7
  %v44 = vsub.s32 1, %v43
  %v45 = vrot.slane %v36, %v44
  %vm48 = vcmask 261120
  %v50 = vsel %vm48, %v20, 0
  %v53 = vsel %vm48, %v21, 0
  %v56 = vsel %vm48, %v22, 0
  %v59 = vsel %vm48, %v23, 0
  %v62 = vsel %vm48, %v24, 0
  %v65 = vsel %vm48, %v25, 0
  %v68 = vsel %vm48, %v26, 0
  %v71 = vsel %vm48, %v27, 0
  %73 = vmatprep.subr.mxu0 %v29
  %74 = vmatpush1.msra.mxu0 %v28
  %75 = vmatprep.subr.mxu0 %v31
  %76 = vmatpush1.msra.mxu0 %v30
  %77 = vmatprep.subr.mxu0 %v33
  %78 = vmatpush1.msra.mxu0 %v32
  %79 = vmatprep.subr.mxu0 %v35
  %80 = vmatpush1.msra.mxu0 %v34
  %81 = vmatprep.subr.mxu0 0.0
  %82 = vmatpush1.msra.mxu0 0.0
  %83 = vmatprep.subr.mxu0 0.0
  %84 = vmatpush1.msra.mxu0 0.0
  %85 = vmatprep.subr.mxu0 0.0
  %86 = vmatpush1.msra.mxu0 0.0
  %87 = vmatprep.subr.mxu0 0.0
  %88 = vmatpush1.msra.mxu0 0.0
  %89 = vmatprep.subr.mxu0 0.0
  %90 = vmatpush1.msra.mxu0 0.0
  %91 = vmatprep.subr.mxu0 0.0
  %92 = vmatpush1.msra.mxu0 0.0
  %93 = vmatprep.subr.mxu0 0.0
  %94 = vmatpush1.msra.mxu0 0.0
  %95 = vmatprep.subr.mxu0 0.0
  %96 = vmatpush1.msra.mxu0 0.0
  %97 = vmatprep.subr.mxu0 0.0
  %98 = vmatpush1.msra.mxu0 0.0
  %99 = vmatprep.subr.mxu0 0.0
  %100 = vmatpush1.msra.mxu0 0.0
  %101 = vmatprep.subr.mxu0 0.0
  %102 = vmatpush1.msra.mxu0 0.0
  %103 = vmatprep.subr.mxu0 0.0
  %104 = vmatpush1.msra.mxu0 0.0
  %105 = vmatprep.subr.mxu0 0.0
  %106 = vmatpush1.msra.mxu0 0.0
  %107 = vmatprep.subr.mxu0 0.0
  %108 = vmatpush1.msra.mxu0 0.0
  %109 = vmatprep.subr.mxu0 0.0
  %110 = vmatpush1.msra.mxu0 0.0
  %111 = vmatprep.subr.mxu0 0.0
  %112 = vmatpush1.msra.mxu0 0.0
  %113 = vmatprep.subr.mxu0 0.0
  %114 = vmatpush1.msra.mxu0 0.0
  %115 = vmatprep.subr.mxu0 0.0
  %116 = vmatpush1.msra.mxu0 0.0
  %117 = vmatprep.subr.mxu0 0.0
  %118 = vmatpush1.msra.mxu0 0.0
  %119 = vmatprep.subr.mxu0 0.0
  %120 = vmatpush1.msra.mxu0 0.0
  %121 = vmatprep.subr.mxu0 0.0
  %122 = vmatpush1.msra.mxu0 0.0
  %123 = vmatprep.subr.mxu0 0.0
  %124 = vmatpush1.msra.mxu0 0.0
  %125 = vmatprep.subr.mxu0 0.0
  %126 = vmatpush1.msra.mxu0 0.0
  %127 = vmatprep.subr.mxu0 0.0
  %128 = vmatpush1.msra.mxu0 0.0
  %129 = vmatprep.subr.mxu0 0.0
  %130 = vmatpush1.msra.mxu0 0.0
  %131 = vmatprep.subr.mxu0 0.0
  %132 = vmatpush1.msra.mxu0 0.0
  %133 = vmatprep.subr.mxu0 0.0
  %134 = vmatpush1.msra.mxu0 0.0
  %135 = vmatprep.subr.mxu0 0.0
  %136 = vmatpush1.msra.mxu0 0.0
  %137 = vmatprep.mubr.f32.mxu0 0.0
  %138 = vmatmul.mubr.f32.gmra.mrb[0].mxu0 %v50
  %v139 = vpop.f32.mrb[0].mxu0
  %v140 = vadd.f32 %v41, %v139
  %v141 = vpop.f32.mrb[0].mxu0
  %v142 = vadd.f32 %v45, %v141
  %143 = vmatprep.mubr.f32.mxu0 0.0
  %144 = vmatmul.mubr.f32.gmra.mrb[0].mxu0 %v53
  %v145 = vpop.f32.mrb[0].mxu0
  %v146 = vadd.f32 %v41, %v145
  %v147 = vpop.f32.mrb[0].mxu0
  %v148 = vadd.f32 %v45, %v147
  %149 = vmatprep.mubr.f32.mxu0 0.0
  %150 = vmatmul.mubr.f32.gmra.mrb[0].mxu0 %v56
  %v151 = vpop.f32.mrb[0].mxu0
  %v152 = vadd.f32 %v41, %v151
  %v153 = vpop.f32.mrb[0].mxu0
  %v154 = vadd.f32 %v45, %v153
  %155 = vmatprep.mubr.f32.mxu0 0.0
  %156 = vmatmul.mubr.f32.gmra.mrb[0].mxu0 %v59
  %v157 = vpop.f32.mrb[0].mxu0
  %v158 = vadd.f32 %v41, %v157
  %v159 = vpop.f32.mrb[0].mxu0
  %v160 = vadd.f32 %v45, %v159
  %161 = vmatprep.mubr.f32.mxu0 0.0
  %162 = vmatmul.mubr.f32.gmra.mrb[0].mxu0 %v62
  %v163 = vpop.f32.mrb[0].mxu0
  %v164 = vadd.f32 %v41, %v163
  %v165 = vpop.f32.mrb[0].mxu0
  %v166 = vadd.f32 %v45, %v165
  %167 = vmatprep.mubr.f32.mxu0 0.0
  %168 = vmatmul.mubr.f32.gmra.mrb[0].mxu0 %v65
  %v169 = vpop.f32.mrb[0].mxu0
  %v170 = vadd.f32 %v41, %v169
  %v171 = vpop.f32.mrb[0].mxu0
  %v172 = vadd.f32 %v45, %v171
  %173 = vmatprep.mubr.f32.mxu0 0.0
  %174 = vmatmul.mubr.f32.gmra.mrb[0].mxu0 %v68
  %v175 = vpop.f32.mrb[0].mxu0
  %v176 = vadd.f32 %v41, %v175
  %v177 = vpop.f32.mrb[0].mxu0
  %v178 = vadd.f32 %v45, %v177
  %179 = vmatprep.mubr.f32.mxu0 0.0
  %180 = vmatmul.mubr.f32.gmra.mrb[0].mxu0 %v71
  %v181 = vpop.f32.mrb[0].mxu0
  %v182 = vadd.f32 %v41, %v181
  %v183 = vpop.f32.mrb[0].mxu0
  %v184 = vadd.f32 %v45, %v183
  %185 = vdwg.mxu0
  %186 = vst [vmem:[#allocation2] sm:$0xff] %v140
  %187 = vst [vmem:[#allocation2 + $0x8] sm:$0xff] %v142
  %188 = vst [vmem:[#allocation2 + $0x10] sm:$0xff] %v146
  %189 = vst [vmem:[#allocation2 + $0x18] sm:$0xff] %v148
  %190 = vst [vmem:[#allocation2 + $0x20] sm:$0xff] %v152
  %191 = vst [vmem:[#allocation2 + $0x28] sm:$0xff] %v154
  %192 = vst [vmem:[#allocation2 + $0x30] sm:$0xff] %v158
  %193 = vst [vmem:[#allocation2 + $0x38] sm:$0xff] %v160
  %194 = vst [vmem:[#allocation2 + $0x40] sm:$0xff] %v164
  %195 = vst [vmem:[#allocation2 + $0x48] sm:$0xff] %v166
  %196 = vst [vmem:[#allocation2 + $0x50] sm:$0xff] %v170
  %197 = vst [vmem:[#allocation2 + $0x58] sm:$0xff] %v172
  %198 = vst [vmem:[#allocation2 + $0x60] sm:$0xff] %v176
  %199 = vst [vmem:[#allocation2 + $0x68] sm:$0xff] %v178
  %200 = vst [vmem:[#allocation2 + $0x70] sm:$0xff] %v182
  %201 = vst [vmem:[#allocation2 + $0x78] sm:$0xff] %v184
  %v202 = vld [vmem:[%s3] sm:$0xff]
  %v203 = vld [vmem:[%s3 + $0x8] sm:$0xff]
  %v204 = vld [vmem:[%s3 + $0x10] sm:$0xff]
  %v205 = vld [vmem:[%s3 + $0x18] sm:$0xff]
  %v206 = vld [vmem:[%s4] sm:$0xff]
  %v207 = vld [vmem:[%s4 + $0x8] sm:$0xff]
  %v208 = vld [vmem:[%s4 + $0x10] sm:$0xff]
  %v209 = vld [vmem:[%s4 + $0x18] sm:$0xff]
  %s210 = smul.u32 0, 2
  %s211 = smul.addr %s210, 8
  %s212 = scalar_lea.vmem [#allocation2], %s211
  %v213 = vld [vmem:[%s212] sm:$0xff]
  %v215 = vsel %vm48, 0.0, 0
  %217 = vmatprep.subr.mxu0 0.0
  %218 = vmatpush1.msra.mxu0 %v202
  %219 = vmatprep.subr.mxu0 0.0
  %220 = vmatpush1.msra.mxu0 %v203
  %221 = vmatprep.subr.mxu0 0.0
  %222 = vmatpush1.msra.mxu0 %v204
  %223 = vmatprep.subr.mxu0 0.0
  %224 = vmatpush1.msra.mxu0 %v205
  %225 = vmatprep.subr.mxu0 0.0
  %226 = vmatpush1.msra.mxu0 0.0
  %227 = vmatprep.subr.mxu0 0.0
  %228 = vmatpush1.msra.mxu0 0.0
  %229 = vmatprep.subr.mxu0 0.0
  %230 = vmatpush1.msra.mxu0 0.0
  %231 = vmatprep.subr.mxu0 0.0
  %232 = vmatpush1.msra.mxu0 0.0
  %233 = vmatprep.subr.mxu0 0.0
  %234 = vmatpush1.msra.mxu0 0.0
  %235 = vmatprep.subr.mxu0 0.0
  %236 = vmatpush1.msra.mxu0 0.0
  %237 = vmatprep.subr.mxu0 0.0
  %238 = vmatpush1.msra.mxu0 0.0
  %239 = vmatprep.subr.mxu0 0.0
  %240 = vmatpush1.msra.mxu0 0.0
  %241 = vmatprep.subr.mxu0 0.0
  %242 = vmatpush1.msra.mxu0 0.0
  %243 = vmatprep.subr.mxu0 0.0
  %244 = vmatpush1.msra.mxu0 0.0
  %245 = vmatprep.subr.mxu0 0.0
  %246 = vmatpush1.msra.mxu0 0.0
  %247 = vmatprep.subr.mxu0 0.0
  %248 = vmatpush1.msra.mxu0 0.0
  %249 = vmatprep.subr.mxu0 0.0
  %250 = vmatpush1.msra.mxu0 0.0
  %251 = vmatprep.subr.mxu0 0.0
  %252 = vmatpush1.msra.mxu0 0.0
  %253 = vmatprep.subr.mxu0 0.0
  %254 = vmatpush1.msra.mxu0 0.0
  %255 = vmatprep.subr.mxu0 0.0
  %256 = vmatpush1.msra.mxu0 0.0
  %257 = vmatprep.subr.mxu0 0.0
  %258 = vmatpush1.msra.mxu0 0.0
  %259 = vmatprep.subr.mxu0 0.0
  %260 = vmatpush1.msra.mxu0 0.0
  %261 = vmatprep.subr.mxu0 0.0
  %262 = vmatpush1.msra.mxu0 0.0
  %263 = vmatprep.subr.mxu0 0.0
  %264 = vmatpush1.msra.mxu0 0.0
  %265 = vmatprep.subr.mxu0 0.0
  %266 = vmatpush1.msra.mxu0 0.0
  %267 = vmatprep.subr.mxu0 0.0
  %268 = vmatpush1.msra.mxu0 0.0
  %269 = vmatprep.subr.mxu0 0.0
  %270 = vmatpush1.msra.mxu0 0.0
  %271 = vmatprep.subr.mxu0 0.0
  %272 = vmatpush1.msra.mxu0 0.0
  %273 = vmatprep.subr.mxu0 0.0
  %274 = vmatpush1.msra.mxu0 0.0
  %275 = vmatprep.subr.mxu0 0.0
  %276 = vmatpush1.msra.mxu0 0.0
  %277 = vmatprep.subr.mxu0 0.0
  %278 = vmatpush1.msra.mxu0 0.0
  %279 = vmatprep.subr.mxu0 0.0
  %280 = vmatpush1.msra.mxu0 0.0
  %281 = vmatprep.mubr.f32.mxu0 0.0
  %282 = vmatmul.mubr.f32.gmra.mrb[0].mxu0 %v215
  %v283 = vpop.f32.mrb[0].mxu0
  %v284 = vadd.f32 0.0, %v283
  %v285 = vpop.f32.mrb[0].mxu0
  %286 = vdwg.mxu0
  %v287 = vadd.f32 %v213, %v284
  %v288 = vxor.u32 %v287, 2147483648
  %v289 = vmul.f32 %v288, 1.442695
  %v290 = vpow.pop %v289
  %v291 = vadd.f32 %v290, 1.0
  %v292 = vrcp.pop %v291
  %v293 = vmul.f32 1.0, %v292
  %v294 = vtanh.pop %v287
  %v295 = vmul.f32 %v293, 0.0
  %297 = vrot.lane.b32.xlu0 %v294, 64
  %v298 = vpop.permute.xlu0 %297
  %v300 = vmul.f32 %v293, %v298
  %302 = vrot.lane.b32.xlu0 %v300, 32
  %v303 = vpop.permute.xlu0 %302
  %v305 = vadd.f32 %v295, %v303
  %v306 = vtanh.pop %v305
  %308 = vrot.lane.b32.xlu0 %v306, 64
  %v309 = vpop.permute.xlu0 %308
  %v311 = vmul.f32 %v293, %v309
  %313 = vrot.lane.b32.xlu0 %v311, 32
  %v314 = vpop.permute.xlu0 %313
  %316 = vst.msk [vmem:[%s5] sm:$0xff] %vm48, %v314
  %s317 = smul.u32 7, 2
  %s318 = smul.addr %s317, 8
  %s319 = scalar_lea.vmem [#allocation2], %s318
  %v320 = vld [vmem:[%s319 + $0x8] sm:$0xff]
  %321 = vmatprep.subr.mxu0 0.0
  %322 = vmatpush1.msra.mxu0 %v206
  %323 = vmatprep.subr.mxu0 0.0
  %324 = vmatpush1.msra.mxu0 %v207
  %325 = vmatprep.subr.mxu0 0.0
  %326 = vmatpush1.msra.mxu0 %v208
  %327 = vmatprep.subr.mxu0 0.0
  %328 = vmatpush1.msra.mxu0 %v209
  %329 = vmatprep.subr.mxu0 0.0
  %330 = vmatpush1.msra.mxu0 0.0
  %331 = vmatprep.subr.mxu0 0.0
  %332 = vmatpush1.msra.mxu0 0.0
  %333 = vmatprep.subr.mxu0 0.0
  %334 = vmatpush1.msra.mxu0 0.0
  %335 = vmatprep.subr.mxu0 0.0
  %336 = vmatpush1.msra.mxu0 0.0
  %337 = vmatprep.subr.mxu0 0.0
  %338 = vmatpush1.msra.mxu0 0.0
  %339 = vmatprep.subr.mxu0 0.0
  %340 = vmatpush1.msra.mxu0 0.0
  %341 = vmatprep.subr.mxu0 0.0
  %342 = vmatpush1.msra.mxu0 0.0
  %343 = vmatprep.subr.mxu0 0.0
  %344 = vmatpush1.msra.mxu0 0.0
  %345 = vmatprep.subr.mxu0 0.0
  %346 = vmatpush1.msra.mxu0 0.0
  %347 = vmatprep.subr.mxu0 0.0
  %348 = vmatpush1.msra.mxu0 0.0
  %349 = vmatprep.subr.mxu0 0.0
  %350 = vmatpush1.msra.mxu0 0.0
  %351 = vmatprep.subr.mxu0 0.0
  %352 = vmatpush1.msra.mxu0 0.0
  %353 = vmatprep.subr.mxu0 0.0
  %354 = vmatpush1.msra.mxu0 0.0
  %355 = vmatprep.subr.mxu0 0.0
  %356 = vmatpush1.msra.mxu0 0.0
  %357 = vmatprep.subr.mxu0 0.0
  %358 = vmatpush1.msra.mxu0 0.0
  %359 = vmatprep.subr.mxu0 0.0
  %360 = vmatpush1.msra.mxu0 0.0
  %361 = vmatprep.subr.mxu0 0.0
  %362 = vmatpush1.msra.mxu0 0.0
  %363 = vmatprep.subr.mxu0 0.0
  %364 = vmatpush1.msra.mxu0 0.0
  %365 = vmatprep.subr.mxu0 0.0
  %366 = vmatpush1.msra.mxu0 0.0
  %367 = vmatprep.subr.mxu0 0.0
  %368 = vmatpush1.msra.mxu0 0.0
  %369 = vmatprep.subr.mxu0 0.0
  %370 = vmatpush1.msra.mxu0 0.0
  %371 = vmatprep.subr.mxu0 0.0
  %372 = vmatpush1.msra.mxu0 0.0
  %373 = vmatprep.subr.mxu0 0.0
  %374 = vmatpush1.msra.mxu0 0.0
  %375 = vmatprep.subr.mxu0 0.0
  %376 = vmatpush1.msra.mxu0 0.0
  %377 = vmatprep.subr.mxu0 0.0
  %378 = vmatpush1.msra.mxu0 0.0
  %379 = vmatprep.subr.mxu0 0.0
  %380 = vmatpush1.msra.mxu0 0.0
  %381 = vmatprep.subr.mxu0 0.0
  %382 = vmatpush1.msra.mxu0 0.0
  %383 = vmatprep.subr.mxu0 0.0
  %384 = vmatpush1.msra.mxu0 0.0
  %385 = vmatprep.mubr.f32.mxu0 0.0
  %386 = vmatmul.mubr.f32.gmra.mrb[0].mxu0 %v215
  %v387 = vpop.f32.mrb[0].mxu0
  %v388 = vadd.f32 0.0, %v387
  %v389 = vpop.f32.mrb[0].mxu0
  %390 = vdwg.mxu0
  %v391 = vadd.f32 %v320, %v388
  %v392 = vxor.u32 %v391, 2147483648
  %v393 = vmul.f32 %v392, 1.442695
  %v394 = vpow.pop %v393
  %v395 = vadd.f32 %v394, 1.0
  %v396 = vrcp.pop %v395
  %v397 = vmul.f32 1.0, %v396
  %v398 = vtanh.pop %v391
  %v399 = vmul.f32 %v397, 0.0
  %401 = vrot.lane.b32.xlu0 %v398, 64
  %v402 = vpop.permute.xlu0 %401
  %v404 = vmul.f32 %v397, %v402
  %406 = vrot.lane.b32.xlu0 %v404, 32
  %v407 = vpop.permute.xlu0 %406
  %v409 = vadd.f32 %v399, %v407
  %v410 = vtanh.pop %v409
  %412 = vrot.lane.b32.xlu0 %v410, 64
  %v413 = vpop.permute.xlu0 %412
  %v415 = vmul.f32 %v397, %v413
  %417 = vrot.lane.b32.xlu0 %v415, 64
  %v418 = vpop.permute.xlu0 %417
  %s420 = scalar_lea.vmem %s5, 56
  %vm421 = vcmask 523520
  %422 = vst.msk [vmem:[%s420] sm:$0xff] %vm421, %v418
  %s423 = smul.u32 1, 2
  %s424 = smul.addr %s423, 8
  %s425 = scalar_lea.vmem [#allocation2], %s424
  %v426 = vld [vmem:[%s425] sm:$0xff]
  %v427 = vsel %vm48, %v314, 0
  %429 = vmatprep.subr.mxu0 0.0
  %430 = vmatpush1.msra.mxu0 %v202
  %431 = vmatprep.subr.mxu0 0.0
  %432 = vmatpush1.msra.mxu0 %v203
  %433 = vmatprep.subr.mxu0 0.0
  %434 = vmatpush1.msra.mxu0 %v204
  %435 = vmatprep.subr.mxu0 0.0
  %436 = vmatpush1.msra.mxu0 %v205
  %437 = vmatprep.subr.mxu0 0.0
  %438 = vmatpush1.msra.mxu0 0.0
  %439 = vmatprep.subr.mxu0 0.0
  %440 = vmatpush1.msra.mxu0 0.0
  %441 = vmatprep.subr.mxu0 0.0
  %442 = vmatpush1.msra.mxu0 0.0
  %443 = vmatprep.subr.mxu0 0.0
  %444 = vmatpush1.msra.mxu0 0.0
  %445 = vmatprep.subr.mxu0 0.0
  %446 = vmatpush1.msra.mxu0 0.0
  %447 = vmatprep.subr.mxu0 0.0
  %448 = vmatpush1.msra.mxu0 0.0
  %449 = vmatprep.subr.mxu0 0.0
  %450 = vmatpush1.msra.mxu0 0.0
  %451 = vmatprep.subr.mxu0 0.0
  %452 = vmatpush1.msra.mxu0 0.0
  %453 = vmatprep.subr.mxu0 0.0
  %454 = vmatpush1.msra.mxu0 0.0
  %455 = vmatprep.subr.mxu0 0.0
  %456 = vmatpush1.msra.mxu0 0.0
  %457 = vmatprep.subr.mxu0 0.0
  %458 = vmatpush1.msra.mxu0 0.0
  %459 = vmatprep.subr.mxu0 0.0
  %460 = vmatpush1.msra.mxu0 0.0
  %461 = vmatprep.subr.mxu0 0.0
  %462 = vmatpush1.msra.mxu0 0.0
  %463 = vmatprep.subr.mxu0 0.0
  %464 = vmatpush1.msra.mxu0 0.0
  %465 = vmatprep.subr.mxu0 0.0
  %466 = vmatpush1.msra.mxu0 0.0
  %467 = vmatprep.subr.mxu0 0.0
  %468 = vmatpush1.msra.mxu0 0.0
  %469 = vmatprep.subr.mxu0 0.0
  %470 = vmatpush1.msra.mxu0 0.0
  %471 = vmatprep.subr.mxu0 0.0
  %472 = vmatpush1.msra.mxu0 0.0
  %473 = vmatprep.subr.mxu0 0.0
  %474 = vmatpush1.msra.mxu0 0.0
  %475 = vmatprep.subr.mxu0 0.0
  %476 = vmatpush1.msra.mxu0 0.0
  %477 = vmatprep.subr.mxu0 0.0
  %478 = vmatpush1.msra.mxu0 0.0
  %479 = vmatprep.subr.mxu0 0.0
  %480 = vmatpush1.msra.mxu0 0.0
  %481 = vmatprep.subr.mxu0 0.0
  %482 = vmatpush1.msra.mxu0 0.0
  %483 = vmatprep.subr.mxu0 0.0
  %484 = vmatpush1.msra.mxu0 0.0
  %485 = vmatprep.subr.mxu0 0.0
  %486 = vmatpush1.msra.mxu0 0.0
  %487 = vmatprep.subr.mxu0 0.0
  %488 = vmatpush1.msra.mxu0 0.0
  %489 = vmatprep.subr.mxu0 0.0
  %490 = vmatpush1.msra.mxu0 0.0
  %491 = vmatprep.subr.mxu0 0.0
  %492 = vmatpush1.msra.mxu0 0.0
  %493 = vmatprep.mubr.f32.mxu0 0.0
  %494 = vmatmul.mubr.f32.gmra.mrb[0].mxu0 %v427
  %v495 = vpop.f32.mrb[0].mxu0
  %v496 = vadd.f32 0.0, %v495
  %v497 = vpop.f32.mrb[0].mxu0
  %498 = vdwg.mxu0
  %v499 = vadd.f32 %v426, %v496
  %v500 = vxor.u32 %v499, 2147483648
  %v501 = vmul.f32 %v500, 1.442695
  %v502 = vpow.pop %v501
  %v503 = vadd.f32 %v502, 1.0
  %v504 = vrcp.pop %v503
  %v505 = vmul.f32 1.0, %v504
  %v506 = vtanh.pop %v499
  %v507 = vmul.f32 %v505, %v305
  %509 = vrot.lane.b32.xlu0 %v506, 64
  %v510 = vpop.permute.xlu0 %509
  %v512 = vmul.f32 %v505, %v510
  %514 = vrot.lane.b32.xlu0 %v512, 32
  %v515 = vpop.permute.xlu0 %514
  %v517 = vadd.f32 %v507, %v515
  %v518 = vtanh.pop %v517
  %520 = vrot.lane.b32.xlu0 %v518, 64
  %v521 = vpop.permute.xlu0 %520
  %v523 = vmul.f32 %v505, %v521
  %525 = vrot.lane.b32.xlu0 %v523, 32
  %v526 = vpop.permute.xlu0 %525
  %s528 = scalar_lea.vmem %s5, 8
  %529 = vst.msk [vmem:[%s528] sm:$0xff] %vm48, %v526
  %s530 = smul.u32 6, 2
  %s531 = smul.addr %s530, 8
  %s532 = scalar_lea.vmem [#allocation2], %s531
  %v533 = vld [vmem:[%s532 + $0x8] sm:$0xff]
  %534 = vrot.lane.b32.xlu0 %v415, 32
  %v535 = vpop.permute.xlu0 %534
  %v536 = vsel %vm48, %v535, 0
  %538 = vmatprep.subr.mxu0 0.0
  %539 = vmatpush1.msra.mxu0 %v206
  %540 = vmatprep.subr.mxu0 0.0
  %541 = vmatpush1.msra.mxu0 %v207
  %542 = vmatprep.subr.mxu0 0.0
  %543 = vmatpush1.msra.mxu0 %v208
  %544 = vmatprep.subr.mxu0 0.0
  %545 = vmatpush1.msra.mxu0 %v209
  %546 = vmatprep.subr.mxu0 0.0
  %547 = vmatpush1.msra.mxu0 0.0
  %548 = vmatprep.subr.mxu0 0.0
  %549 = vmatpush1.msra.mxu0 0.0
  %550 = vmatprep.subr.mxu0 0.0
  %551 = vmatpush1.msra.mxu0 0.0
  %552 = vmatprep.subr.mxu0 0.0
  %553 = vmatpush1.msra.mxu0 0.0
  %554 = vmatprep.subr.mxu0 0.0
  %555 = vmatpush1.msra.mxu0 0.0
  %556 = vmatprep.subr.mxu0 0.0
  %557 = vmatpush1.msra.mxu0 0.0
  %558 = vmatprep.subr.mxu0 0.0
  %559 = vmatpush1.msra.mxu0 0.0
  %560 = vmatprep.subr.mxu0 0.0
  %561 = vmatpush1.msra.mxu0 0.0
  %562 = vmatprep.subr.mxu0 0.0
  %563 = vmatpush1.msra.mxu0 0.0
  %564 = vmatprep.subr.mxu0 0.0
  %565 = vmatpush1.msra.mxu0 0.0
  %566 = vmatprep.subr.mxu0 0.0
  %567 = vmatpush1.msra.mxu0 0.0
  %568 = vmatprep.subr.mxu0 0.0
  %569 = vmatpush1.msra.mxu0 0.0
  %570 = vmatprep.subr.mxu0 0.0
  %571 = vmatpush1.msra.mxu0 0.0
  %572 = vmatprep.subr.mxu0 0.0
  %573 = vmatpush1.msra.mxu0 0.0
  %574 = vmatprep.subr.mxu0 0.0
  %575 = vmatpush1.msra.mxu0 0.0
  %576 = vmatprep.subr.mxu0 0.0
  %577 = vmatpush1.msra.mxu0 0.0
  %578 = vmatprep.subr.mxu0 0.0
  %579 = vmatpush1.msra.mxu0 0.0
  %580 = vmatprep.subr.mxu0 0.0
  %581 = vmatpush1.msra.mxu0 0.0
  %582 = vmatprep.subr.mxu0 0.0
  %583 = vmatpush1.msra.mxu0 0.0
  %584 = vmatprep.subr.mxu0 0.0
  %585 = vmatpush1.msra.mxu0 0.0
  %586 = vmatprep.subr.mxu0 0.0
  %587 = vmatpush1.msra.mxu0 0.0
  %588 = vmatprep.subr.mxu0 0.0
  %589 = vmatpush1.msra.mxu0 0.0
  %590 = vmatprep.subr.mxu0 0.0
  %591 = vmatpush1.msra.mxu0 0.0
  %592 = vmatprep.subr.mxu0 0.0
  %593 = vmatpush1.msra.mxu0 0.0
  %594 = vmatprep.subr.mxu0 0.0
  %595 = vmatpush1.msra.mxu0 0.0
  %596 = vmatprep.subr.mxu0 0.0
  %597 = vmatpush1.msra.mxu0 0.0
  %598 = vmatprep.subr.mxu0 0.0
  %599 = vmatpush1.msra.mxu0 0.0
  %600 = vmatprep.subr.mxu0 0.0
  %601 = vmatpush1.msra.mxu0 0.0
  %602 = vmatprep.mubr.f32.mxu0 0.0
  %603 = vmatmul.mubr.f32.gmra.mrb[0].mxu0 %v536
  %v604 = vpop.f32.mrb[0].mxu0
  %v605 = vadd.f32 0.0, %v604
  %v606 = vpop.f32.mrb[0].mxu0
  %607 = vdwg.mxu0
  %v608 = vadd.f32 %v533, %v605
  %v609 = vxor.u32 %v608, 2147483648
  %v610 = vmul.f32 %v609, 1.442695
  %v611 = vpow.pop %v610
  %v612 = vadd.f32 %v611, 1.0
  %v613 = vrcp.pop %v612
  %v614 = vmul.f32 1.0, %v613
  %v615 = vtanh.pop %v608
  %v616 = vmul.f32 %v614, %v409
  %618 = vrot.lane.b32.xlu0 %v615, 64
  %v619 = vpop.permute.xlu0 %618
  %v621 = vmul.f32 %v614, %v619
  %623 = vrot.lane.b32.xlu0 %v621, 32
  %v624 = vpop.permute.xlu0 %623
  %v626 = vadd.f32 %v616, %v624
  %v627 = vtanh.pop %v626
  %629 = vrot.lane.b32.xlu0 %v627, 64
  %v630 = vpop.permute.xlu0 %629
  %v632 = vmul.f32 %v614, %v630
  %634 = vrot.lane.b32.xlu0 %v632, 64
  %v635 = vpop.permute.xlu0 %634
  %s637 = scalar_lea.vmem %s5, 48
  %638 = vst.msk [vmem:[%s637] sm:$0xff] %vm421, %v635
  %s639 = smul.u32 2, 2
  %s640 = smul.addr %s639, 8
  %s641 = scalar_lea.vmem [#allocation2], %s640
  %v642 = vld [vmem:[%s641] sm:$0xff]
  %v643 = vsel %vm48, %v526, 0
  %645 = vmatprep.subr.mxu0 0.0
  %646 = vmatpush1.msra.mxu0 %v202
  %647 = vmatprep.subr.mxu0 0.0
  %648 = vmatpush1.msra.mxu0 %v203
  %649 = vmatprep.subr.mxu0 0.0
  %650 = vmatpush1.msra.mxu0 %v204
  %651 = vmatprep.subr.mxu0 0.0
  %652 = vmatpush1.msra.mxu0 %v205
  %653 = vmatprep.subr.mxu0 0.0
  %654 = vmatpush1.msra.mxu0 0.0
  %655 = vmatprep.subr.mxu0 0.0
  %656 = vmatpush1.msra.mxu0 0.0
  %657 = vmatprep.subr.mxu0 0.0
  %658 = vmatpush1.msra.mxu0 0.0
  %659 = vmatprep.subr.mxu0 0.0
  %660 = vmatpush1.msra.mxu0 0.0
  %661 = vmatprep.subr.mxu0 0.0
  %662 = vmatpush1.msra.mxu0 0.0
  %663 = vmatprep.subr.mxu0 0.0
  %664 = vmatpush1.msra.mxu0 0.0
  %665 = vmatprep.subr.mxu0 0.0
  %666 = vmatpush1.msra.mxu0 0.0
  %667 = vmatprep.subr.mxu0 0.0
  %668 = vmatpush1.msra.mxu0 0.0
  %669 = vmatprep.subr.mxu0 0.0
  %670 = vmatpush1.msra.mxu0 0.0
  %671 = vmatprep.subr.mxu0 0.0
  %672 = vmatpush1.msra.mxu0 0.0
  %673 = vmatprep.subr.mxu0 0.0
  %674 = vmatpush1.msra.mxu0 0.0
  %675 = vmatprep.subr.mxu0 0.0
  %676 = vmatpush1.msra.mxu0 0.0
  %677 = vmatprep.subr.mxu0 0.0
  %678 = vmatpush1.msra.mxu0 0.0
  %679 = vmatprep.subr.mxu0 0.0
  %680 = vmatpush1.msra.mxu0 0.0
  %681 = vmatprep.subr.mxu0 0.0
  %682 = vmatpush1.msra.mxu0 0.0
  %683 = vmatprep.subr.mxu0 0.0
  %684 = vmatpush1.msra.mxu0 0.0
  %685 = vmatprep.subr.mxu0 0.0
  %686 = vmatpush1.msra.mxu0 0.0
  %687 = vmatprep.subr.mxu0 0.0
  %688 = vmatpush1.msra.mxu0 0.0
  %689 = vmatprep.subr.mxu0 0.0
  %690 = vmatpush1.msra.mxu0 0.0
  %691 = vmatprep.subr.mxu0 0.0
  %692 = vmatpush1.msra.mxu0 0.0
  %693 = vmatprep.subr.mxu0 0.0
  %694 = vmatpush1.msra.mxu0 0.0
  %695 = vmatprep.subr.mxu0 0.0
  %696 = vmatpush1.msra.mxu0 0.0
  %697 = vmatprep.subr.mxu0 0.0
  %698 = vmatpush1.msra.mxu0 0.0
  %699 = vmatprep.subr.mxu0 0.0
  %700 = vmatpush1.msra.mxu0 0.0
  %701 = vmatprep.subr.mxu0 0.0
  %702 = vmatpush1.msra.mxu0 0.0
  %703 = vmatprep.subr.mxu0 0.0
  %704 = vmatpush1.msra.mxu0 0.0
  %705 = vmatprep.subr.mxu0 0.0
  %706 = vmatpush1.msra.mxu0 0.0
  %707 = vmatprep.subr.mxu0 0.0
  %708 = vmatpush1.msra.mxu0 0.0
  %709 = vmatprep.mubr.f32.mxu0 0.0
  %710 = vmatmul.mubr.f32.gmra.mrb[0].mxu0 %v643
  %v711 = vpop.f32.mrb[0].mxu0
  %v712 = vadd.f32 0.0, %v711
  %v713 = vpop.f32.mrb[0].mxu0
  %714 = vdwg.mxu0
  %v715 = vadd.f32 %v642, %v712
  %v716 = vxor.u32 %v715, 2147483648
  %v717 = vmul.f32 %v716, 1.442695
  %v718 = vpow.pop %v717
  %v719 = vadd.f32 %v718, 1.0
  %v720 = vrcp.pop %v719
  %v721 = vmul.f32 1.0, %v720
  %v722 = vtanh.pop %v715
  %v723 = vmul.f32 %v721, %v517
  %725 = vrot.lane.b32.xlu0 %v722, 64
  %v726 = vpop.permute.xlu0 %725
  %v728 = vmul.f32 %v721, %v726
  %730 = vrot.lane.b32.xlu0 %v728, 32
  %v731 = vpop.permute.xlu0 %730
  %v733 = vadd.f32 %v723, %v731
  %v734 = vtanh.pop %v733
  %736 = vrot.lane.b32.xlu0 %v734, 64
  %v737 = vpop.permute.xlu0 %736
  %v739 = vmul.f32 %v721, %v737
  %741 = vrot.lane.b32.xlu0 %v739, 32
  %v742 = vpop.permute.xlu0 %741
  %s744 = scalar_lea.vmem %s5, 16
  %745 = vst.msk [vmem:[%s744] sm:$0xff] %vm48, %v742
  %s746 = smul.u32 5, 2
  %s747 = smul.addr %s746, 8
  %s748 = scalar_lea.vmem [#allocation2], %s747
  %v749 = vld [vmem:[%s748 + $0x8] sm:$0xff]
  %750 = vrot.lane.b32.xlu0 %v632, 32
  %v751 = vpop.permute.xlu0 %750
  %v752 = vsel %vm48, %v751, 0
  %754 = vmatprep.subr.mxu0 0.0
  %755 = vmatpush1.msra.mxu0 %v206
  %756 = vmatprep.subr.mxu0 0.0
  %757 = vmatpush1.msra.mxu0 %v207
  %758 = vmatprep.subr.mxu0 0.0
  %759 = vmatpush1.msra.mxu0 %v208
  %760 = vmatprep.subr.mxu0 0.0
  %761 = vmatpush1.msra.mxu0 %v209
  %762 = vmatprep.subr.mxu0 0.0
  %763 = vmatpush1.msra.mxu0 0.0
  %764 = vmatprep.subr.mxu0 0.0
  %765 = vmatpush1.msra.mxu0 0.0
  %766 = vmatprep.subr.mxu0 0.0
  %767 = vmatpush1.msra.mxu0 0.0
  %768 = vmatprep.subr.mxu0 0.0
  %769 = vmatpush1.msra.mxu0 0.0
  %770 = vmatprep.subr.mxu0 0.0
  %771 = vmatpush1.msra.mxu0 0.0
  %772 = vmatprep.subr.mxu0 0.0
  %773 = vmatpush1.msra.mxu0 0.0
  %774 = vmatprep.subr.mxu0 0.0
  %775 = vmatpush1.msra.mxu0 0.0
  %776 = vmatprep.subr.mxu0 0.0
  %777 = vmatpush1.msra.mxu0 0.0
  %778 = vmatprep.subr.mxu0 0.0
  %779 = vmatpush1.msra.mxu0 0.0
  %780 = vmatprep.subr.mxu0 0.0
  %781 = vmatpush1.msra.mxu0 0.0
  %782 = vmatprep.subr.mxu0 0.0
  %783 = vmatpush1.msra.mxu0 0.0
  %784 = vmatprep.subr.mxu0 0.0
  %785 = vmatpush1.msra.mxu0 0.0
  %786 = vmatprep.subr.mxu0 0.0
  %787 = vmatpush1.msra.mxu0 0.0
  %788 = vmatprep.subr.mxu0 0.0
  %789 = vmatpush1.msra.mxu0 0.0
  %790 = vmatprep.subr.mxu0 0.0
  %791 = vmatpush1.msra.mxu0 0.0
  %792 = vmatprep.subr.mxu0 0.0
  %793 = vmatpush1.msra.mxu0 0.0
  %794 = vmatprep.subr.mxu0 0.0
  %795 = vmatpush1.msra.mxu0 0.0
  %796 = vmatprep.subr.mxu0 0.0
  %797 = vmatpush1.msra.mxu0 0.0
  %798 = vmatprep.subr.mxu0 0.0
  %799 = vmatpush1.msra.mxu0 0.0
  %800 = vmatprep.subr.mxu0 0.0
  %801 = vmatpush1.msra.mxu0 0.0
  %802 = vmatprep.subr.mxu0 0.0
  %803 = vmatpush1.msra.mxu0 0.0
  %804 = vmatprep.subr.mxu0 0.0
  %805 = vmatpush1.msra.mxu0 0.0
  %806 = vmatprep.subr.mxu0 0.0
  %807 = vmatpush1.msra.mxu0 0.0
  %808 = vmatprep.subr.mxu0 0.0
  %809 = vmatpush1.msra.mxu0 0.0
  %810 = vmatprep.subr.mxu0 0.0
  %811 = vmatpush1.msra.mxu0 0.0
  %812 = vmatprep.subr.mxu0 0.0
  %813 = vmatpush1.msra.mxu0 0.0
  %814 = vmatprep.subr.mxu0 0.0
  %815 = vmatpush1.msra.mxu0 0.0
  %816 = vmatprep.subr.mxu0 0.0
  %817 = vmatpush1.msra.mxu0 0.0
  %818 = vmatprep.mubr.f32.mxu0 0.0
  %819 = vmatmul.mubr.f32.gmra.mrb[0].mxu0 %v752
  %v820 = vpop.f32.mrb[0].mxu0
  %v821 = vadd.f32 0.0, %v820
  %v822 = vpop.f32.mrb[0].mxu0
  %823 = vdwg.mxu0
  %v824 = vadd.f32 %v749, %v821
  %v825 = vxor.u32 %v824, 2147483648
  %v826 = vmul.f32 %v825, 1.442695
  %v827 = vpow.pop %v826
  %v828 = vadd.f32 %v827, 1.0
  %v829 = vrcp.pop %v828
  %v830 = vmul.f32 1.0, %v829
  %v831 = vtanh.pop %v824
  %v832 = vmul.f32 %v830, %v626
  %834 = vrot.lane.b32.xlu0 %v831, 64
  %v835 = vpop.permute.xlu0 %834
  %v837 = vmul.f32 %v830, %v835
  %839 = vrot.lane.b32.xlu0 %v837, 32
  %v840 = vpop.permute.xlu0 %839
  %v842 = vadd.f32 %v832, %v840
  %v843 = vtanh.pop %v842
  %845 = vrot.lane.b32.xlu0 %v843, 64
  %v846 = vpop.permute.xlu0 %845
  %v848 = vmul.f32 %v830, %v846
  %850 = vrot.lane.b32.xlu0 %v848, 64
  %v851 = vpop.permute.xlu0 %850
  %s853 = scalar_lea.vmem %s5, 40
  %854 = vst.msk [vmem:[%s853] sm:$0xff] %vm421, %v851
  %s855 = smul.u32 3, 2
  %s856 = smul.addr %s855, 8
  %s857 = scalar_lea.vmem [#allocation2], %s856
  %v858 = vld [vmem:[%s857] sm:$0xff]
  %v859 = vsel %vm48, %v742, 0
  %861 = vmatprep.subr.mxu0 0.0
  %862 = vmatpush1.msra.mxu0 %v202
  %863 = vmatprep.subr.mxu0 0.0
  %864 = vmatpush1.msra.mxu0 %v203
  %865 = vmatprep.subr.mxu0 0.0
  %866 = vmatpush1.msra.mxu0 %v204
  %867 = vmatprep.subr.mxu0 0.0
  %868 = vmatpush1.msra.mxu0 %v205
  %869 = vmatprep.subr.mxu0 0.0
  %870 = vmatpush1.msra.mxu0 0.0
  %871 = vmatprep.subr.mxu0 0.0
  %872 = vmatpush1.msra.mxu0 0.0
  %873 = vmatprep.subr.mxu0 0.0
  %874 = vmatpush1.msra.mxu0 0.0
  %875 = vmatprep.subr.mxu0 0.0
  %876 = vmatpush1.msra.mxu0 0.0
  %877 = vmatprep.subr.mxu0 0.0
  %878 = vmatpush1.msra.mxu0 0.0
  %879 = vmatprep.subr.mxu0 0.0
  %880 = vmatpush1.msra.mxu0 0.0
  %881 = vmatprep.subr.mxu0 0.0
  %882 = vmatpush1.msra.mxu0 0.0
  %883 = vmatprep.subr.mxu0 0.0
  %884 = vmatpush1.msra.mxu0 0.0
  %885 = vmatprep.subr.mxu0 0.0
  %886 = vmatpush1.msra.mxu0 0.0
  %887 = vmatprep.subr.mxu0 0.0
  %888 = vmatpush1.msra.mxu0 0.0
  %889 = vmatprep.subr.mxu0 0.0
  %890 = vmatpush1.msra.mxu0 0.0
  %891 = vmatprep.subr.mxu0 0.0
  %892 = vmatpush1.msra.mxu0 0.0
  %893 = vmatprep.subr.mxu0 0.0
  %894 = vmatpush1.msra.mxu0 0.0
  %895 = vmatprep.subr.mxu0 0.0
  %896 = vmatpush1.msra.mxu0 0.0
  %897 = vmatprep.subr.mxu0 0.0
  %898 = vmatpush1.msra.mxu0 0.0
  %899 = vmatprep.subr.mxu0 0.0
  %900 = vmatpush1.msra.mxu0 0.0
  %901 = vmatprep.subr.mxu0 0.0
  %902 = vmatpush1.msra.mxu0 0.0
  %903 = vmatprep.subr.mxu0 0.0
  %904 = vmatpush1.msra.mxu0 0.0
  %905 = vmatprep.subr.mxu0 0.0
  %906 = vmatpush1.msra.mxu0 0.0
  %907 = vmatprep.subr.mxu0 0.0
  %908 = vmatpush1.msra.mxu0 0.0
  %909 = vmatprep.subr.mxu0 0.0
  %910 = vmatpush1.msra.mxu0 0.0
  %911 = vmatprep.subr.mxu0 0.0
  %912 = vmatpush1.msra.mxu0 0.0
  %913 = vmatprep.subr.mxu0 0.0
  %914 = vmatpush1.msra.mxu0 0.0
  %915 = vmatprep.subr.mxu0 0.0
  %916 = vmatpush1.msra.mxu0 0.0
  %917 = vmatprep.subr.mxu0 0.0
  %918 = vmatpush1.msra.mxu0 0.0
  %919 = vmatprep.subr.mxu0 0.0
  %920 = vmatpush1.msra.mxu0 0.0
  %921 = vmatprep.subr.mxu0 0.0
  %922 = vmatpush1.msra.mxu0 0.0
  %923 = vmatprep.subr.mxu0 0.0
  %924 = vmatpush1.msra.mxu0 0.0
  %925 = vmatprep.mubr.f32.mxu0 0.0
  %926 = vmatmul.mubr.f32.gmra.mrb[0].mxu0 %v859
  %v927 = vpop.f32.mrb[0].mxu0
  %v928 = vadd.f32 0.0, %v927
  %v929 = vpop.f32.mrb[0].mxu0
  %930 = vdwg.mxu0
  %v931 = vadd.f32 %v858, %v928
  %v932 = vxor.u32 %v931, 2147483648
  %v933 = vmul.f32 %v932, 1.442695
  %v934 = vpow.pop %v933
  %v935 = vadd.f32 %v934, 1.0
  %v936 = vrcp.pop %v935
  %v937 = vmul.f32 1.0, %v936
  %v938 = vtanh.pop %v931
  %v939 = vmul.f32 %v937, %v733
  %941 = vrot.lane.b32.xlu0 %v938, 64
  %v942 = vpop.permute.xlu0 %941
  %v944 = vmul.f32 %v937, %v942
  %946 = vrot.lane.b32.xlu0 %v944, 32
  %v947 = vpop.permute.xlu0 %946
  %v949 = vadd.f32 %v939, %v947
  %v950 = vtanh.pop %v949
  %952 = vrot.lane.b32.xlu0 %v950, 64
  %v953 = vpop.permute.xlu0 %952
  %v955 = vmul.f32 %v937, %v953
  %957 = vrot.lane.b32.xlu0 %v955, 32
  %v958 = vpop.permute.xlu0 %957
  %s960 = scalar_lea.vmem %s5, 24
  %961 = vst.msk [vmem:[%s960] sm:$0xff] %vm48, %v958
  %s962 = smul.u32 4, 2
  %s963 = smul.addr %s962, 8
  %s964 = scalar_lea.vmem [#allocation2], %s963
  %v965 = vld [vmem:[%s964 + $0x8] sm:$0xff]
  %966 = vrot.lane.b32.xlu0 %v848, 32
  %v967 = vpop.permute.xlu0 %966
  %v968 = vsel %vm48, %v967, 0
  %970 = vmatprep.subr.mxu0 0.0
  %971 = vmatpush1.msra.mxu0 %v206
  %972 = vmatprep.subr.mxu0 0.0
  %973 = vmatpush1.msra.mxu0 %v207
  %974 = vmatprep.subr.mxu0 0.0
  %975 = vmatpush1.msra.mxu0 %v208
  %976 = vmatprep.subr.mxu0 0.0
  %977 = vmatpush1.msra.mxu0 %v209
  %978 = vmatprep.subr.mxu0 0.0
  %979 = vmatpush1.msra.mxu0 0.0
  %980 = vmatprep.subr.mxu0 0.0
  %981 = vmatpush1.msra.mxu0 0.0
  %982 = vmatprep.subr.mxu0 0.0
  %983 = vmatpush1.msra.mxu0 0.0
  %984 = vmatprep.subr.mxu0 0.0
  %985 = vmatpush1.msra.mxu0 0.0
  %986 = vmatprep.subr.mxu0 0.0
  %987 = vmatpush1.msra.mxu0 0.0
  %988 = vmatprep.subr.mxu0 0.0
  %989 = vmatpush1.msra.mxu0 0.0
  %990 = vmatprep.subr.mxu0 0.0
  %991 = vmatpush1.msra.mxu0 0.0
  %992 = vmatprep.subr.mxu0 0.0
  %993 = vmatpush1.msra.mxu0 0.0
  %994 = vmatprep.subr.mxu0 0.0
  %995 = vmatpush1.msra.mxu0 0.0
  %996 = vmatprep.subr.mxu0 0.0
  %997 = vmatpush1.msra.mxu0 0.0
  %998 = vmatprep.subr.mxu0 0.0
  %999 = vmatpush1.msra.mxu0 0.0
  %1000 = vmatprep.subr.mxu0 0.0
  %1001 = vmatpush1.msra.mxu0 0.0
  %1002 = vmatprep.subr.mxu0 0.0
  %1003 = vmatpush1.msra.mxu0 0.0
  %1004 = vmatprep.subr.mxu0 0.0
  %1005 = vmatpush1.msra.mxu0 0.0
  %1006 = vmatprep.subr.mxu0 0.0
  %1007 = vmatpush1.msra.mxu0 0.0
  %1008 = vmatprep.subr.mxu0 0.0
  %1009 = vmatpush1.msra.mxu0 0.0
  %1010 = vmatprep.subr.mxu0 0.0
  %1011 = vmatpush1.msra.mxu0 0.0
  %1012 = vmatprep.subr.mxu0 0.0
  %1013 = vmatpush1.msra.mxu0 0.0
  %1014 = vmatprep.subr.mxu0 0.0
  %1015 = vmatpush1.msra.mxu0 0.0
  %1016 = vmatprep.subr.mxu0 0.0
  %1017 = vmatpush1.msra.mxu0 0.0
  %1018 = vmatprep.subr.mxu0 0.0
  %1019 = vmatpush1.msra.mxu0 0.0
  %1020 = vmatprep.subr.mxu0 0.0
  %1021 = vmatpush1.msra.mxu0 0.0
  %1022 = vmatprep.subr.mxu0 0.0
  %1023 = vmatpush1.msra.mxu0 0.0
  %1024 = vmatprep.subr.mxu0 0.0
  %1025 = vmatpush1.msra.mxu0 0.0
  %1026 = vmatprep.subr.mxu0 0.0
  %1027 = vmatpush1.msra.mxu0 0.0
  %1028 = vmatprep.subr.mxu0 0.0
  %1029 = vmatpush1.msra.mxu0 0.0
  %1030 = vmatprep.subr.mxu0 0.0
  %1031 = vmatpush1.msra.mxu0 0.0
  %1032 = vmatprep.subr.mxu0 0.0
  %1033 = vmatpush1.msra.mxu0 0.0
  %1034 = vmatprep.mubr.f32.mxu0 0.0
  %1035 = vmatmul.mubr.f32.gmra.mrb[0].mxu0 %v968
  %v1036 = vpop.f32.mrb[0].mxu0
  %v1037 = vadd.f32 0.0, %v1036
  %v1038 = vpop.f32.mrb[0].mxu0
  %1039 = vdwg.mxu0
  %v1040 = vadd.f32 %v965, %v1037
  %v1041 = vxor.u32 %v1040, 2147483648
  %v1042 = vmul.f32 %v1041, 1.442695
  %v1043 = vpow.pop %v1042
  %v1044 = vadd.f32 %v1043, 1.0
  %v1045 = vrcp.pop %v1044
  %v1046 = vmul.f32 1.0, %v1045
  %v1047 = vtanh.pop %v1040
  %v1048 = vmul.f32 %v1046, %v842
  %1050 = vrot.lane.b32.xlu0 %v1047, 64
  %v1051 = vpop.permute.xlu0 %1050
  %v1053 = vmul.f32 %v1046, %v1051
  %1055 = vrot.lane.b32.xlu0 %v1053, 32
  %v1056 = vpop.permute.xlu0 %1055
  %v1058 = vadd.f32 %v1048, %v1056
  %v1059 = vtanh.pop %v1058
  %1061 = vrot.lane.b32.xlu0 %v1059, 64
  %v1062 = vpop.permute.xlu0 %1061
  %v1064 = vmul.f32 %v1046, %v1062
  %1066 = vrot.lane.b32.xlu0 %v1064, 64
  %v1067 = vpop.permute.xlu0 %1066
  %s1069 = scalar_lea.vmem %s5, 32
  %1070 = vst.msk [vmem:[%s1069] sm:$0xff] %vm421, %v1067
  %v1071 = vld [vmem:[%s964] sm:$0xff]
  %v1072 = vsel %vm48, %v958, 0
  %1074 = vmatprep.subr.mxu0 0.0
  %1075 = vmatpush1.msra.mxu0 %v202
  %1076 = vmatprep.subr.mxu0 0.0
  %1077 = vmatpush1.msra.mxu0 %v203
  %1078 = vmatprep.subr.mxu0 0.0
  %1079 = vmatpush1.msra.mxu0 %v204
  %1080 = vmatprep.subr.mxu0 0.0
  %1081 = vmatpush1.msra.mxu0 %v205
  %1082 = vmatprep.subr.mxu0 0.0
  %1083 = vmatpush1.msra.mxu0 0.0
  %1084 = vmatprep.subr.mxu0 0.0
  %1085 = vmatpush1.msra.mxu0 0.0
  %1086 = vmatprep.subr.mxu0 0.0
  %1087 = vmatpush1.msra.mxu0 0.0
  %1088 = vmatprep.subr.mxu0 0.0
  %1089 = vmatpush1.msra.mxu0 0.0
  %1090 = vmatprep.subr.mxu0 0.0
  %1091 = vmatpush1.msra.mxu0 0.0
  %1092 = vmatprep.subr.mxu0 0.0
  %1093 = vmatpush1.msra.mxu0 0.0
  %1094 = vmatprep.subr.mxu0 0.0
  %1095 = vmatpush1.msra.mxu0 0.0
  %1096 = vmatprep.subr.mxu0 0.0
  %1097 = vmatpush1.msra.mxu0 0.0
  %1098 = vmatprep.subr.mxu0 0.0
  %1099 = vmatpush1.msra.mxu0 0.0
  %1100 = vmatprep.subr.mxu0 0.0
  %1101 = vmatpush1.msra.mxu0 0.0
  %1102 = vmatprep.subr.mxu0 0.0
  %1103 = vmatpush1.msra.mxu0 0.0
  %1104 = vmatprep.subr.mxu0 0.0
  %1105 = vmatpush1.msra.mxu0 0.0
  %1106 = vmatprep.subr.mxu0 0.0
  %1107 = vmatpush1.msra.mxu0 0.0
  %1108 = vmatprep.subr.mxu0 0.0
  %1109 = vmatpush1.msra.mxu0 0.0
  %1110 = vmatprep.subr.mxu0 0.0
  %1111 = vmatpush1.msra.mxu0 0.0
  %1112 = vmatprep.subr.mxu0 0.0
  %1113 = vmatpush1.msra.mxu0 0.0
  %1114 = vmatprep.subr.mxu0 0.0
  %1115 = vmatpush1.msra.mxu0 0.0
  %1116 = vmatprep.subr.mxu0 0.0
  %1117 = vmatpush1.msra.mxu0 0.0
  %1118 = vmatprep.subr.mxu0 0.0
  %1119 = vmatpush1.msra.mxu0 0.0
  %1120 = vmatprep.subr.mxu0 0.0
  %1121 = vmatpush1.msra.mxu0 0.0
  %1122 = vmatprep.subr.mxu0 0.0
  %1123 = vmatpush1.msra.mxu0 0.0
  %1124 = vmatprep.subr.mxu0 0.0
  %1125 = vmatpush1.msra.mxu0 0.0
  %1126 = vmatprep.subr.mxu0 0.0
  %1127 = vmatpush1.msra.mxu0 0.0
  %1128 = vmatprep.subr.mxu0 0.0
  %1129 = vmatpush1.msra.mxu0 0.0
  %1130 = vmatprep.subr.mxu0 0.0
  %1131 = vmatpush1.msra.mxu0 0.0
  %1132 = vmatprep.subr.mxu0 0.0
  %1133 = vmatpush1.msra.mxu0 0.0
  %1134 = vmatprep.subr.mxu0 0.0
  %1135 = vmatpush1.msra.mxu0 0.0
  %1136 = vmatprep.subr.mxu0 0.0
  %1137 = vmatpush1.msra.mxu0 0.0
  %1138 = vmatprep.mubr.f32.mxu0 0.0
  %1139 = vmatmul.mubr.f32.gmra.mrb[0].mxu0 %v1072
  %v1140 = vpop.f32.mrb[0].mxu0
  %v1141 = vadd.f32 0.0, %v1140
  %v1142 = vpop.f32.mrb[0].mxu0
  %1143 = vdwg.mxu0
  %v1144 = vadd.f32 %v1071, %v1141
  %v1145 = vxor.u32 %v1144, 2147483648
  %v1146 = vmul.f32 %v1145, 1.442695
  %v1147 = vpow.pop %v1146
  %v1148 = vadd.f32 %v1147, 1.0
  %v1149 = vrcp.pop %v1148
  %v1150 = vmul.f32 1.0, %v1149
  %v1151 = vtanh.pop %v1144
  %v1152 = vmul.f32 %v1150, %v949
  %1154 = vrot.lane.b32.xlu0 %v1151, 64
  %v1155 = vpop.permute.xlu0 %1154
  %v1157 = vmul.f32 %v1150, %v1155
  %1159 = vrot.lane.b32.xlu0 %v1157, 32
  %v1160 = vpop.permute.xlu0 %1159
  %v1162 = vadd.f32 %v1152, %v1160
  %v1163 = vtanh.pop %v1162
  %1165 = vrot.lane.b32.xlu0 %v1163, 64
  %v1166 = vpop.permute.xlu0 %1165
  %v1168 = vmul.f32 %v1150, %v1166
  %1170 = vrot.lane.b32.xlu0 %v1168, 32
  %v1171 = vpop.permute.xlu0 %1170
  %1173 = vst.msk [vmem:[%s1069] sm:$0xff] %vm48, %v1171
  %v1174 = vld [vmem:[%s857 + $0x8] sm:$0xff]
  %1175 = vrot.lane.b32.xlu0 %v1064, 32
  %v1176 = vpop.permute.xlu0 %1175
  %v1177 = vsel %vm48, %v1176, 0
  %1179 = vmatprep.subr.mxu0 0.0
  %1180 = vmatpush1.msra.mxu0 %v206
  %1181 = vmatprep.subr.mxu0 0.0
  %1182 = vmatpush1.msra.mxu0 %v207
  %1183 = vmatprep.subr.mxu0 0.0
  %1184 = vmatpush1.msra.mxu0 %v208
  %1185 = vmatprep.subr.mxu0 0.0
  %1186 = vmatpush1.msra.mxu0 %v209
  %1187 = vmatprep.subr.mxu0 0.0
  %1188 = vmatpush1.msra.mxu0 0.0
  %1189 = vmatprep.subr.mxu0 0.0
  %1190 = vmatpush1.msra.mxu0 0.0
  %1191 = vmatprep.subr.mxu0 0.0
  %1192 = vmatpush1.msra.mxu0 0.0
  %1193 = vmatprep.subr.mxu0 0.0
  %1194 = vmatpush1.msra.mxu0 0.0
  %1195 = vmatprep.subr.mxu0 0.0
  %1196 = vmatpush1.msra.mxu0 0.0
  %1197 = vmatprep.subr.mxu0 0.0
  %1198 = vmatpush1.msra.mxu0 0.0
  %1199 = vmatprep.subr.mxu0 0.0
  %1200 = vmatpush1.msra.mxu0 0.0
  %1201 = vmatprep.subr.mxu0 0.0
  %1202 = vmatpush1.msra.mxu0 0.0
  %1203 = vmatprep.subr.mxu0 0.0
  %1204 = vmatpush1.msra.mxu0 0.0
  %1205 = vmatprep.subr.mxu0 0.0
  %1206 = vmatpush1.msra.mxu0 0.0
  %1207 = vmatprep.subr.mxu0 0.0
  %1208 = vmatpush1.msra.mxu0 0.0
  %1209 = vmatprep.subr.mxu0 0.0
  %1210 = vmatpush1.msra.mxu0 0.0
  %1211 = vmatprep.subr.mxu0 0.0
  %1212 = vmatpush1.msra.mxu0 0.0
  %1213 = vmatprep.subr.mxu0 0.0
  %1214 = vmatpush1.msra.mxu0 0.0
  %1215 = vmatprep.subr.mxu0 0.0
  %1216 = vmatpush1.msra.mxu0 0.0
  %1217 = vmatprep.subr.mxu0 0.0
  %1218 = vmatpush1.msra.mxu0 0.0
  %1219 = vmatprep.subr.mxu0 0.0
  %1220 = vmatpush1.msra.mxu0 0.0
  %1221 = vmatprep.subr.mxu0 0.0
  %1222 = vmatpush1.msra.mxu0 0.0
  %1223 = vmatprep.subr.mxu0 0.0
  %1224 = vmatpush1.msra.mxu0 0.0
  %1225 = vmatprep.subr.mxu0 0.0
  %1226 = vmatpush1.msra.mxu0 0.0
  %1227 = vmatprep.subr.mxu0 0.0
  %1228 = vmatpush1.msra.mxu0 0.0
  %1229 = vmatprep.subr.mxu0 0.0
  %1230 = vmatpush1.msra.mxu0 0.0
  %1231 = vmatprep.subr.mxu0 0.0
  %1232 = vmatpush1.msra.mxu0 0.0
  %1233 = vmatprep.subr.mxu0 0.0
  %1234 = vmatpush1.msra.mxu0 0.0
  %1235 = vmatprep.subr.mxu0 0.0
  %1236 = vmatpush1.msra.mxu0 0.0
  %1237 = vmatprep.subr.mxu0 0.0
  %1238 = vmatpush1.msra.mxu0 0.0
  %1239 = vmatprep.subr.mxu0 0.0
  %1240 = vmatpush1.msra.mxu0 0.0
  %1241 = vmatprep.subr.mxu0 0.0
  %1242 = vmatpush1.msra.mxu0 0.0
  %1243 = vmatprep.mubr.f32.mxu0 0.0
  %1244 = vmatmul.mubr.f32.gmra.mrb[0].mxu0 %v1177
  %v1245 = vpop.f32.mrb[0].mxu0
  %v1246 = vadd.f32 0.0, %v1245
  %v1247 = vpop.f32.mrb[0].mxu0
  %1248 = vdwg.mxu0
  %v1249 = vadd.f32 %v1174, %v1246
  %v1250 = vxor.u32 %v1249, 2147483648
  %v1251 = vmul.f32 %v1250, 1.442695
  %v1252 = vpow.pop %v1251
  %v1253 = vadd.f32 %v1252, 1.0
  %v1254 = vrcp.pop %v1253
  %v1255 = vmul.f32 1.0, %v1254
  %v1256 = vtanh.pop %v1249
  %v1257 = vmul.f32 %v1255, %v1058
  %1259 = vrot.lane.b32.xlu0 %v1256, 64
  %v1260 = vpop.permute.xlu0 %1259
  %v1262 = vmul.f32 %v1255, %v1260
  %1264 = vrot.lane.b32.xlu0 %v1262, 32
  %v1265 = vpop.permute.xlu0 %1264
  %v1267 = vadd.f32 %v1257, %v1265
  %v1268 = vtanh.pop %v1267
  %1270 = vrot.lane.b32.xlu0 %v1268, 64
  %v1271 = vpop.permute.xlu0 %1270
  %v1273 = vmul.f32 %v1255, %v1271
  %1275 = vrot.lane.b32.xlu0 %v1273, 64
  %v1276 = vpop.permute.xlu0 %1275
  %1278 = vst.msk [vmem:[%s960] sm:$0xff] %vm421, %v1276
  %v1279 = vld [vmem:[%s748] sm:$0xff]
  %v1280 = vsel %vm48, %v1171, 0
  %1282 = vmatprep.subr.mxu0 0.0
  %1283 = vmatpush1.msra.mxu0 %v202
  %1284 = vmatprep.subr.mxu0 0.0
  %1285 = vmatpush1.msra.mxu0 %v203
  %1286 = vmatprep.subr.mxu0 0.0
  %1287 = vmatpush1.msra.mxu0 %v204
  %1288 = vmatprep.subr.mxu0 0.0
  %1289 = vmatpush1.msra.mxu0 %v205
  %1290 = vmatprep.subr.mxu0 0.0
  %1291 = vmatpush1.msra.mxu0 0.0
  %1292 = vmatprep.subr.mxu0 0.0
  %1293 = vmatpush1.msra.mxu0 0.0
  %1294 = vmatprep.subr.mxu0 0.0
  %1295 = vmatpush1.msra.mxu0 0.0
  %1296 = vmatprep.subr.mxu0 0.0
  %1297 = vmatpush1.msra.mxu0 0.0
  %1298 = vmatprep.subr.mxu0 0.0
  %1299 = vmatpush1.msra.mxu0 0.0
  %1300 = vmatprep.subr.mxu0 0.0
  %1301 = vmatpush1.msra.mxu0 0.0
  %1302 = vmatprep.subr.mxu0 0.0
  %1303 = vmatpush1.msra.mxu0 0.0
  %1304 = vmatprep.subr.mxu0 0.0
  %1305 = vmatpush1.msra.mxu0 0.0
  %1306 = vmatprep.subr.mxu0 0.0
  %1307 = vmatpush1.msra.mxu0 0.0
  %1308 = vmatprep.subr.mxu0 0.0
  %1309 = vmatpush1.msra.mxu0 0.0
  %1310 = vmatprep.subr.mxu0 0.0
  %1311 = vmatpush1.msra.mxu0 0.0
  %1312 = vmatprep.subr.mxu0 0.0
  %1313 = vmatpush1.msra.mxu0 0.0
  %1314 = vmatprep.subr.mxu0 0.0
  %1315 = vmatpush1.msra.mxu0 0.0
  %1316 = vmatprep.subr.mxu0 0.0
  %1317 = vmatpush1.msra.mxu0 0.0
  %1318 = vmatprep.subr.mxu0 0.0
  %1319 = vmatpush1.msra.mxu0 0.0
  %1320 = vmatprep.subr.mxu0 0.0
  %1321 = vmatpush1.msra.mxu0 0.0
  %1322 = vmatprep.subr.mxu0 0.0
  %1323 = vmatpush1.msra.mxu0 0.0
  %1324 = vmatprep.subr.mxu0 0.0
  %1325 = vmatpush1.msra.mxu0 0.0
  %1326 = vmatprep.subr.mxu0 0.0
  %1327 = vmatpush1.msra.mxu0 0.0
  %1328 = vmatprep.subr.mxu0 0.0
  %1329 = vmatpush1.msra.mxu0 0.0
  %1330 = vmatprep.subr.mxu0 0.0
  %1331 = vmatpush1.msra.mxu0 0.0
  %1332 = vmatprep.subr.mxu0 0.0
  %1333 = vmatpush1.msra.mxu0 0.0
  %1334 = vmatprep.subr.mxu0 0.0
  %1335 = vmatpush1.msra.mxu0 0.0
  %1336 = vmatprep.subr.mxu0 0.0
  %1337 = vmatpush1.msra.mxu0 0.0
  %1338 = vmatprep.subr.mxu0 0.0
  %1339 = vmatpush1.msra.mxu0 0.0
  %1340 = vmatprep.subr.mxu0 0.0
  %1341 = vmatpush1.msra.mxu0 0.0
  %1342 = vmatprep.subr.mxu0 0.0
  %1343 = vmatpush1.msra.mxu0 0.0
  %1344 = vmatprep.subr.mxu0 0.0
  %1345 = vmatpush1.msra.mxu0 0.0
  %1346 = vmatprep.mubr.f32.mxu0 0.0
  %1347 = vmatmul.mubr.f32.gmra.mrb[0].mxu0 %v1280
  %v1348 = vpop.f32.mrb[0].mxu0
  %v1349 = vadd.f32 0.0, %v1348
  %v1350 = vpop.f32.mrb[0].mxu0
  %1351 = vdwg.mxu0
  %v1352 = vadd.f32 %v1279, %v1349
  %v1353 = vxor.u32 %v1352, 2147483648
  %v1354 = vmul.f32 %v1353, 1.442695
  %v1355 = vpow.pop %v1354
  %v1356 = vadd.f32 %v1355, 1.0
  %v1357 = vrcp.pop %v1356
  %v1358 = vmul.f32 1.0, %v1357
  %v1359 = vtanh.pop %v1352
  %v1360 = vmul.f32 %v1358, %v1162
  %1362 = vrot.lane.b32.xlu0 %v1359, 64
  %v1363 = vpop.permute.xlu0 %1362
  %v1365 = vmul.f32 %v1358, %v1363
  %1367 = vrot.lane.b32.xlu0 %v1365, 32
  %v1368 = vpop.permute.xlu0 %1367
  %v1370 = vadd.f32 %v1360, %v1368
  %v1371 = vtanh.pop %v1370
  %1373 = vrot.lane.b32.xlu0 %v1371, 64
  %v1374 = vpop.permute.xlu0 %1373
  %v1376 = vmul.f32 %v1358, %v1374
  %1378 = vrot.lane.b32.xlu0 %v1376, 32
  %v1379 = vpop.permute.xlu0 %1378
  %1381 = vst.msk [vmem:[%s853] sm:$0xff] %vm48, %v1379
  %v1382 = vld [vmem:[%s641 + $0x8] sm:$0xff]
  %1383 = vrot.lane.b32.xlu0 %v1273, 32
  %v1384 = vpop.permute.xlu0 %1383
  %v1385 = vsel %vm48, %v1384, 0
  %1387 = vmatprep.subr.mxu0 0.0
  %1388 = vmatpush1.msra.mxu0 %v206
  %1389 = vmatprep.subr.mxu0 0.0
  %1390 = vmatpush1.msra.mxu0 %v207
  %1391 = vmatprep.subr.mxu0 0.0
  %1392 = vmatpush1.msra.mxu0 %v208
  %1393 = vmatprep.subr.mxu0 0.0
  %1394 = vmatpush1.msra.mxu0 %v209
  %1395 = vmatprep.subr.mxu0 0.0
  %1396 = vmatpush1.msra.mxu0 0.0
  %1397 = vmatprep.subr.mxu0 0.0
  %1398 = vmatpush1.msra.mxu0 0.0
  %1399 = vmatprep.subr.mxu0 0.0
  %1400 = vmatpush1.msra.mxu0 0.0
  %1401 = vmatprep.subr.mxu0 0.0
  %1402 = vmatpush1.msra.mxu0 0.0
  %1403 = vmatprep.subr.mxu0 0.0
  %1404 = vmatpush1.msra.mxu0 0.0
  %1405 = vmatprep.subr.mxu0 0.0
  %1406 = vmatpush1.msra.mxu0 0.0
  %1407 = vmatprep.subr.mxu0 0.0
  %1408 = vmatpush1.msra.mxu0 0.0
  %1409 = vmatprep.subr.mxu0 0.0
  %1410 = vmatpush1.msra.mxu0 0.0
  %1411 = vmatprep.subr.mxu0 0.0
  %1412 = vmatpush1.msra.mxu0 0.0
  %1413 = vmatprep.subr.mxu0 0.0
  %1414 = vmatpush1.msra.mxu0 0.0
  %1415 = vmatprep.subr.mxu0 0.0
  %1416 = vmatpush1.msra.mxu0 0.0
  %1417 = vmatprep.subr.mxu0 0.0
  %1418 = vmatpush1.msra.mxu0 0.0
  %1419 = vmatprep.subr.mxu0 0.0
  %1420 = vmatpush1.msra.mxu0 0.0
  %1421 = vmatprep.subr.mxu0 0.0
  %1422 = vmatpush1.msra.mxu0 0.0
  %1423 = vmatprep.subr.mxu0 0.0
  %1424 = vmatpush1.msra.mxu0 0.0
  %1425 = vmatprep.subr.mxu0 0.0
  %1426 = vmatpush1.msra.mxu0 0.0
  %1427 = vmatprep.subr.mxu0 0.0
  %1428 = vmatpush1.msra.mxu0 0.0
  %1429 = vmatprep.subr.mxu0 0.0
  %1430 = vmatpush1.msra.mxu0 0.0
  %1431 = vmatprep.subr.mxu0 0.0
  %1432 = vmatpush1.msra.mxu0 0.0
  %1433 = vmatprep.subr.mxu0 0.0
  %1434 = vmatpush1.msra.mxu0 0.0
  %1435 = vmatprep.subr.mxu0 0.0
  %1436 = vmatpush1.msra.mxu0 0.0
  %1437 = vmatprep.subr.mxu0 0.0
  %1438 = vmatpush1.msra.mxu0 0.0
  %1439 = vmatprep.subr.mxu0 0.0
  %1440 = vmatpush1.msra.mxu0 0.0
  %1441 = vmatprep.subr.mxu0 0.0
  %1442 = vmatpush1.msra.mxu0 0.0
  %1443 = vmatprep.subr.mxu0 0.0
  %1444 = vmatpush1.msra.mxu0 0.0
  %1445 = vmatprep.subr.mxu0 0.0
  %1446 = vmatpush1.msra.mxu0 0.0
  %1447 = vmatprep.subr.mxu0 0.0
  %1448 = vmatpush1.msra.mxu0 0.0
  %1449 = vmatprep.subr.mxu0 0.0
  %1450 = vmatpush1.msra.mxu0 0.0
  %1451 = vmatprep.mubr.f32.mxu0 0.0
  %1452 = vmatmul.mubr.f32.gmra.mrb[0].mxu0 %v1385
  %v1453 = vpop.f32.mrb[0].mxu0
  %v1454 = vadd.f32 0.0, %v1453
  %v1455 = vpop.f32.mrb[0].mxu0
  %1456 = vdwg.mxu0
  %v1457 = vadd.f32 %v1382, %v1454
  %v1458 = vxor.u32 %v1457, 2147483648
  %v1459 = vmul.f32 %v1458, 1.442695
  %v1460 = vpow.pop %v1459
  %v1461 = vadd.f32 %v1460, 1.0
  %v1462 = vrcp.pop %v1461
  %v1463 = vmul.f32 1.0, %v1462
  %v1464 = vtanh.pop %v1457
  %v1465 = vmul.f32 %v1463, %v1267
  %1467 = vrot.lane.b32.xlu0 %v1464, 64
  %v1468 = vpop.permute.xlu0 %1467
  %v1470 = vmul.f32 %v1463, %v1468
  %1472 = vrot.lane.b32.xlu0 %v1470, 32
  %v1473 = vpop.permute.xlu0 %1472
  %v1475 = vadd.f32 %v1465, %v1473
  %v1476 = vtanh.pop %v1475
  %1478 = vrot.lane.b32.xlu0 %v1476, 64
  %v1479 = vpop.permute.xlu0 %1478
  %v1481 = vmul.f32 %v1463, %v1479
  %1483 = vrot.lane.b32.xlu0 %v1481, 64
  %v1484 = vpop.permute.xlu0 %1483
  %1486 = vst.msk [vmem:[%s744] sm:$0xff] %vm421, %v1484
  %v1487 = vld [vmem:[%s532] sm:$0xff]
  %v1488 = vsel %vm48, %v1379, 0
  %1490 = vmatprep.subr.mxu0 0.0
  %1491 = vmatpush1.msra.mxu0 %v202
  %1492 = vmatprep.subr.mxu0 0.0
  %1493 = vmatpush1.msra.mxu0 %v203
  %1494 = vmatprep.subr.mxu0 0.0
  %1495 = vmatpush1.msra.mxu0 %v204
  %1496 = vmatprep.subr.mxu0 0.0
  %1497 = vmatpush1.msra.mxu0 %v205
  %1498 = vmatprep.subr.mxu0 0.0
  %1499 = vmatpush1.msra.mxu0 0.0
  %1500 = vmatprep.subr.mxu0 0.0
  %1501 = vmatpush1.msra.mxu0 0.0
  %1502 = vmatprep.subr.mxu0 0.0
  %1503 = vmatpush1.msra.mxu0 0.0
  %1504 = vmatprep.subr.mxu0 0.0
  %1505 = vmatpush1.msra.mxu0 0.0
  %1506 = vmatprep.subr.mxu0 0.0
  %1507 = vmatpush1.msra.mxu0 0.0
  %1508 = vmatprep.subr.mxu0 0.0
  %1509 = vmatpush1.msra.mxu0 0.0
  %1510 = vmatprep.subr.mxu0 0.0
  %1511 = vmatpush1.msra.mxu0 0.0
  %1512 = vmatprep.subr.mxu0 0.0
  %1513 = vmatpush1.msra.mxu0 0.0
  %1514 = vmatprep.subr.mxu0 0.0
  %1515 = vmatpush1.msra.mxu0 0.0
  %1516 = vmatprep.subr.mxu0 0.0
  %1517 = vmatpush1.msra.mxu0 0.0
  %1518 = vmatprep.subr.mxu0 0.0
  %1519 = vmatpush1.msra.mxu0 0.0
  %1520 = vmatprep.subr.mxu0 0.0
  %1521 = vmatpush1.msra.mxu0 0.0
  %1522 = vmatprep.subr.mxu0 0.0
  %1523 = vmatpush1.msra.mxu0 0.0
  %1524 = vmatprep.subr.mxu0 0.0
  %1525 = vmatpush1.msra.mxu0 0.0
  %1526 = vmatprep.subr.mxu0 0.0
  %1527 = vmatpush1.msra.mxu0 0.0
  %1528 = vmatprep.subr.mxu0 0.0
  %1529 = vmatpush1.msra.mxu0 0.0
  %1530 = vmatprep.subr.mxu0 0.0
  %1531 = vmatpush1.msra.mxu0 0.0
  %1532 = vmatprep.subr.mxu0 0.0
  %1533 = vmatpush1.msra.mxu0 0.0
  %1534 = vmatprep.subr.mxu0 0.0
  %1535 = vmatpush1.msra.mxu0 0.0
  %1536 = vmatprep.subr.mxu0 0.0
  %1537 = vmatpush1.msra.mxu0 0.0
  %1538 = vmatprep.subr.mxu0 0.0
  %1539 = vmatpush1.msra.mxu0 0.0
  %1540 = vmatprep.subr.mxu0 0.0
  %1541 = vmatpush1.msra.mxu0 0.0
  %1542 = vmatprep.subr.mxu0 0.0
  %1543 = vmatpush1.msra.mxu0 0.0
  %1544 = vmatprep.subr.mxu0 0.0
  %1545 = vmatpush1.msra.mxu0 0.0
  %1546 = vmatprep.subr.mxu0 0.0
  %1547 = vmatpush1.msra.mxu0 0.0
  %1548 = vmatprep.subr.mxu0 0.0
  %1549 = vmatpush1.msra.mxu0 0.0
  %1550 = vmatprep.subr.mxu0 0.0
  %1551 = vmatpush1.msra.mxu0 0.0
  %1552 = vmatprep.subr.mxu0 0.0
  %1553 = vmatpush1.msra.mxu0 0.0
  %1554 = vmatprep.mubr.f32.mxu0 0.0
  %1555 = vmatmul.mubr.f32.gmra.mrb[0].mxu0 %v1488
  %v1556 = vpop.f32.mrb[0].mxu0
  %v1557 = vadd.f32 0.0, %v1556
  %v1558 = vpop.f32.mrb[0].mxu0
  %1559 = vdwg.mxu0
  %v1560 = vadd.f32 %v1487, %v1557
  %v1561 = vxor.u32 %v1560, 2147483648
  %v1562 = vmul.f32 %v1561, 1.442695
  %v1563 = vpow.pop %v1562
  %v1564 = vadd.f32 %v1563, 1.0
  %v1565 = vrcp.pop %v1564
  %v1566 = vmul.f32 1.0, %v1565
  %v1567 = vtanh.pop %v1560
  %v1568 = vmul.f32 %v1566, %v1370
  %1570 = vrot.lane.b32.xlu0 %v1567, 64
  %v1571 = vpop.permute.xlu0 %1570
  %v1573 = vmul.f32 %v1566, %v1571
  %1575 = vrot.lane.b32.xlu0 %v1573, 32
  %v1576 = vpop.permute.xlu0 %1575
  %v1578 = vadd.f32 %v1568, %v1576
  %v1579 = vtanh.pop %v1578
  %1581 = vrot.lane.b32.xlu0 %v1579, 64
  %v1582 = vpop.permute.xlu0 %1581
  %v1584 = vmul.f32 %v1566, %v1582
  %1586 = vrot.lane.b32.xlu0 %v1584, 32
  %v1587 = vpop.permute.xlu0 %1586
  %1589 = vst.msk [vmem:[%s637] sm:$0xff] %vm48, %v1587
  %v1590 = vld [vmem:[%s425 + $0x8] sm:$0xff]
  %1591 = vrot.lane.b32.xlu0 %v1481, 32
  %v1592 = vpop.permute.xlu0 %1591
  %v1593 = vsel %vm48, %v1592, 0
  %1595 = vmatprep.subr.mxu0 0.0
  %1596 = vmatpush1.msra.mxu0 %v206
  %1597 = vmatprep.subr.mxu0 0.0
  %1598 = vmatpush1.msra.mxu0 %v207
  %1599 = vmatprep.subr.mxu0 0.0
  %1600 = vmatpush1.msra.mxu0 %v208
  %1601 = vmatprep.subr.mxu0 0.0
  %1602 = vmatpush1.msra.mxu0 %v209
  %1603 = vmatprep.subr.mxu0 0.0
  %1604 = vmatpush1.msra.mxu0 0.0
  %1605 = vmatprep.subr.mxu0 0.0
  %1606 = vmatpush1.msra.mxu0 0.0
  %1607 = vmatprep.subr.mxu0 0.0
  %1608 = vmatpush1.msra.mxu0 0.0
  %1609 = vmatprep.subr.mxu0 0.0
  %1610 = vmatpush1.msra.mxu0 0.0
  %1611 = vmatprep.subr.mxu0 0.0
  %1612 = vmatpush1.msra.mxu0 0.0
  %1613 = vmatprep.subr.mxu0 0.0
  %1614 = vmatpush1.msra.mxu0 0.0
  %1615 = vmatprep.subr.mxu0 0.0
  %1616 = vmatpush1.msra.mxu0 0.0
  %1617 = vmatprep.subr.mxu0 0.0
  %1618 = vmatpush1.msra.mxu0 0.0
  %1619 = vmatprep.subr.mxu0 0.0
  %1620 = vmatpush1.msra.mxu0 0.0
  %1621 = vmatprep.subr.mxu0 0.0
  %1622 = vmatpush1.msra.mxu0 0.0
  %1623 = vmatprep.subr.mxu0 0.0
  %1624 = vmatpush1.msra.mxu0 0.0
  %1625 = vmatprep.subr.mxu0 0.0
  %1626 = vmatpush1.msra.mxu0 0.0
  %1627 = vmatprep.subr.mxu0 0.0
  %1628 = vmatpush1.msra.mxu0 0.0
  %1629 = vmatprep.subr.mxu0 0.0
  %1630 = vmatpush1.msra.mxu0 0.0
  %1631 = vmatprep.subr.mxu0 0.0
  %1632 = vmatpush1.msra.mxu0 0.0
  %1633 = vmatprep.subr.mxu0 0.0
  %1634 = vmatpush1.msra.mxu0 0.0
  %1635 = vmatprep.subr.mxu0 0.0
  %1636 = vmatpush1.msra.mxu0 0.0
  %1637 = vmatprep.subr.mxu0 0.0
  %1638 = vmatpush1.msra.mxu0 0.0
  %1639 = vmatprep.subr.mxu0 0.0
  %1640 = vmatpush1.msra.mxu0 0.0
  %1641 = vmatprep.subr.mxu0 0.0
  %1642 = vmatpush1.msra.mxu0 0.0
  %1643 = vmatprep.subr.mxu0 0.0
  %1644 = vmatpush1.msra.mxu0 0.0
  %1645 = vmatprep.subr.mxu0 0.0
  %1646 = vmatpush1.msra.mxu0 0.0
  %1647 = vmatprep.subr.mxu0 0.0
  %1648 = vmatpush1.msra.mxu0 0.0
  %1649 = vmatprep.subr.mxu0 0.0
  %1650 = vmatpush1.msra.mxu0 0.0
  %1651 = vmatprep.subr.mxu0 0.0
  %1652 = vmatpush1.msra.mxu0 0.0
  %1653 = vmatprep.subr.mxu0 0.0
  %1654 = vmatpush1.msra.mxu0 0.0
  %1655 = vmatprep.subr.mxu0 0.0
  %1656 = vmatpush1.msra.mxu0 0.0
  %1657 = vmatprep.subr.mxu0 0.0
  %1658 = vmatpush1.msra.mxu0 0.0
  %1659 = vmatprep.mubr.f32.mxu0 0.0
  %1660 = vmatmul.mubr.f32.gmra.mrb[0].mxu0 %v1593
  %v1661 = vpop.f32.mrb[0].mxu0
  %v1662 = vadd.f32 0.0, %v1661
  %v1663 = vpop.f32.mrb[0].mxu0
  %1664 = vdwg.mxu0
  %v1665 = vadd.f32 %v1590, %v1662
  %v1666 = vxor.u32 %v1665, 2147483648
  %v1667 = vmul.f32 %v1666, 1.442695
  %v1668 = vpow.pop %v1667
  %v1669 = vadd.f32 %v1668, 1.0
  %v1670 = vrcp.pop %v1669
  %v1671 = vmul.f32 1.0, %v1670
  %v1672 = vtanh.pop %v1665
  %v1673 = vmul.f32 %v1671, %v1475
  %1675 = vrot.lane.b32.xlu0 %v1672, 64
  %v1676 = vpop.permute.xlu0 %1675
  %v1678 = vmul.f32 %v1671, %v1676
  %1680 = vrot.lane.b32.xlu0 %v1678, 32
  %v1681 = vpop.permute.xlu0 %1680
  %v1683 = vadd.f32 %v1673, %v1681
  %v1684 = vtanh.pop %v1683
  %1686 = vrot.lane.b32.xlu0 %v1684, 64
  %v1687 = vpop.permute.xlu0 %1686
  %v1689 = vmul.f32 %v1671, %v1687
  %1691 = vrot.lane.b32.xlu0 %v1689, 64
  %v1692 = vpop.permute.xlu0 %1691
  %1694 = vst.msk [vmem:[%s528] sm:$0xff] %vm421, %v1692
  %v1695 = vld [vmem:[%s319] sm:$0xff]
  %v1696 = vsel %vm48, %v1587, 0
  %1698 = vmatprep.subr.mxu0 0.0
  %1699 = vmatpush1.msra.mxu0 %v202
  %1700 = vmatprep.subr.mxu0 0.0
  %1701 = vmatpush1.msra.mxu0 %v203
  %1702 = vmatprep.subr.mxu0 0.0
  %1703 = vmatpush1.msra.mxu0 %v204
  %1704 = vmatprep.subr.mxu0 0.0
  %1705 = vmatpush1.msra.mxu0 %v205
  %1706 = vmatprep.subr.mxu0 0.0
  %1707 = vmatpush1.msra.mxu0 0.0
  %1708 = vmatprep.subr.mxu0 0.0
  %1709 = vmatpush1.msra.mxu0 0.0
  %1710 = vmatprep.subr.mxu0 0.0
  %1711 = vmatpush1.msra.mxu0 0.0
  %1712 = vmatprep.subr.mxu0 0.0
  %1713 = vmatpush1.msra.mxu0 0.0
  %1714 = vmatprep.subr.mxu0 0.0
  %1715 = vmatpush1.msra.mxu0 0.0
  %1716 = vmatprep.subr.mxu0 0.0
  %1717 = vmatpush1.msra.mxu0 0.0
  %1718 = vmatprep.subr.mxu0 0.0
  %1719 = vmatpush1.msra.mxu0 0.0
  %1720 = vmatprep.subr.mxu0 0.0
  %1721 = vmatpush1.msra.mxu0 0.0
  %1722 = vmatprep.subr.mxu0 0.0
  %1723 = vmatpush1.msra.mxu0 0.0
  %1724 = vmatprep.subr.mxu0 0.0
  %1725 = vmatpush1.msra.mxu0 0.0
  %1726 = vmatprep.subr.mxu0 0.0
  %1727 = vmatpush1.msra.mxu0 0.0
  %1728 = vmatprep.subr.mxu0 0.0
  %1729 = vmatpush1.msra.mxu0 0.0
  %1730 = vmatprep.subr.mxu0 0.0
  %1731 = vmatpush1.msra.mxu0 0.0
  %1732 = vmatprep.subr.mxu0 0.0
  %1733 = vmatpush1.msra.mxu0 0.0
  %1734 = vmatprep.subr.mxu0 0.0
  %1735 = vmatpush1.msra.mxu0 0.0
  %1736 = vmatprep.subr.mxu0 0.0
  %1737 = vmatpush1.msra.mxu0 0.0
  %1738 = vmatprep.subr.mxu0 0.0
  %1739 = vmatpush1.msra.mxu0 0.0
  %1740 = vmatprep.subr.mxu0 0.0
  %1741 = vmatpush1.msra.mxu0 0.0
  %1742 = vmatprep.subr.mxu0 0.0
  %1743 = vmatpush1.msra.mxu0 0.0
  %1744 = vmatprep.subr.mxu0 0.0
  %1745 = vmatpush1.msra.mxu0 0.0
  %1746 = vmatprep.subr.mxu0 0.0
  %1747 = vmatpush1.msra.mxu0 0.0
  %1748 = vmatprep.subr.mxu0 0.0
  %1749 = vmatpush1.msra.mxu0 0.0
  %1750 = vmatprep.subr.mxu0 0.0
  %1751 = vmatpush1.msra.mxu0 0.0
  %1752 = vmatprep.subr.mxu0 0.0
  %1753 = vmatpush1.msra.mxu0 0.0
  %1754 = vmatprep.subr.mxu0 0.0
  %1755 = vmatpush1.msra.mxu0 0.0
  %1756 = vmatprep.subr.mxu0 0.0
  %1757 = vmatpush1.msra.mxu0 0.0
  %1758 = vmatprep.subr.mxu0 0.0
  %1759 = vmatpush1.msra.mxu0 0.0
  %1760 = vmatprep.subr.mxu0 0.0
  %1761 = vmatpush1.msra.mxu0 0.0
  %1762 = vmatprep.mubr.f32.mxu0 0.0
  %1763 = vmatmul.mubr.f32.gmra.mrb[0].mxu0 %v1696
  %v1764 = vpop.f32.mrb[0].mxu0
  %v1765 = vadd.f32 0.0, %v1764
  %v1766 = vpop.f32.mrb[0].mxu0
  %1767 = vdwg.mxu0
  %v1768 = vadd.f32 %v1695, %v1765
  %v1769 = vxor.u32 %v1768, 2147483648
  %v1770 = vmul.f32 %v1769, 1.442695
  %v1771 = vpow.pop %v1770
  %v1772 = vadd.f32 %v1771, 1.0
  %v1773 = vrcp.pop %v1772
  %v1774 = vmul.f32 1.0, %v1773
  %v1775 = vtanh.pop %v1768
  %v1776 = vmul.f32 %v1774, %v1578
  %1778 = vrot.lane.b32.xlu0 %v1775, 64
  %v1779 = vpop.permute.xlu0 %1778
  %v1781 = vmul.f32 %v1774, %v1779
  %1783 = vrot.lane.b32.xlu0 %v1781, 32
  %v1784 = vpop.permute.xlu0 %1783
  %v1786 = vadd.f32 %v1776, %v1784
  %v1787 = vtanh.pop %v1786
  %1789 = vrot.lane.b32.xlu0 %v1787, 64
  %v1790 = vpop.permute.xlu0 %1789
  %v1792 = vmul.f32 %v1774, %v1790
  %1794 = vrot.lane.b32.xlu0 %v1792, 32
  %v1795 = vpop.permute.xlu0 %1794
  %1797 = vst.msk [vmem:[%s420] sm:$0xff] %vm48, %v1795
  %v1798 = vld [vmem:[%s212 + $0x8] sm:$0xff]
  %1799 = vrot.lane.b32.xlu0 %v1689, 32
  %v1800 = vpop.permute.xlu0 %1799
  %v1801 = vsel %vm48, %v1800, 0
  %1803 = vmatprep.subr.mxu0 0.0
  %1804 = vmatpush1.msra.mxu0 %v206
  %1805 = vmatprep.subr.mxu0 0.0
  %1806 = vmatpush1.msra.mxu0 %v207
  %1807 = vmatprep.subr.mxu0 0.0
  %1808 = vmatpush1.msra.mxu0 %v208
  %1809 = vmatprep.subr.mxu0 0.0
  %1810 = vmatpush1.msra.mxu0 %v209
  %1811 = vmatprep.subr.mxu0 0.0
  %1812 = vmatpush1.msra.mxu0 0.0
  %1813 = vmatprep.subr.mxu0 0.0
  %1814 = vmatpush1.msra.mxu0 0.0
  %1815 = vmatprep.subr.mxu0 0.0
  %1816 = vmatpush1.msra.mxu0 0.0
  %1817 = vmatprep.subr.mxu0 0.0
  %1818 = vmatpush1.msra.mxu0 0.0
  %1819 = vmatprep.subr.mxu0 0.0
  %1820 = vmatpush1.msra.mxu0 0.0
  %1821 = vmatprep.subr.mxu0 0.0
  %1822 = vmatpush1.msra.mxu0 0.0
  %1823 = vmatprep.subr.mxu0 0.0
  %1824 = vmatpush1.msra.mxu0 0.0
  %1825 = vmatprep.subr.mxu0 0.0
  %1826 = vmatpush1.msra.mxu0 0.0
  %1827 = vmatprep.subr.mxu0 0.0
  %1828 = vmatpush1.msra.mxu0 0.0
  %1829 = vmatprep.subr.mxu0 0.0
  %1830 = vmatpush1.msra.mxu0 0.0
  %1831 = vmatprep.subr.mxu0 0.0
  %1832 = vmatpush1.msra.mxu0 0.0
  %1833 = vmatprep.subr.mxu0 0.0
  %1834 = vmatpush1.msra.mxu0 0.0
  %1835 = vmatprep.subr.mxu0 0.0
  %1836 = vmatpush1.msra.mxu0 0.0
  %1837 = vmatprep.subr.mxu0 0.0
  %1838 = vmatpush1.msra.mxu0 0.0
  %1839 = vmatprep.subr.mxu0 0.0
  %1840 = vmatpush1.msra.mxu0 0.0
  %1841 = vmatprep.subr.mxu0 0.0
  %1842 = vmatpush1.msra.mxu0 0.0
  %1843 = vmatprep.subr.mxu0 0.0
  %1844 = vmatpush1.msra.mxu0 0.0
  %1845 = vmatprep.subr.mxu0 0.0
  %1846 = vmatpush1.msra.mxu0 0.0
  %1847 = vmatprep.subr.mxu0 0.0
  %1848 = vmatpush1.msra.mxu0 0.0
  %1849 = vmatprep.subr.mxu0 0.0
  %1850 = vmatpush1.msra.mxu0 0.0
  %1851 = vmatprep.subr.mxu0 0.0
  %1852 = vmatpush1.msra.mxu0 0.0
  %1853 = vmatprep.subr.mxu0 0.0
  %1854 = vmatpush1.msra.mxu0 0.0
  %1855 = vmatprep.subr.mxu0 0.0
  %1856 = vmatpush1.msra.mxu0 0.0
  %1857 = vmatprep.subr.mxu0 0.0
  %1858 = vmatpush1.msra.mxu0 0.0
  %1859 = vmatprep.subr.mxu0 0.0
  %1860 = vmatpush1.msra.mxu0 0.0
  %1861 = vmatprep.subr.mxu0 0.0
  %1862 = vmatpush1.msra.mxu0 0.0
  %1863 = vmatprep.subr.mxu0 0.0
  %1864 = vmatpush1.msra.mxu0 0.0
  %1865 = vmatprep.subr.mxu0 0.0
  %1866 = vmatpush1.msra.mxu0 0.0
  %1867 = vmatprep.mubr.f32.mxu0 0.0
  %1868 = vmatmul.mubr.f32.gmra.mrb[0].mxu0 %v1801
  %v1869 = vpop.f32.mrb[0].mxu0
  %v1870 = vadd.f32 0.0, %v1869
  %v1871 = vpop.f32.mrb[0].mxu0
  %1872 = vdwg.mxu0
  %v1873 = vadd.f32 %v1798, %v1870
  %v1874 = vxor.u32 %v1873, 2147483648
  %v1875 = vmul.f32 %v1874, 1.442695
  %v1876 = vpow.pop %v1875
  %v1877 = vadd.f32 %v1876, 1.0
  %v1878 = vrcp.pop %v1877
  %v1879 = vmul.f32 1.0, %v1878
  %v1880 = vtanh.pop %v1873
  %v1881 = vmul.f32 %v1879, %v1683
  %1883 = vrot.lane.b32.xlu0 %v1880, 64
  %v1884 = vpop.permute.xlu0 %1883
  %v1886 = vmul.f32 %v1879, %v1884
  %1888 = vrot.lane.b32.xlu0 %v1886, 32
  %v1889 = vpop.permute.xlu0 %1888
  %v1891 = vadd.f32 %v1881, %v1889
  %v1892 = vtanh.pop %v1891
  %1894 = vrot.lane.b32.xlu0 %v1892, 64
  %v1895 = vpop.permute.xlu0 %1894
  %v1897 = vmul.f32 %v1879, %v1895
  %1899 = vrot.lane.b32.xlu0 %v1897, 64
  %v1900 = vpop.permute.xlu0 %1899
  %1902 = vst.msk [vmem:[%s5] sm:$0xff] %vm421, %v1900
  // Predicated region
  $region22: #{lstm_model_forward.3} parent=0 // pred_check
    _
  $region23: #{lstm_model_forward.3} parent=0 // pred_check_branch
    %1904 = sbr.rel (0) target = $region25
  $region24: #{lstm_model_forward.3} parent=0 // pred_region
    _
  $region25: #{lstm_model_forward.3} parent=0 // pred_fallthru
    _
  // Predicated region
  $region26: #{lstm_model_forward.3} parent=0 // pred_check
    _
  $region27: #{lstm_model_forward.3} parent=0 // pred_check_branch
    %1906 = sbr.rel (0) target = $region29
  $region28: #{lstm_model_forward.3} parent=0 // pred_region
    _
  $region29: #{lstm_model_forward.3} parent=0 // pred_fallthru
    _

// kernel: lstm_model_forward.4
$region0: #{lstm_model_forward.4}
  #allocation0 [shape = 'u32[]', space=smem, size = 0x4, offset = 0x4, fixed_abs, tag = 'smem constant byte address 0x4 - core index']
  #allocation1 [shape = 'u32[144,128]{1,0:T(1,128)}', space=vmem, size = 0x12000, scoped, tag = 'internal scratch']
  #allocation2 [shape = 'f32[64,256]{1,0:T(8,128)}', space=vmem, size = 0x10000, scoped, tag = 'scratch operand']
  %s0 = inlined_call_operand.vmem [shape: f32[8,8,64], index: 0, kind: input, shape index: {}]
  %s1 = inlined_call_operand.vmem [shape: f32[64,256], index: 1, kind: input, shape index: {}]
  %s2 = inlined_call_operand.vmem [shape: f32[1,256], index: 2, kind: input, shape index: {}]
  %s3 = inlined_call_operand.vmem [shape: f32[32,128], index: 3, kind: input, shape index: {}]
  %s4 = inlined_call_operand.vmem [shape: f32[32,128], index: 4, kind: input, shape index: {}]
  %s5 = inlined_call_operand.vmem [shape: f32[8,8,64], index: 5, kind: output, shape index: {}]
  %s6 = sld [smem:[#allocation0]]
  $region30: #{lstm_model_forward.4} parent=0
    _
  %s8 = ssub.s32 1, %s6
  %s9 = scalar_select 0, %s8, %s6
  // Predicated region
  $region2: #{lstm_model_forward.4} parent=0 // pred_check
    _
  $region3: #{lstm_model_forward.4} parent=0 // pred_check_branch
    %11 = sbr.rel (0) target = $region5
  $region4: #{lstm_model_forward.4} parent=0 // pred_region
    _
  $region5: #{lstm_model_forward.4} parent=0 // pred_fallthru
    _
  // Predicated region
  $region6: #{lstm_model_forward.4} parent=0 // pred_check
    _
  $region7: #{lstm_model_forward.4} parent=0 // pred_check_branch
    %13 = sbr.rel (0) target = $region9
  $region8: #{lstm_model_forward.4} parent=0 // pred_region
    _
  $region9: #{lstm_model_forward.4} parent=0 // pred_fallthru
    _
  // Predicated region
  $region10: #{lstm_model_forward.4} parent=0 // pred_check
    _
  $region11: #{lstm_model_forward.4} parent=0 // pred_check_branch
    %15 = sbr.rel (0) target = $region13
  $region12: #{lstm_model_forward.4} parent=0 // pred_region
    _
  $region13: #{lstm_model_forward.4} parent=0 // pred_fallthru
    _
  // Predicated region
  $region14: #{lstm_model_forward.4} parent=0 // pred_check
    _
  $region15: #{lstm_model_forward.4} parent=0 // pred_check_branch
    %17 = sbr.rel (0) target = $region17
  $region16: #{lstm_model_forward.4} parent=0 // pred_region
    _
  $region17: #{lstm_model_forward.4} parent=0 // pred_fallthru
    _
  // Predicated region
  $region18: #{lstm_model_forward.4} parent=0 // pred_check
    _
  $region19: #{lstm_model_forward.4} parent=0 // pred_check_branch
    %19 = sbr.rel (0) target = $region21
  $region20: #{lstm_model_forward.4} parent=0 // pred_region
    _
  $region21: #{lstm_model_forward.4} parent=0 // pred_fallthru
    _
  %v20 = vld [vmem:[%s0] sm:$0xff]
  %v21 = vld [vmem:[%s0 + $0x8] sm:$0xff]
  %v22 = vld [vmem:[%s0 + $0x10] sm:$0xff]
  %v23 = vld [vmem:[%s0 + $0x18] sm:$0xff]
  %v24 = vld [vmem:[%s0 + $0x20] sm:$0xff]
  %v25 = vld [vmem:[%s0 + $0x28] sm:$0xff]
  %v26 = vld [vmem:[%s0 + $0x30] sm:$0xff]
  %v27 = vld [vmem:[%s0 + $0x38] sm:$0xff]
  %v28 = vld [vmem:[%s1] sm:$0xff]
  %v29 = vld [vmem:[%s1 + $0x8] sm:$0xff]
  %v30 = vld [vmem:[%s1 + $0x10] sm:$0xff]
  %v31 = vld [vmem:[%s1 + $0x18] sm:$0xff]
  %v32 = vld [vmem:[%s1 + $0x20] sm:$0xff]
  %v33 = vld [vmem:[%s1 + $0x28] sm:$0xff]
  %v34 = vld [vmem:[%s1 + $0x30] sm:$0xff]
  %v35 = vld [vmem:[%s1 + $0x38] sm:$0xff]
  %v36 = vld [vmem:[%s1 + $0x40] sm:$0xff]
  %v37 = vld [vmem:[%s1 + $0x48] sm:$0xff]
  %v38 = vld [vmem:[%s1 + $0x50] sm:$0xff]
  %v39 = vld [vmem:[%s1 + $0x58] sm:$0xff]
  %v40 = vld [vmem:[%s1 + $0x60] sm:$0xff]
  %v41 = vld [vmem:[%s1 + $0x68] sm:$0xff]
  %v42 = vld [vmem:[%s1 + $0x70] sm:$0xff]
  %v43 = vld [vmem:[%s1 + $0x78] sm:$0xff]
  %v44 = vld [vmem:[%s2] sm:$0x3]
  %v46 = vlaneseq
  %v47 = vshrl.u32 %v46, 7
  %v48 = vsub.s32 0, %v47
  %v49 = vrot.slane %v44, %v48
  %v50 = vlaneseq
  %v51 = vshrl.u32 %v50, 7
  %v52 = vsub.s32 1, %v51
  %v53 = vrot.slane %v44, %v52
  %vm56 = vcmask 523264
  %v58 = vsel %vm56, %v20, 0
  %v61 = vsel %vm56, %v21, 0
  %v64 = vsel %vm56, %v22, 0
  %v67 = vsel %vm56, %v23, 0
  %v70 = vsel %vm56, %v24, 0
  %v73 = vsel %vm56, %v25, 0
  %v76 = vsel %vm56, %v26, 0
  %v79 = vsel %vm56, %v27, 0
  %81 = vmatprep.subr.mxu0 %v29
  %82 = vmatpush1.msra.mxu0 %v28
  %83 = vmatprep.subr.mxu0 %v31
  %84 = vmatpush1.msra.mxu0 %v30
  %85 = vmatprep.subr.mxu0 %v33
  %86 = vmatpush1.msra.mxu0 %v32
  %87 = vmatprep.subr.mxu0 %v35
  %88 = vmatpush1.msra.mxu0 %v34
  %89 = vmatprep.subr.mxu0 %v37
  %90 = vmatpush1.msra.mxu0 %v36
  %91 = vmatprep.subr.mxu0 %v39
  %92 = vmatpush1.msra.mxu0 %v38
  %93 = vmatprep.subr.mxu0 %v41
  %94 = vmatpush1.msra.mxu0 %v40
  %95 = vmatprep.subr.mxu0 %v43
  %96 = vmatpush1.msra.mxu0 %v42
  %97 = vmatprep.subr.mxu0 0.0
  %98 = vmatpush1.msra.mxu0 0.0
  %99 = vmatprep.subr.mxu0 0.0
  %100 = vmatpush1.msra.mxu0 0.0
  %101 = vmatprep.subr.mxu0 0.0
  %102 = vmatpush1.msra.mxu0 0.0
  %103 = vmatprep.subr.mxu0 0.0
  %104 = vmatpush1.msra.mxu0 0.0
  %105 = vmatprep.subr.mxu0 0.0
  %106 = vmatpush1.msra.mxu0 0.0
  %107 = vmatprep.subr.mxu0 0.0
  %108 = vmatpush1.msra.mxu0 0.0
  %109 = vmatprep.subr.mxu0 0.0
  %110 = vmatpush1.msra.mxu0 0.0
  %111 = vmatprep.subr.mxu0 0.0
  %112 = vmatpush1.msra.mxu0 0.0
  %113 = vmatprep.subr.mxu0 0.0
  %114 = vmatpush1.msra.mxu0 0.0
  %115 = vmatprep.subr.mxu0 0.0
  %116 = vmatpush1.msra.mxu0 0.0
  %117 = vmatprep.subr.mxu0 0.0
  %118 = vmatpush1.msra.mxu0 0.0
  %119 = vmatprep.subr.mxu0 0.0
  %120 = vmatpush1.msra.mxu0 0.0
  %121 = vmatprep.subr.mxu0 0.0
  %122 = vmatpush1.msra.mxu0 0.0
  %123 = vmatprep.subr.mxu0 0.0
  %124 = vmatpush1.msra.mxu0 0.0
  %125 = vmatprep.subr.mxu0 0.0
  %126 = vmatpush1.msra.mxu0 0.0
  %127 = vmatprep.subr.mxu0 0.0
  %128 = vmatpush1.msra.mxu0 0.0
  %129 = vmatprep.subr.mxu0 0.0
  %130 = vmatpush1.msra.mxu0 0.0
  %131 = vmatprep.subr.mxu0 0.0
  %132 = vmatpush1.msra.mxu0 0.0
  %133 = vmatprep.subr.mxu0 0.0
  %134 = vmatpush1.msra.mxu0 0.0
  %135 = vmatprep.subr.mxu0 0.0
  %136 = vmatpush1.msra.mxu0 0.0
  %137 = vmatprep.subr.mxu0 0.0
  %138 = vmatpush1.msra.mxu0 0.0
  %139 = vmatprep.subr.mxu0 0.0
  %140 = vmatpush1.msra.mxu0 0.0
  %141 = vmatprep.subr.mxu0 0.0
  %142 = vmatpush1.msra.mxu0 0.0
  %143 = vmatprep.subr.mxu0 0.0
  %144 = vmatpush1.msra.mxu0 0.0
  %145 = vmatprep.mubr.f32.mxu0 0.0
  %146 = vmatmul.mubr.f32.gmra.mrb[0].mxu0 %v58
  %v147 = vpop.f32.mrb[0].mxu0
  %v148 = vadd.f32 %v49, %v147
  %v149 = vpop.f32.mrb[0].mxu0
  %v150 = vadd.f32 %v53, %v149
  %151 = vmatprep.mubr.f32.mxu0 0.0
  %152 = vmatmul.mubr.f32.gmra.mrb[0].mxu0 %v61
  %v153 = vpop.f32.mrb[0].mxu0
  %v154 = vadd.f32 %v49, %v153
  %v155 = vpop.f32.mrb[0].mxu0
  %v156 = vadd.f32 %v53, %v155
  %157 = vmatprep.mubr.f32.mxu0 0.0
  %158 = vmatmul.mubr.f32.gmra.mrb[0].mxu0 %v64
  %v159 = vpop.f32.mrb[0].mxu0
  %v160 = vadd.f32 %v49, %v159
  %v161 = vpop.f32.mrb[0].mxu0
  %v162 = vadd.f32 %v53, %v161
  %163 = vmatprep.mubr.f32.mxu0 0.0
  %164 = vmatmul.mubr.f32.gmra.mrb[0].mxu0 %v67
  %v165 = vpop.f32.mrb[0].mxu0
  %v166 = vadd.f32 %v49, %v165
  %v167 = vpop.f32.mrb[0].mxu0
  %v168 = vadd.f32 %v53, %v167
  %169 = vmatprep.mubr.f32.mxu0 0.0
  %170 = vmatmul.mubr.f32.gmra.mrb[0].mxu0 %v70
  %v171 = vpop.f32.mrb[0].mxu0
  %v172 = vadd.f32 %v49, %v171
  %v173 = vpop.f32.mrb[0].mxu0
  %v174 = vadd.f32 %v53, %v173
  %175 = vmatprep.mubr.f32.mxu0 0.0
  %176 = vmatmul.mubr.f32.gmra.mrb[0].mxu0 %v73
  %v177 = vpop.f32.mrb[0].mxu0
  %v178 = vadd.f32 %v49, %v177
  %v179 = vpop.f32.mrb[0].mxu0
  %v180 = vadd.f32 %v53, %v179
  %181 = vmatprep.mubr.f32.mxu0 0.0
  %182 = vmatmul.mubr.f32.gmra.mrb[0].mxu0 %v76
  %v183 = vpop.f32.mrb[0].mxu0
  %v184 = vadd.f32 %v49, %v183
  %v185 = vpop.f32.mrb[0].mxu0
  %v186 = vadd.f32 %v53, %v185
  %187 = vmatprep.mubr.f32.mxu0 0.0
  %188 = vmatmul.mubr.f32.gmra.mrb[0].mxu0 %v79
  %v189 = vpop.f32.mrb[0].mxu0
  %v190 = vadd.f32 %v49, %v189
  %v191 = vpop.f32.mrb[0].mxu0
  %v192 = vadd.f32 %v53, %v191
  %193 = vdwg.mxu0
  %194 = vst [vmem:[#allocation2] sm:$0xff] %v148
  %195 = vst [vmem:[#allocation2 + $0x8] sm:$0xff] %v150
  %196 = vst [vmem:[#allocation2 + $0x10] sm:$0xff] %v154
  %197 = vst [vmem:[#allocation2 + $0x18] sm:$0xff] %v156
  %198 = vst [vmem:[#allocation2 + $0x20] sm:$0xff] %v160
  %199 = vst [vmem:[#allocation2 + $0x28] sm:$0xff] %v162
  %200 = vst [vmem:[#allocation2 + $0x30] sm:$0xff] %v166
  %201 = vst [vmem:[#allocation2 + $0x38] sm:$0xff] %v168
  %202 = vst [vmem:[#allocation2 + $0x40] sm:$0xff] %v172
  %203 = vst [vmem:[#allocation2 + $0x48] sm:$0xff] %v174
  %204 = vst [vmem:[#allocation2 + $0x50] sm:$0xff] %v178
  %205 = vst [vmem:[#allocation2 + $0x58] sm:$0xff] %v180
  %206 = vst [vmem:[#allocation2 + $0x60] sm:$0xff] %v184
  %207 = vst [vmem:[#allocation2 + $0x68] sm:$0xff] %v186
  %208 = vst [vmem:[#allocation2 + $0x70] sm:$0xff] %v190
  %209 = vst [vmem:[#allocation2 + $0x78] sm:$0xff] %v192
  %v210 = vld [vmem:[%s3] sm:$0xff]
  %v211 = vld [vmem:[%s3 + $0x8] sm:$0xff]
  %v212 = vld [vmem:[%s3 + $0x10] sm:$0xff]
  %v213 = vld [vmem:[%s3 + $0x18] sm:$0xff]
  %v214 = vld [vmem:[%s4] sm:$0xff]
  %v215 = vld [vmem:[%s4 + $0x8] sm:$0xff]
  %v216 = vld [vmem:[%s4 + $0x10] sm:$0xff]
  %v217 = vld [vmem:[%s4 + $0x18] sm:$0xff]
  %s218 = smul.u32 0, 2
  %s219 = smul.addr %s218, 8
  %s220 = scalar_lea.vmem [#allocation2], %s219
  %v221 = vld [vmem:[%s220] sm:$0xff]
  %vm222 = vcmask 261120
  %v224 = vsel %vm222, 0.0, 0
  %226 = vmatprep.subr.mxu0 0.0
  %227 = vmatpush1.msra.mxu0 %v210
  %228 = vmatprep.subr.mxu0 0.0
  %229 = vmatpush1.msra.mxu0 %v211
  %230 = vmatprep.subr.mxu0 0.0
  %231 = vmatpush1.msra.mxu0 %v212
  %232 = vmatprep.subr.mxu0 0.0
  %233 = vmatpush1.msra.mxu0 %v213
  %234 = vmatprep.subr.mxu0 0.0
  %235 = vmatpush1.msra.mxu0 0.0
  %236 = vmatprep.subr.mxu0 0.0
  %237 = vmatpush1.msra.mxu0 0.0
  %238 = vmatprep.subr.mxu0 0.0
  %239 = vmatpush1.msra.mxu0 0.0
  %240 = vmatprep.subr.mxu0 0.0
  %241 = vmatpush1.msra.mxu0 0.0
  %242 = vmatprep.subr.mxu0 0.0
  %243 = vmatpush1.msra.mxu0 0.0
  %244 = vmatprep.subr.mxu0 0.0
  %245 = vmatpush1.msra.mxu0 0.0
  %246 = vmatprep.subr.mxu0 0.0
  %247 = vmatpush1.msra.mxu0 0.0
  %248 = vmatprep.subr.mxu0 0.0
  %249 = vmatpush1.msra.mxu0 0.0
  %250 = vmatprep.subr.mxu0 0.0
  %251 = vmatpush1.msra.mxu0 0.0
  %252 = vmatprep.subr.mxu0 0.0
  %253 = vmatpush1.msra.mxu0 0.0
  %254 = vmatprep.subr.mxu0 0.0
  %255 = vmatpush1.msra.mxu0 0.0
  %256 = vmatprep.subr.mxu0 0.0
  %257 = vmatpush1.msra.mxu0 0.0
  %258 = vmatprep.subr.mxu0 0.0
  %259 = vmatpush1.msra.mxu0 0.0
  %260 = vmatprep.subr.mxu0 0.0
  %261 = vmatpush1.msra.mxu0 0.0
  %262 = vmatprep.subr.mxu0 0.0
  %263 = vmatpush1.msra.mxu0 0.0
  %264 = vmatprep.subr.mxu0 0.0
  %265 = vmatpush1.msra.mxu0 0.0
  %266 = vmatprep.subr.mxu0 0.0
  %267 = vmatpush1.msra.mxu0 0.0
  %268 = vmatprep.subr.mxu0 0.0
  %269 = vmatpush1.msra.mxu0 0.0
  %270 = vmatprep.subr.mxu0 0.0
  %271 = vmatpush1.msra.mxu0 0.0
  %272 = vmatprep.subr.mxu0 0.0
  %273 = vmatpush1.msra.mxu0 0.0
  %274 = vmatprep.subr.mxu0 0.0
  %275 = vmatpush1.msra.mxu0 0.0
  %276 = vmatprep.subr.mxu0 0.0
  %277 = vmatpush1.msra.mxu0 0.0
  %278 = vmatprep.subr.mxu0 0.0
  %279 = vmatpush1.msra.mxu0 0.0
  %280 = vmatprep.subr.mxu0 0.0
  %281 = vmatpush1.msra.mxu0 0.0
  %282 = vmatprep.subr.mxu0 0.0
  %283 = vmatpush1.msra.mxu0 0.0
  %284 = vmatprep.subr.mxu0 0.0
  %285 = vmatpush1.msra.mxu0 0.0
  %286 = vmatprep.subr.mxu0 0.0
  %287 = vmatpush1.msra.mxu0 0.0
  %288 = vmatprep.subr.mxu0 0.0
  %289 = vmatpush1.msra.mxu0 0.0
  %290 = vmatprep.mubr.f32.mxu0 0.0
  %291 = vmatmul.mubr.f32.gmra.mrb[0].mxu0 %v224
  %v292 = vpop.f32.mrb[0].mxu0
  %v293 = vadd.f32 0.0, %v292
  %v294 = vpop.f32.mrb[0].mxu0
  %295 = vdwg.mxu0
  %v296 = vadd.f32 %v221, %v293
  %v297 = vxor.u32 %v296, 2147483648
  %v298 = vmul.f32 %v297, 1.442695
  %v299 = vpow.pop %v298
  %v300 = vadd.f32 %v299, 1.0
  %v301 = vrcp.pop %v300
  %v302 = vmul.f32 1.0, %v301
  %v303 = vtanh.pop %v296
  %v304 = vmul.f32 %v302, 0.0
  %306 = vrot.lane.b32.xlu0 %v303, 64
  %v307 = vpop.permute.xlu0 %306
  %v309 = vmul.f32 %v302, %v307
  %311 = vrot.lane.b32.xlu0 %v309, 32
  %v312 = vpop.permute.xlu0 %311
  %v314 = vadd.f32 %v304, %v312
  %v315 = vtanh.pop %v314
  %317 = vrot.lane.b32.xlu0 %v315, 64
  %v318 = vpop.permute.xlu0 %317
  %v320 = vmul.f32 %v302, %v318
  %322 = vrot.lane.b32.xlu0 %v320, 32
  %v323 = vpop.permute.xlu0 %322
  %325 = vst.msk [vmem:[%s5] sm:$0xff] %vm222, %v323
  %s326 = smul.u32 7, 2
  %s327 = smul.addr %s326, 8
  %s328 = scalar_lea.vmem [#allocation2], %s327
  %v329 = vld [vmem:[%s328 + $0x8] sm:$0xff]
  %330 = vmatprep.subr.mxu0 0.0
  %331 = vmatpush1.msra.mxu0 %v214
  %332 = vmatprep.subr.mxu0 0.0
  %333 = vmatpush1.msra.mxu0 %v215
  %334 = vmatprep.subr.mxu0 0.0
  %335 = vmatpush1.msra.mxu0 %v216
  %336 = vmatprep.subr.mxu0 0.0
  %337 = vmatpush1.msra.mxu0 %v217
  %338 = vmatprep.subr.mxu0 0.0
  %339 = vmatpush1.msra.mxu0 0.0
  %340 = vmatprep.subr.mxu0 0.0
  %341 = vmatpush1.msra.mxu0 0.0
  %342 = vmatprep.subr.mxu0 0.0
  %343 = vmatpush1.msra.mxu0 0.0
  %344 = vmatprep.subr.mxu0 0.0
  %345 = vmatpush1.msra.mxu0 0.0
  %346 = vmatprep.subr.mxu0 0.0
  %347 = vmatpush1.msra.mxu0 0.0
  %348 = vmatprep.subr.mxu0 0.0
  %349 = vmatpush1.msra.mxu0 0.0
  %350 = vmatprep.subr.mxu0 0.0
  %351 = vmatpush1.msra.mxu0 0.0
  %352 = vmatprep.subr.mxu0 0.0
  %353 = vmatpush1.msra.mxu0 0.0
  %354 = vmatprep.subr.mxu0 0.0
  %355 = vmatpush1.msra.mxu0 0.0
  %356 = vmatprep.subr.mxu0 0.0
  %357 = vmatpush1.msra.mxu0 0.0
  %358 = vmatprep.subr.mxu0 0.0
  %359 = vmatpush1.msra.mxu0 0.0
  %360 = vmatprep.subr.mxu0 0.0
  %361 = vmatpush1.msra.mxu0 0.0
  %362 = vmatprep.subr.mxu0 0.0
  %363 = vmatpush1.msra.mxu0 0.0
  %364 = vmatprep.subr.mxu0 0.0
  %365 = vmatpush1.msra.mxu0 0.0
  %366 = vmatprep.subr.mxu0 0.0
  %367 = vmatpush1.msra.mxu0 0.0
  %368 = vmatprep.subr.mxu0 0.0
  %369 = vmatpush1.msra.mxu0 0.0
  %370 = vmatprep.subr.mxu0 0.0
  %371 = vmatpush1.msra.mxu0 0.0
  %372 = vmatprep.subr.mxu0 0.0
  %373 = vmatpush1.msra.mxu0 0.0
  %374 = vmatprep.subr.mxu0 0.0
  %375 = vmatpush1.msra.mxu0 0.0
  %376 = vmatprep.subr.mxu0 0.0
  %377 = vmatpush1.msra.mxu0 0.0
  %378 = vmatprep.subr.mxu0 0.0
  %379 = vmatpush1.msra.mxu0 0.0
  %380 = vmatprep.subr.mxu0 0.0
  %381 = vmatpush1.msra.mxu0 0.0
  %382 = vmatprep.subr.mxu0 0.0
  %383 = vmatpush1.msra.mxu0 0.0
  %384 = vmatprep.subr.mxu0 0.0
  %385 = vmatpush1.msra.mxu0 0.0
  %386 = vmatprep.subr.mxu0 0.0
  %387 = vmatpush1.msra.mxu0 0.0
  %388 = vmatprep.subr.mxu0 0.0
  %389 = vmatpush1.msra.mxu0 0.0
  %390 = vmatprep.subr.mxu0 0.0
  %391 = vmatpush1.msra.mxu0 0.0
  %392 = vmatprep.subr.mxu0 0.0
  %393 = vmatpush1.msra.mxu0 0.0
  %394 = vmatprep.mubr.f32.mxu0 0.0
  %395 = vmatmul.mubr.f32.gmra.mrb[0].mxu0 %v224
  %v396 = vpop.f32.mrb[0].mxu0
  %v397 = vadd.f32 0.0, %v396
  %v398 = vpop.f32.mrb[0].mxu0
  %399 = vdwg.mxu0
  %v400 = vadd.f32 %v329, %v397
  %v401 = vxor.u32 %v400, 2147483648
  %v402 = vmul.f32 %v401, 1.442695
  %v403 = vpow.pop %v402
  %v404 = vadd.f32 %v403, 1.0
  %v405 = vrcp.pop %v404
  %v406 = vmul.f32 1.0, %v405
  %v407 = vtanh.pop %v400
  %v408 = vmul.f32 %v406, 0.0
  %410 = vrot.lane.b32.xlu0 %v407, 64
  %v411 = vpop.permute.xlu0 %410
  %v413 = vmul.f32 %v406, %v411
  %415 = vrot.lane.b32.xlu0 %v413, 32
  %v416 = vpop.permute.xlu0 %415
  %v418 = vadd.f32 %v408, %v416
  %v419 = vtanh.pop %v418
  %421 = vrot.lane.b32.xlu0 %v419, 64
  %v422 = vpop.permute.xlu0 %421
  %v424 = vmul.f32 %v406, %v422
  %426 = vrot.lane.b32.xlu0 %v424, 64
  %v427 = vpop.permute.xlu0 %426
  %s429 = scalar_lea.vmem %s5, 56
  %vm430 = vcmask 523520
  %431 = vst.msk [vmem:[%s429] sm:$0xff] %vm430, %v427
  %s432 = smul.u32 1, 2
  %s433 = smul.addr %s432, 8
  %s434 = scalar_lea.vmem [#allocation2], %s433
  %v435 = vld [vmem:[%s434] sm:$0xff]
  %v436 = vsel %vm222, %v323, 0
  %438 = vmatprep.subr.mxu0 0.0
  %439 = vmatpush1.msra.mxu0 %v210
  %440 = vmatprep.subr.mxu0 0.0
  %441 = vmatpush1.msra.mxu0 %v211
  %442 = vmatprep.subr.mxu0 0.0
  %443 = vmatpush1.msra.mxu0 %v212
  %444 = vmatprep.subr.mxu0 0.0
  %445 = vmatpush1.msra.mxu0 %v213
  %446 = vmatprep.subr.mxu0 0.0
  %447 = vmatpush1.msra.mxu0 0.0
  %448 = vmatprep.subr.mxu0 0.0
  %449 = vmatpush1.msra.mxu0 0.0
  %450 = vmatprep.subr.mxu0 0.0
  %451 = vmatpush1.msra.mxu0 0.0
  %452 = vmatprep.subr.mxu0 0.0
  %453 = vmatpush1.msra.mxu0 0.0
  %454 = vmatprep.subr.mxu0 0.0
  %455 = vmatpush1.msra.mxu0 0.0
  %456 = vmatprep.subr.mxu0 0.0
  %457 = vmatpush1.msra.mxu0 0.0
  %458 = vmatprep.subr.mxu0 0.0
  %459 = vmatpush1.msra.mxu0 0.0
  %460 = vmatprep.subr.mxu0 0.0
  %461 = vmatpush1.msra.mxu0 0.0
  %462 = vmatprep.subr.mxu0 0.0
  %463 = vmatpush1.msra.mxu0 0.0
  %464 = vmatprep.subr.mxu0 0.0
  %465 = vmatpush1.msra.mxu0 0.0
  %466 = vmatprep.subr.mxu0 0.0
  %467 = vmatpush1.msra.mxu0 0.0
  %468 = vmatprep.subr.mxu0 0.0
  %469 = vmatpush1.msra.mxu0 0.0
  %470 = vmatprep.subr.mxu0 0.0
  %471 = vmatpush1.msra.mxu0 0.0
  %472 = vmatprep.subr.mxu0 0.0
  %473 = vmatpush1.msra.mxu0 0.0
  %474 = vmatprep.subr.mxu0 0.0
  %475 = vmatpush1.msra.mxu0 0.0
  %476 = vmatprep.subr.mxu0 0.0
  %477 = vmatpush1.msra.mxu0 0.0
  %478 = vmatprep.subr.mxu0 0.0
  %479 = vmatpush1.msra.mxu0 0.0
  %480 = vmatprep.subr.mxu0 0.0
  %481 = vmatpush1.msra.mxu0 0.0
  %482 = vmatprep.subr.mxu0 0.0
  %483 = vmatpush1.msra.mxu0 0.0
  %484 = vmatprep.subr.mxu0 0.0
  %485 = vmatpush1.msra.mxu0 0.0
  %486 = vmatprep.subr.mxu0 0.0
  %487 = vmatpush1.msra.mxu0 0.0
  %488 = vmatprep.subr.mxu0 0.0
  %489 = vmatpush1.msra.mxu0 0.0
  %490 = vmatprep.subr.mxu0 0.0
  %491 = vmatpush1.msra.mxu0 0.0
  %492 = vmatprep.subr.mxu0 0.0
  %493 = vmatpush1.msra.mxu0 0.0
  %494 = vmatprep.subr.mxu0 0.0
  %495 = vmatpush1.msra.mxu0 0.0
  %496 = vmatprep.subr.mxu0 0.0
  %497 = vmatpush1.msra.mxu0 0.0
  %498 = vmatprep.subr.mxu0 0.0
  %499 = vmatpush1.msra.mxu0 0.0
  %500 = vmatprep.subr.mxu0 0.0
  %501 = vmatpush1.msra.mxu0 0.0
  %502 = vmatprep.mubr.f32.mxu0 0.0
  %503 = vmatmul.mubr.f32.gmra.mrb[0].mxu0 %v436
  %v504 = vpop.f32.mrb[0].mxu0
  %v505 = vadd.f32 0.0, %v504
  %v506 = vpop.f32.mrb[0].mxu0
  %507 = vdwg.mxu0
  %v508 = vadd.f32 %v435, %v505
  %v509 = vxor.u32 %v508, 2147483648
  %v510 = vmul.f32 %v509, 1.442695
  %v511 = vpow.pop %v510
  %v512 = vadd.f32 %v511, 1.0
  %v513 = vrcp.pop %v512
  %v514 = vmul.f32 1.0, %v513
  %v515 = vtanh.pop %v508
  %v516 = vmul.f32 %v514, %v314
  %518 = vrot.lane.b32.xlu0 %v515, 64
  %v519 = vpop.permute.xlu0 %518
  %v521 = vmul.f32 %v514, %v519
  %523 = vrot.lane.b32.xlu0 %v521, 32
  %v524 = vpop.permute.xlu0 %523
  %v526 = vadd.f32 %v516, %v524
  %v527 = vtanh.pop %v526
  %529 = vrot.lane.b32.xlu0 %v527, 64
  %v530 = vpop.permute.xlu0 %529
  %v532 = vmul.f32 %v514, %v530
  %534 = vrot.lane.b32.xlu0 %v532, 32
  %v535 = vpop.permute.xlu0 %534
  %s537 = scalar_lea.vmem %s5, 8
  %538 = vst.msk [vmem:[%s537] sm:$0xff] %vm222, %v535
  %s539 = smul.u32 6, 2
  %s540 = smul.addr %s539, 8
  %s541 = scalar_lea.vmem [#allocation2], %s540
  %v542 = vld [vmem:[%s541 + $0x8] sm:$0xff]
  %543 = vrot.lane.b32.xlu0 %v424, 32
  %v544 = vpop.permute.xlu0 %543
  %v545 = vsel %vm222, %v544, 0
  %547 = vmatprep.subr.mxu0 0.0
  %548 = vmatpush1.msra.mxu0 %v214
  %549 = vmatprep.subr.mxu0 0.0
  %550 = vmatpush1.msra.mxu0 %v215
  %551 = vmatprep.subr.mxu0 0.0
  %552 = vmatpush1.msra.mxu0 %v216
  %553 = vmatprep.subr.mxu0 0.0
  %554 = vmatpush1.msra.mxu0 %v217
  %555 = vmatprep.subr.mxu0 0.0
  %556 = vmatpush1.msra.mxu0 0.0
  %557 = vmatprep.subr.mxu0 0.0
  %558 = vmatpush1.msra.mxu0 0.0
  %559 = vmatprep.subr.mxu0 0.0
  %560 = vmatpush1.msra.mxu0 0.0
  %561 = vmatprep.subr.mxu0 0.0
  %562 = vmatpush1.msra.mxu0 0.0
  %563 = vmatprep.subr.mxu0 0.0
  %564 = vmatpush1.msra.mxu0 0.0
  %565 = vmatprep.subr.mxu0 0.0
  %566 = vmatpush1.msra.mxu0 0.0
  %567 = vmatprep.subr.mxu0 0.0
  %568 = vmatpush1.msra.mxu0 0.0
  %569 = vmatprep.subr.mxu0 0.0
  %570 = vmatpush1.msra.mxu0 0.0
  %571 = vmatprep.subr.mxu0 0.0
  %572 = vmatpush1.msra.mxu0 0.0
  %573 = vmatprep.subr.mxu0 0.0
  %574 = vmatpush1.msra.mxu0 0.0
  %575 = vmatprep.subr.mxu0 0.0
  %576 = vmatpush1.msra.mxu0 0.0
  %577 = vmatprep.subr.mxu0 0.0
  %578 = vmatpush1.msra.mxu0 0.0
  %579 = vmatprep.subr.mxu0 0.0
  %580 = vmatpush1.msra.mxu0 0.0
  %581 = vmatprep.subr.mxu0 0.0
  %582 = vmatpush1.msra.mxu0 0.0
  %583 = vmatprep.subr.mxu0 0.0
  %584 = vmatpush1.msra.mxu0 0.0
  %585 = vmatprep.subr.mxu0 0.0
  %586 = vmatpush1.msra.mxu0 0.0
  %587 = vmatprep.subr.mxu0 0.0
  %588 = vmatpush1.msra.mxu0 0.0
  %589 = vmatprep.subr.mxu0 0.0
  %590 = vmatpush1.msra.mxu0 0.0
  %591 = vmatprep.subr.mxu0 0.0
  %592 = vmatpush1.msra.mxu0 0.0
  %593 = vmatprep.subr.mxu0 0.0
  %594 = vmatpush1.msra.mxu0 0.0
  %595 = vmatprep.subr.mxu0 0.0
  %596 = vmatpush1.msra.mxu0 0.0
  %597 = vmatprep.subr.mxu0 0.0
  %598 = vmatpush1.msra.mxu0 0.0
  %599 = vmatprep.subr.mxu0 0.0
  %600 = vmatpush1.msra.mxu0 0.0
  %601 = vmatprep.subr.mxu0 0.0
  %602 = vmatpush1.msra.mxu0 0.0
  %603 = vmatprep.subr.mxu0 0.0
  %604 = vmatpush1.msra.mxu0 0.0
  %605 = vmatprep.subr.mxu0 0.0
  %606 = vmatpush1.msra.mxu0 0.0
  %607 = vmatprep.subr.mxu0 0.0
  %608 = vmatpush1.msra.mxu0 0.0
  %609 = vmatprep.subr.mxu0 0.0
  %610 = vmatpush1.msra.mxu0 0.0
  %611 = vmatprep.mubr.f32.mxu0 0.0
  %612 = vmatmul.mubr.f32.gmra.mrb[0].mxu0 %v545
  %v613 = vpop.f32.mrb[0].mxu0
  %v614 = vadd.f32 0.0, %v613
  %v615 = vpop.f32.mrb[0].mxu0
  %616 = vdwg.mxu0
  %v617 = vadd.f32 %v542, %v614
  %v618 = vxor.u32 %v617, 2147483648
  %v619 = vmul.f32 %v618, 1.442695
  %v620 = vpow.pop %v619
  %v621 = vadd.f32 %v620, 1.0
  %v622 = vrcp.pop %v621
  %v623 = vmul.f32 1.0, %v622
  %v624 = vtanh.pop %v617
  %v625 = vmul.f32 %v623, %v418
  %627 = vrot.lane.b32.xlu0 %v624, 64
  %v628 = vpop.permute.xlu0 %627
  %v630 = vmul.f32 %v623, %v628
  %632 = vrot.lane.b32.xlu0 %v630, 32
  %v633 = vpop.permute.xlu0 %632
  %v635 = vadd.f32 %v625, %v633
  %v636 = vtanh.pop %v635
  %638 = vrot.lane.b32.xlu0 %v636, 64
  %v639 = vpop.permute.xlu0 %638
  %v641 = vmul.f32 %v623, %v639
  %643 = vrot.lane.b32.xlu0 %v641, 64
  %v644 = vpop.permute.xlu0 %643
  %s646 = scalar_lea.vmem %s5, 48
  %647 = vst.msk [vmem:[%s646] sm:$0xff] %vm430, %v644
  %s648 = smul.u32 2, 2
  %s649 = smul.addr %s648, 8
  %s650 = scalar_lea.vmem [#allocation2], %s649
  %v651 = vld [vmem:[%s650] sm:$0xff]
  %v652 = vsel %vm222, %v535, 0
  %654 = vmatprep.subr.mxu0 0.0
  %655 = vmatpush1.msra.mxu0 %v210
  %656 = vmatprep.subr.mxu0 0.0
  %657 = vmatpush1.msra.mxu0 %v211
  %658 = vmatprep.subr.mxu0 0.0
  %659 = vmatpush1.msra.mxu0 %v212
  %660 = vmatprep.subr.mxu0 0.0
  %661 = vmatpush1.msra.mxu0 %v213
  %662 = vmatprep.subr.mxu0 0.0
  %663 = vmatpush1.msra.mxu0 0.0
  %664 = vmatprep.subr.mxu0 0.0
  %665 = vmatpush1.msra.mxu0 0.0
  %666 = vmatprep.subr.mxu0 0.0
  %667 = vmatpush1.msra.mxu0 0.0
  %668 = vmatprep.subr.mxu0 0.0
  %669 = vmatpush1.msra.mxu0 0.0
  %670 = vmatprep.subr.mxu0 0.0
  %671 = vmatpush1.msra.mxu0 0.0
  %672 = vmatprep.subr.mxu0 0.0
  %673 = vmatpush1.msra.mxu0 0.0
  %674 = vmatprep.subr.mxu0 0.0
  %675 = vmatpush1.msra.mxu0 0.0
  %676 = vmatprep.subr.mxu0 0.0
  %677 = vmatpush1.msra.mxu0 0.0
  %678 = vmatprep.subr.mxu0 0.0
  %679 = vmatpush1.msra.mxu0 0.0
  %680 = vmatprep.subr.mxu0 0.0
  %681 = vmatpush1.msra.mxu0 0.0
  %682 = vmatprep.subr.mxu0 0.0
  %683 = vmatpush1.msra.mxu0 0.0
  %684 = vmatprep.subr.mxu0 0.0
  %685 = vmatpush1.msra.mxu0 0.0
  %686 = vmatprep.subr.mxu0 0.0
  %687 = vmatpush1.msra.mxu0 0.0
  %688 = vmatprep.subr.mxu0 0.0
  %689 = vmatpush1.msra.mxu0 0.0
  %690 = vmatprep.subr.mxu0 0.0
  %691 = vmatpush1.msra.mxu0 0.0
  %692 = vmatprep.subr.mxu0 0.0
  %693 = vmatpush1.msra.mxu0 0.0
  %694 = vmatprep.subr.mxu0 0.0
  %695 = vmatpush1.msra.mxu0 0.0
  %696 = vmatprep.subr.mxu0 0.0
  %697 = vmatpush1.msra.mxu0 0.0
  %698 = vmatprep.subr.mxu0 0.0
  %699 = vmatpush1.msra.mxu0 0.0
  %700 = vmatprep.subr.mxu0 0.0
  %701 = vmatpush1.msra.mxu0 0.0
  %702 = vmatprep.subr.mxu0 0.0
  %703 = vmatpush1.msra.mxu0 0.0
  %704 = vmatprep.subr.mxu0 0.0
  %705 = vmatpush1.msra.mxu0 0.0
  %706 = vmatprep.subr.mxu0 0.0
  %707 = vmatpush1.msra.mxu0 0.0
  %708 = vmatprep.subr.mxu0 0.0
  %709 = vmatpush1.msra.mxu0 0.0
  %710 = vmatprep.subr.mxu0 0.0
  %711 = vmatpush1.msra.mxu0 0.0
  %712 = vmatprep.subr.mxu0 0.0
  %713 = vmatpush1.msra.mxu0 0.0
  %714 = vmatprep.subr.mxu0 0.0
  %715 = vmatpush1.msra.mxu0 0.0
  %716 = vmatprep.subr.mxu0 0.0
  %717 = vmatpush1.msra.mxu0 0.0
  %718 = vmatprep.mubr.f32.mxu0 0.0
  %719 = vmatmul.mubr.f32.gmra.mrb[0].mxu0 %v652
  %v720 = vpop.f32.mrb[0].mxu0
  %v721 = vadd.f32 0.0, %v720
  %v722 = vpop.f32.mrb[0].mxu0
  %723 = vdwg.mxu0
  %v724 = vadd.f32 %v651, %v721
  %v725 = vxor.u32 %v724, 2147483648
  %v726 = vmul.f32 %v725, 1.442695
  %v727 = vpow.pop %v726
  %v728 = vadd.f32 %v727, 1.0
  %v729 = vrcp.pop %v728
  %v730 = vmul.f32 1.0, %v729
  %v731 = vtanh.pop %v724
  %v732 = vmul.f32 %v730, %v526
  %734 = vrot.lane.b32.xlu0 %v731, 64
  %v735 = vpop.permute.xlu0 %734
  %v737 = vmul.f32 %v730, %v735
  %739 = vrot.lane.b32.xlu0 %v737, 32
  %v740 = vpop.permute.xlu0 %739
  %v742 = vadd.f32 %v732, %v740
  %v743 = vtanh.pop %v742
  %745 = vrot.lane.b32.xlu0 %v743, 64
  %v746 = vpop.permute.xlu0 %745
  %v748 = vmul.f32 %v730, %v746
  %750 = vrot.lane.b32.xlu0 %v748, 32
  %v751 = vpop.permute.xlu0 %750
  %s753 = scalar_lea.vmem %s5, 16
  %754 = vst.msk [vmem:[%s753] sm:$0xff] %vm222, %v751
  %s755 = smul.u32 5, 2
  %s756 = smul.addr %s755, 8
  %s757 = scalar_lea.vmem [#allocation2], %s756
  %v758 = vld [vmem:[%s757 + $0x8] sm:$0xff]
  %759 = vrot.lane.b32.xlu0 %v641, 32
  %v760 = vpop.permute.xlu0 %759
  %v761 = vsel %vm222, %v760, 0
  %763 = vmatprep.subr.mxu0 0.0
  %764 = vmatpush1.msra.mxu0 %v214
  %765 = vmatprep.subr.mxu0 0.0
  %766 = vmatpush1.msra.mxu0 %v215
  %767 = vmatprep.subr.mxu0 0.0
  %768 = vmatpush1.msra.mxu0 %v216
  %769 = vmatprep.subr.mxu0 0.0
  %770 = vmatpush1.msra.mxu0 %v217
  %771 = vmatprep.subr.mxu0 0.0
  %772 = vmatpush1.msra.mxu0 0.0
  %773 = vmatprep.subr.mxu0 0.0
  %774 = vmatpush1.msra.mxu0 0.0
  %775 = vmatprep.subr.mxu0 0.0
  %776 = vmatpush1.msra.mxu0 0.0
  %777 = vmatprep.subr.mxu0 0.0
  %778 = vmatpush1.msra.mxu0 0.0
  %779 = vmatprep.subr.mxu0 0.0
  %780 = vmatpush1.msra.mxu0 0.0
  %781 = vmatprep.subr.mxu0 0.0
  %782 = vmatpush1.msra.mxu0 0.0
  %783 = vmatprep.subr.mxu0 0.0
  %784 = vmatpush1.msra.mxu0 0.0
  %785 = vmatprep.subr.mxu0 0.0
  %786 = vmatpush1.msra.mxu0 0.0
  %787 = vmatprep.subr.mxu0 0.0
  %788 = vmatpush1.msra.mxu0 0.0
  %789 = vmatprep.subr.mxu0 0.0
  %790 = vmatpush1.msra.mxu0 0.0
  %791 = vmatprep.subr.mxu0 0.0
  %792 = vmatpush1.msra.mxu0 0.0
  %793 = vmatprep.subr.mxu0 0.0
  %794 = vmatpush1.msra.mxu0 0.0
  %795 = vmatprep.subr.mxu0 0.0
  %796 = vmatpush1.msra.mxu0 0.0
  %797 = vmatprep.subr.mxu0 0.0
  %798 = vmatpush1.msra.mxu0 0.0
  %799 = vmatprep.subr.mxu0 0.0
  %800 = vmatpush1.msra.mxu0 0.0
  %801 = vmatprep.subr.mxu0 0.0
  %802 = vmatpush1.msra.mxu0 0.0
  %803 = vmatprep.subr.mxu0 0.0
  %804 = vmatpush1.msra.mxu0 0.0
  %805 = vmatprep.subr.mxu0 0.0
  %806 = vmatpush1.msra.mxu0 0.0
  %807 = vmatprep.subr.mxu0 0.0
  %808 = vmatpush1.msra.mxu0 0.0
  %809 = vmatprep.subr.mxu0 0.0
  %810 = vmatpush1.msra.mxu0 0.0
  %811 = vmatprep.subr.mxu0 0.0
  %812 = vmatpush1.msra.mxu0 0.0
  %813 = vmatprep.subr.mxu0 0.0
  %814 = vmatpush1.msra.mxu0 0.0
  %815 = vmatprep.subr.mxu0 0.0
  %816 = vmatpush1.msra.mxu0 0.0
  %817 = vmatprep.subr.mxu0 0.0
  %818 = vmatpush1.msra.mxu0 0.0
  %819 = vmatprep.subr.mxu0 0.0
  %820 = vmatpush1.msra.mxu0 0.0
  %821 = vmatprep.subr.mxu0 0.0
  %822 = vmatpush1.msra.mxu0 0.0
  %823 = vmatprep.subr.mxu0 0.0
  %824 = vmatpush1.msra.mxu0 0.0
  %825 = vmatprep.subr.mxu0 0.0
  %826 = vmatpush1.msra.mxu0 0.0
  %827 = vmatprep.mubr.f32.mxu0 0.0
  %828 = vmatmul.mubr.f32.gmra.mrb[0].mxu0 %v761
  %v829 = vpop.f32.mrb[0].mxu0
  %v830 = vadd.f32 0.0, %v829
  %v831 = vpop.f32.mrb[0].mxu0
  %832 = vdwg.mxu0
  %v833 = vadd.f32 %v758, %v830
  %v834 = vxor.u32 %v833, 2147483648
  %v835 = vmul.f32 %v834, 1.442695
  %v836 = vpow.pop %v835
  %v837 = vadd.f32 %v836, 1.0
  %v838 = vrcp.pop %v837
  %v839 = vmul.f32 1.0, %v838
  %v840 = vtanh.pop %v833
  %v841 = vmul.f32 %v839, %v635
  %843 = vrot.lane.b32.xlu0 %v840, 64
  %v844 = vpop.permute.xlu0 %843
  %v846 = vmul.f32 %v839, %v844
  %848 = vrot.lane.b32.xlu0 %v846, 32
  %v849 = vpop.permute.xlu0 %848
  %v851 = vadd.f32 %v841, %v849
  %v852 = vtanh.pop %v851
  %854 = vrot.lane.b32.xlu0 %v852, 64
  %v855 = vpop.permute.xlu0 %854
  %v857 = vmul.f32 %v839, %v855
  %859 = vrot.lane.b32.xlu0 %v857, 64
  %v860 = vpop.permute.xlu0 %859
  %s862 = scalar_lea.vmem %s5, 40
  %863 = vst.msk [vmem:[%s862] sm:$0xff] %vm430, %v860
  %s864 = smul.u32 3, 2
  %s865 = smul.addr %s864, 8
  %s866 = scalar_lea.vmem [#allocation2], %s865
  %v867 = vld [vmem:[%s866] sm:$0xff]
  %v868 = vsel %vm222, %v751, 0
  %870 = vmatprep.subr.mxu0 0.0
  %871 = vmatpush1.msra.mxu0 %v210
  %872 = vmatprep.subr.mxu0 0.0
  %873 = vmatpush1.msra.mxu0 %v211
  %874 = vmatprep.subr.mxu0 0.0
  %875 = vmatpush1.msra.mxu0 %v212
  %876 = vmatprep.subr.mxu0 0.0
  %877 = vmatpush1.msra.mxu0 %v213
  %878 = vmatprep.subr.mxu0 0.0
  %879 = vmatpush1.msra.mxu0 0.0
  %880 = vmatprep.subr.mxu0 0.0
  %881 = vmatpush1.msra.mxu0 0.0
  %882 = vmatprep.subr.mxu0 0.0
  %883 = vmatpush1.msra.mxu0 0.0
  %884 = vmatprep.subr.mxu0 0.0
  %885 = vmatpush1.msra.mxu0 0.0
  %886 = vmatprep.subr.mxu0 0.0
  %887 = vmatpush1.msra.mxu0 0.0
  %888 = vmatprep.subr.mxu0 0.0
  %889 = vmatpush1.msra.mxu0 0.0
  %890 = vmatprep.subr.mxu0 0.0
  %891 = vmatpush1.msra.mxu0 0.0
  %892 = vmatprep.subr.mxu0 0.0
  %893 = vmatpush1.msra.mxu0 0.0
  %894 = vmatprep.subr.mxu0 0.0
  %895 = vmatpush1.msra.mxu0 0.0
  %896 = vmatprep.subr.mxu0 0.0
  %897 = vmatpush1.msra.mxu0 0.0
  %898 = vmatprep.subr.mxu0 0.0
  %899 = vmatpush1.msra.mxu0 0.0
  %900 = vmatprep.subr.mxu0 0.0
  %901 = vmatpush1.msra.mxu0 0.0
  %902 = vmatprep.subr.mxu0 0.0
  %903 = vmatpush1.msra.mxu0 0.0
  %904 = vmatprep.subr.mxu0 0.0
  %905 = vmatpush1.msra.mxu0 0.0
  %906 = vmatprep.subr.mxu0 0.0
  %907 = vmatpush1.msra.mxu0 0.0
  %908 = vmatprep.subr.mxu0 0.0
  %909 = vmatpush1.msra.mxu0 0.0
  %910 = vmatprep.subr.mxu0 0.0
  %911 = vmatpush1.msra.mxu0 0.0
  %912 = vmatprep.subr.mxu0 0.0
  %913 = vmatpush1.msra.mxu0 0.0
  %914 = vmatprep.subr.mxu0 0.0
  %915 = vmatpush1.msra.mxu0 0.0
  %916 = vmatprep.subr.mxu0 0.0
  %917 = vmatpush1.msra.mxu0 0.0
  %918 = vmatprep.subr.mxu0 0.0
  %919 = vmatpush1.msra.mxu0 0.0
  %920 = vmatprep.subr.mxu0 0.0
  %921 = vmatpush1.msra.mxu0 0.0
  %922 = vmatprep.subr.mxu0 0.0
  %923 = vmatpush1.msra.mxu0 0.0
  %924 = vmatprep.subr.mxu0 0.0
  %925 = vmatpush1.msra.mxu0 0.0
  %926 = vmatprep.subr.mxu0 0.0
  %927 = vmatpush1.msra.mxu0 0.0
  %928 = vmatprep.subr.mxu0 0.0
  %929 = vmatpush1.msra.mxu0 0.0
  %930 = vmatprep.subr.mxu0 0.0
  %931 = vmatpush1.msra.mxu0 0.0
  %932 = vmatprep.subr.mxu0 0.0
  %933 = vmatpush1.msra.mxu0 0.0
  %934 = vmatprep.mubr.f32.mxu0 0.0
  %935 = vmatmul.mubr.f32.gmra.mrb[0].mxu0 %v868
  %v936 = vpop.f32.mrb[0].mxu0
  %v937 = vadd.f32 0.0, %v936
  %v938 = vpop.f32.mrb[0].mxu0
  %939 = vdwg.mxu0
  %v940 = vadd.f32 %v867, %v937
  %v941 = vxor.u32 %v940, 2147483648
  %v942 = vmul.f32 %v941, 1.442695
  %v943 = vpow.pop %v942
  %v944 = vadd.f32 %v943, 1.0
  %v945 = vrcp.pop %v944
  %v946 = vmul.f32 1.0, %v945
  %v947 = vtanh.pop %v940
  %v948 = vmul.f32 %v946, %v742
  %950 = vrot.lane.b32.xlu0 %v947, 64
  %v951 = vpop.permute.xlu0 %950
  %v953 = vmul.f32 %v946, %v951
  %955 = vrot.lane.b32.xlu0 %v953, 32
  %v956 = vpop.permute.xlu0 %955
  %v958 = vadd.f32 %v948, %v956
  %v959 = vtanh.pop %v958
  %961 = vrot.lane.b32.xlu0 %v959, 64
  %v962 = vpop.permute.xlu0 %961
  %v964 = vmul.f32 %v946, %v962
  %966 = vrot.lane.b32.xlu0 %v964, 32
  %v967 = vpop.permute.xlu0 %966
  %s969 = scalar_lea.vmem %s5, 24
  %970 = vst.msk [vmem:[%s969] sm:$0xff] %vm222, %v967
  %s971 = smul.u32 4, 2
  %s972 = smul.addr %s971, 8
  %s973 = scalar_lea.vmem [#allocation2], %s972
  %v974 = vld [vmem:[%s973 + $0x8] sm:$0xff]
  %975 = vrot.lane.b32.xlu0 %v857, 32
  %v976 = vpop.permute.xlu0 %975
  %v977 = vsel %vm222, %v976, 0
  %979 = vmatprep.subr.mxu0 0.0
  %980 = vmatpush1.msra.mxu0 %v214
  %981 = vmatprep.subr.mxu0 0.0
  %982 = vmatpush1.msra.mxu0 %v215
  %983 = vmatprep.subr.mxu0 0.0
  %984 = vmatpush1.msra.mxu0 %v216
  %985 = vmatprep.subr.mxu0 0.0
  %986 = vmatpush1.msra.mxu0 %v217
  %987 = vmatprep.subr.mxu0 0.0
  %988 = vmatpush1.msra.mxu0 0.0
  %989 = vmatprep.subr.mxu0 0.0
  %990 = vmatpush1.msra.mxu0 0.0
  %991 = vmatprep.subr.mxu0 0.0
  %992 = vmatpush1.msra.mxu0 0.0
  %993 = vmatprep.subr.mxu0 0.0
  %994 = vmatpush1.msra.mxu0 0.0
  %995 = vmatprep.subr.mxu0 0.0
  %996 = vmatpush1.msra.mxu0 0.0
  %997 = vmatprep.subr.mxu0 0.0
  %998 = vmatpush1.msra.mxu0 0.0
  %999 = vmatprep.subr.mxu0 0.0
  %1000 = vmatpush1.msra.mxu0 0.0
  %1001 = vmatprep.subr.mxu0 0.0
  %1002 = vmatpush1.msra.mxu0 0.0
  %1003 = vmatprep.subr.mxu0 0.0
  %1004 = vmatpush1.msra.mxu0 0.0
  %1005 = vmatprep.subr.mxu0 0.0
  %1006 = vmatpush1.msra.mxu0 0.0
  %1007 = vmatprep.subr.mxu0 0.0
  %1008 = vmatpush1.msra.mxu0 0.0
  %1009 = vmatprep.subr.mxu0 0.0
  %1010 = vmatpush1.msra.mxu0 0.0
  %1011 = vmatprep.subr.mxu0 0.0
  %1012 = vmatpush1.msra.mxu0 0.0
  %1013 = vmatprep.subr.mxu0 0.0
  %1014 = vmatpush1.msra.mxu0 0.0
  %1015 = vmatprep.subr.mxu0 0.0
  %1016 = vmatpush1.msra.mxu0 0.0
  %1017 = vmatprep.subr.mxu0 0.0
  %1018 = vmatpush1.msra.mxu0 0.0
  %1019 = vmatprep.subr.mxu0 0.0
  %1020 = vmatpush1.msra.mxu0 0.0
  %1021 = vmatprep.subr.mxu0 0.0
  %1022 = vmatpush1.msra.mxu0 0.0
  %1023 = vmatprep.subr.mxu0 0.0
  %1024 = vmatpush1.msra.mxu0 0.0
  %1025 = vmatprep.subr.mxu0 0.0
  %1026 = vmatpush1.msra.mxu0 0.0
  %1027 = vmatprep.subr.mxu0 0.0
  %1028 = vmatpush1.msra.mxu0 0.0
  %1029 = vmatprep.subr.mxu0 0.0
  %1030 = vmatpush1.msra.mxu0 0.0
  %1031 = vmatprep.subr.mxu0 0.0
  %1032 = vmatpush1.msra.mxu0 0.0
  %1033 = vmatprep.subr.mxu0 0.0
  %1034 = vmatpush1.msra.mxu0 0.0
  %1035 = vmatprep.subr.mxu0 0.0
  %1036 = vmatpush1.msra.mxu0 0.0
  %1037 = vmatprep.subr.mxu0 0.0
  %1038 = vmatpush1.msra.mxu0 0.0
  %1039 = vmatprep.subr.mxu0 0.0
  %1040 = vmatpush1.msra.mxu0 0.0
  %1041 = vmatprep.subr.mxu0 0.0
  %1042 = vmatpush1.msra.mxu0 0.0
  %1043 = vmatprep.mubr.f32.mxu0 0.0
  %1044 = vmatmul.mubr.f32.gmra.mrb[0].mxu0 %v977
  %v1045 = vpop.f32.mrb[0].mxu0
  %v1046 = vadd.f32 0.0, %v1045
  %v1047 = vpop.f32.mrb[0].mxu0
  %1048 = vdwg.mxu0
  %v1049 = vadd.f32 %v974, %v1046
  %v1050 = vxor.u32 %v1049, 2147483648
  %v1051 = vmul.f32 %v1050, 1.442695
  %v1052 = vpow.pop %v1051
  %v1053 = vadd.f32 %v1052, 1.0
  %v1054 = vrcp.pop %v1053
  %v1055 = vmul.f32 1.0, %v1054
  %v1056 = vtanh.pop %v1049
  %v1057 = vmul.f32 %v1055, %v851
  %1059 = vrot.lane.b32.xlu0 %v1056, 64
  %v1060 = vpop.permute.xlu0 %1059
  %v1062 = vmul.f32 %v1055, %v1060
  %1064 = vrot.lane.b32.xlu0 %v1062, 32
  %v1065 = vpop.permute.xlu0 %1064
  %v1067 = vadd.f32 %v1057, %v1065
  %v1068 = vtanh.pop %v1067
  %1070 = vrot.lane.b32.xlu0 %v1068, 64
  %v1071 = vpop.permute.xlu0 %1070
  %v1073 = vmul.f32 %v1055, %v1071
  %1075 = vrot.lane.b32.xlu0 %v1073, 64
  %v1076 = vpop.permute.xlu0 %1075
  %s1078 = scalar_lea.vmem %s5, 32
  %1079 = vst.msk [vmem:[%s1078] sm:$0xff] %vm430, %v1076
  %v1080 = vld [vmem:[%s973] sm:$0xff]
  %v1081 = vsel %vm222, %v967, 0
  %1083 = vmatprep.subr.mxu0 0.0
  %1084 = vmatpush1.msra.mxu0 %v210
  %1085 = vmatprep.subr.mxu0 0.0
  %1086 = vmatpush1.msra.mxu0 %v211
  %1087 = vmatprep.subr.mxu0 0.0
  %1088 = vmatpush1.msra.mxu0 %v212
  %1089 = vmatprep.subr.mxu0 0.0
  %1090 = vmatpush1.msra.mxu0 %v213
  %1091 = vmatprep.subr.mxu0 0.0
  %1092 = vmatpush1.msra.mxu0 0.0
  %1093 = vmatprep.subr.mxu0 0.0
  %1094 = vmatpush1.msra.mxu0 0.0
  %1095 = vmatprep.subr.mxu0 0.0
  %1096 = vmatpush1.msra.mxu0 0.0
  %1097 = vmatprep.subr.mxu0 0.0
  %1098 = vmatpush1.msra.mxu0 0.0
  %1099 = vmatprep.subr.mxu0 0.0
  %1100 = vmatpush1.msra.mxu0 0.0
  %1101 = vmatprep.subr.mxu0 0.0
  %1102 = vmatpush1.msra.mxu0 0.0
  %1103 = vmatprep.subr.mxu0 0.0
  %1104 = vmatpush1.msra.mxu0 0.0
  %1105 = vmatprep.subr.mxu0 0.0
  %1106 = vmatpush1.msra.mxu0 0.0
  %1107 = vmatprep.subr.mxu0 0.0
  %1108 = vmatpush1.msra.mxu0 0.0
  %1109 = vmatprep.subr.mxu0 0.0
  %1110 = vmatpush1.msra.mxu0 0.0
  %1111 = vmatprep.subr.mxu0 0.0
  %1112 = vmatpush1.msra.mxu0 0.0
  %1113 = vmatprep.subr.mxu0 0.0
  %1114 = vmatpush1.msra.mxu0 0.0
  %1115 = vmatprep.subr.mxu0 0.0
  %1116 = vmatpush1.msra.mxu0 0.0
  %1117 = vmatprep.subr.mxu0 0.0
  %1118 = vmatpush1.msra.mxu0 0.0
  %1119 = vmatprep.subr.mxu0 0.0
  %1120 = vmatpush1.msra.mxu0 0.0
  %1121 = vmatprep.subr.mxu0 0.0
  %1122 = vmatpush1.msra.mxu0 0.0
  %1123 = vmatprep.subr.mxu0 0.0
  %1124 = vmatpush1.msra.mxu0 0.0
  %1125 = vmatprep.subr.mxu0 0.0
  %1126 = vmatpush1.msra.mxu0 0.0
  %1127 = vmatprep.subr.mxu0 0.0
  %1128 = vmatpush1.msra.mxu0 0.0
  %1129 = vmatprep.subr.mxu0 0.0
  %1130 = vmatpush1.msra.mxu0 0.0
  %1131 = vmatprep.subr.mxu0 0.0
  %1132 = vmatpush1.msra.mxu0 0.0
  %1133 = vmatprep.subr.mxu0 0.0
  %1134 = vmatpush1.msra.mxu0 0.0
  %1135 = vmatprep.subr.mxu0 0.0
  %1136 = vmatpush1.msra.mxu0 0.0
  %1137 = vmatprep.subr.mxu0 0.0
  %1138 = vmatpush1.msra.mxu0 0.0
  %1139 = vmatprep.subr.mxu0 0.0
  %1140 = vmatpush1.msra.mxu0 0.0
  %1141 = vmatprep.subr.mxu0 0.0
  %1142 = vmatpush1.msra.mxu0 0.0
  %1143 = vmatprep.subr.mxu0 0.0
  %1144 = vmatpush1.msra.mxu0 0.0
  %1145 = vmatprep.subr.mxu0 0.0
  %1146 = vmatpush1.msra.mxu0 0.0
  %1147 = vmatprep.mubr.f32.mxu0 0.0
  %1148 = vmatmul.mubr.f32.gmra.mrb[0].mxu0 %v1081
  %v1149 = vpop.f32.mrb[0].mxu0
  %v1150 = vadd.f32 0.0, %v1149
  %v1151 = vpop.f32.mrb[0].mxu0
  %1152 = vdwg.mxu0
  %v1153 = vadd.f32 %v1080, %v1150
  %v1154 = vxor.u32 %v1153, 2147483648
  %v1155 = vmul.f32 %v1154, 1.442695
  %v1156 = vpow.pop %v1155
  %v1157 = vadd.f32 %v1156, 1.0
  %v1158 = vrcp.pop %v1157
  %v1159 = vmul.f32 1.0, %v1158
  %v1160 = vtanh.pop %v1153
  %v1161 = vmul.f32 %v1159, %v958
  %1163 = vrot.lane.b32.xlu0 %v1160, 64
  %v1164 = vpop.permute.xlu0 %1163
  %v1166 = vmul.f32 %v1159, %v1164
  %1168 = vrot.lane.b32.xlu0 %v1166, 32
  %v1169 = vpop.permute.xlu0 %1168
  %v1171 = vadd.f32 %v1161, %v1169
  %v1172 = vtanh.pop %v1171
  %1174 = vrot.lane.b32.xlu0 %v1172, 64
  %v1175 = vpop.permute.xlu0 %1174
  %v1177 = vmul.f32 %v1159, %v1175
  %1179 = vrot.lane.b32.xlu0 %v1177, 32
  %v1180 = vpop.permute.xlu0 %1179
  %1182 = vst.msk [vmem:[%s1078] sm:$0xff] %vm222, %v1180
  %v1183 = vld [vmem:[%s866 + $0x8] sm:$0xff]
  %1184 = vrot.lane.b32.xlu0 %v1073, 32
  %v1185 = vpop.permute.xlu0 %1184
  %v1186 = vsel %vm222, %v1185, 0
  %1188 = vmatprep.subr.mxu0 0.0
  %1189 = vmatpush1.msra.mxu0 %v214
  %1190 = vmatprep.subr.mxu0 0.0
  %1191 = vmatpush1.msra.mxu0 %v215
  %1192 = vmatprep.subr.mxu0 0.0
  %1193 = vmatpush1.msra.mxu0 %v216
  %1194 = vmatprep.subr.mxu0 0.0
  %1195 = vmatpush1.msra.mxu0 %v217
  %1196 = vmatprep.subr.mxu0 0.0
  %1197 = vmatpush1.msra.mxu0 0.0
  %1198 = vmatprep.subr.mxu0 0.0
  %1199 = vmatpush1.msra.mxu0 0.0
  %1200 = vmatprep.subr.mxu0 0.0
  %1201 = vmatpush1.msra.mxu0 0.0
  %1202 = vmatprep.subr.mxu0 0.0
  %1203 = vmatpush1.msra.mxu0 0.0
  %1204 = vmatprep.subr.mxu0 0.0
  %1205 = vmatpush1.msra.mxu0 0.0
  %1206 = vmatprep.subr.mxu0 0.0
  %1207 = vmatpush1.msra.mxu0 0.0
  %1208 = vmatprep.subr.mxu0 0.0
  %1209 = vmatpush1.msra.mxu0 0.0
  %1210 = vmatprep.subr.mxu0 0.0
  %1211 = vmatpush1.msra.mxu0 0.0
  %1212 = vmatprep.subr.mxu0 0.0
  %1213 = vmatpush1.msra.mxu0 0.0
  %1214 = vmatprep.subr.mxu0 0.0
  %1215 = vmatpush1.msra.mxu0 0.0
  %1216 = vmatprep.subr.mxu0 0.0
  %1217 = vmatpush1.msra.mxu0 0.0
  %1218 = vmatprep.subr.mxu0 0.0
  %1219 = vmatpush1.msra.mxu0 0.0
  %1220 = vmatprep.subr.mxu0 0.0
  %1221 = vmatpush1.msra.mxu0 0.0
  %1222 = vmatprep.subr.mxu0 0.0
  %1223 = vmatpush1.msra.mxu0 0.0
  %1224 = vmatprep.subr.mxu0 0.0
  %1225 = vmatpush1.msra.mxu0 0.0
  %1226 = vmatprep.subr.mxu0 0.0
  %1227 = vmatpush1.msra.mxu0 0.0
  %1228 = vmatprep.subr.mxu0 0.0
  %1229 = vmatpush1.msra.mxu0 0.0
  %1230 = vmatprep.subr.mxu0 0.0
  %1231 = vmatpush1.msra.mxu0 0.0
  %1232 = vmatprep.subr.mxu0 0.0
  %1233 = vmatpush1.msra.mxu0 0.0
  %1234 = vmatprep.subr.mxu0 0.0
  %1235 = vmatpush1.msra.mxu0 0.0
  %1236 = vmatprep.subr.mxu0 0.0
  %1237 = vmatpush1.msra.mxu0 0.0
  %1238 = vmatprep.subr.mxu0 0.0
  %1239 = vmatpush1.msra.mxu0 0.0
  %1240 = vmatprep.subr.mxu0 0.0
  %1241 = vmatpush1.msra.mxu0 0.0
  %1242 = vmatprep.subr.mxu0 0.0
  %1243 = vmatpush1.msra.mxu0 0.0
  %1244 = vmatprep.subr.mxu0 0.0
  %1245 = vmatpush1.msra.mxu0 0.0
  %1246 = vmatprep.subr.mxu0 0.0
  %1247 = vmatpush1.msra.mxu0 0.0
  %1248 = vmatprep.subr.mxu0 0.0
  %1249 = vmatpush1.msra.mxu0 0.0
  %1250 = vmatprep.subr.mxu0 0.0
  %1251 = vmatpush1.msra.mxu0 0.0
  %1252 = vmatprep.mubr.f32.mxu0 0.0
  %1253 = vmatmul.mubr.f32.gmra.mrb[0].mxu0 %v1186
  %v1254 = vpop.f32.mrb[0].mxu0
  %v1255 = vadd.f32 0.0, %v1254
  %v1256 = vpop.f32.mrb[0].mxu0
  %1257 = vdwg.mxu0
  %v1258 = vadd.f32 %v1183, %v1255
  %v1259 = vxor.u32 %v1258, 2147483648
  %v1260 = vmul.f32 %v1259, 1.442695
  %v1261 = vpow.pop %v1260
  %v1262 = vadd.f32 %v1261, 1.0
  %v1263 = vrcp.pop %v1262
  %v1264 = vmul.f32 1.0, %v1263
  %v1265 = vtanh.pop %v1258
  %v1266 = vmul.f32 %v1264, %v1067
  %1268 = vrot.lane.b32.xlu0 %v1265, 64
  %v1269 = vpop.permute.xlu0 %1268
  %v1271 = vmul.f32 %v1264, %v1269
  %1273 = vrot.lane.b32.xlu0 %v1271, 32
  %v1274 = vpop.permute.xlu0 %1273
  %v1276 = vadd.f32 %v1266, %v1274
  %v1277 = vtanh.pop %v1276
  %1279 = vrot.lane.b32.xlu0 %v1277, 64
  %v1280 = vpop.permute.xlu0 %1279
  %v1282 = vmul.f32 %v1264, %v1280
  %1284 = vrot.lane.b32.xlu0 %v1282, 64
  %v1285 = vpop.permute.xlu0 %1284
  %1287 = vst.msk [vmem:[%s969] sm:$0xff] %vm430, %v1285
  %v1288 = vld [vmem:[%s757] sm:$0xff]
  %v1289 = vsel %vm222, %v1180, 0
  %1291 = vmatprep.subr.mxu0 0.0
  %1292 = vmatpush1.msra.mxu0 %v210
  %1293 = vmatprep.subr.mxu0 0.0
  %1294 = vmatpush1.msra.mxu0 %v211
  %1295 = vmatprep.subr.mxu0 0.0
  %1296 = vmatpush1.msra.mxu0 %v212
  %1297 = vmatprep.subr.mxu0 0.0
  %1298 = vmatpush1.msra.mxu0 %v213
  %1299 = vmatprep.subr.mxu0 0.0
  %1300 = vmatpush1.msra.mxu0 0.0
  %1301 = vmatprep.subr.mxu0 0.0
  %1302 = vmatpush1.msra.mxu0 0.0
  %1303 = vmatprep.subr.mxu0 0.0
  %1304 = vmatpush1.msra.mxu0 0.0
  %1305 = vmatprep.subr.mxu0 0.0
  %1306 = vmatpush1.msra.mxu0 0.0
  %1307 = vmatprep.subr.mxu0 0.0
  %1308 = vmatpush1.msra.mxu0 0.0
  %1309 = vmatprep.subr.mxu0 0.0
  %1310 = vmatpush1.msra.mxu0 0.0
  %1311 = vmatprep.subr.mxu0 0.0
  %1312 = vmatpush1.msra.mxu0 0.0
  %1313 = vmatprep.subr.mxu0 0.0
  %1314 = vmatpush1.msra.mxu0 0.0
  %1315 = vmatprep.subr.mxu0 0.0
  %1316 = vmatpush1.msra.mxu0 0.0
  %1317 = vmatprep.subr.mxu0 0.0
  %1318 = vmatpush1.msra.mxu0 0.0
  %1319 = vmatprep.subr.mxu0 0.0
  %1320 = vmatpush1.msra.mxu0 0.0
  %1321 = vmatprep.subr.mxu0 0.0
  %1322 = vmatpush1.msra.mxu0 0.0
  %1323 = vmatprep.subr.mxu0 0.0
  %1324 = vmatpush1.msra.mxu0 0.0
  %1325 = vmatprep.subr.mxu0 0.0
  %1326 = vmatpush1.msra.mxu0 0.0
  %1327 = vmatprep.subr.mxu0 0.0
  %1328 = vmatpush1.msra.mxu0 0.0
  %1329 = vmatprep.subr.mxu0 0.0
  %1330 = vmatpush1.msra.mxu0 0.0
  %1331 = vmatprep.subr.mxu0 0.0
  %1332 = vmatpush1.msra.mxu0 0.0
  %1333 = vmatprep.subr.mxu0 0.0
  %1334 = vmatpush1.msra.mxu0 0.0
  %1335 = vmatprep.subr.mxu0 0.0
  %1336 = vmatpush1.msra.mxu0 0.0
  %1337 = vmatprep.subr.mxu0 0.0
  %1338 = vmatpush1.msra.mxu0 0.0
  %1339 = vmatprep.subr.mxu0 0.0
  %1340 = vmatpush1.msra.mxu0 0.0
  %1341 = vmatprep.subr.mxu0 0.0
  %1342 = vmatpush1.msra.mxu0 0.0
  %1343 = vmatprep.subr.mxu0 0.0
  %1344 = vmatpush1.msra.mxu0 0.0
  %1345 = vmatprep.subr.mxu0 0.0
  %1346 = vmatpush1.msra.mxu0 0.0
  %1347 = vmatprep.subr.mxu0 0.0
  %1348 = vmatpush1.msra.mxu0 0.0
  %1349 = vmatprep.subr.mxu0 0.0
  %1350 = vmatpush1.msra.mxu0 0.0
  %1351 = vmatprep.subr.mxu0 0.0
  %1352 = vmatpush1.msra.mxu0 0.0
  %1353 = vmatprep.subr.mxu0 0.0
  %1354 = vmatpush1.msra.mxu0 0.0
  %1355 = vmatprep.mubr.f32.mxu0 0.0
  %1356 = vmatmul.mubr.f32.gmra.mrb[0].mxu0 %v1289
  %v1357 = vpop.f32.mrb[0].mxu0
  %v1358 = vadd.f32 0.0, %v1357
  %v1359 = vpop.f32.mrb[0].mxu0
  %1360 = vdwg.mxu0
  %v1361 = vadd.f32 %v1288, %v1358
  %v1362 = vxor.u32 %v1361, 2147483648
  %v1363 = vmul.f32 %v1362, 1.442695
  %v1364 = vpow.pop %v1363
  %v1365 = vadd.f32 %v1364, 1.0
  %v1366 = vrcp.pop %v1365
  %v1367 = vmul.f32 1.0, %v1366
  %v1368 = vtanh.pop %v1361
  %v1369 = vmul.f32 %v1367, %v1171
  %1371 = vrot.lane.b32.xlu0 %v1368, 64
  %v1372 = vpop.permute.xlu0 %1371
  %v1374 = vmul.f32 %v1367, %v1372
  %1376 = vrot.lane.b32.xlu0 %v1374, 32
  %v1377 = vpop.permute.xlu0 %1376
  %v1379 = vadd.f32 %v1369, %v1377
  %v1380 = vtanh.pop %v1379
  %1382 = vrot.lane.b32.xlu0 %v1380, 64
  %v1383 = vpop.permute.xlu0 %1382
  %v1385 = vmul.f32 %v1367, %v1383
  %1387 = vrot.lane.b32.xlu0 %v1385, 32
  %v1388 = vpop.permute.xlu0 %1387
  %1390 = vst.msk [vmem:[%s862] sm:$0xff] %vm222, %v1388
  %v1391 = vld [vmem:[%s650 + $0x8] sm:$0xff]
  %1392 = vrot.lane.b32.xlu0 %v1282, 32
  %v1393 = vpop.permute.xlu0 %1392
  %v1394 = vsel %vm222, %v1393, 0
  %1396 = vmatprep.subr.mxu0 0.0
  %1397 = vmatpush1.msra.mxu0 %v214
  %1398 = vmatprep.subr.mxu0 0.0
  %1399 = vmatpush1.msra.mxu0 %v215
  %1400 = vmatprep.subr.mxu0 0.0
  %1401 = vmatpush1.msra.mxu0 %v216
  %1402 = vmatprep.subr.mxu0 0.0
  %1403 = vmatpush1.msra.mxu0 %v217
  %1404 = vmatprep.subr.mxu0 0.0
  %1405 = vmatpush1.msra.mxu0 0.0
  %1406 = vmatprep.subr.mxu0 0.0
  %1407 = vmatpush1.msra.mxu0 0.0
  %1408 = vmatprep.subr.mxu0 0.0
  %1409 = vmatpush1.msra.mxu0 0.0
  %1410 = vmatprep.subr.mxu0 0.0
  %1411 = vmatpush1.msra.mxu0 0.0
  %1412 = vmatprep.subr.mxu0 0.0
  %1413 = vmatpush1.msra.mxu0 0.0
  %1414 = vmatprep.subr.mxu0 0.0
  %1415 = vmatpush1.msra.mxu0 0.0
  %1416 = vmatprep.subr.mxu0 0.0
  %1417 = vmatpush1.msra.mxu0 0.0
  %1418 = vmatprep.subr.mxu0 0.0
  %1419 = vmatpush1.msra.mxu0 0.0
  %1420 = vmatprep.subr.mxu0 0.0
  %1421 = vmatpush1.msra.mxu0 0.0
  %1422 = vmatprep.subr.mxu0 0.0
  %1423 = vmatpush1.msra.mxu0 0.0
  %1424 = vmatprep.subr.mxu0 0.0
  %1425 = vmatpush1.msra.mxu0 0.0
  %1426 = vmatprep.subr.mxu0 0.0
  %1427 = vmatpush1.msra.mxu0 0.0
  %1428 = vmatprep.subr.mxu0 0.0
  %1429 = vmatpush1.msra.mxu0 0.0
  %1430 = vmatprep.subr.mxu0 0.0
  %1431 = vmatpush1.msra.mxu0 0.0
  %1432 = vmatprep.subr.mxu0 0.0
  %1433 = vmatpush1.msra.mxu0 0.0
  %1434 = vmatprep.subr.mxu0 0.0
  %1435 = vmatpush1.msra.mxu0 0.0
  %1436 = vmatprep.subr.mxu0 0.0
  %1437 = vmatpush1.msra.mxu0 0.0
  %1438 = vmatprep.subr.mxu0 0.0
  %1439 = vmatpush1.msra.mxu0 0.0
  %1440 = vmatprep.subr.mxu0 0.0
  %1441 = vmatpush1.msra.mxu0 0.0
  %1442 = vmatprep.subr.mxu0 0.0
  %1443 = vmatpush1.msra.mxu0 0.0
  %1444 = vmatprep.subr.mxu0 0.0
  %1445 = vmatpush1.msra.mxu0 0.0
  %1446 = vmatprep.subr.mxu0 0.0
  %1447 = vmatpush1.msra.mxu0 0.0
  %1448 = vmatprep.subr.mxu0 0.0
  %1449 = vmatpush1.msra.mxu0 0.0
  %1450 = vmatprep.subr.mxu0 0.0
  %1451 = vmatpush1.msra.mxu0 0.0
  %1452 = vmatprep.subr.mxu0 0.0
  %1453 = vmatpush1.msra.mxu0 0.0
  %1454 = vmatprep.subr.mxu0 0.0
  %1455 = vmatpush1.msra.mxu0 0.0
  %1456 = vmatprep.subr.mxu0 0.0
  %1457 = vmatpush1.msra.mxu0 0.0
  %1458 = vmatprep.subr.mxu0 0.0
  %1459 = vmatpush1.msra.mxu0 0.0
  %1460 = vmatprep.mubr.f32.mxu0 0.0
  %1461 = vmatmul.mubr.f32.gmra.mrb[0].mxu0 %v1394
  %v1462 = vpop.f32.mrb[0].mxu0
  %v1463 = vadd.f32 0.0, %v1462
  %v1464 = vpop.f32.mrb[0].mxu0
  %1465 = vdwg.mxu0
  %v1466 = vadd.f32 %v1391, %v1463
  %v1467 = vxor.u32 %v1466, 2147483648
  %v1468 = vmul.f32 %v1467, 1.442695
  %v1469 = vpow.pop %v1468
  %v1470 = vadd.f32 %v1469, 1.0
  %v1471 = vrcp.pop %v1470
  %v1472 = vmul.f32 1.0, %v1471
  %v1473 = vtanh.pop %v1466
  %v1474 = vmul.f32 %v1472, %v1276
  %1476 = vrot.lane.b32.xlu0 %v1473, 64
  %v1477 = vpop.permute.xlu0 %1476
  %v1479 = vmul.f32 %v1472, %v1477
  %1481 = vrot.lane.b32.xlu0 %v1479, 32
  %v1482 = vpop.permute.xlu0 %1481
  %v1484 = vadd.f32 %v1474, %v1482
  %v1485 = vtanh.pop %v1484
  %1487 = vrot.lane.b32.xlu0 %v1485, 64
  %v1488 = vpop.permute.xlu0 %1487
  %v1490 = vmul.f32 %v1472, %v1488
  %1492 = vrot.lane.b32.xlu0 %v1490, 64
  %v1493 = vpop.permute.xlu0 %1492
  %1495 = vst.msk [vmem:[%s753] sm:$0xff] %vm430, %v1493
  %v1496 = vld [vmem:[%s541] sm:$0xff]
  %v1497 = vsel %vm222, %v1388, 0
  %1499 = vmatprep.subr.mxu0 0.0
  %1500 = vmatpush1.msra.mxu0 %v210
  %1501 = vmatprep.subr.mxu0 0.0
  %1502 = vmatpush1.msra.mxu0 %v211
  %1503 = vmatprep.subr.mxu0 0.0
  %1504 = vmatpush1.msra.mxu0 %v212
  %1505 = vmatprep.subr.mxu0 0.0
  %1506 = vmatpush1.msra.mxu0 %v213
  %1507 = vmatprep.subr.mxu0 0.0
  %1508 = vmatpush1.msra.mxu0 0.0
  %1509 = vmatprep.subr.mxu0 0.0
  %1510 = vmatpush1.msra.mxu0 0.0
  %1511 = vmatprep.subr.mxu0 0.0
  %1512 = vmatpush1.msra.mxu0 0.0
  %1513 = vmatprep.subr.mxu0 0.0
  %1514 = vmatpush1.msra.mxu0 0.0
  %1515 = vmatprep.subr.mxu0 0.0
  %1516 = vmatpush1.msra.mxu0 0.0
  %1517 = vmatprep.subr.mxu0 0.0
  %1518 = vmatpush1.msra.mxu0 0.0
  %1519 = vmatprep.subr.mxu0 0.0
  %1520 = vmatpush1.msra.mxu0 0.0
  %1521 = vmatprep.subr.mxu0 0.0
  %1522 = vmatpush1.msra.mxu0 0.0
  %1523 = vmatprep.subr.mxu0 0.0
  %1524 = vmatpush1.msra.mxu0 0.0
  %1525 = vmatprep.subr.mxu0 0.0
  %1526 = vmatpush1.msra.mxu0 0.0
  %1527 = vmatprep.subr.mxu0 0.0
  %1528 = vmatpush1.msra.mxu0 0.0
  %1529 = vmatprep.subr.mxu0 0.0
  %1530 = vmatpush1.msra.mxu0 0.0
  %1531 = vmatprep.subr.mxu0 0.0
  %1532 = vmatpush1.msra.mxu0 0.0
  %1533 = vmatprep.subr.mxu0 0.0
  %1534 = vmatpush1.msra.mxu0 0.0
  %1535 = vmatprep.subr.mxu0 0.0
  %1536 = vmatpush1.msra.mxu0 0.0
  %1537 = vmatprep.subr.mxu0 0.0
  %1538 = vmatpush1.msra.mxu0 0.0
  %1539 = vmatprep.subr.mxu0 0.0
  %1540 = vmatpush1.msra.mxu0 0.0
  %1541 = vmatprep.subr.mxu0 0.0
  %1542 = vmatpush1.msra.mxu0 0.0
  %1543 = vmatprep.subr.mxu0 0.0
  %1544 = vmatpush1.msra.mxu0 0.0
  %1545 = vmatprep.subr.mxu0 0.0
  %1546 = vmatpush1.msra.mxu0 0.0
  %1547 = vmatprep.subr.mxu0 0.0
  %1548 = vmatpush1.msra.mxu0 0.0
  %1549 = vmatprep.subr.mxu0 0.0
  %1550 = vmatpush1.msra.mxu0 0.0
  %1551 = vmatprep.subr.mxu0 0.0
  %1552 = vmatpush1.msra.mxu0 0.0
  %1553 = vmatprep.subr.mxu0 0.0
  %1554 = vmatpush1.msra.mxu0 0.0
  %1555 = vmatprep.subr.mxu0 0.0
  %1556 = vmatpush1.msra.mxu0 0.0
  %1557 = vmatprep.subr.mxu0 0.0
  %1558 = vmatpush1.msra.mxu0 0.0
  %1559 = vmatprep.subr.mxu0 0.0
  %1560 = vmatpush1.msra.mxu0 0.0
  %1561 = vmatprep.subr.mxu0 0.0
  %1562 = vmatpush1.msra.mxu0 0.0
  %1563 = vmatprep.mubr.f32.mxu0 0.0
  %1564 = vmatmul.mubr.f32.gmra.mrb[0].mxu0 %v1497
  %v1565 = vpop.f32.mrb[0].mxu0
  %v1566 = vadd.f32 0.0, %v1565
  %v1567 = vpop.f32.mrb[0].mxu0
  %1568 = vdwg.mxu0
  %v1569 = vadd.f32 %v1496, %v1566
  %v1570 = vxor.u32 %v1569, 2147483648
  %v1571 = vmul.f32 %v1570, 1.442695
  %v1572 = vpow.pop %v1571
  %v1573 = vadd.f32 %v1572, 1.0
  %v1574 = vrcp.pop %v1573
  %v1575 = vmul.f32 1.0, %v1574
  %v1576 = vtanh.pop %v1569
  %v1577 = vmul.f32 %v1575, %v1379
  %1579 = vrot.lane.b32.xlu0 %v1576, 64
  %v1580 = vpop.permute.xlu0 %1579
  %v1582 = vmul.f32 %v1575, %v1580
  %1584 = vrot.lane.b32.xlu0 %v1582, 32
  %v1585 = vpop.permute.xlu0 %1584
  %v1587 = vadd.f32 %v1577, %v1585
  %v1588 = vtanh.pop %v1587
  %1590 = vrot.lane.b32.xlu0 %v1588, 64
  %v1591 = vpop.permute.xlu0 %1590
  %v1593 = vmul.f32 %v1575, %v1591
  %1595 = vrot.lane.b32.xlu0 %v1593, 32
  %v1596 = vpop.permute.xlu0 %1595
  %1598 = vst.msk [vmem:[%s646] sm:$0xff] %vm222, %v1596
  %v1599 = vld [vmem:[%s434 + $0x8] sm:$0xff]
  %1600 = vrot.lane.b32.xlu0 %v1490, 32
  %v1601 = vpop.permute.xlu0 %1600
  %v1602 = vsel %vm222, %v1601, 0
  %1604 = vmatprep.subr.mxu0 0.0
  %1605 = vmatpush1.msra.mxu0 %v214
  %1606 = vmatprep.subr.mxu0 0.0
  %1607 = vmatpush1.msra.mxu0 %v215
  %1608 = vmatprep.subr.mxu0 0.0
  %1609 = vmatpush1.msra.mxu0 %v216
  %1610 = vmatprep.subr.mxu0 0.0
  %1611 = vmatpush1.msra.mxu0 %v217
  %1612 = vmatprep.subr.mxu0 0.0
  %1613 = vmatpush1.msra.mxu0 0.0
  %1614 = vmatprep.subr.mxu0 0.0
  %1615 = vmatpush1.msra.mxu0 0.0
  %1616 = vmatprep.subr.mxu0 0.0
  %1617 = vmatpush1.msra.mxu0 0.0
  %1618 = vmatprep.subr.mxu0 0.0
  %1619 = vmatpush1.msra.mxu0 0.0
  %1620 = vmatprep.subr.mxu0 0.0
  %1621 = vmatpush1.msra.mxu0 0.0
  %1622 = vmatprep.subr.mxu0 0.0
  %1623 = vmatpush1.msra.mxu0 0.0
  %1624 = vmatprep.subr.mxu0 0.0
  %1625 = vmatpush1.msra.mxu0 0.0
  %1626 = vmatprep.subr.mxu0 0.0
  %1627 = vmatpush1.msra.mxu0 0.0
  %1628 = vmatprep.subr.mxu0 0.0
  %1629 = vmatpush1.msra.mxu0 0.0
  %1630 = vmatprep.subr.mxu0 0.0
  %1631 = vmatpush1.msra.mxu0 0.0
  %1632 = vmatprep.subr.mxu0 0.0
  %1633 = vmatpush1.msra.mxu0 0.0
  %1634 = vmatprep.subr.mxu0 0.0
  %1635 = vmatpush1.msra.mxu0 0.0
  %1636 = vmatprep.subr.mxu0 0.0
  %1637 = vmatpush1.msra.mxu0 0.0
  %1638 = vmatprep.subr.mxu0 0.0
  %1639 = vmatpush1.msra.mxu0 0.0
  %1640 = vmatprep.subr.mxu0 0.0
  %1641 = vmatpush1.msra.mxu0 0.0
  %1642 = vmatprep.subr.mxu0 0.0
  %1643 = vmatpush1.msra.mxu0 0.0
  %1644 = vmatprep.subr.mxu0 0.0
  %1645 = vmatpush1.msra.mxu0 0.0
  %1646 = vmatprep.subr.mxu0 0.0
  %1647 = vmatpush1.msra.mxu0 0.0
  %1648 = vmatprep.subr.mxu0 0.0
  %1649 = vmatpush1.msra.mxu0 0.0
  %1650 = vmatprep.subr.mxu0 0.0
  %1651 = vmatpush1.msra.mxu0 0.0
  %1652 = vmatprep.subr.mxu0 0.0
  %1653 = vmatpush1.msra.mxu0 0.0
  %1654 = vmatprep.subr.mxu0 0.0
  %1655 = vmatpush1.msra.mxu0 0.0
  %1656 = vmatprep.subr.mxu0 0.0
  %1657 = vmatpush1.msra.mxu0 0.0
  %1658 = vmatprep.subr.mxu0 0.0
  %1659 = vmatpush1.msra.mxu0 0.0
  %1660 = vmatprep.subr.mxu0 0.0
  %1661 = vmatpush1.msra.mxu0 0.0
  %1662 = vmatprep.subr.mxu0 0.0
  %1663 = vmatpush1.msra.mxu0 0.0
  %1664 = vmatprep.subr.mxu0 0.0
  %1665 = vmatpush1.msra.mxu0 0.0
  %1666 = vmatprep.subr.mxu0 0.0
  %1667 = vmatpush1.msra.mxu0 0.0
  %1668 = vmatprep.mubr.f32.mxu0 0.0
  %1669 = vmatmul.mubr.f32.gmra.mrb[0].mxu0 %v1602
  %v1670 = vpop.f32.mrb[0].mxu0
  %v1671 = vadd.f32 0.0, %v1670
  %v1672 = vpop.f32.mrb[0].mxu0
  %1673 = vdwg.mxu0
  %v1674 = vadd.f32 %v1599, %v1671
  %v1675 = vxor.u32 %v1674, 2147483648
  %v1676 = vmul.f32 %v1675, 1.442695
  %v1677 = vpow.pop %v1676
  %v1678 = vadd.f32 %v1677, 1.0
  %v1679 = vrcp.pop %v1678
  %v1680 = vmul.f32 1.0, %v1679
  %v1681 = vtanh.pop %v1674
  %v1682 = vmul.f32 %v1680, %v1484
  %1684 = vrot.lane.b32.xlu0 %v1681, 64
  %v1685 = vpop.permute.xlu0 %1684
  %v1687 = vmul.f32 %v1680, %v1685
  %1689 = vrot.lane.b32.xlu0 %v1687, 32
  %v1690 = vpop.permute.xlu0 %1689
  %v1692 = vadd.f32 %v1682, %v1690
  %v1693 = vtanh.pop %v1692
  %1695 = vrot.lane.b32.xlu0 %v1693, 64
  %v1696 = vpop.permute.xlu0 %1695
  %v1698 = vmul.f32 %v1680, %v1696
  %1700 = vrot.lane.b32.xlu0 %v1698, 64
  %v1701 = vpop.permute.xlu0 %1700
  %1703 = vst.msk [vmem:[%s537] sm:$0xff] %vm430, %v1701
  %v1704 = vld [vmem:[%s328] sm:$0xff]
  %v1705 = vsel %vm222, %v1596, 0
  %1707 = vmatprep.subr.mxu0 0.0
  %1708 = vmatpush1.msra.mxu0 %v210
  %1709 = vmatprep.subr.mxu0 0.0
  %1710 = vmatpush1.msra.mxu0 %v211
  %1711 = vmatprep.subr.mxu0 0.0
  %1712 = vmatpush1.msra.mxu0 %v212
  %1713 = vmatprep.subr.mxu0 0.0
  %1714 = vmatpush1.msra.mxu0 %v213
  %1715 = vmatprep.subr.mxu0 0.0
  %1716 = vmatpush1.msra.mxu0 0.0
  %1717 = vmatprep.subr.mxu0 0.0
  %1718 = vmatpush1.msra.mxu0 0.0
  %1719 = vmatprep.subr.mxu0 0.0
  %1720 = vmatpush1.msra.mxu0 0.0
  %1721 = vmatprep.subr.mxu0 0.0
  %1722 = vmatpush1.msra.mxu0 0.0
  %1723 = vmatprep.subr.mxu0 0.0
  %1724 = vmatpush1.msra.mxu0 0.0
  %1725 = vmatprep.subr.mxu0 0.0
  %1726 = vmatpush1.msra.mxu0 0.0
  %1727 = vmatprep.subr.mxu0 0.0
  %1728 = vmatpush1.msra.mxu0 0.0
  %1729 = vmatprep.subr.mxu0 0.0
  %1730 = vmatpush1.msra.mxu0 0.0
  %1731 = vmatprep.subr.mxu0 0.0
  %1732 = vmatpush1.msra.mxu0 0.0
  %1733 = vmatprep.subr.mxu0 0.0
  %1734 = vmatpush1.msra.mxu0 0.0
  %1735 = vmatprep.subr.mxu0 0.0
  %1736 = vmatpush1.msra.mxu0 0.0
  %1737 = vmatprep.subr.mxu0 0.0
  %1738 = vmatpush1.msra.mxu0 0.0
  %1739 = vmatprep.subr.mxu0 0.0
  %1740 = vmatpush1.msra.mxu0 0.0
  %1741 = vmatprep.subr.mxu0 0.0
  %1742 = vmatpush1.msra.mxu0 0.0
  %1743 = vmatprep.subr.mxu0 0.0
  %1744 = vmatpush1.msra.mxu0 0.0
  %1745 = vmatprep.subr.mxu0 0.0
  %1746 = vmatpush1.msra.mxu0 0.0
  %1747 = vmatprep.subr.mxu0 0.0
  %1748 = vmatpush1.msra.mxu0 0.0
  %1749 = vmatprep.subr.mxu0 0.0
  %1750 = vmatpush1.msra.mxu0 0.0
  %1751 = vmatprep.subr.mxu0 0.0
  %1752 = vmatpush1.msra.mxu0 0.0
  %1753 = vmatprep.subr.mxu0 0.0
  %1754 = vmatpush1.msra.mxu0 0.0
  %1755 = vmatprep.subr.mxu0 0.0
  %1756 = vmatpush1.msra.mxu0 0.0
  %1757 = vmatprep.subr.mxu0 0.0
  %1758 = vmatpush1.msra.mxu0 0.0
  %1759 = vmatprep.subr.mxu0 0.0
  %1760 = vmatpush1.msra.mxu0 0.0
  %1761 = vmatprep.subr.mxu0 0.0
  %1762 = vmatpush1.msra.mxu0 0.0
  %1763 = vmatprep.subr.mxu0 0.0
  %1764 = vmatpush1.msra.mxu0 0.0
  %1765 = vmatprep.subr.mxu0 0.0
  %1766 = vmatpush1.msra.mxu0 0.0
  %1767 = vmatprep.subr.mxu0 0.0
  %1768 = vmatpush1.msra.mxu0 0.0
  %1769 = vmatprep.subr.mxu0 0.0
  %1770 = vmatpush1.msra.mxu0 0.0
  %1771 = vmatprep.mubr.f32.mxu0 0.0
  %1772 = vmatmul.mubr.f32.gmra.mrb[0].mxu0 %v1705
  %v1773 = vpop.f32.mrb[0].mxu0
  %v1774 = vadd.f32 0.0, %v1773
  %v1775 = vpop.f32.mrb[0].mxu0
  %1776 = vdwg.mxu0
  %v1777 = vadd.f32 %v1704, %v1774
  %v1778 = vxor.u32 %v1777, 2147483648
  %v1779 = vmul.f32 %v1778, 1.442695
  %v1780 = vpow.pop %v1779
  %v1781 = vadd.f32 %v1780, 1.0
  %v1782 = vrcp.pop %v1781
  %v1783 = vmul.f32 1.0, %v1782
  %v1784 = vtanh.pop %v1777
  %v1785 = vmul.f32 %v1783, %v1587
  %1787 = vrot.lane.b32.xlu0 %v1784, 64
  %v1788 = vpop.permute.xlu0 %1787
  %v1790 = vmul.f32 %v1783, %v1788
  %1792 = vrot.lane.b32.xlu0 %v1790, 32
  %v1793 = vpop.permute.xlu0 %1792
  %v1795 = vadd.f32 %v1785, %v1793
  %v1796 = vtanh.pop %v1795
  %1798 = vrot.lane.b32.xlu0 %v1796, 64
  %v1799 = vpop.permute.xlu0 %1798
  %v1801 = vmul.f32 %v1783, %v1799
  %1803 = vrot.lane.b32.xlu0 %v1801, 32
  %v1804 = vpop.permute.xlu0 %1803
  %1806 = vst.msk [vmem:[%s429] sm:$0xff] %vm222, %v1804
  %v1807 = vld [vmem:[%s220 + $0x8] sm:$0xff]
  %1808 = vrot.lane.b32.xlu0 %v1698, 32
  %v1809 = vpop.permute.xlu0 %1808
  %v1810 = vsel %vm222, %v1809, 0
  %1812 = vmatprep.subr.mxu0 0.0
  %1813 = vmatpush1.msra.mxu0 %v214
  %1814 = vmatprep.subr.mxu0 0.0
  %1815 = vmatpush1.msra.mxu0 %v215
  %1816 = vmatprep.subr.mxu0 0.0
  %1817 = vmatpush1.msra.mxu0 %v216
  %1818 = vmatprep.subr.mxu0 0.0
  %1819 = vmatpush1.msra.mxu0 %v217
  %1820 = vmatprep.subr.mxu0 0.0
  %1821 = vmatpush1.msra.mxu0 0.0
  %1822 = vmatprep.subr.mxu0 0.0
  %1823 = vmatpush1.msra.mxu0 0.0
  %1824 = vmatprep.subr.mxu0 0.0
  %1825 = vmatpush1.msra.mxu0 0.0
  %1826 = vmatprep.subr.mxu0 0.0
  %1827 = vmatpush1.msra.mxu0 0.0
  %1828 = vmatprep.subr.mxu0 0.0
  %1829 = vmatpush1.msra.mxu0 0.0
  %1830 = vmatprep.subr.mxu0 0.0
  %1831 = vmatpush1.msra.mxu0 0.0
  %1832 = vmatprep.subr.mxu0 0.0
  %1833 = vmatpush1.msra.mxu0 0.0
  %1834 = vmatprep.subr.mxu0 0.0
  %1835 = vmatpush1.msra.mxu0 0.0
  %1836 = vmatprep.subr.mxu0 0.0
  %1837 = vmatpush1.msra.mxu0 0.0
  %1838 = vmatprep.subr.mxu0 0.0
  %1839 = vmatpush1.msra.mxu0 0.0
  %1840 = vmatprep.subr.mxu0 0.0
  %1841 = vmatpush1.msra.mxu0 0.0
  %1842 = vmatprep.subr.mxu0 0.0
  %1843 = vmatpush1.msra.mxu0 0.0
  %1844 = vmatprep.subr.mxu0 0.0
  %1845 = vmatpush1.msra.mxu0 0.0
  %1846 = vmatprep.subr.mxu0 0.0
  %1847 = vmatpush1.msra.mxu0 0.0
  %1848 = vmatprep.subr.mxu0 0.0
  %1849 = vmatpush1.msra.mxu0 0.0
  %1850 = vmatprep.subr.mxu0 0.0
  %1851 = vmatpush1.msra.mxu0 0.0
  %1852 = vmatprep.subr.mxu0 0.0
  %1853 = vmatpush1.msra.mxu0 0.0
  %1854 = vmatprep.subr.mxu0 0.0
  %1855 = vmatpush1.msra.mxu0 0.0
  %1856 = vmatprep.subr.mxu0 0.0
  %1857 = vmatpush1.msra.mxu0 0.0
  %1858 = vmatprep.subr.mxu0 0.0
  %1859 = vmatpush1.msra.mxu0 0.0
  %1860 = vmatprep.subr.mxu0 0.0
  %1861 = vmatpush1.msra.mxu0 0.0
  %1862 = vmatprep.subr.mxu0 0.0
  %1863 = vmatpush1.msra.mxu0 0.0
  %1864 = vmatprep.subr.mxu0 0.0
  %1865 = vmatpush1.msra.mxu0 0.0
  %1866 = vmatprep.subr.mxu0 0.0
  %1867 = vmatpush1.msra.mxu0 0.0
  %1868 = vmatprep.subr.mxu0 0.0
  %1869 = vmatpush1.msra.mxu0 0.0
  %1870 = vmatprep.subr.mxu0 0.0
  %1871 = vmatpush1.msra.mxu0 0.0
  %1872 = vmatprep.subr.mxu0 0.0
  %1873 = vmatpush1.msra.mxu0 0.0
  %1874 = vmatprep.subr.mxu0 0.0
  %1875 = vmatpush1.msra.mxu0 0.0
  %1876 = vmatprep.mubr.f32.mxu0 0.0
  %1877 = vmatmul.mubr.f32.gmra.mrb[0].mxu0 %v1810
  %v1878 = vpop.f32.mrb[0].mxu0
  %v1879 = vadd.f32 0.0, %v1878
  %v1880 = vpop.f32.mrb[0].mxu0
  %1881 = vdwg.mxu0
  %v1882 = vadd.f32 %v1807, %v1879
  %v1883 = vxor.u32 %v1882, 2147483648
  %v1884 = vmul.f32 %v1883, 1.442695
  %v1885 = vpow.pop %v1884
  %v1886 = vadd.f32 %v1885, 1.0
  %v1887 = vrcp.pop %v1886
  %v1888 = vmul.f32 1.0, %v1887
  %v1889 = vtanh.pop %v1882
  %v1890 = vmul.f32 %v1888, %v1692
  %1892 = vrot.lane.b32.xlu0 %v1889, 64
  %v1893 = vpop.permute.xlu0 %1892
  %v1895 = vmul.f32 %v1888, %v1893
  %1897 = vrot.lane.b32.xlu0 %v1895, 32
  %v1898 = vpop.permute.xlu0 %1897
  %v1900 = vadd.f32 %v1890, %v1898
  %v1901 = vtanh.pop %v1900
  %1903 = vrot.lane.b32.xlu0 %v1901, 64
  %v1904 = vpop.permute.xlu0 %1903
  %v1906 = vmul.f32 %v1888, %v1904
  %1908 = vrot.lane.b32.xlu0 %v1906, 64
  %v1909 = vpop.permute.xlu0 %1908
  %1911 = vst.msk [vmem:[%s5] sm:$0xff] %vm430, %v1909
  // Predicated region
  $region22: #{lstm_model_forward.4} parent=0 // pred_check
    _
  $region23: #{lstm_model_forward.4} parent=0 // pred_check_branch
    %1913 = sbr.rel (0) target = $region25
  $region24: #{lstm_model_forward.4} parent=0 // pred_region
    _
  $region25: #{lstm_model_forward.4} parent=0 // pred_fallthru
    _
  // Predicated region
  $region26: #{lstm_model_forward.4} parent=0 // pred_check
    _
  $region27: #{lstm_model_forward.4} parent=0 // pred_check_branch
    %1915 = sbr.rel (0) target = $region29
  $region28: #{lstm_model_forward.4} parent=0 // pred_region
    _
  $region29: #{lstm_model_forward.4} parent=0 // pred_fallthru
    _

// kernel: lstm_model_forward.5
$region0: #{lstm_model_forward.5}
  #allocation0 [shape = 'u32[]', space=smem, size = 0x4, offset = 0x4, fixed_abs, tag = 'smem constant byte address 0x4 - core index']
  #allocation1 [shape = 'u32[144,128]{1,0:T(1,128)}', space=vmem, size = 0x12000, scoped, tag = 'internal scratch']
  #allocation2 [shape = 'f32[64,256]{1,0:T(8,128)}', space=vmem, size = 0x10000, scoped, tag = 'scratch operand']
  %s0 = inlined_call_operand.vmem [shape: f32[8,8,64], index: 0, kind: input, shape index: {}]
  %s1 = inlined_call_operand.vmem [shape: f32[64,256], index: 1, kind: input, shape index: {}]
  %s2 = inlined_call_operand.vmem [shape: f32[1,256], index: 2, kind: input, shape index: {}]
  %s3 = inlined_call_operand.vmem [shape: f32[32,128], index: 3, kind: input, shape index: {}]
  %s4 = inlined_call_operand.vmem [shape: f32[32,128], index: 4, kind: input, shape index: {}]
  %s5 = inlined_call_operand.vmem [shape: f32[64,128], index: 5, kind: input, shape index: {}]
  %s6 = inlined_call_operand.vmem [shape: f32[1,128], index: 6, kind: input, shape index: {}]
  %s7 = inlined_call_operand.vmem [shape: f32[128,5], index: 7, kind: input, shape index: {}]
  %s8 = inlined_call_operand.vmem [shape: f32[1,5], index: 8, kind: input, shape index: {}]
  %s9 = inlined_call_operand.hbm [shape: f32[8,8,64], index: 9, kind: output, shape index: {0}]
  %s10 = inlined_call_operand.vmem [shape: f32[8,5], index: 10, kind: output, shape index: {1}]
  %11 = xla_tuple %s9, %s10
  %s12 = sld [smem:[#allocation0]]
  $region54: #{lstm_model_forward.5} parent=0
    _
  %s14 = ssub.s32 1, %s12
  %s15 = scalar_select 0, %s14, %s12
  $region1: #{lstm_model_forward.5} parent=0
    #allocation3 [shape = 'u8[32768]{0}', space=vmem, size = 0x8000, scoped, tag = 'output window, operand 0, single buffered']
    #allocation4 [shape = 's32[1]{0}', space=sflag, size = 0x4, scoped, tag = 'scoped memory for lstm_model_forward.5']
    %16 = vsyncpa [#allocation4], 0
    // Predicated region
    $region2: #{lstm_model_forward.5} parent=1 // pred_check
      _
    $region3: #{lstm_model_forward.5} parent=1 // pred_check_branch
      %18 = sbr.rel (0) target = $region5
    $region4: #{lstm_model_forward.5} parent=1 // pred_region
      _
    $region5: #{lstm_model_forward.5} parent=1 // pred_fallthru
      _
    // Predicated region
    $region6: #{lstm_model_forward.5} parent=1 // pred_check
      _
    $region7: #{lstm_model_forward.5} parent=1 // pred_check_branch
      %20 = sbr.rel (0) target = $region9
    $region8: #{lstm_model_forward.5} parent=1 // pred_region
      _
    $region9: #{lstm_model_forward.5} parent=1 // pred_fallthru
      _
    // Predicated region
    $region10: #{lstm_model_forward.5} parent=1 // pred_check
      _
    $region11: #{lstm_model_forward.5} parent=1 // pred_check_branch
      %22 = sbr.rel (0) target = $region13
    $region12: #{lstm_model_forward.5} parent=1 // pred_region
      _
    $region13: #{lstm_model_forward.5} parent=1 // pred_fallthru
      _
    // Predicated region
    $region14: #{lstm_model_forward.5} parent=1 // pred_check
      _
    $region15: #{lstm_model_forward.5} parent=1 // pred_check_branch
      %24 = sbr.rel (0) target = $region17
    $region16: #{lstm_model_forward.5} parent=1 // pred_region
      _
    $region17: #{lstm_model_forward.5} parent=1 // pred_fallthru
      _
    // Predicated region
    $region18: #{lstm_model_forward.5} parent=1 // pred_check
      _
    $region19: #{lstm_model_forward.5} parent=1 // pred_check_branch
      %26 = sbr.rel (0) target = $region21
    $region20: #{lstm_model_forward.5} parent=1 // pred_region
      _
    $region21: #{lstm_model_forward.5} parent=1 // pred_fallthru
      _
    // Predicated region
    $region22: #{lstm_model_forward.5} parent=1 // pred_check
      _
    $region23: #{lstm_model_forward.5} parent=1 // pred_check_branch
      %28 = sbr.rel (0) target = $region25
    $region24: #{lstm_model_forward.5} parent=1 // pred_region
      _
    $region25: #{lstm_model_forward.5} parent=1 // pred_fallthru
      _
    // Predicated region
    $region26: #{lstm_model_forward.5} parent=1 // pred_check
      _
    $region27: #{lstm_model_forward.5} parent=1 // pred_check_branch
      %30 = sbr.rel (0) target = $region29
    $region28: #{lstm_model_forward.5} parent=1 // pred_region
      _
    $region29: #{lstm_model_forward.5} parent=1 // pred_fallthru
      _
    // Predicated region
    $region30: #{lstm_model_forward.5} parent=1 // pred_check
      _
    $region31: #{lstm_model_forward.5} parent=1 // pred_check_branch
      %32 = sbr.rel (0) target = $region33
    $region32: #{lstm_model_forward.5} parent=1 // pred_region
      _
    $region33: #{lstm_model_forward.5} parent=1 // pred_fallthru
      _
    // Predicated region
    $region34: #{lstm_model_forward.5} parent=1 // pred_check
      _
    $region35: #{lstm_model_forward.5} parent=1 // pred_check_branch
      %34 = sbr.rel (0) target = $region37
    $region36: #{lstm_model_forward.5} parent=1 // pred_region
      _
    $region37: #{lstm_model_forward.5} parent=1 // pred_fallthru
      _
    %v35 = vld [vmem:[%s0] sm:$0xff]
    %v36 = vld [vmem:[%s0 + $0x8] sm:$0xff]
    %v37 = vld [vmem:[%s0 + $0x10] sm:$0xff]
    %v38 = vld [vmem:[%s0 + $0x18] sm:$0xff]
    %v39 = vld [vmem:[%s0 + $0x20] sm:$0xff]
    %v40 = vld [vmem:[%s0 + $0x28] sm:$0xff]
    %v41 = vld [vmem:[%s0 + $0x30] sm:$0xff]
    %v42 = vld [vmem:[%s0 + $0x38] sm:$0xff]
    %v43 = vld [vmem:[%s1] sm:$0xff]
    %v44 = vld [vmem:[%s1 + $0x8] sm:$0xff]
    %v45 = vld [vmem:[%s1 + $0x10] sm:$0xff]
    %v46 = vld [vmem:[%s1 + $0x18] sm:$0xff]
    %v47 = vld [vmem:[%s1 + $0x20] sm:$0xff]
    %v48 = vld [vmem:[%s1 + $0x28] sm:$0xff]
    %v49 = vld [vmem:[%s1 + $0x30] sm:$0xff]
    %v50 = vld [vmem:[%s1 + $0x38] sm:$0xff]
    %v51 = vld [vmem:[%s1 + $0x40] sm:$0xff]
    %v52 = vld [vmem:[%s1 + $0x48] sm:$0xff]
    %v53 = vld [vmem:[%s1 + $0x50] sm:$0xff]
    %v54 = vld [vmem:[%s1 + $0x58] sm:$0xff]
    %v55 = vld [vmem:[%s1 + $0x60] sm:$0xff]
    %v56 = vld [vmem:[%s1 + $0x68] sm:$0xff]
    %v57 = vld [vmem:[%s1 + $0x70] sm:$0xff]
    %v58 = vld [vmem:[%s1 + $0x78] sm:$0xff]
    %v59 = vld [vmem:[%s2] sm:$0x3]
    %v61 = vlaneseq
    %v62 = vshrl.u32 %v61, 7
    %v63 = vsub.s32 0, %v62
    %v64 = vrot.slane %v59, %v63
    %v65 = vlaneseq
    %v66 = vshrl.u32 %v65, 7
    %v67 = vsub.s32 1, %v66
    %v68 = vrot.slane %v59, %v67
    %vm71 = vcmask 523264
    %v73 = vsel %vm71, %v35, 0
    %v76 = vsel %vm71, %v36, 0
    %v79 = vsel %vm71, %v37, 0
    %v82 = vsel %vm71, %v38, 0
    %v85 = vsel %vm71, %v39, 0
    %v88 = vsel %vm71, %v40, 0
    %v91 = vsel %vm71, %v41, 0
    %v94 = vsel %vm71, %v42, 0
    %96 = vmatprep.subr.mxu0 %v44
    %97 = vmatpush1.msra.mxu0 %v43
    %98 = vmatprep.subr.mxu0 %v46
    %99 = vmatpush1.msra.mxu0 %v45
    %100 = vmatprep.subr.mxu0 %v48
    %101 = vmatpush1.msra.mxu0 %v47
    %102 = vmatprep.subr.mxu0 %v50
    %103 = vmatpush1.msra.mxu0 %v49
    %104 = vmatprep.subr.mxu0 %v52
    %105 = vmatpush1.msra.mxu0 %v51
    %106 = vmatprep.subr.mxu0 %v54
    %107 = vmatpush1.msra.mxu0 %v53
    %108 = vmatprep.subr.mxu0 %v56
    %109 = vmatpush1.msra.mxu0 %v55
    %110 = vmatprep.subr.mxu0 %v58
    %111 = vmatpush1.msra.mxu0 %v57
    %112 = vmatprep.subr.mxu0 0.0
    %113 = vmatpush1.msra.mxu0 0.0
    %114 = vmatprep.subr.mxu0 0.0
    %115 = vmatpush1.msra.mxu0 0.0
    %116 = vmatprep.subr.mxu0 0.0
    %117 = vmatpush1.msra.mxu0 0.0
    %118 = vmatprep.subr.mxu0 0.0
    %119 = vmatpush1.msra.mxu0 0.0
    %120 = vmatprep.subr.mxu0 0.0
    %121 = vmatpush1.msra.mxu0 0.0
    %122 = vmatprep.subr.mxu0 0.0
    %123 = vmatpush1.msra.mxu0 0.0
    %124 = vmatprep.subr.mxu0 0.0
    %125 = vmatpush1.msra.mxu0 0.0
    %126 = vmatprep.subr.mxu0 0.0
    %127 = vmatpush1.msra.mxu0 0.0
    %128 = vmatprep.subr.mxu0 0.0
    %129 = vmatpush1.msra.mxu0 0.0
    %130 = vmatprep.subr.mxu0 0.0
    %131 = vmatpush1.msra.mxu0 0.0
    %132 = vmatprep.subr.mxu0 0.0
    %133 = vmatpush1.msra.mxu0 0.0
    %134 = vmatprep.subr.mxu0 0.0
    %135 = vmatpush1.msra.mxu0 0.0
    %136 = vmatprep.subr.mxu0 0.0
    %137 = vmatpush1.msra.mxu0 0.0
    %138 = vmatprep.subr.mxu0 0.0
    %139 = vmatpush1.msra.mxu0 0.0
    %140 = vmatprep.subr.mxu0 0.0
    %141 = vmatpush1.msra.mxu0 0.0
    %142 = vmatprep.subr.mxu0 0.0
    %143 = vmatpush1.msra.mxu0 0.0
    %144 = vmatprep.subr.mxu0 0.0
    %145 = vmatpush1.msra.mxu0 0.0
    %146 = vmatprep.subr.mxu0 0.0
    %147 = vmatpush1.msra.mxu0 0.0
    %148 = vmatprep.subr.mxu0 0.0
    %149 = vmatpush1.msra.mxu0 0.0
    %150 = vmatprep.subr.mxu0 0.0
    %151 = vmatpush1.msra.mxu0 0.0
    %152 = vmatprep.subr.mxu0 0.0
    %153 = vmatpush1.msra.mxu0 0.0
    %154 = vmatprep.subr.mxu0 0.0
    %155 = vmatpush1.msra.mxu0 0.0
    %156 = vmatprep.subr.mxu0 0.0
    %157 = vmatpush1.msra.mxu0 0.0
    %158 = vmatprep.subr.mxu0 0.0
    %159 = vmatpush1.msra.mxu0 0.0
    %160 = vmatprep.mubr.f32.mxu0 0.0
    %161 = vmatmul.mubr.f32.gmra.mrb[0].mxu0 %v73
    %v162 = vpop.f32.mrb[0].mxu0
    %v163 = vadd.f32 %v64, %v162
    %v164 = vpop.f32.mrb[0].mxu0
    %v165 = vadd.f32 %v68, %v164
    %166 = vmatprep.mubr.f32.mxu0 0.0
    %167 = vmatmul.mubr.f32.gmra.mrb[0].mxu0 %v76
    %v168 = vpop.f32.mrb[0].mxu0
    %v169 = vadd.f32 %v64, %v168
    %v170 = vpop.f32.mrb[0].mxu0
    %v171 = vadd.f32 %v68, %v170
    %172 = vmatprep.mubr.f32.mxu0 0.0
    %173 = vmatmul.mubr.f32.gmra.mrb[0].mxu0 %v79
    %v174 = vpop.f32.mrb[0].mxu0
    %v175 = vadd.f32 %v64, %v174
    %v176 = vpop.f32.mrb[0].mxu0
    %v177 = vadd.f32 %v68, %v176
    %178 = vmatprep.mubr.f32.mxu0 0.0
    %179 = vmatmul.mubr.f32.gmra.mrb[0].mxu0 %v82
    %v180 = vpop.f32.mrb[0].mxu0
    %v181 = vadd.f32 %v64, %v180
    %v182 = vpop.f32.mrb[0].mxu0
    %v183 = vadd.f32 %v68, %v182
    %184 = vmatprep.mubr.f32.mxu0 0.0
    %185 = vmatmul.mubr.f32.gmra.mrb[0].mxu0 %v85
    %v186 = vpop.f32.mrb[0].mxu0
    %v187 = vadd.f32 %v64, %v186
    %v188 = vpop.f32.mrb[0].mxu0
    %v189 = vadd.f32 %v68, %v188
    %190 = vmatprep.mubr.f32.mxu0 0.0
    %191 = vmatmul.mubr.f32.gmra.mrb[0].mxu0 %v88
    %v192 = vpop.f32.mrb[0].mxu0
    %v193 = vadd.f32 %v64, %v192
    %v194 = vpop.f32.mrb[0].mxu0
    %v195 = vadd.f32 %v68, %v194
    %196 = vmatprep.mubr.f32.mxu0 0.0
    %197 = vmatmul.mubr.f32.gmra.mrb[0].mxu0 %v91
    %v198 = vpop.f32.mrb[0].mxu0
    %v199 = vadd.f32 %v64, %v198
    %v200 = vpop.f32.mrb[0].mxu0
    %v201 = vadd.f32 %v68, %v200
    %202 = vmatprep.mubr.f32.mxu0 0.0
    %203 = vmatmul.mubr.f32.gmra.mrb[0].mxu0 %v94
    %v204 = vpop.f32.mrb[0].mxu0
    %v205 = vadd.f32 %v64, %v204
    %v206 = vpop.f32.mrb[0].mxu0
    %v207 = vadd.f32 %v68, %v206
    %208 = vdwg.mxu0
    %209 = vst [vmem:[#allocation2] sm:$0xff] %v163
    %210 = vst [vmem:[#allocation2 + $0x8] sm:$0xff] %v165
    %211 = vst [vmem:[#allocation2 + $0x10] sm:$0xff] %v169
    %212 = vst [vmem:[#allocation2 + $0x18] sm:$0xff] %v171
    %213 = vst [vmem:[#allocation2 + $0x20] sm:$0xff] %v175
    %214 = vst [vmem:[#allocation2 + $0x28] sm:$0xff] %v177
    %215 = vst [vmem:[#allocation2 + $0x30] sm:$0xff] %v181
    %216 = vst [vmem:[#allocation2 + $0x38] sm:$0xff] %v183
    %217 = vst [vmem:[#allocation2 + $0x40] sm:$0xff] %v187
    %218 = vst [vmem:[#allocation2 + $0x48] sm:$0xff] %v189
    %219 = vst [vmem:[#allocation2 + $0x50] sm:$0xff] %v193
    %220 = vst [vmem:[#allocation2 + $0x58] sm:$0xff] %v195
    %221 = vst [vmem:[#allocation2 + $0x60] sm:$0xff] %v199
    %222 = vst [vmem:[#allocation2 + $0x68] sm:$0xff] %v201
    %223 = vst [vmem:[#allocation2 + $0x70] sm:$0xff] %v205
    %224 = vst [vmem:[#allocation2 + $0x78] sm:$0xff] %v207
    %v225 = vld [vmem:[%s3] sm:$0xff]
    %v226 = vld [vmem:[%s3 + $0x8] sm:$0xff]
    %v227 = vld [vmem:[%s3 + $0x10] sm:$0xff]
    %v228 = vld [vmem:[%s3 + $0x18] sm:$0xff]
    %v229 = vld [vmem:[%s4] sm:$0xff]
    %v230 = vld [vmem:[%s4 + $0x8] sm:$0xff]
    %v231 = vld [vmem:[%s4 + $0x10] sm:$0xff]
    %v232 = vld [vmem:[%s4 + $0x18] sm:$0xff]
    %s233 = smul.u32 0, 2
    %s234 = smul.addr %s233, 8
    %s235 = scalar_lea.vmem [#allocation2], %s234
    %v236 = vld [vmem:[%s235] sm:$0xff]
    %vm237 = vcmask 261120
    %v239 = vsel %vm237, 0.0, 0
    %241 = vmatprep.subr.mxu0 0.0
    %242 = vmatpush1.msra.mxu0 %v225
    %243 = vmatprep.subr.mxu0 0.0
    %244 = vmatpush1.msra.mxu0 %v226
    %245 = vmatprep.subr.mxu0 0.0
    %246 = vmatpush1.msra.mxu0 %v227
    %247 = vmatprep.subr.mxu0 0.0
    %248 = vmatpush1.msra.mxu0 %v228
    %249 = vmatprep.subr.mxu0 0.0
    %250 = vmatpush1.msra.mxu0 0.0
    %251 = vmatprep.subr.mxu0 0.0
    %252 = vmatpush1.msra.mxu0 0.0
    %253 = vmatprep.subr.mxu0 0.0
    %254 = vmatpush1.msra.mxu0 0.0
    %255 = vmatprep.subr.mxu0 0.0
    %256 = vmatpush1.msra.mxu0 0.0
    %257 = vmatprep.subr.mxu0 0.0
    %258 = vmatpush1.msra.mxu0 0.0
    %259 = vmatprep.subr.mxu0 0.0
    %260 = vmatpush1.msra.mxu0 0.0
    %261 = vmatprep.subr.mxu0 0.0
    %262 = vmatpush1.msra.mxu0 0.0
    %263 = vmatprep.subr.mxu0 0.0
    %264 = vmatpush1.msra.mxu0 0.0
    %265 = vmatprep.subr.mxu0 0.0
    %266 = vmatpush1.msra.mxu0 0.0
    %267 = vmatprep.subr.mxu0 0.0
    %268 = vmatpush1.msra.mxu0 0.0
    %269 = vmatprep.subr.mxu0 0.0
    %270 = vmatpush1.msra.mxu0 0.0
    %271 = vmatprep.subr.mxu0 0.0
    %272 = vmatpush1.msra.mxu0 0.0
    %273 = vmatprep.subr.mxu0 0.0
    %274 = vmatpush1.msra.mxu0 0.0
    %275 = vmatprep.subr.mxu0 0.0
    %276 = vmatpush1.msra.mxu0 0.0
    %277 = vmatprep.subr.mxu0 0.0
    %278 = vmatpush1.msra.mxu0 0.0
    %279 = vmatprep.subr.mxu0 0.0
    %280 = vmatpush1.msra.mxu0 0.0
    %281 = vmatprep.subr.mxu0 0.0
    %282 = vmatpush1.msra.mxu0 0.0
    %283 = vmatprep.subr.mxu0 0.0
    %284 = vmatpush1.msra.mxu0 0.0
    %285 = vmatprep.subr.mxu0 0.0
    %286 = vmatpush1.msra.mxu0 0.0
    %287 = vmatprep.subr.mxu0 0.0
    %288 = vmatpush1.msra.mxu0 0.0
    %289 = vmatprep.subr.mxu0 0.0
    %290 = vmatpush1.msra.mxu0 0.0
    %291 = vmatprep.subr.mxu0 0.0
    %292 = vmatpush1.msra.mxu0 0.0
    %293 = vmatprep.subr.mxu0 0.0
    %294 = vmatpush1.msra.mxu0 0.0
    %295 = vmatprep.subr.mxu0 0.0
    %296 = vmatpush1.msra.mxu0 0.0
    %297 = vmatprep.subr.mxu0 0.0
    %298 = vmatpush1.msra.mxu0 0.0
    %299 = vmatprep.subr.mxu0 0.0
    %300 = vmatpush1.msra.mxu0 0.0
    %301 = vmatprep.subr.mxu0 0.0
    %302 = vmatpush1.msra.mxu0 0.0
    %303 = vmatprep.subr.mxu0 0.0
    %304 = vmatpush1.msra.mxu0 0.0
    %305 = vmatprep.mubr.f32.mxu0 0.0
    %306 = vmatmul.mubr.f32.gmra.mrb[0].mxu0 %v239
    %v307 = vpop.f32.mrb[0].mxu0
    %v308 = vadd.f32 0.0, %v307
    %v309 = vpop.f32.mrb[0].mxu0
    %310 = vdwg.mxu0
    %v311 = vadd.f32 %v236, %v308
    %v312 = vxor.u32 %v311, 2147483648
    %v313 = vmul.f32 %v312, 1.442695
    %v314 = vpow.pop %v313
    %v315 = vadd.f32 %v314, 1.0
    %v316 = vrcp.pop %v315
    %v317 = vmul.f32 1.0, %v316
    %v318 = vtanh.pop %v311
    %v319 = vmul.f32 %v317, 0.0
    %321 = vrot.lane.b32.xlu0 %v318, 64
    %v322 = vpop.permute.xlu0 %321
    %v324 = vmul.f32 %v317, %v322
    %326 = vrot.lane.b32.xlu0 %v324, 32
    %v327 = vpop.permute.xlu0 %326
    %v329 = vadd.f32 %v319, %v327
    %v330 = vtanh.pop %v329
    %332 = vrot.lane.b32.xlu0 %v330, 64
    %v333 = vpop.permute.xlu0 %332
    %v335 = vmul.f32 %v317, %v333
    %337 = vrot.lane.b32.xlu0 %v335, 32
    %v338 = vpop.permute.xlu0 %337
    %340 = vst.msk [vmem:[#allocation3] sm:$0xff] %vm237, %v338
    %s341 = smul.u32 7, 2
    %s342 = smul.addr %s341, 8
    %s343 = scalar_lea.vmem [#allocation2], %s342
    %v344 = vld [vmem:[%s343 + $0x8] sm:$0xff]
    %345 = vmatprep.subr.mxu0 0.0
    %346 = vmatpush1.msra.mxu0 %v229
    %347 = vmatprep.subr.mxu0 0.0
    %348 = vmatpush1.msra.mxu0 %v230
    %349 = vmatprep.subr.mxu0 0.0
    %350 = vmatpush1.msra.mxu0 %v231
    %351 = vmatprep.subr.mxu0 0.0
    %352 = vmatpush1.msra.mxu0 %v232
    %353 = vmatprep.subr.mxu0 0.0
    %354 = vmatpush1.msra.mxu0 0.0
    %355 = vmatprep.subr.mxu0 0.0
    %356 = vmatpush1.msra.mxu0 0.0
    %357 = vmatprep.subr.mxu0 0.0
    %358 = vmatpush1.msra.mxu0 0.0
    %359 = vmatprep.subr.mxu0 0.0
    %360 = vmatpush1.msra.mxu0 0.0
    %361 = vmatprep.subr.mxu0 0.0
    %362 = vmatpush1.msra.mxu0 0.0
    %363 = vmatprep.subr.mxu0 0.0
    %364 = vmatpush1.msra.mxu0 0.0
    %365 = vmatprep.subr.mxu0 0.0
    %366 = vmatpush1.msra.mxu0 0.0
    %367 = vmatprep.subr.mxu0 0.0
    %368 = vmatpush1.msra.mxu0 0.0
    %369 = vmatprep.subr.mxu0 0.0
    %370 = vmatpush1.msra.mxu0 0.0
    %371 = vmatprep.subr.mxu0 0.0
    %372 = vmatpush1.msra.mxu0 0.0
    %373 = vmatprep.subr.mxu0 0.0
    %374 = vmatpush1.msra.mxu0 0.0
    %375 = vmatprep.subr.mxu0 0.0
    %376 = vmatpush1.msra.mxu0 0.0
    %377 = vmatprep.subr.mxu0 0.0
    %378 = vmatpush1.msra.mxu0 0.0
    %379 = vmatprep.subr.mxu0 0.0
    %380 = vmatpush1.msra.mxu0 0.0
    %381 = vmatprep.subr.mxu0 0.0
    %382 = vmatpush1.msra.mxu0 0.0
    %383 = vmatprep.subr.mxu0 0.0
    %384 = vmatpush1.msra.mxu0 0.0
    %385 = vmatprep.subr.mxu0 0.0
    %386 = vmatpush1.msra.mxu0 0.0
    %387 = vmatprep.subr.mxu0 0.0
    %388 = vmatpush1.msra.mxu0 0.0
    %389 = vmatprep.subr.mxu0 0.0
    %390 = vmatpush1.msra.mxu0 0.0
    %391 = vmatprep.subr.mxu0 0.0
    %392 = vmatpush1.msra.mxu0 0.0
    %393 = vmatprep.subr.mxu0 0.0
    %394 = vmatpush1.msra.mxu0 0.0
    %395 = vmatprep.subr.mxu0 0.0
    %396 = vmatpush1.msra.mxu0 0.0
    %397 = vmatprep.subr.mxu0 0.0
    %398 = vmatpush1.msra.mxu0 0.0
    %399 = vmatprep.subr.mxu0 0.0
    %400 = vmatpush1.msra.mxu0 0.0
    %401 = vmatprep.subr.mxu0 0.0
    %402 = vmatpush1.msra.mxu0 0.0
    %403 = vmatprep.subr.mxu0 0.0
    %404 = vmatpush1.msra.mxu0 0.0
    %405 = vmatprep.subr.mxu0 0.0
    %406 = vmatpush1.msra.mxu0 0.0
    %407 = vmatprep.subr.mxu0 0.0
    %408 = vmatpush1.msra.mxu0 0.0
    %409 = vmatprep.mubr.f32.mxu0 0.0
    %410 = vmatmul.mubr.f32.gmra.mrb[0].mxu0 %v239
    %v411 = vpop.f32.mrb[0].mxu0
    %v412 = vadd.f32 0.0, %v411
    %v413 = vpop.f32.mrb[0].mxu0
    %414 = vdwg.mxu0
    %v415 = vadd.f32 %v344, %v412
    %v416 = vxor.u32 %v415, 2147483648
    %v417 = vmul.f32 %v416, 1.442695
    %v418 = vpow.pop %v417
    %v419 = vadd.f32 %v418, 1.0
    %v420 = vrcp.pop %v419
    %v421 = vmul.f32 1.0, %v420
    %v422 = vtanh.pop %v415
    %v423 = vmul.f32 %v421, 0.0
    %425 = vrot.lane.b32.xlu0 %v422, 64
    %v426 = vpop.permute.xlu0 %425
    %v428 = vmul.f32 %v421, %v426
    %430 = vrot.lane.b32.xlu0 %v428, 32
    %v431 = vpop.permute.xlu0 %430
    %v433 = vadd.f32 %v423, %v431
    %v434 = vtanh.pop %v433
    %436 = vrot.lane.b32.xlu0 %v434, 64
    %v437 = vpop.permute.xlu0 %436
    %v439 = vmul.f32 %v421, %v437
    %441 = vrot.lane.b32.xlu0 %v439, 64
    %v442 = vpop.permute.xlu0 %441
    %s444 = scalar_lea.vmem [#allocation3], 56
    %vm445 = vcmask 523520
    %446 = vst.msk [vmem:[%s444] sm:$0xff] %vm445, %v442
    %s447 = smul.u32 1, 2
    %s448 = smul.addr %s447, 8
    %s449 = scalar_lea.vmem [#allocation2], %s448
    %v450 = vld [vmem:[%s449] sm:$0xff]
    %v451 = vsel %vm237, %v338, 0
    %453 = vmatprep.subr.mxu0 0.0
    %454 = vmatpush1.msra.mxu0 %v225
    %455 = vmatprep.subr.mxu0 0.0
    %456 = vmatpush1.msra.mxu0 %v226
    %457 = vmatprep.subr.mxu0 0.0
    %458 = vmatpush1.msra.mxu0 %v227
    %459 = vmatprep.subr.mxu0 0.0
    %460 = vmatpush1.msra.mxu0 %v228
    %461 = vmatprep.subr.mxu0 0.0
    %462 = vmatpush1.msra.mxu0 0.0
    %463 = vmatprep.subr.mxu0 0.0
    %464 = vmatpush1.msra.mxu0 0.0
    %465 = vmatprep.subr.mxu0 0.0
    %466 = vmatpush1.msra.mxu0 0.0
    %467 = vmatprep.subr.mxu0 0.0
    %468 = vmatpush1.msra.mxu0 0.0
    %469 = vmatprep.subr.mxu0 0.0
    %470 = vmatpush1.msra.mxu0 0.0
    %471 = vmatprep.subr.mxu0 0.0
    %472 = vmatpush1.msra.mxu0 0.0
    %473 = vmatprep.subr.mxu0 0.0
    %474 = vmatpush1.msra.mxu0 0.0
    %475 = vmatprep.subr.mxu0 0.0
    %476 = vmatpush1.msra.mxu0 0.0
    %477 = vmatprep.subr.mxu0 0.0
    %478 = vmatpush1.msra.mxu0 0.0
    %479 = vmatprep.subr.mxu0 0.0
    %480 = vmatpush1.msra.mxu0 0.0
    %481 = vmatprep.subr.mxu0 0.0
    %482 = vmatpush1.msra.mxu0 0.0
    %483 = vmatprep.subr.mxu0 0.0
    %484 = vmatpush1.msra.mxu0 0.0
    %485 = vmatprep.subr.mxu0 0.0
    %486 = vmatpush1.msra.mxu0 0.0
    %487 = vmatprep.subr.mxu0 0.0
    %488 = vmatpush1.msra.mxu0 0.0
    %489 = vmatprep.subr.mxu0 0.0
    %490 = vmatpush1.msra.mxu0 0.0
    %491 = vmatprep.subr.mxu0 0.0
    %492 = vmatpush1.msra.mxu0 0.0
    %493 = vmatprep.subr.mxu0 0.0
    %494 = vmatpush1.msra.mxu0 0.0
    %495 = vmatprep.subr.mxu0 0.0
    %496 = vmatpush1.msra.mxu0 0.0
    %497 = vmatprep.subr.mxu0 0.0
    %498 = vmatpush1.msra.mxu0 0.0
    %499 = vmatprep.subr.mxu0 0.0
    %500 = vmatpush1.msra.mxu0 0.0
    %501 = vmatprep.subr.mxu0 0.0
    %502 = vmatpush1.msra.mxu0 0.0
    %503 = vmatprep.subr.mxu0 0.0
    %504 = vmatpush1.msra.mxu0 0.0
    %505 = vmatprep.subr.mxu0 0.0
    %506 = vmatpush1.msra.mxu0 0.0
    %507 = vmatprep.subr.mxu0 0.0
    %508 = vmatpush1.msra.mxu0 0.0
    %509 = vmatprep.subr.mxu0 0.0
    %510 = vmatpush1.msra.mxu0 0.0
    %511 = vmatprep.subr.mxu0 0.0
    %512 = vmatpush1.msra.mxu0 0.0
    %513 = vmatprep.subr.mxu0 0.0
    %514 = vmatpush1.msra.mxu0 0.0
    %515 = vmatprep.subr.mxu0 0.0
    %516 = vmatpush1.msra.mxu0 0.0
    %517 = vmatprep.mubr.f32.mxu0 0.0
    %518 = vmatmul.mubr.f32.gmra.mrb[0].mxu0 %v451
    %v519 = vpop.f32.mrb[0].mxu0
    %v520 = vadd.f32 0.0, %v519
    %v521 = vpop.f32.mrb[0].mxu0
    %522 = vdwg.mxu0
    %v523 = vadd.f32 %v450, %v520
    %v524 = vxor.u32 %v523, 2147483648
    %v525 = vmul.f32 %v524, 1.442695
    %v526 = vpow.pop %v525
    %v527 = vadd.f32 %v526, 1.0
    %v528 = vrcp.pop %v527
    %v529 = vmul.f32 1.0, %v528
    %v530 = vtanh.pop %v523
    %v531 = vmul.f32 %v529, %v329
    %533 = vrot.lane.b32.xlu0 %v530, 64
    %v534 = vpop.permute.xlu0 %533
    %v536 = vmul.f32 %v529, %v534
    %538 = vrot.lane.b32.xlu0 %v536, 32
    %v539 = vpop.permute.xlu0 %538
    %v541 = vadd.f32 %v531, %v539
    %v542 = vtanh.pop %v541
    %544 = vrot.lane.b32.xlu0 %v542, 64
    %v545 = vpop.permute.xlu0 %544
    %v547 = vmul.f32 %v529, %v545
    %549 = vrot.lane.b32.xlu0 %v547, 32
    %v550 = vpop.permute.xlu0 %549
    %s552 = scalar_lea.vmem [#allocation3], 8
    %553 = vst.msk [vmem:[%s552] sm:$0xff] %vm237, %v550
    %s554 = smul.u32 6, 2
    %s555 = smul.addr %s554, 8
    %s556 = scalar_lea.vmem [#allocation2], %s555
    %v557 = vld [vmem:[%s556 + $0x8] sm:$0xff]
    %558 = vrot.lane.b32.xlu0 %v439, 32
    %v559 = vpop.permute.xlu0 %558
    %v560 = vsel %vm237, %v559, 0
    %562 = vmatprep.subr.mxu0 0.0
    %563 = vmatpush1.msra.mxu0 %v229
    %564 = vmatprep.subr.mxu0 0.0
    %565 = vmatpush1.msra.mxu0 %v230
    %566 = vmatprep.subr.mxu0 0.0
    %567 = vmatpush1.msra.mxu0 %v231
    %568 = vmatprep.subr.mxu0 0.0
    %569 = vmatpush1.msra.mxu0 %v232
    %570 = vmatprep.subr.mxu0 0.0
    %571 = vmatpush1.msra.mxu0 0.0
    %572 = vmatprep.subr.mxu0 0.0
    %573 = vmatpush1.msra.mxu0 0.0
    %574 = vmatprep.subr.mxu0 0.0
    %575 = vmatpush1.msra.mxu0 0.0
    %576 = vmatprep.subr.mxu0 0.0
    %577 = vmatpush1.msra.mxu0 0.0
    %578 = vmatprep.subr.mxu0 0.0
    %579 = vmatpush1.msra.mxu0 0.0
    %580 = vmatprep.subr.mxu0 0.0
    %581 = vmatpush1.msra.mxu0 0.0
    %582 = vmatprep.subr.mxu0 0.0
    %583 = vmatpush1.msra.mxu0 0.0
    %584 = vmatprep.subr.mxu0 0.0
    %585 = vmatpush1.msra.mxu0 0.0
    %586 = vmatprep.subr.mxu0 0.0
    %587 = vmatpush1.msra.mxu0 0.0
    %588 = vmatprep.subr.mxu0 0.0
    %589 = vmatpush1.msra.mxu0 0.0
    %590 = vmatprep.subr.mxu0 0.0
    %591 = vmatpush1.msra.mxu0 0.0
    %592 = vmatprep.subr.mxu0 0.0
    %593 = vmatpush1.msra.mxu0 0.0
    %594 = vmatprep.subr.mxu0 0.0
    %595 = vmatpush1.msra.mxu0 0.0
    %596 = vmatprep.subr.mxu0 0.0
    %597 = vmatpush1.msra.mxu0 0.0
    %598 = vmatprep.subr.mxu0 0.0
    %599 = vmatpush1.msra.mxu0 0.0
    %600 = vmatprep.subr.mxu0 0.0
    %601 = vmatpush1.msra.mxu0 0.0
    %602 = vmatprep.subr.mxu0 0.0
    %603 = vmatpush1.msra.mxu0 0.0
    %604 = vmatprep.subr.mxu0 0.0
    %605 = vmatpush1.msra.mxu0 0.0
    %606 = vmatprep.subr.mxu0 0.0
    %607 = vmatpush1.msra.mxu0 0.0
    %608 = vmatprep.subr.mxu0 0.0
    %609 = vmatpush1.msra.mxu0 0.0
    %610 = vmatprep.subr.mxu0 0.0
    %611 = vmatpush1.msra.mxu0 0.0
    %612 = vmatprep.subr.mxu0 0.0
    %613 = vmatpush1.msra.mxu0 0.0
    %614 = vmatprep.subr.mxu0 0.0
    %615 = vmatpush1.msra.mxu0 0.0
    %616 = vmatprep.subr.mxu0 0.0
    %617 = vmatpush1.msra.mxu0 0.0
    %618 = vmatprep.subr.mxu0 0.0
    %619 = vmatpush1.msra.mxu0 0.0
    %620 = vmatprep.subr.mxu0 0.0
    %621 = vmatpush1.msra.mxu0 0.0
    %622 = vmatprep.subr.mxu0 0.0
    %623 = vmatpush1.msra.mxu0 0.0
    %624 = vmatprep.subr.mxu0 0.0
    %625 = vmatpush1.msra.mxu0 0.0
    %626 = vmatprep.mubr.f32.mxu0 0.0
    %627 = vmatmul.mubr.f32.gmra.mrb[0].mxu0 %v560
    %v628 = vpop.f32.mrb[0].mxu0
    %v629 = vadd.f32 0.0, %v628
    %v630 = vpop.f32.mrb[0].mxu0
    %631 = vdwg.mxu0
    %v632 = vadd.f32 %v557, %v629
    %v633 = vxor.u32 %v632, 2147483648
    %v634 = vmul.f32 %v633, 1.442695
    %v635 = vpow.pop %v634
    %v636 = vadd.f32 %v635, 1.0
    %v637 = vrcp.pop %v636
    %v638 = vmul.f32 1.0, %v637
    %v639 = vtanh.pop %v632
    %v640 = vmul.f32 %v638, %v433
    %642 = vrot.lane.b32.xlu0 %v639, 64
    %v643 = vpop.permute.xlu0 %642
    %v645 = vmul.f32 %v638, %v643
    %647 = vrot.lane.b32.xlu0 %v645, 32
    %v648 = vpop.permute.xlu0 %647
    %v650 = vadd.f32 %v640, %v648
    %v651 = vtanh.pop %v650
    %653 = vrot.lane.b32.xlu0 %v651, 64
    %v654 = vpop.permute.xlu0 %653
    %v656 = vmul.f32 %v638, %v654
    %658 = vrot.lane.b32.xlu0 %v656, 64
    %v659 = vpop.permute.xlu0 %658
    %s661 = scalar_lea.vmem [#allocation3], 48
    %662 = vst.msk [vmem:[%s661] sm:$0xff] %vm445, %v659
    %s663 = smul.u32 2, 2
    %s664 = smul.addr %s663, 8
    %s665 = scalar_lea.vmem [#allocation2], %s664
    %v666 = vld [vmem:[%s665] sm:$0xff]
    %v667 = vsel %vm237, %v550, 0
    %669 = vmatprep.subr.mxu0 0.0
    %670 = vmatpush1.msra.mxu0 %v225
    %671 = vmatprep.subr.mxu0 0.0
    %672 = vmatpush1.msra.mxu0 %v226
    %673 = vmatprep.subr.mxu0 0.0
    %674 = vmatpush1.msra.mxu0 %v227
    %675 = vmatprep.subr.mxu0 0.0
    %676 = vmatpush1.msra.mxu0 %v228
    %677 = vmatprep.subr.mxu0 0.0
    %678 = vmatpush1.msra.mxu0 0.0
    %679 = vmatprep.subr.mxu0 0.0
    %680 = vmatpush1.msra.mxu0 0.0
    %681 = vmatprep.subr.mxu0 0.0
    %682 = vmatpush1.msra.mxu0 0.0
    %683 = vmatprep.subr.mxu0 0.0
    %684 = vmatpush1.msra.mxu0 0.0
    %685 = vmatprep.subr.mxu0 0.0
    %686 = vmatpush1.msra.mxu0 0.0
    %687 = vmatprep.subr.mxu0 0.0
    %688 = vmatpush1.msra.mxu0 0.0
    %689 = vmatprep.subr.mxu0 0.0
    %690 = vmatpush1.msra.mxu0 0.0
    %691 = vmatprep.subr.mxu0 0.0
    %692 = vmatpush1.msra.mxu0 0.0
    %693 = vmatprep.subr.mxu0 0.0
    %694 = vmatpush1.msra.mxu0 0.0
    %695 = vmatprep.subr.mxu0 0.0
    %696 = vmatpush1.msra.mxu0 0.0
    %697 = vmatprep.subr.mxu0 0.0
    %698 = vmatpush1.msra.mxu0 0.0
    %699 = vmatprep.subr.mxu0 0.0
    %700 = vmatpush1.msra.mxu0 0.0
    %701 = vmatprep.subr.mxu0 0.0
    %702 = vmatpush1.msra.mxu0 0.0
    %703 = vmatprep.subr.mxu0 0.0
    %704 = vmatpush1.msra.mxu0 0.0
    %705 = vmatprep.subr.mxu0 0.0
    %706 = vmatpush1.msra.mxu0 0.0
    %707 = vmatprep.subr.mxu0 0.0
    %708 = vmatpush1.msra.mxu0 0.0
    %709 = vmatprep.subr.mxu0 0.0
    %710 = vmatpush1.msra.mxu0 0.0
    %711 = vmatprep.subr.mxu0 0.0
    %712 = vmatpush1.msra.mxu0 0.0
    %713 = vmatprep.subr.mxu0 0.0
    %714 = vmatpush1.msra.mxu0 0.0
    %715 = vmatprep.subr.mxu0 0.0
    %716 = vmatpush1.msra.mxu0 0.0
    %717 = vmatprep.subr.mxu0 0.0
    %718 = vmatpush1.msra.mxu0 0.0
    %719 = vmatprep.subr.mxu0 0.0
    %720 = vmatpush1.msra.mxu0 0.0
    %721 = vmatprep.subr.mxu0 0.0
    %722 = vmatpush1.msra.mxu0 0.0
    %723 = vmatprep.subr.mxu0 0.0
    %724 = vmatpush1.msra.mxu0 0.0
    %725 = vmatprep.subr.mxu0 0.0
    %726 = vmatpush1.msra.mxu0 0.0
    %727 = vmatprep.subr.mxu0 0.0
    %728 = vmatpush1.msra.mxu0 0.0
    %729 = vmatprep.subr.mxu0 0.0
    %730 = vmatpush1.msra.mxu0 0.0
    %731 = vmatprep.subr.mxu0 0.0
    %732 = vmatpush1.msra.mxu0 0.0
    %733 = vmatprep.mubr.f32.mxu0 0.0
    %734 = vmatmul.mubr.f32.gmra.mrb[0].mxu0 %v667
    %v735 = vpop.f32.mrb[0].mxu0
    %v736 = vadd.f32 0.0, %v735
    %v737 = vpop.f32.mrb[0].mxu0
    %738 = vdwg.mxu0
    %v739 = vadd.f32 %v666, %v736
    %v740 = vxor.u32 %v739, 2147483648
    %v741 = vmul.f32 %v740, 1.442695
    %v742 = vpow.pop %v741
    %v743 = vadd.f32 %v742, 1.0
    %v744 = vrcp.pop %v743
    %v745 = vmul.f32 1.0, %v744
    %v746 = vtanh.pop %v739
    %v747 = vmul.f32 %v745, %v541
    %749 = vrot.lane.b32.xlu0 %v746, 64
    %v750 = vpop.permute.xlu0 %749
    %v752 = vmul.f32 %v745, %v750
    %754 = vrot.lane.b32.xlu0 %v752, 32
    %v755 = vpop.permute.xlu0 %754
    %v757 = vadd.f32 %v747, %v755
    %v758 = vtanh.pop %v757
    %760 = vrot.lane.b32.xlu0 %v758, 64
    %v761 = vpop.permute.xlu0 %760
    %v763 = vmul.f32 %v745, %v761
    %765 = vrot.lane.b32.xlu0 %v763, 32
    %v766 = vpop.permute.xlu0 %765
    %s768 = scalar_lea.vmem [#allocation3], 16
    %769 = vst.msk [vmem:[%s768] sm:$0xff] %vm237, %v766
    %s770 = smul.u32 5, 2
    %s771 = smul.addr %s770, 8
    %s772 = scalar_lea.vmem [#allocation2], %s771
    %v773 = vld [vmem:[%s772 + $0x8] sm:$0xff]
    %774 = vrot.lane.b32.xlu0 %v656, 32
    %v775 = vpop.permute.xlu0 %774
    %v776 = vsel %vm237, %v775, 0
    %778 = vmatprep.subr.mxu0 0.0
    %779 = vmatpush1.msra.mxu0 %v229
    %780 = vmatprep.subr.mxu0 0.0
    %781 = vmatpush1.msra.mxu0 %v230
    %782 = vmatprep.subr.mxu0 0.0
    %783 = vmatpush1.msra.mxu0 %v231
    %784 = vmatprep.subr.mxu0 0.0
    %785 = vmatpush1.msra.mxu0 %v232
    %786 = vmatprep.subr.mxu0 0.0
    %787 = vmatpush1.msra.mxu0 0.0
    %788 = vmatprep.subr.mxu0 0.0
    %789 = vmatpush1.msra.mxu0 0.0
    %790 = vmatprep.subr.mxu0 0.0
    %791 = vmatpush1.msra.mxu0 0.0
    %792 = vmatprep.subr.mxu0 0.0
    %793 = vmatpush1.msra.mxu0 0.0
    %794 = vmatprep.subr.mxu0 0.0
    %795 = vmatpush1.msra.mxu0 0.0
    %796 = vmatprep.subr.mxu0 0.0
    %797 = vmatpush1.msra.mxu0 0.0
    %798 = vmatprep.subr.mxu0 0.0
    %799 = vmatpush1.msra.mxu0 0.0
    %800 = vmatprep.subr.mxu0 0.0
    %801 = vmatpush1.msra.mxu0 0.0
    %802 = vmatprep.subr.mxu0 0.0
    %803 = vmatpush1.msra.mxu0 0.0
    %804 = vmatprep.subr.mxu0 0.0
    %805 = vmatpush1.msra.mxu0 0.0
    %806 = vmatprep.subr.mxu0 0.0
    %807 = vmatpush1.msra.mxu0 0.0
    %808 = vmatprep.subr.mxu0 0.0
    %809 = vmatpush1.msra.mxu0 0.0
    %810 = vmatprep.subr.mxu0 0.0
    %811 = vmatpush1.msra.mxu0 0.0
    %812 = vmatprep.subr.mxu0 0.0
    %813 = vmatpush1.msra.mxu0 0.0
    %814 = vmatprep.subr.mxu0 0.0
    %815 = vmatpush1.msra.mxu0 0.0
    %816 = vmatprep.subr.mxu0 0.0
    %817 = vmatpush1.msra.mxu0 0.0
    %818 = vmatprep.subr.mxu0 0.0
    %819 = vmatpush1.msra.mxu0 0.0
    %820 = vmatprep.subr.mxu0 0.0
    %821 = vmatpush1.msra.mxu0 0.0
    %822 = vmatprep.subr.mxu0 0.0
    %823 = vmatpush1.msra.mxu0 0.0
    %824 = vmatprep.subr.mxu0 0.0
    %825 = vmatpush1.msra.mxu0 0.0
    %826 = vmatprep.subr.mxu0 0.0
    %827 = vmatpush1.msra.mxu0 0.0
    %828 = vmatprep.subr.mxu0 0.0
    %829 = vmatpush1.msra.mxu0 0.0
    %830 = vmatprep.subr.mxu0 0.0
    %831 = vmatpush1.msra.mxu0 0.0
    %832 = vmatprep.subr.mxu0 0.0
    %833 = vmatpush1.msra.mxu0 0.0
    %834 = vmatprep.subr.mxu0 0.0
    %835 = vmatpush1.msra.mxu0 0.0
    %836 = vmatprep.subr.mxu0 0.0
    %837 = vmatpush1.msra.mxu0 0.0
    %838 = vmatprep.subr.mxu0 0.0
    %839 = vmatpush1.msra.mxu0 0.0
    %840 = vmatprep.subr.mxu0 0.0
    %841 = vmatpush1.msra.mxu0 0.0
    %842 = vmatprep.mubr.f32.mxu0 0.0
    %843 = vmatmul.mubr.f32.gmra.mrb[0].mxu0 %v776
    %v844 = vpop.f32.mrb[0].mxu0
    %v845 = vadd.f32 0.0, %v844
    %v846 = vpop.f32.mrb[0].mxu0
    %847 = vdwg.mxu0
    %v848 = vadd.f32 %v773, %v845
    %v849 = vxor.u32 %v848, 2147483648
    %v850 = vmul.f32 %v849, 1.442695
    %v851 = vpow.pop %v850
    %v852 = vadd.f32 %v851, 1.0
    %v853 = vrcp.pop %v852
    %v854 = vmul.f32 1.0, %v853
    %v855 = vtanh.pop %v848
    %v856 = vmul.f32 %v854, %v650
    %858 = vrot.lane.b32.xlu0 %v855, 64
    %v859 = vpop.permute.xlu0 %858
    %v861 = vmul.f32 %v854, %v859
    %863 = vrot.lane.b32.xlu0 %v861, 32
    %v864 = vpop.permute.xlu0 %863
    %v866 = vadd.f32 %v856, %v864
    %v867 = vtanh.pop %v866
    %869 = vrot.lane.b32.xlu0 %v867, 64
    %v870 = vpop.permute.xlu0 %869
    %v872 = vmul.f32 %v854, %v870
    %874 = vrot.lane.b32.xlu0 %v872, 64
    %v875 = vpop.permute.xlu0 %874
    %s877 = scalar_lea.vmem [#allocation3], 40
    %878 = vst.msk [vmem:[%s877] sm:$0xff] %vm445, %v875
    %s879 = smul.u32 3, 2
    %s880 = smul.addr %s879, 8
    %s881 = scalar_lea.vmem [#allocation2], %s880
    %v882 = vld [vmem:[%s881] sm:$0xff]
    %v883 = vsel %vm237, %v766, 0
    %885 = vmatprep.subr.mxu0 0.0
    %886 = vmatpush1.msra.mxu0 %v225
    %887 = vmatprep.subr.mxu0 0.0
    %888 = vmatpush1.msra.mxu0 %v226
    %889 = vmatprep.subr.mxu0 0.0
    %890 = vmatpush1.msra.mxu0 %v227
    %891 = vmatprep.subr.mxu0 0.0
    %892 = vmatpush1.msra.mxu0 %v228
    %893 = vmatprep.subr.mxu0 0.0
    %894 = vmatpush1.msra.mxu0 0.0
    %895 = vmatprep.subr.mxu0 0.0
    %896 = vmatpush1.msra.mxu0 0.0
    %897 = vmatprep.subr.mxu0 0.0
    %898 = vmatpush1.msra.mxu0 0.0
    %899 = vmatprep.subr.mxu0 0.0
    %900 = vmatpush1.msra.mxu0 0.0
    %901 = vmatprep.subr.mxu0 0.0
    %902 = vmatpush1.msra.mxu0 0.0
    %903 = vmatprep.subr.mxu0 0.0
    %904 = vmatpush1.msra.mxu0 0.0
    %905 = vmatprep.subr.mxu0 0.0
    %906 = vmatpush1.msra.mxu0 0.0
    %907 = vmatprep.subr.mxu0 0.0
    %908 = vmatpush1.msra.mxu0 0.0
    %909 = vmatprep.subr.mxu0 0.0
    %910 = vmatpush1.msra.mxu0 0.0
    %911 = vmatprep.subr.mxu0 0.0
    %912 = vmatpush1.msra.mxu0 0.0
    %913 = vmatprep.subr.mxu0 0.0
    %914 = vmatpush1.msra.mxu0 0.0
    %915 = vmatprep.subr.mxu0 0.0
    %916 = vmatpush1.msra.mxu0 0.0
    %917 = vmatprep.subr.mxu0 0.0
    %918 = vmatpush1.msra.mxu0 0.0
    %919 = vmatprep.subr.mxu0 0.0
    %920 = vmatpush1.msra.mxu0 0.0
    %921 = vmatprep.subr.mxu0 0.0
    %922 = vmatpush1.msra.mxu0 0.0
    %923 = vmatprep.subr.mxu0 0.0
    %924 = vmatpush1.msra.mxu0 0.0
    %925 = vmatprep.subr.mxu0 0.0
    %926 = vmatpush1.msra.mxu0 0.0
    %927 = vmatprep.subr.mxu0 0.0
    %928 = vmatpush1.msra.mxu0 0.0
    %929 = vmatprep.subr.mxu0 0.0
    %930 = vmatpush1.msra.mxu0 0.0
    %931 = vmatprep.subr.mxu0 0.0
    %932 = vmatpush1.msra.mxu0 0.0
    %933 = vmatprep.subr.mxu0 0.0
    %934 = vmatpush1.msra.mxu0 0.0
    %935 = vmatprep.subr.mxu0 0.0
    %936 = vmatpush1.msra.mxu0 0.0
    %937 = vmatprep.subr.mxu0 0.0
    %938 = vmatpush1.msra.mxu0 0.0
    %939 = vmatprep.subr.mxu0 0.0
    %940 = vmatpush1.msra.mxu0 0.0
    %941 = vmatprep.subr.mxu0 0.0
    %942 = vmatpush1.msra.mxu0 0.0
    %943 = vmatprep.subr.mxu0 0.0
    %944 = vmatpush1.msra.mxu0 0.0
    %945 = vmatprep.subr.mxu0 0.0
    %946 = vmatpush1.msra.mxu0 0.0
    %947 = vmatprep.subr.mxu0 0.0
    %948 = vmatpush1.msra.mxu0 0.0
    %949 = vmatprep.mubr.f32.mxu0 0.0
    %950 = vmatmul.mubr.f32.gmra.mrb[0].mxu0 %v883
    %v951 = vpop.f32.mrb[0].mxu0
    %v952 = vadd.f32 0.0, %v951
    %v953 = vpop.f32.mrb[0].mxu0
    %954 = vdwg.mxu0
    %v955 = vadd.f32 %v882, %v952
    %v956 = vxor.u32 %v955, 2147483648
    %v957 = vmul.f32 %v956, 1.442695
    %v958 = vpow.pop %v957
    %v959 = vadd.f32 %v958, 1.0
    %v960 = vrcp.pop %v959
    %v961 = vmul.f32 1.0, %v960
    %v962 = vtanh.pop %v955
    %v963 = vmul.f32 %v961, %v757
    %965 = vrot.lane.b32.xlu0 %v962, 64
    %v966 = vpop.permute.xlu0 %965
    %v968 = vmul.f32 %v961, %v966
    %970 = vrot.lane.b32.xlu0 %v968, 32
    %v971 = vpop.permute.xlu0 %970
    %v973 = vadd.f32 %v963, %v971
    %v974 = vtanh.pop %v973
    %976 = vrot.lane.b32.xlu0 %v974, 64
    %v977 = vpop.permute.xlu0 %976
    %v979 = vmul.f32 %v961, %v977
    %981 = vrot.lane.b32.xlu0 %v979, 32
    %v982 = vpop.permute.xlu0 %981
    %s984 = scalar_lea.vmem [#allocation3], 24
    %985 = vst.msk [vmem:[%s984] sm:$0xff] %vm237, %v982
    %s986 = smul.u32 4, 2
    %s987 = smul.addr %s986, 8
    %s988 = scalar_lea.vmem [#allocation2], %s987
    %v989 = vld [vmem:[%s988 + $0x8] sm:$0xff]
    %990 = vrot.lane.b32.xlu0 %v872, 32
    %v991 = vpop.permute.xlu0 %990
    %v992 = vsel %vm237, %v991, 0
    %994 = vmatprep.subr.mxu0 0.0
    %995 = vmatpush1.msra.mxu0 %v229
    %996 = vmatprep.subr.mxu0 0.0
    %997 = vmatpush1.msra.mxu0 %v230
    %998 = vmatprep.subr.mxu0 0.0
    %999 = vmatpush1.msra.mxu0 %v231
    %1000 = vmatprep.subr.mxu0 0.0
    %1001 = vmatpush1.msra.mxu0 %v232
    %1002 = vmatprep.subr.mxu0 0.0
    %1003 = vmatpush1.msra.mxu0 0.0
    %1004 = vmatprep.subr.mxu0 0.0
    %1005 = vmatpush1.msra.mxu0 0.0
    %1006 = vmatprep.subr.mxu0 0.0
    %1007 = vmatpush1.msra.mxu0 0.0
    %1008 = vmatprep.subr.mxu0 0.0
    %1009 = vmatpush1.msra.mxu0 0.0
    %1010 = vmatprep.subr.mxu0 0.0
    %1011 = vmatpush1.msra.mxu0 0.0
    %1012 = vmatprep.subr.mxu0 0.0
    %1013 = vmatpush1.msra.mxu0 0.0
    %1014 = vmatprep.subr.mxu0 0.0
    %1015 = vmatpush1.msra.mxu0 0.0
    %1016 = vmatprep.subr.mxu0 0.0
    %1017 = vmatpush1.msra.mxu0 0.0
    %1018 = vmatprep.subr.mxu0 0.0
    %1019 = vmatpush1.msra.mxu0 0.0
    %1020 = vmatprep.subr.mxu0 0.0
    %1021 = vmatpush1.msra.mxu0 0.0
    %1022 = vmatprep.subr.mxu0 0.0
    %1023 = vmatpush1.msra.mxu0 0.0
    %1024 = vmatprep.subr.mxu0 0.0
    %1025 = vmatpush1.msra.mxu0 0.0
    %1026 = vmatprep.subr.mxu0 0.0
    %1027 = vmatpush1.msra.mxu0 0.0
    %1028 = vmatprep.subr.mxu0 0.0
    %1029 = vmatpush1.msra.mxu0 0.0
    %1030 = vmatprep.subr.mxu0 0.0
    %1031 = vmatpush1.msra.mxu0 0.0
    %1032 = vmatprep.subr.mxu0 0.0
    %1033 = vmatpush1.msra.mxu0 0.0
    %1034 = vmatprep.subr.mxu0 0.0
    %1035 = vmatpush1.msra.mxu0 0.0
    %1036 = vmatprep.subr.mxu0 0.0
    %1037 = vmatpush1.msra.mxu0 0.0
    %1038 = vmatprep.subr.mxu0 0.0
    %1039 = vmatpush1.msra.mxu0 0.0
    %1040 = vmatprep.subr.mxu0 0.0
    %1041 = vmatpush1.msra.mxu0 0.0
    %1042 = vmatprep.subr.mxu0 0.0
    %1043 = vmatpush1.msra.mxu0 0.0
    %1044 = vmatprep.subr.mxu0 0.0
    %1045 = vmatpush1.msra.mxu0 0.0
    %1046 = vmatprep.subr.mxu0 0.0
    %1047 = vmatpush1.msra.mxu0 0.0
    %1048 = vmatprep.subr.mxu0 0.0
    %1049 = vmatpush1.msra.mxu0 0.0
    %1050 = vmatprep.subr.mxu0 0.0
    %1051 = vmatpush1.msra.mxu0 0.0
    %1052 = vmatprep.subr.mxu0 0.0
    %1053 = vmatpush1.msra.mxu0 0.0
    %1054 = vmatprep.subr.mxu0 0.0
    %1055 = vmatpush1.msra.mxu0 0.0
    %1056 = vmatprep.subr.mxu0 0.0
    %1057 = vmatpush1.msra.mxu0 0.0
    %1058 = vmatprep.mubr.f32.mxu0 0.0
    %1059 = vmatmul.mubr.f32.gmra.mrb[0].mxu0 %v992
    %v1060 = vpop.f32.mrb[0].mxu0
    %v1061 = vadd.f32 0.0, %v1060
    %v1062 = vpop.f32.mrb[0].mxu0
    %1063 = vdwg.mxu0
    %v1064 = vadd.f32 %v989, %v1061
    %v1065 = vxor.u32 %v1064, 2147483648
    %v1066 = vmul.f32 %v1065, 1.442695
    %v1067 = vpow.pop %v1066
    %v1068 = vadd.f32 %v1067, 1.0
    %v1069 = vrcp.pop %v1068
    %v1070 = vmul.f32 1.0, %v1069
    %v1071 = vtanh.pop %v1064
    %v1072 = vmul.f32 %v1070, %v866
    %1074 = vrot.lane.b32.xlu0 %v1071, 64
    %v1075 = vpop.permute.xlu0 %1074
    %v1077 = vmul.f32 %v1070, %v1075
    %1079 = vrot.lane.b32.xlu0 %v1077, 32
    %v1080 = vpop.permute.xlu0 %1079
    %v1082 = vadd.f32 %v1072, %v1080
    %v1083 = vtanh.pop %v1082
    %1085 = vrot.lane.b32.xlu0 %v1083, 64
    %v1086 = vpop.permute.xlu0 %1085
    %v1088 = vmul.f32 %v1070, %v1086
    %1090 = vrot.lane.b32.xlu0 %v1088, 64
    %v1091 = vpop.permute.xlu0 %1090
    %s1093 = scalar_lea.vmem [#allocation3], 32
    %1094 = vst.msk [vmem:[%s1093] sm:$0xff] %vm445, %v1091
    %v1095 = vld [vmem:[%s988] sm:$0xff]
    %v1096 = vsel %vm237, %v982, 0
    %1098 = vmatprep.subr.mxu0 0.0
    %1099 = vmatpush1.msra.mxu0 %v225
    %1100 = vmatprep.subr.mxu0 0.0
    %1101 = vmatpush1.msra.mxu0 %v226
    %1102 = vmatprep.subr.mxu0 0.0
    %1103 = vmatpush1.msra.mxu0 %v227
    %1104 = vmatprep.subr.mxu0 0.0
    %1105 = vmatpush1.msra.mxu0 %v228
    %1106 = vmatprep.subr.mxu0 0.0
    %1107 = vmatpush1.msra.mxu0 0.0
    %1108 = vmatprep.subr.mxu0 0.0
    %1109 = vmatpush1.msra.mxu0 0.0
    %1110 = vmatprep.subr.mxu0 0.0
    %1111 = vmatpush1.msra.mxu0 0.0
    %1112 = vmatprep.subr.mxu0 0.0
    %1113 = vmatpush1.msra.mxu0 0.0
    %1114 = vmatprep.subr.mxu0 0.0
    %1115 = vmatpush1.msra.mxu0 0.0
    %1116 = vmatprep.subr.mxu0 0.0
    %1117 = vmatpush1.msra.mxu0 0.0
    %1118 = vmatprep.subr.mxu0 0.0
    %1119 = vmatpush1.msra.mxu0 0.0
    %1120 = vmatprep.subr.mxu0 0.0
    %1121 = vmatpush1.msra.mxu0 0.0
    %1122 = vmatprep.subr.mxu0 0.0
    %1123 = vmatpush1.msra.mxu0 0.0
    %1124 = vmatprep.subr.mxu0 0.0
    %1125 = vmatpush1.msra.mxu0 0.0
    %1126 = vmatprep.subr.mxu0 0.0
    %1127 = vmatpush1.msra.mxu0 0.0
    %1128 = vmatprep.subr.mxu0 0.0
    %1129 = vmatpush1.msra.mxu0 0.0
    %1130 = vmatprep.subr.mxu0 0.0
    %1131 = vmatpush1.msra.mxu0 0.0
    %1132 = vmatprep.subr.mxu0 0.0
    %1133 = vmatpush1.msra.mxu0 0.0
    %1134 = vmatprep.subr.mxu0 0.0
    %1135 = vmatpush1.msra.mxu0 0.0
    %1136 = vmatprep.subr.mxu0 0.0
    %1137 = vmatpush1.msra.mxu0 0.0
    %1138 = vmatprep.subr.mxu0 0.0
    %1139 = vmatpush1.msra.mxu0 0.0
    %1140 = vmatprep.subr.mxu0 0.0
    %1141 = vmatpush1.msra.mxu0 0.0
    %1142 = vmatprep.subr.mxu0 0.0
    %1143 = vmatpush1.msra.mxu0 0.0
    %1144 = vmatprep.subr.mxu0 0.0
    %1145 = vmatpush1.msra.mxu0 0.0
    %1146 = vmatprep.subr.mxu0 0.0
    %1147 = vmatpush1.msra.mxu0 0.0
    %1148 = vmatprep.subr.mxu0 0.0
    %1149 = vmatpush1.msra.mxu0 0.0
    %1150 = vmatprep.subr.mxu0 0.0
    %1151 = vmatpush1.msra.mxu0 0.0
    %1152 = vmatprep.subr.mxu0 0.0
    %1153 = vmatpush1.msra.mxu0 0.0
    %1154 = vmatprep.subr.mxu0 0.0
    %1155 = vmatpush1.msra.mxu0 0.0
    %1156 = vmatprep.subr.mxu0 0.0
    %1157 = vmatpush1.msra.mxu0 0.0
    %1158 = vmatprep.subr.mxu0 0.0
    %1159 = vmatpush1.msra.mxu0 0.0
    %1160 = vmatprep.subr.mxu0 0.0
    %1161 = vmatpush1.msra.mxu0 0.0
    %1162 = vmatprep.mubr.f32.mxu0 0.0
    %1163 = vmatmul.mubr.f32.gmra.mrb[0].mxu0 %v1096
    %v1164 = vpop.f32.mrb[0].mxu0
    %v1165 = vadd.f32 0.0, %v1164
    %v1166 = vpop.f32.mrb[0].mxu0
    %1167 = vdwg.mxu0
    %v1168 = vadd.f32 %v1095, %v1165
    %v1169 = vxor.u32 %v1168, 2147483648
    %v1170 = vmul.f32 %v1169, 1.442695
    %v1171 = vpow.pop %v1170
    %v1172 = vadd.f32 %v1171, 1.0
    %v1173 = vrcp.pop %v1172
    %v1174 = vmul.f32 1.0, %v1173
    %v1175 = vtanh.pop %v1168
    %v1176 = vmul.f32 %v1174, %v973
    %1178 = vrot.lane.b32.xlu0 %v1175, 64
    %v1179 = vpop.permute.xlu0 %1178
    %v1181 = vmul.f32 %v1174, %v1179
    %1183 = vrot.lane.b32.xlu0 %v1181, 32
    %v1184 = vpop.permute.xlu0 %1183
    %v1186 = vadd.f32 %v1176, %v1184
    %v1187 = vtanh.pop %v1186
    %1189 = vrot.lane.b32.xlu0 %v1187, 64
    %v1190 = vpop.permute.xlu0 %1189
    %v1192 = vmul.f32 %v1174, %v1190
    %1194 = vrot.lane.b32.xlu0 %v1192, 32
    %v1195 = vpop.permute.xlu0 %1194
    %1197 = vst.msk [vmem:[%s1093] sm:$0xff] %vm237, %v1195
    %v1198 = vld [vmem:[%s881 + $0x8] sm:$0xff]
    %1199 = vrot.lane.b32.xlu0 %v1088, 32
    %v1200 = vpop.permute.xlu0 %1199
    %v1201 = vsel %vm237, %v1200, 0
    %1203 = vmatprep.subr.mxu0 0.0
    %1204 = vmatpush1.msra.mxu0 %v229
    %1205 = vmatprep.subr.mxu0 0.0
    %1206 = vmatpush1.msra.mxu0 %v230
    %1207 = vmatprep.subr.mxu0 0.0
    %1208 = vmatpush1.msra.mxu0 %v231
    %1209 = vmatprep.subr.mxu0 0.0
    %1210 = vmatpush1.msra.mxu0 %v232
    %1211 = vmatprep.subr.mxu0 0.0
    %1212 = vmatpush1.msra.mxu0 0.0
    %1213 = vmatprep.subr.mxu0 0.0
    %1214 = vmatpush1.msra.mxu0 0.0
    %1215 = vmatprep.subr.mxu0 0.0
    %1216 = vmatpush1.msra.mxu0 0.0
    %1217 = vmatprep.subr.mxu0 0.0
    %1218 = vmatpush1.msra.mxu0 0.0
    %1219 = vmatprep.subr.mxu0 0.0
    %1220 = vmatpush1.msra.mxu0 0.0
    %1221 = vmatprep.subr.mxu0 0.0
    %1222 = vmatpush1.msra.mxu0 0.0
    %1223 = vmatprep.subr.mxu0 0.0
    %1224 = vmatpush1.msra.mxu0 0.0
    %1225 = vmatprep.subr.mxu0 0.0
    %1226 = vmatpush1.msra.mxu0 0.0
    %1227 = vmatprep.subr.mxu0 0.0
    %1228 = vmatpush1.msra.mxu0 0.0
    %1229 = vmatprep.subr.mxu0 0.0
    %1230 = vmatpush1.msra.mxu0 0.0
    %1231 = vmatprep.subr.mxu0 0.0
    %1232 = vmatpush1.msra.mxu0 0.0
    %1233 = vmatprep.subr.mxu0 0.0
    %1234 = vmatpush1.msra.mxu0 0.0
    %1235 = vmatprep.subr.mxu0 0.0
    %1236 = vmatpush1.msra.mxu0 0.0
    %1237 = vmatprep.subr.mxu0 0.0
    %1238 = vmatpush1.msra.mxu0 0.0
    %1239 = vmatprep.subr.mxu0 0.0
    %1240 = vmatpush1.msra.mxu0 0.0
    %1241 = vmatprep.subr.mxu0 0.0
    %1242 = vmatpush1.msra.mxu0 0.0
    %1243 = vmatprep.subr.mxu0 0.0
    %1244 = vmatpush1.msra.mxu0 0.0
    %1245 = vmatprep.subr.mxu0 0.0
    %1246 = vmatpush1.msra.mxu0 0.0
    %1247 = vmatprep.subr.mxu0 0.0
    %1248 = vmatpush1.msra.mxu0 0.0
    %1249 = vmatprep.subr.mxu0 0.0
    %1250 = vmatpush1.msra.mxu0 0.0
    %1251 = vmatprep.subr.mxu0 0.0
    %1252 = vmatpush1.msra.mxu0 0.0
    %1253 = vmatprep.subr.mxu0 0.0
    %1254 = vmatpush1.msra.mxu0 0.0
    %1255 = vmatprep.subr.mxu0 0.0
    %1256 = vmatpush1.msra.mxu0 0.0
    %1257 = vmatprep.subr.mxu0 0.0
    %1258 = vmatpush1.msra.mxu0 0.0
    %1259 = vmatprep.subr.mxu0 0.0
    %1260 = vmatpush1.msra.mxu0 0.0
    %1261 = vmatprep.subr.mxu0 0.0
    %1262 = vmatpush1.msra.mxu0 0.0
    %1263 = vmatprep.subr.mxu0 0.0
    %1264 = vmatpush1.msra.mxu0 0.0
    %1265 = vmatprep.subr.mxu0 0.0
    %1266 = vmatpush1.msra.mxu0 0.0
    %1267 = vmatprep.mubr.f32.mxu0 0.0
    %1268 = vmatmul.mubr.f32.gmra.mrb[0].mxu0 %v1201
    %v1269 = vpop.f32.mrb[0].mxu0
    %v1270 = vadd.f32 0.0, %v1269
    %v1271 = vpop.f32.mrb[0].mxu0
    %1272 = vdwg.mxu0
    %v1273 = vadd.f32 %v1198, %v1270
    %v1274 = vxor.u32 %v1273, 2147483648
    %v1275 = vmul.f32 %v1274, 1.442695
    %v1276 = vpow.pop %v1275
    %v1277 = vadd.f32 %v1276, 1.0
    %v1278 = vrcp.pop %v1277
    %v1279 = vmul.f32 1.0, %v1278
    %v1280 = vtanh.pop %v1273
    %v1281 = vmul.f32 %v1279, %v1082
    %1283 = vrot.lane.b32.xlu0 %v1280, 64
    %v1284 = vpop.permute.xlu0 %1283
    %v1286 = vmul.f32 %v1279, %v1284
    %1288 = vrot.lane.b32.xlu0 %v1286, 32
    %v1289 = vpop.permute.xlu0 %1288
    %v1291 = vadd.f32 %v1281, %v1289
    %v1292 = vtanh.pop %v1291
    %1294 = vrot.lane.b32.xlu0 %v1292, 64
    %v1295 = vpop.permute.xlu0 %1294
    %v1297 = vmul.f32 %v1279, %v1295
    %1299 = vrot.lane.b32.xlu0 %v1297, 64
    %v1300 = vpop.permute.xlu0 %1299
    %1302 = vst.msk [vmem:[%s984] sm:$0xff] %vm445, %v1300
    %v1303 = vld [vmem:[%s772] sm:$0xff]
    %v1304 = vsel %vm237, %v1195, 0
    %1306 = vmatprep.subr.mxu0 0.0
    %1307 = vmatpush1.msra.mxu0 %v225
    %1308 = vmatprep.subr.mxu0 0.0
    %1309 = vmatpush1.msra.mxu0 %v226
    %1310 = vmatprep.subr.mxu0 0.0
    %1311 = vmatpush1.msra.mxu0 %v227
    %1312 = vmatprep.subr.mxu0 0.0
    %1313 = vmatpush1.msra.mxu0 %v228
    %1314 = vmatprep.subr.mxu0 0.0
    %1315 = vmatpush1.msra.mxu0 0.0
    %1316 = vmatprep.subr.mxu0 0.0
    %1317 = vmatpush1.msra.mxu0 0.0
    %1318 = vmatprep.subr.mxu0 0.0
    %1319 = vmatpush1.msra.mxu0 0.0
    %1320 = vmatprep.subr.mxu0 0.0
    %1321 = vmatpush1.msra.mxu0 0.0
    %1322 = vmatprep.subr.mxu0 0.0
    %1323 = vmatpush1.msra.mxu0 0.0
    %1324 = vmatprep.subr.mxu0 0.0
    %1325 = vmatpush1.msra.mxu0 0.0
    %1326 = vmatprep.subr.mxu0 0.0
    %1327 = vmatpush1.msra.mxu0 0.0
    %1328 = vmatprep.subr.mxu0 0.0
    %1329 = vmatpush1.msra.mxu0 0.0
    %1330 = vmatprep.subr.mxu0 0.0
    %1331 = vmatpush1.msra.mxu0 0.0
    %1332 = vmatprep.subr.mxu0 0.0
    %1333 = vmatpush1.msra.mxu0 0.0
    %1334 = vmatprep.subr.mxu0 0.0
    %1335 = vmatpush1.msra.mxu0 0.0
    %1336 = vmatprep.subr.mxu0 0.0
    %1337 = vmatpush1.msra.mxu0 0.0
    %1338 = vmatprep.subr.mxu0 0.0
    %1339 = vmatpush1.msra.mxu0 0.0
    %1340 = vmatprep.subr.mxu0 0.0
    %1341 = vmatpush1.msra.mxu0 0.0
    %1342 = vmatprep.subr.mxu0 0.0
    %1343 = vmatpush1.msra.mxu0 0.0
    %1344 = vmatprep.subr.mxu0 0.0
    %1345 = vmatpush1.msra.mxu0 0.0
    %1346 = vmatprep.subr.mxu0 0.0
    %1347 = vmatpush1.msra.mxu0 0.0
    %1348 = vmatprep.subr.mxu0 0.0
    %1349 = vmatpush1.msra.mxu0 0.0
    %1350 = vmatprep.subr.mxu0 0.0
    %1351 = vmatpush1.msra.mxu0 0.0
    %1352 = vmatprep.subr.mxu0 0.0
    %1353 = vmatpush1.msra.mxu0 0.0
    %1354 = vmatprep.subr.mxu0 0.0
    %1355 = vmatpush1.msra.mxu0 0.0
    %1356 = vmatprep.subr.mxu0 0.0
    %1357 = vmatpush1.msra.mxu0 0.0
    %1358 = vmatprep.subr.mxu0 0.0
    %1359 = vmatpush1.msra.mxu0 0.0
    %1360 = vmatprep.subr.mxu0 0.0
    %1361 = vmatpush1.msra.mxu0 0.0
    %1362 = vmatprep.subr.mxu0 0.0
    %1363 = vmatpush1.msra.mxu0 0.0
    %1364 = vmatprep.subr.mxu0 0.0
    %1365 = vmatpush1.msra.mxu0 0.0
    %1366 = vmatprep.subr.mxu0 0.0
    %1367 = vmatpush1.msra.mxu0 0.0
    %1368 = vmatprep.subr.mxu0 0.0
    %1369 = vmatpush1.msra.mxu0 0.0
    %1370 = vmatprep.mubr.f32.mxu0 0.0
    %1371 = vmatmul.mubr.f32.gmra.mrb[0].mxu0 %v1304
    %v1372 = vpop.f32.mrb[0].mxu0
    %v1373 = vadd.f32 0.0, %v1372
    %v1374 = vpop.f32.mrb[0].mxu0
    %1375 = vdwg.mxu0
    %v1376 = vadd.f32 %v1303, %v1373
    %v1377 = vxor.u32 %v1376, 2147483648
    %v1378 = vmul.f32 %v1377, 1.442695
    %v1379 = vpow.pop %v1378
    %v1380 = vadd.f32 %v1379, 1.0
    %v1381 = vrcp.pop %v1380
    %v1382 = vmul.f32 1.0, %v1381
    %v1383 = vtanh.pop %v1376
    %v1384 = vmul.f32 %v1382, %v1186
    %1386 = vrot.lane.b32.xlu0 %v1383, 64
    %v1387 = vpop.permute.xlu0 %1386
    %v1389 = vmul.f32 %v1382, %v1387
    %1391 = vrot.lane.b32.xlu0 %v1389, 32
    %v1392 = vpop.permute.xlu0 %1391
    %v1394 = vadd.f32 %v1384, %v1392
    %v1395 = vtanh.pop %v1394
    %1397 = vrot.lane.b32.xlu0 %v1395, 64
    %v1398 = vpop.permute.xlu0 %1397
    %v1400 = vmul.f32 %v1382, %v1398
    %1402 = vrot.lane.b32.xlu0 %v1400, 32
    %v1403 = vpop.permute.xlu0 %1402
    %1405 = vst.msk [vmem:[%s877] sm:$0xff] %vm237, %v1403
    %v1406 = vld [vmem:[%s665 + $0x8] sm:$0xff]
    %1407 = vrot.lane.b32.xlu0 %v1297, 32
    %v1408 = vpop.permute.xlu0 %1407
    %v1409 = vsel %vm237, %v1408, 0
    %1411 = vmatprep.subr.mxu0 0.0
    %1412 = vmatpush1.msra.mxu0 %v229
    %1413 = vmatprep.subr.mxu0 0.0
    %1414 = vmatpush1.msra.mxu0 %v230
    %1415 = vmatprep.subr.mxu0 0.0
    %1416 = vmatpush1.msra.mxu0 %v231
    %1417 = vmatprep.subr.mxu0 0.0
    %1418 = vmatpush1.msra.mxu0 %v232
    %1419 = vmatprep.subr.mxu0 0.0
    %1420 = vmatpush1.msra.mxu0 0.0
    %1421 = vmatprep.subr.mxu0 0.0
    %1422 = vmatpush1.msra.mxu0 0.0
    %1423 = vmatprep.subr.mxu0 0.0
    %1424 = vmatpush1.msra.mxu0 0.0
    %1425 = vmatprep.subr.mxu0 0.0
    %1426 = vmatpush1.msra.mxu0 0.0
    %1427 = vmatprep.subr.mxu0 0.0
    %1428 = vmatpush1.msra.mxu0 0.0
    %1429 = vmatprep.subr.mxu0 0.0
    %1430 = vmatpush1.msra.mxu0 0.0
    %1431 = vmatprep.subr.mxu0 0.0
    %1432 = vmatpush1.msra.mxu0 0.0
    %1433 = vmatprep.subr.mxu0 0.0
    %1434 = vmatpush1.msra.mxu0 0.0
    %1435 = vmatprep.subr.mxu0 0.0
    %1436 = vmatpush1.msra.mxu0 0.0
    %1437 = vmatprep.subr.mxu0 0.0
    %1438 = vmatpush1.msra.mxu0 0.0
    %1439 = vmatprep.subr.mxu0 0.0
    %1440 = vmatpush1.msra.mxu0 0.0
    %1441 = vmatprep.subr.mxu0 0.0
    %1442 = vmatpush1.msra.mxu0 0.0
    %1443 = vmatprep.subr.mxu0 0.0
    %1444 = vmatpush1.msra.mxu0 0.0
    %1445 = vmatprep.subr.mxu0 0.0
    %1446 = vmatpush1.msra.mxu0 0.0
    %1447 = vmatprep.subr.mxu0 0.0
    %1448 = vmatpush1.msra.mxu0 0.0
    %1449 = vmatprep.subr.mxu0 0.0
    %1450 = vmatpush1.msra.mxu0 0.0
    %1451 = vmatprep.subr.mxu0 0.0
    %1452 = vmatpush1.msra.mxu0 0.0
    %1453 = vmatprep.subr.mxu0 0.0
    %1454 = vmatpush1.msra.mxu0 0.0
    %1455 = vmatprep.subr.mxu0 0.0
    %1456 = vmatpush1.msra.mxu0 0.0
    %1457 = vmatprep.subr.mxu0 0.0
    %1458 = vmatpush1.msra.mxu0 0.0
    %1459 = vmatprep.subr.mxu0 0.0
    %1460 = vmatpush1.msra.mxu0 0.0
    %1461 = vmatprep.subr.mxu0 0.0
    %1462 = vmatpush1.msra.mxu0 0.0
    %1463 = vmatprep.subr.mxu0 0.0
    %1464 = vmatpush1.msra.mxu0 0.0
    %1465 = vmatprep.subr.mxu0 0.0
    %1466 = vmatpush1.msra.mxu0 0.0
    %1467 = vmatprep.subr.mxu0 0.0
    %1468 = vmatpush1.msra.mxu0 0.0
    %1469 = vmatprep.subr.mxu0 0.0
    %1470 = vmatpush1.msra.mxu0 0.0
    %1471 = vmatprep.subr.mxu0 0.0
    %1472 = vmatpush1.msra.mxu0 0.0
    %1473 = vmatprep.subr.mxu0 0.0
    %1474 = vmatpush1.msra.mxu0 0.0
    %1475 = vmatprep.mubr.f32.mxu0 0.0
    %1476 = vmatmul.mubr.f32.gmra.mrb[0].mxu0 %v1409
    %v1477 = vpop.f32.mrb[0].mxu0
    %v1478 = vadd.f32 0.0, %v1477
    %v1479 = vpop.f32.mrb[0].mxu0
    %1480 = vdwg.mxu0
    %v1481 = vadd.f32 %v1406, %v1478
    %v1482 = vxor.u32 %v1481, 2147483648
    %v1483 = vmul.f32 %v1482, 1.442695
    %v1484 = vpow.pop %v1483
    %v1485 = vadd.f32 %v1484, 1.0
    %v1486 = vrcp.pop %v1485
    %v1487 = vmul.f32 1.0, %v1486
    %v1488 = vtanh.pop %v1481
    %v1489 = vmul.f32 %v1487, %v1291
    %1491 = vrot.lane.b32.xlu0 %v1488, 64
    %v1492 = vpop.permute.xlu0 %1491
    %v1494 = vmul.f32 %v1487, %v1492
    %1496 = vrot.lane.b32.xlu0 %v1494, 32
    %v1497 = vpop.permute.xlu0 %1496
    %v1499 = vadd.f32 %v1489, %v1497
    %v1500 = vtanh.pop %v1499
    %1502 = vrot.lane.b32.xlu0 %v1500, 64
    %v1503 = vpop.permute.xlu0 %1502
    %v1505 = vmul.f32 %v1487, %v1503
    %1507 = vrot.lane.b32.xlu0 %v1505, 64
    %v1508 = vpop.permute.xlu0 %1507
    %1510 = vst.msk [vmem:[%s768] sm:$0xff] %vm445, %v1508
    %v1511 = vld [vmem:[%s556] sm:$0xff]
    %v1512 = vsel %vm237, %v1403, 0
    %1514 = vmatprep.subr.mxu0 0.0
    %1515 = vmatpush1.msra.mxu0 %v225
    %1516 = vmatprep.subr.mxu0 0.0
    %1517 = vmatpush1.msra.mxu0 %v226
    %1518 = vmatprep.subr.mxu0 0.0
    %1519 = vmatpush1.msra.mxu0 %v227
    %1520 = vmatprep.subr.mxu0 0.0
    %1521 = vmatpush1.msra.mxu0 %v228
    %1522 = vmatprep.subr.mxu0 0.0
    %1523 = vmatpush1.msra.mxu0 0.0
    %1524 = vmatprep.subr.mxu0 0.0
    %1525 = vmatpush1.msra.mxu0 0.0
    %1526 = vmatprep.subr.mxu0 0.0
    %1527 = vmatpush1.msra.mxu0 0.0
    %1528 = vmatprep.subr.mxu0 0.0
    %1529 = vmatpush1.msra.mxu0 0.0
    %1530 = vmatprep.subr.mxu0 0.0
    %1531 = vmatpush1.msra.mxu0 0.0
    %1532 = vmatprep.subr.mxu0 0.0
    %1533 = vmatpush1.msra.mxu0 0.0
    %1534 = vmatprep.subr.mxu0 0.0
    %1535 = vmatpush1.msra.mxu0 0.0
    %1536 = vmatprep.subr.mxu0 0.0
    %1537 = vmatpush1.msra.mxu0 0.0
    %1538 = vmatprep.subr.mxu0 0.0
    %1539 = vmatpush1.msra.mxu0 0.0
    %1540 = vmatprep.subr.mxu0 0.0
    %1541 = vmatpush1.msra.mxu0 0.0
    %1542 = vmatprep.subr.mxu0 0.0
    %1543 = vmatpush1.msra.mxu0 0.0
    %1544 = vmatprep.subr.mxu0 0.0
    %1545 = vmatpush1.msra.mxu0 0.0
    %1546 = vmatprep.subr.mxu0 0.0
    %1547 = vmatpush1.msra.mxu0 0.0
    %1548 = vmatprep.subr.mxu0 0.0
    %1549 = vmatpush1.msra.mxu0 0.0
    %1550 = vmatprep.subr.mxu0 0.0
    %1551 = vmatpush1.msra.mxu0 0.0
    %1552 = vmatprep.subr.mxu0 0.0
    %1553 = vmatpush1.msra.mxu0 0.0
    %1554 = vmatprep.subr.mxu0 0.0
    %1555 = vmatpush1.msra.mxu0 0.0
    %1556 = vmatprep.subr.mxu0 0.0
    %1557 = vmatpush1.msra.mxu0 0.0
    %1558 = vmatprep.subr.mxu0 0.0
    %1559 = vmatpush1.msra.mxu0 0.0
    %1560 = vmatprep.subr.mxu0 0.0
    %1561 = vmatpush1.msra.mxu0 0.0
    %1562 = vmatprep.subr.mxu0 0.0
    %1563 = vmatpush1.msra.mxu0 0.0
    %1564 = vmatprep.subr.mxu0 0.0
    %1565 = vmatpush1.msra.mxu0 0.0
    %1566 = vmatprep.subr.mxu0 0.0
    %1567 = vmatpush1.msra.mxu0 0.0
    %1568 = vmatprep.subr.mxu0 0.0
    %1569 = vmatpush1.msra.mxu0 0.0
    %1570 = vmatprep.subr.mxu0 0.0
    %1571 = vmatpush1.msra.mxu0 0.0
    %1572 = vmatprep.subr.mxu0 0.0
    %1573 = vmatpush1.msra.mxu0 0.0
    %1574 = vmatprep.subr.mxu0 0.0
    %1575 = vmatpush1.msra.mxu0 0.0
    %1576 = vmatprep.subr.mxu0 0.0
    %1577 = vmatpush1.msra.mxu0 0.0
    %1578 = vmatprep.mubr.f32.mxu0 0.0
    %1579 = vmatmul.mubr.f32.gmra.mrb[0].mxu0 %v1512
    %v1580 = vpop.f32.mrb[0].mxu0
    %v1581 = vadd.f32 0.0, %v1580
    %v1582 = vpop.f32.mrb[0].mxu0
    %1583 = vdwg.mxu0
    %v1584 = vadd.f32 %v1511, %v1581
    %v1585 = vxor.u32 %v1584, 2147483648
    %v1586 = vmul.f32 %v1585, 1.442695
    %v1587 = vpow.pop %v1586
    %v1588 = vadd.f32 %v1587, 1.0
    %v1589 = vrcp.pop %v1588
    %v1590 = vmul.f32 1.0, %v1589
    %v1591 = vtanh.pop %v1584
    %v1592 = vmul.f32 %v1590, %v1394
    %1594 = vrot.lane.b32.xlu0 %v1591, 64
    %v1595 = vpop.permute.xlu0 %1594
    %v1597 = vmul.f32 %v1590, %v1595
    %1599 = vrot.lane.b32.xlu0 %v1597, 32
    %v1600 = vpop.permute.xlu0 %1599
    %v1602 = vadd.f32 %v1592, %v1600
    %v1603 = vtanh.pop %v1602
    %1605 = vrot.lane.b32.xlu0 %v1603, 64
    %v1606 = vpop.permute.xlu0 %1605
    %v1608 = vmul.f32 %v1590, %v1606
    %1610 = vrot.lane.b32.xlu0 %v1608, 32
    %v1611 = vpop.permute.xlu0 %1610
    %1613 = vst.msk [vmem:[%s661] sm:$0xff] %vm237, %v1611
    %v1614 = vld [vmem:[%s449 + $0x8] sm:$0xff]
    %1615 = vrot.lane.b32.xlu0 %v1505, 32
    %v1616 = vpop.permute.xlu0 %1615
    %v1617 = vsel %vm237, %v1616, 0
    %1619 = vmatprep.subr.mxu0 0.0
    %1620 = vmatpush1.msra.mxu0 %v229
    %1621 = vmatprep.subr.mxu0 0.0
    %1622 = vmatpush1.msra.mxu0 %v230
    %1623 = vmatprep.subr.mxu0 0.0
    %1624 = vmatpush1.msra.mxu0 %v231
    %1625 = vmatprep.subr.mxu0 0.0
    %1626 = vmatpush1.msra.mxu0 %v232
    %1627 = vmatprep.subr.mxu0 0.0
    %1628 = vmatpush1.msra.mxu0 0.0
    %1629 = vmatprep.subr.mxu0 0.0
    %1630 = vmatpush1.msra.mxu0 0.0
    %1631 = vmatprep.subr.mxu0 0.0
    %1632 = vmatpush1.msra.mxu0 0.0
    %1633 = vmatprep.subr.mxu0 0.0
    %1634 = vmatpush1.msra.mxu0 0.0
    %1635 = vmatprep.subr.mxu0 0.0
    %1636 = vmatpush1.msra.mxu0 0.0
    %1637 = vmatprep.subr.mxu0 0.0
    %1638 = vmatpush1.msra.mxu0 0.0
    %1639 = vmatprep.subr.mxu0 0.0
    %1640 = vmatpush1.msra.mxu0 0.0
    %1641 = vmatprep.subr.mxu0 0.0
    %1642 = vmatpush1.msra.mxu0 0.0
    %1643 = vmatprep.subr.mxu0 0.0
    %1644 = vmatpush1.msra.mxu0 0.0
    %1645 = vmatprep.subr.mxu0 0.0
    %1646 = vmatpush1.msra.mxu0 0.0
    %1647 = vmatprep.subr.mxu0 0.0
    %1648 = vmatpush1.msra.mxu0 0.0
    %1649 = vmatprep.subr.mxu0 0.0
    %1650 = vmatpush1.msra.mxu0 0.0
    %1651 = vmatprep.subr.mxu0 0.0
    %1652 = vmatpush1.msra.mxu0 0.0
    %1653 = vmatprep.subr.mxu0 0.0
    %1654 = vmatpush1.msra.mxu0 0.0
    %1655 = vmatprep.subr.mxu0 0.0
    %1656 = vmatpush1.msra.mxu0 0.0
    %1657 = vmatprep.subr.mxu0 0.0
    %1658 = vmatpush1.msra.mxu0 0.0
    %1659 = vmatprep.subr.mxu0 0.0
    %1660 = vmatpush1.msra.mxu0 0.0
    %1661 = vmatprep.subr.mxu0 0.0
    %1662 = vmatpush1.msra.mxu0 0.0
    %1663 = vmatprep.subr.mxu0 0.0
    %1664 = vmatpush1.msra.mxu0 0.0
    %1665 = vmatprep.subr.mxu0 0.0
    %1666 = vmatpush1.msra.mxu0 0.0
    %1667 = vmatprep.subr.mxu0 0.0
    %1668 = vmatpush1.msra.mxu0 0.0
    %1669 = vmatprep.subr.mxu0 0.0
    %1670 = vmatpush1.msra.mxu0 0.0
    %1671 = vmatprep.subr.mxu0 0.0
    %1672 = vmatpush1.msra.mxu0 0.0
    %1673 = vmatprep.subr.mxu0 0.0
    %1674 = vmatpush1.msra.mxu0 0.0
    %1675 = vmatprep.subr.mxu0 0.0
    %1676 = vmatpush1.msra.mxu0 0.0
    %1677 = vmatprep.subr.mxu0 0.0
    %1678 = vmatpush1.msra.mxu0 0.0
    %1679 = vmatprep.subr.mxu0 0.0
    %1680 = vmatpush1.msra.mxu0 0.0
    %1681 = vmatprep.subr.mxu0 0.0
    %1682 = vmatpush1.msra.mxu0 0.0
    %1683 = vmatprep.mubr.f32.mxu0 0.0
    %1684 = vmatmul.mubr.f32.gmra.mrb[0].mxu0 %v1617
    %v1685 = vpop.f32.mrb[0].mxu0
    %v1686 = vadd.f32 0.0, %v1685
    %v1687 = vpop.f32.mrb[0].mxu0
    %1688 = vdwg.mxu0
    %v1689 = vadd.f32 %v1614, %v1686
    %v1690 = vxor.u32 %v1689, 2147483648
    %v1691 = vmul.f32 %v1690, 1.442695
    %v1692 = vpow.pop %v1691
    %v1693 = vadd.f32 %v1692, 1.0
    %v1694 = vrcp.pop %v1693
    %v1695 = vmul.f32 1.0, %v1694
    %v1696 = vtanh.pop %v1689
    %v1697 = vmul.f32 %v1695, %v1499
    %1699 = vrot.lane.b32.xlu0 %v1696, 64
    %v1700 = vpop.permute.xlu0 %1699
    %v1702 = vmul.f32 %v1695, %v1700
    %1704 = vrot.lane.b32.xlu0 %v1702, 32
    %v1705 = vpop.permute.xlu0 %1704
    %v1707 = vadd.f32 %v1697, %v1705
    %v1708 = vtanh.pop %v1707
    %1710 = vrot.lane.b32.xlu0 %v1708, 64
    %v1711 = vpop.permute.xlu0 %1710
    %v1713 = vmul.f32 %v1695, %v1711
    %1715 = vrot.lane.b32.xlu0 %v1713, 64
    %v1716 = vpop.permute.xlu0 %1715
    %1718 = vst.msk [vmem:[%s552] sm:$0xff] %vm445, %v1716
    %v1719 = vld [vmem:[%s343] sm:$0xff]
    %v1720 = vsel %vm237, %v1611, 0
    %1722 = vmatprep.subr.mxu0 0.0
    %1723 = vmatpush1.msra.mxu0 %v225
    %1724 = vmatprep.subr.mxu0 0.0
    %1725 = vmatpush1.msra.mxu0 %v226
    %1726 = vmatprep.subr.mxu0 0.0
    %1727 = vmatpush1.msra.mxu0 %v227
    %1728 = vmatprep.subr.mxu0 0.0
    %1729 = vmatpush1.msra.mxu0 %v228
    %1730 = vmatprep.subr.mxu0 0.0
    %1731 = vmatpush1.msra.mxu0 0.0
    %1732 = vmatprep.subr.mxu0 0.0
    %1733 = vmatpush1.msra.mxu0 0.0
    %1734 = vmatprep.subr.mxu0 0.0
    %1735 = vmatpush1.msra.mxu0 0.0
    %1736 = vmatprep.subr.mxu0 0.0
    %1737 = vmatpush1.msra.mxu0 0.0
    %1738 = vmatprep.subr.mxu0 0.0
    %1739 = vmatpush1.msra.mxu0 0.0
    %1740 = vmatprep.subr.mxu0 0.0
    %1741 = vmatpush1.msra.mxu0 0.0
    %1742 = vmatprep.subr.mxu0 0.0
    %1743 = vmatpush1.msra.mxu0 0.0
    %1744 = vmatprep.subr.mxu0 0.0
    %1745 = vmatpush1.msra.mxu0 0.0
    %1746 = vmatprep.subr.mxu0 0.0
    %1747 = vmatpush1.msra.mxu0 0.0
    %1748 = vmatprep.subr.mxu0 0.0
    %1749 = vmatpush1.msra.mxu0 0.0
    %1750 = vmatprep.subr.mxu0 0.0
    %1751 = vmatpush1.msra.mxu0 0.0
    %1752 = vmatprep.subr.mxu0 0.0
    %1753 = vmatpush1.msra.mxu0 0.0
    %1754 = vmatprep.subr.mxu0 0.0
    %1755 = vmatpush1.msra.mxu0 0.0
    %1756 = vmatprep.subr.mxu0 0.0
    %1757 = vmatpush1.msra.mxu0 0.0
    %1758 = vmatprep.subr.mxu0 0.0
    %1759 = vmatpush1.msra.mxu0 0.0
    %1760 = vmatprep.subr.mxu0 0.0
    %1761 = vmatpush1.msra.mxu0 0.0
    %1762 = vmatprep.subr.mxu0 0.0
    %1763 = vmatpush1.msra.mxu0 0.0
    %1764 = vmatprep.subr.mxu0 0.0
    %1765 = vmatpush1.msra.mxu0 0.0
    %1766 = vmatprep.subr.mxu0 0.0
    %1767 = vmatpush1.msra.mxu0 0.0
    %1768 = vmatprep.subr.mxu0 0.0
    %1769 = vmatpush1.msra.mxu0 0.0
    %1770 = vmatprep.subr.mxu0 0.0
    %1771 = vmatpush1.msra.mxu0 0.0
    %1772 = vmatprep.subr.mxu0 0.0
    %1773 = vmatpush1.msra.mxu0 0.0
    %1774 = vmatprep.subr.mxu0 0.0
    %1775 = vmatpush1.msra.mxu0 0.0
    %1776 = vmatprep.subr.mxu0 0.0
    %1777 = vmatpush1.msra.mxu0 0.0
    %1778 = vmatprep.subr.mxu0 0.0
    %1779 = vmatpush1.msra.mxu0 0.0
    %1780 = vmatprep.subr.mxu0 0.0
    %1781 = vmatpush1.msra.mxu0 0.0
    %1782 = vmatprep.subr.mxu0 0.0
    %1783 = vmatpush1.msra.mxu0 0.0
    %1784 = vmatprep.subr.mxu0 0.0
    %1785 = vmatpush1.msra.mxu0 0.0
    %1786 = vmatprep.mubr.f32.mxu0 0.0
    %1787 = vmatmul.mubr.f32.gmra.mrb[0].mxu0 %v1720
    %v1788 = vpop.f32.mrb[0].mxu0
    %v1789 = vadd.f32 0.0, %v1788
    %v1790 = vpop.f32.mrb[0].mxu0
    %1791 = vdwg.mxu0
    %v1792 = vadd.f32 %v1719, %v1789
    %v1793 = vxor.u32 %v1792, 2147483648
    %v1794 = vmul.f32 %v1793, 1.442695
    %v1795 = vpow.pop %v1794
    %v1796 = vadd.f32 %v1795, 1.0
    %v1797 = vrcp.pop %v1796
    %v1798 = vmul.f32 1.0, %v1797
    %v1799 = vtanh.pop %v1792
    %v1800 = vmul.f32 %v1798, %v1602
    %1802 = vrot.lane.b32.xlu0 %v1799, 64
    %v1803 = vpop.permute.xlu0 %1802
    %v1805 = vmul.f32 %v1798, %v1803
    %1807 = vrot.lane.b32.xlu0 %v1805, 32
    %v1808 = vpop.permute.xlu0 %1807
    %v1810 = vadd.f32 %v1800, %v1808
    %v1811 = vtanh.pop %v1810
    %1813 = vrot.lane.b32.xlu0 %v1811, 64
    %v1814 = vpop.permute.xlu0 %1813
    %v1816 = vmul.f32 %v1798, %v1814
    %1818 = vrot.lane.b32.xlu0 %v1816, 32
    %v1819 = vpop.permute.xlu0 %1818
    %1821 = vst.msk [vmem:[%s444] sm:$0xff] %vm237, %v1819
    %v1822 = vld [vmem:[%s235 + $0x8] sm:$0xff]
    %1823 = vrot.lane.b32.xlu0 %v1713, 32
    %v1824 = vpop.permute.xlu0 %1823
    %v1825 = vsel %vm237, %v1824, 0
    %1827 = vmatprep.subr.mxu0 0.0
    %1828 = vmatpush1.msra.mxu0 %v229
    %1829 = vmatprep.subr.mxu0 0.0
    %1830 = vmatpush1.msra.mxu0 %v230
    %1831 = vmatprep.subr.mxu0 0.0
    %1832 = vmatpush1.msra.mxu0 %v231
    %1833 = vmatprep.subr.mxu0 0.0
    %1834 = vmatpush1.msra.mxu0 %v232
    %1835 = vmatprep.subr.mxu0 0.0
    %1836 = vmatpush1.msra.mxu0 0.0
    %1837 = vmatprep.subr.mxu0 0.0
    %1838 = vmatpush1.msra.mxu0 0.0
    %1839 = vmatprep.subr.mxu0 0.0
    %1840 = vmatpush1.msra.mxu0 0.0
    %1841 = vmatprep.subr.mxu0 0.0
    %1842 = vmatpush1.msra.mxu0 0.0
    %1843 = vmatprep.subr.mxu0 0.0
    %1844 = vmatpush1.msra.mxu0 0.0
    %1845 = vmatprep.subr.mxu0 0.0
    %1846 = vmatpush1.msra.mxu0 0.0
    %1847 = vmatprep.subr.mxu0 0.0
    %1848 = vmatpush1.msra.mxu0 0.0
    %1849 = vmatprep.subr.mxu0 0.0
    %1850 = vmatpush1.msra.mxu0 0.0
    %1851 = vmatprep.subr.mxu0 0.0
    %1852 = vmatpush1.msra.mxu0 0.0
    %1853 = vmatprep.subr.mxu0 0.0
    %1854 = vmatpush1.msra.mxu0 0.0
    %1855 = vmatprep.subr.mxu0 0.0
    %1856 = vmatpush1.msra.mxu0 0.0
    %1857 = vmatprep.subr.mxu0 0.0
    %1858 = vmatpush1.msra.mxu0 0.0
    %1859 = vmatprep.subr.mxu0 0.0
    %1860 = vmatpush1.msra.mxu0 0.0
    %1861 = vmatprep.subr.mxu0 0.0
    %1862 = vmatpush1.msra.mxu0 0.0
    %1863 = vmatprep.subr.mxu0 0.0
    %1864 = vmatpush1.msra.mxu0 0.0
    %1865 = vmatprep.subr.mxu0 0.0
    %1866 = vmatpush1.msra.mxu0 0.0
    %1867 = vmatprep.subr.mxu0 0.0
    %1868 = vmatpush1.msra.mxu0 0.0
    %1869 = vmatprep.subr.mxu0 0.0
    %1870 = vmatpush1.msra.mxu0 0.0
    %1871 = vmatprep.subr.mxu0 0.0
    %1872 = vmatpush1.msra.mxu0 0.0
    %1873 = vmatprep.subr.mxu0 0.0
    %1874 = vmatpush1.msra.mxu0 0.0
    %1875 = vmatprep.subr.mxu0 0.0
    %1876 = vmatpush1.msra.mxu0 0.0
    %1877 = vmatprep.subr.mxu0 0.0
    %1878 = vmatpush1.msra.mxu0 0.0
    %1879 = vmatprep.subr.mxu0 0.0
    %1880 = vmatpush1.msra.mxu0 0.0
    %1881 = vmatprep.subr.mxu0 0.0
    %1882 = vmatpush1.msra.mxu0 0.0
    %1883 = vmatprep.subr.mxu0 0.0
    %1884 = vmatpush1.msra.mxu0 0.0
    %1885 = vmatprep.subr.mxu0 0.0
    %1886 = vmatpush1.msra.mxu0 0.0
    %1887 = vmatprep.subr.mxu0 0.0
    %1888 = vmatpush1.msra.mxu0 0.0
    %1889 = vmatprep.subr.mxu0 0.0
    %1890 = vmatpush1.msra.mxu0 0.0
    %1891 = vmatprep.mubr.f32.mxu0 0.0
    %1892 = vmatmul.mubr.f32.gmra.mrb[0].mxu0 %v1825
    %v1893 = vpop.f32.mrb[0].mxu0
    %v1894 = vadd.f32 0.0, %v1893
    %v1895 = vpop.f32.mrb[0].mxu0
    %1896 = vdwg.mxu0
    %v1897 = vadd.f32 %v1822, %v1894
    %v1898 = vxor.u32 %v1897, 2147483648
    %v1899 = vmul.f32 %v1898, 1.442695
    %v1900 = vpow.pop %v1899
    %v1901 = vadd.f32 %v1900, 1.0
    %v1902 = vrcp.pop %v1901
    %v1903 = vmul.f32 1.0, %v1902
    %v1904 = vtanh.pop %v1897
    %v1905 = vmul.f32 %v1903, %v1707
    %1907 = vrot.lane.b32.xlu0 %v1904, 64
    %v1908 = vpop.permute.xlu0 %1907
    %v1910 = vmul.f32 %v1903, %v1908
    %1912 = vrot.lane.b32.xlu0 %v1910, 32
    %v1913 = vpop.permute.xlu0 %1912
    %v1915 = vadd.f32 %v1905, %v1913
    %v1916 = vtanh.pop %v1915
    %1918 = vrot.lane.b32.xlu0 %v1916, 64
    %v1919 = vpop.permute.xlu0 %1918
    %v1921 = vmul.f32 %v1903, %v1919
    %1923 = vrot.lane.b32.xlu0 %v1921, 64
    %v1924 = vpop.permute.xlu0 %1923
    %1926 = vst.msk [vmem:[#allocation3] sm:$0xff] %vm445, %v1924
    %v1927 = vld [vmem:[%s444] sm:$0xff]
    %v1928 = vld [vmem:[%s5] sm:$0xff]
    %v1929 = vld [vmem:[%s5 + $0x8] sm:$0xff]
    %v1930 = vld [vmem:[%s5 + $0x10] sm:$0xff]
    %v1931 = vld [vmem:[%s5 + $0x18] sm:$0xff]
    %v1932 = vld [vmem:[%s5 + $0x20] sm:$0xff]
    %v1933 = vld [vmem:[%s5 + $0x28] sm:$0xff]
    %v1934 = vld [vmem:[%s5 + $0x30] sm:$0xff]
    %v1935 = vld [vmem:[%s5 + $0x38] sm:$0xff]
    %v1936 = vld [vmem:[%s6] sm:$0x1]
    %v1938 = vlaneseq
    %v1939 = vshrl.u32 %v1938, 7
    %v1940 = vsub.s32 0, %v1939
    %v1941 = vrot.slane %v1936, %v1940
    %v1944 = vsel %vm71, %v1927, 0
    %1946 = vmatprep.subr.mxu0 0.0
    %1947 = vmatpush1.msra.mxu0 %v1928
    %1948 = vmatprep.subr.mxu0 0.0
    %1949 = vmatpush1.msra.mxu0 %v1929
    %1950 = vmatprep.subr.mxu0 0.0
    %1951 = vmatpush1.msra.mxu0 %v1930
    %1952 = vmatprep.subr.mxu0 0.0
    %1953 = vmatpush1.msra.mxu0 %v1931
    %1954 = vmatprep.subr.mxu0 0.0
    %1955 = vmatpush1.msra.mxu0 %v1932
    %1956 = vmatprep.subr.mxu0 0.0
    %1957 = vmatpush1.msra.mxu0 %v1933
    %1958 = vmatprep.subr.mxu0 0.0
    %1959 = vmatpush1.msra.mxu0 %v1934
    %1960 = vmatprep.subr.mxu0 0.0
    %1961 = vmatpush1.msra.mxu0 %v1935
    %1962 = vmatprep.subr.mxu0 0.0
    %1963 = vmatpush1.msra.mxu0 0.0
    %1964 = vmatprep.subr.mxu0 0.0
    %1965 = vmatpush1.msra.mxu0 0.0
    %1966 = vmatprep.subr.mxu0 0.0
    %1967 = vmatpush1.msra.mxu0 0.0
    %1968 = vmatprep.subr.mxu0 0.0
    %1969 = vmatpush1.msra.mxu0 0.0
    %1970 = vmatprep.subr.mxu0 0.0
    %1971 = vmatpush1.msra.mxu0 0.0
    %1972 = vmatprep.subr.mxu0 0.0
    %1973 = vmatpush1.msra.mxu0 0.0
    %1974 = vmatprep.subr.mxu0 0.0
    %1975 = vmatpush1.msra.mxu0 0.0
    %1976 = vmatprep.subr.mxu0 0.0
    %1977 = vmatpush1.msra.mxu0 0.0
    %1978 = vmatprep.subr.mxu0 0.0
    %1979 = vmatpush1.msra.mxu0 0.0
    %1980 = vmatprep.subr.mxu0 0.0
    %1981 = vmatpush1.msra.mxu0 0.0
    %1982 = vmatprep.subr.mxu0 0.0
    %1983 = vmatpush1.msra.mxu0 0.0
    %1984 = vmatprep.subr.mxu0 0.0
    %1985 = vmatpush1.msra.mxu0 0.0
    %1986 = vmatprep.subr.mxu0 0.0
    %1987 = vmatpush1.msra.mxu0 0.0
    %1988 = vmatprep.subr.mxu0 0.0
    %1989 = vmatpush1.msra.mxu0 0.0
    %1990 = vmatprep.subr.mxu0 0.0
    %1991 = vmatpush1.msra.mxu0 0.0
    %1992 = vmatprep.subr.mxu0 0.0
    %1993 = vmatpush1.msra.mxu0 0.0
    %1994 = vmatprep.subr.mxu0 0.0
    %1995 = vmatpush1.msra.mxu0 0.0
    %1996 = vmatprep.subr.mxu0 0.0
    %1997 = vmatpush1.msra.mxu0 0.0
    %1998 = vmatprep.subr.mxu0 0.0
    %1999 = vmatpush1.msra.mxu0 0.0
    %2000 = vmatprep.subr.mxu0 0.0
    %2001 = vmatpush1.msra.mxu0 0.0
    %2002 = vmatprep.subr.mxu0 0.0
    %2003 = vmatpush1.msra.mxu0 0.0
    %2004 = vmatprep.subr.mxu0 0.0
    %2005 = vmatpush1.msra.mxu0 0.0
    %2006 = vmatprep.subr.mxu0 0.0
    %2007 = vmatpush1.msra.mxu0 0.0
    %2008 = vmatprep.subr.mxu0 0.0
    %2009 = vmatpush1.msra.mxu0 0.0
    %2010 = vmatprep.mubr.f32.mxu0 0.0
    %2011 = vmatmul.mubr.f32.gmra.mrb[0].mxu0 %v1944
    %v2012 = vpop.f32.mrb[0].mxu0
    %v2013 = vadd.f32 %v1941, %v2012
    %v2014 = vpop.f32.mrb[0].mxu0
    %2015 = vdwg.mxu0
    %v2016 = vmax.f32 %v2013, 0.0
    %v2017 = vld [vmem:[%s7] sm:$0xff]
    %v2018 = vld [vmem:[%s7 + $0x8] sm:$0xff]
    %v2019 = vld [vmem:[%s7 + $0x10] sm:$0xff]
    %v2020 = vld [vmem:[%s7 + $0x18] sm:$0xff]
    %v2021 = vld [vmem:[%s7 + $0x20] sm:$0xff]
    %v2022 = vld [vmem:[%s7 + $0x28] sm:$0xff]
    %v2023 = vld [vmem:[%s7 + $0x30] sm:$0xff]
    %v2024 = vld [vmem:[%s7 + $0x38] sm:$0xff]
    %v2025 = vld [vmem:[%s7 + $0x40] sm:$0xff]
    %v2026 = vld [vmem:[%s7 + $0x48] sm:$0xff]
    %v2027 = vld [vmem:[%s7 + $0x50] sm:$0xff]
    %v2028 = vld [vmem:[%s7 + $0x58] sm:$0xff]
    %v2029 = vld [vmem:[%s7 + $0x60] sm:$0xff]
    %v2030 = vld [vmem:[%s7 + $0x68] sm:$0xff]
    %v2031 = vld [vmem:[%s7 + $0x70] sm:$0xff]
    %v2032 = vld [vmem:[%s7 + $0x78] sm:$0xff]
    %v2033 = vld [vmem:[%s8] sm:$0x1]
    %v2035 = vlaneseq
    %v2036 = vshrl.u32 %v2035, 7
    %v2037 = vsub.s32 0, %v2036
    %v2038 = vrot.slane %v2033, %v2037
    %2040 = vmatprep.subr.mxu0 0.0
    %2041 = vmatpush1.msra.mxu0 %v2017
    %2042 = vmatprep.subr.mxu0 0.0
    %2043 = vmatpush1.msra.mxu0 %v2018
    %2044 = vmatprep.subr.mxu0 0.0
    %2045 = vmatpush1.msra.mxu0 %v2019
    %2046 = vmatprep.subr.mxu0 0.0
    %2047 = vmatpush1.msra.mxu0 %v2020
    %2048 = vmatprep.subr.mxu0 0.0
    %2049 = vmatpush1.msra.mxu0 %v2021
    %2050 = vmatprep.subr.mxu0 0.0
    %2051 = vmatpush1.msra.mxu0 %v2022
    %2052 = vmatprep.subr.mxu0 0.0
    %2053 = vmatpush1.msra.mxu0 %v2023
    %2054 = vmatprep.subr.mxu0 0.0
    %2055 = vmatpush1.msra.mxu0 %v2024
    %2056 = vmatprep.subr.mxu0 0.0
    %2057 = vmatpush1.msra.mxu0 %v2025
    %2058 = vmatprep.subr.mxu0 0.0
    %2059 = vmatpush1.msra.mxu0 %v2026
    %2060 = vmatprep.subr.mxu0 0.0
    %2061 = vmatpush1.msra.mxu0 %v2027
    %2062 = vmatprep.subr.mxu0 0.0
    %2063 = vmatpush1.msra.mxu0 %v2028
    %2064 = vmatprep.subr.mxu0 0.0
    %2065 = vmatpush1.msra.mxu0 %v2029
    %2066 = vmatprep.subr.mxu0 0.0
    %2067 = vmatpush1.msra.mxu0 %v2030
    %2068 = vmatprep.subr.mxu0 0.0
    %2069 = vmatpush1.msra.mxu0 %v2031
    %2070 = vmatprep.subr.mxu0 0.0
    %2071 = vmatpush1.msra.mxu0 %v2032
    %2072 = vmatprep.subr.mxu0 0.0
    %2073 = vmatpush1.msra.mxu0 0.0
    %2074 = vmatprep.subr.mxu0 0.0
    %2075 = vmatpush1.msra.mxu0 0.0
    %2076 = vmatprep.subr.mxu0 0.0
    %2077 = vmatpush1.msra.mxu0 0.0
    %2078 = vmatprep.subr.mxu0 0.0
    %2079 = vmatpush1.msra.mxu0 0.0
    %2080 = vmatprep.subr.mxu0 0.0
    %2081 = vmatpush1.msra.mxu0 0.0
    %2082 = vmatprep.subr.mxu0 0.0
    %2083 = vmatpush1.msra.mxu0 0.0
    %2084 = vmatprep.subr.mxu0 0.0
    %2085 = vmatpush1.msra.mxu0 0.0
    %2086 = vmatprep.subr.mxu0 0.0
    %2087 = vmatpush1.msra.mxu0 0.0
    %2088 = vmatprep.subr.mxu0 0.0
    %2089 = vmatpush1.msra.mxu0 0.0
    %2090 = vmatprep.subr.mxu0 0.0
    %2091 = vmatpush1.msra.mxu0 0.0
    %2092 = vmatprep.subr.mxu0 0.0
    %2093 = vmatpush1.msra.mxu0 0.0
    %2094 = vmatprep.subr.mxu0 0.0
    %2095 = vmatpush1.msra.mxu0 0.0
    %2096 = vmatprep.subr.mxu0 0.0
    %2097 = vmatpush1.msra.mxu0 0.0
    %2098 = vmatprep.subr.mxu0 0.0
    %2099 = vmatpush1.msra.mxu0 0.0
    %2100 = vmatprep.subr.mxu0 0.0
    %2101 = vmatpush1.msra.mxu0 0.0
    %2102 = vmatprep.subr.mxu0 0.0
    %2103 = vmatpush1.msra.mxu0 0.0
    %2104 = vmatprep.mubr.f32.mxu0 0.0
    %2105 = vmatmul.mubr.f32.gmra.mrb[0].mxu0 %v2016
    %v2106 = vpop.f32.mrb[0].mxu0
    %v2107 = vadd.f32 %v2038, %v2106
    %v2108 = vpop.f32.mrb[0].mxu0
    %2109 = vdwg.mxu0
    %vm2110 = vcmask 39936
    %2111 = vst.msk [vmem:[%s10] sm:$0xff] %vm2110, %v2107
    // Predicated region
    $region38: #{lstm_model_forward.5} parent=1 // pred_check
      _
    $region39: #{lstm_model_forward.5} parent=1 // pred_check_branch
      %2113 = sbr.rel (0) target = $region41
    $region40: #{lstm_model_forward.5} parent=1 // pred_region
      %s2115 = ssub.s32 1024, 1024
      %2116 = vsyncadd [#allocation4], %s2115
      %s2117 = sshll.u32 [#allocation3], 4
      %s2118 = int_to_ptr.vmem [resolvable:$true] %s2117
      %2123 = dma.vmem_to_hbm [thread:$0]  %s2118, 1024, %s9, [#allocation4], 128, 128, 8
    $region41: #{lstm_model_forward.5} parent=1 // pred_fallthru
      _
    // Predicated region
    $region42: #{lstm_model_forward.5} parent=1 // pred_check
      _
    $region43: #{lstm_model_forward.5} parent=1 // pred_check_branch
      %2125 = sbr.rel (0) target = $region45
    $region44: #{lstm_model_forward.5} parent=1 // pred_region
      _
    $region45: #{lstm_model_forward.5} parent=1 // pred_fallthru
      _
    // Predicated region
    $region46: #{lstm_model_forward.5} parent=1 // pred_check
      _
    $region47: #{lstm_model_forward.5} parent=1 // pred_check_branch
      %2127 = sbr.rel (0) target = $region49
    $region48: #{lstm_model_forward.5} parent=1 // pred_region
      %2128 = dma.done [#allocation4], 1024
    $region49: #{lstm_model_forward.5} parent=1 // pred_fallthru
      _
    // Predicated region
    $region50: #{lstm_model_forward.5} parent=1 // pred_check
      _
    $region51: #{lstm_model_forward.5} parent=1 // pred_check_branch
      %2130 = sbr.rel (0) target = $region53
    $region52: #{lstm_model_forward.5} parent=1 // pred_region
      _
    $region53: #{lstm_model_forward.5} parent=1 // pred_fallthru
      _
    %2131 = vsyncpa [#allocation4], 1

</llo_original>
